<compile_context>
chip_gen: v7x
topology: tpu7x:2x2x1
jax: 0.10.0
libtpu: 0.0.40
codegen_flags: <defaults>
</compile_context>

<pallas_src>
import jax
import jax.numpy as jnp
from jax.experimental import pallas as pl
from jax.experimental.pallas import tpu as pltpu

# ---- model hyper-parameters (4*HIDDEN must equal 512 to match the hard-coded
#      nn.Linear(512, 512) intent decoder in the PyTorch module) ----
VOCAB = 50
VOCAB_PAD = 64          # zero-padded rows: tile-friendly one-hot / matmul K
EMBED = 32
HIDDEN = 128
N_LAYERS = 2
N_LABELS = 8
PAD_IDX = 1

BS = 2
SEQ = 8

_VMEM = pl.BlockSpec(memory_space=pltpu.MemorySpace.VMEM)
_ANY = pl.BlockSpec(memory_space=pl.ANY)


# --------------------------------------------------------------------------
# Fused forward kernel: embedding -> 2-layer bi-LSTM -> attention -> decoder
# --------------------------------------------------------------------------
def fused_forward_kernel(ids_ref, emb_ref, h0_ref, c0_ref,
                         wih0_ref, whh0_ref, b0_ref, b1_ref,
                         mask_ref,
                         bd1_ref, wd2_ref, bd2_ref,
                         wih1_hbm, whh1_hbm, watt_hbm, wd1_hbm,
                         out_ref,
                         enc0_ref, enc1_ref,
                         wih1_v, whh1_v, watt_v, wd1_v, sem):
    bs = h0_ref.shape[0] // (2 * N_LAYERS)     # h0 flattened to [(layer,dir,b), H]
    hid = h0_ref.shape[1]
    sb = ids_ref.shape[0]                       # seq*bs, seq-major rows (t*bs + b)
    seq = sb // bs
    vocab = emb_ref.shape[0]
    h4 = 4 * hid

    # ---- overlap the late-use weight DMAs with embedding + layer-0 compute ----
    cp_wih1 = pltpu.make_async_copy(wih1_hbm, wih1_v, sem.at[0]); cp_wih1.start()
    cp_whh1 = pltpu.make_async_copy(whh1_hbm, whh1_v, sem.at[1]); cp_whh1.start()
    cp_watt = pltpu.make_async_copy(watt_hbm, watt_v, sem.at[2]); cp_watt.start()
    cp_wd1 = pltpu.make_async_copy(wd1_hbm, wd1_v, sem.at[3]); cp_wd1.start()

    # ---- embedding lookup as a one-hot matmul (bf16 MXU, f32 accumulate) ----
    ids = ids_ref[...]                                               # [seq*bs, 1] int32
    iota = jax.lax.broadcasted_iota(jnp.int32, (sb, vocab), 1)
    onehot = (ids == iota).astype(jnp.bfloat16)                      # [seq*bs, VOCAB_PAD]
    x0 = jnp.dot(onehot, emb_ref[...],
                 preferred_element_type=jnp.float32)                 # [seq*bs, E] f32

    # ---- fused bidirectional LSTM cell on STACKED [2*bs, 4H] gates ----
    # packed gate order (i, f, o, g): one sigmoid slice + one tanh slice
    def cell(gates, c):
        sig = jax.nn.sigmoid(gates[:, 0:3 * hid])
        g = jnp.tanh(gates[:, 3 * hid:4 * hid])
        c_new = sig[:, hid:2 * hid] * c + sig[:, 0:hid] * g
        h_new = sig[:, 2 * hid:3 * hid] * jnp.tanh(c_new)
        return h_new, c_new

    # ---- one bidirectional layer; fwd/bwd recurrences fully fused per step ----
    def run_layer(gin, w_hh, h_init, c_init, enc_ref):
        # gin:  [seq*bs, 8H] f32  (W_ih x + b, all timesteps, both directions)
        # h/c:  [2*bs, H] stacked (rows 0:bs = forward, bs:2bs = backward)
        h, c = h_init, c_init
        for s in range(seq):                                          # unrolled
            tf = s
            tb = seq - 1 - s
            rec = jnp.dot(h.astype(jnp.bfloat16), w_hh,
                          preferred_element_type=jnp.float32)         # [2*bs, 8H]
            gates = jnp.concatenate(
                [gin[tf * bs:(tf + 1) * bs, 0:h4] + rec[0:bs, 0:h4],
                 gin[tb * bs:(tb + 1) * bs, h4:2 * h4] + rec[bs:2 * bs, h4:2 * h4]],
                axis=0)                                                # [2*bs, 4H]
            h, c = cell(gates, c)
            # write outputs straight to VMEM scratch (lane-aligned 128-wide stores)
            enc_ref[tf * bs:(tf + 1) * bs, 0:hid] = h[0:bs, :]
            enc_ref[tb * bs:(tb + 1) * bs, hid:2 * hid] = h[bs:2 * bs, :]
        # final h: rows 0:bs = fwd output at t=seq-1, rows bs:2bs = bwd output at t=0
        return h

    # ---- layer 0 ----
    gin0 = jnp.dot(x0.astype(jnp.bfloat16), wih0_ref[...],
                   preferred_element_type=jnp.float32) + b0_ref[...]  # [seq*bs, 8H]
    run_layer(gin0, whh0_ref[...], h0_ref[0:2 * bs], c0_ref[0:2 * bs], enc0_ref)

    # ---- layer 1 (its weights were DMA'd behind layer 0) ----
    cp_wih1.wait()
    cp_whh1.wait()
    x1 = enc0_ref[...].astype(jnp.bfloat16)                           # [seq*bs, 2H]
    gin1 = jnp.dot(x1, wih1_v[...],
                   preferred_element_type=jnp.float32) + b1_ref[...]
    h_last = run_layer(gin1, whh1_v[...], h0_ref[2 * bs:4 * bs],
                       c0_ref[2 * bs:4 * bs], enc1_ref)

    # context = cat(forward output at last step, backward output at t=0)
    context = jnp.concatenate([h_last[0:bs, :], h_last[bs:2 * bs, :]], axis=-1)  # [bs, 2H]

    # ---- attention (method='general'); same masking semantics as the reference ----
    cp_watt.wait()
    enc = jnp.stack([enc1_ref[t * bs:(t + 1) * bs, :] for t in range(seq)],
                    axis=1)                                            # [bs, seq, 2H]
    mask = mask_ref[...]                                               # [bs, seq]
    proj = jnp.dot(context.astype(jnp.bfloat16), watt_v[...],
                   preferred_element_type=jnp.float32)                 # [bs, 2H]
    score = jnp.sum(enc * proj[:, None, :], axis=-1)                   # [bs, seq]
    score = score * mask
    score = score - jnp.max(score, axis=-1, keepdims=True)             # stable softmax
    e = jnp.exp(score)
    att_w = e * pl.reciprocal(jnp.sum(e, axis=-1, keepdims=True), approx=True)
    att_w = att_w * mask
    att_ctx = jnp.sum(enc * att_w[:, :, None], axis=1)                 # [bs, 2H]

    # ---- intent decoder: Linear(512,512) -> LeakyReLU(0.2) -> Linear(512,n) -> sigmoid ----
    cp_wd1.wait()
    hidden = jnp.concatenate([att_ctx, context], axis=-1)              # [bs, 4H] == [bs, 512]
    d1 = jnp.dot(hidden.astype(jnp.bfloat16), wd1_v[...],
                 preferred_element_type=jnp.float32) + bd1_ref[...]
    d1 = jnp.where(d1 >= 0, d1, 0.2 * d1)
    d2 = jnp.dot(d1.astype(jnp.bfloat16), wd2_ref[...],
                 preferred_element_type=jnp.float32) + bd2_ref[...]
    out_ref[...] = jax.nn.sigmoid(d2)


# --------------------------------------------------------------------------
# Wrapper: seq-major ids, flattened h0/c0, single grid-less pallas_call
# --------------------------------------------------------------------------
def multi_intent_forward(params, word_vector, mask=None):
    bs, seq_len = word_vector.shape
    sb = seq_len * bs
    h = HIDDEN

    # seq-major flat ids: row t*bs + b  <=>  PyTorch's transpose(embed, 0, 1)
    ids = word_vector.astype(jnp.int32).T.reshape(sb, 1)

    if mask is None:
        mask = jnp.ones((bs, seq_len), dtype=jnp.float32)             # == no mask
    mask = mask.astype(jnp.float32)

    # PyTorch index convention [layer*2 + dir, b, H] flattened to [(layer,dir,b), H]
    h0 = params["h0"].reshape(N_LAYERS * 2 * bs, h)
    c0 = params["c0"].reshape(N_LAYERS * 2 * bs, h)

    vmem_inputs = [
        ids, params["embedding"], h0, c0,
        params["w_ih0"], params["w_hh0"], params["b0"], params["b1"],
        mask,
        params["b_d1"], params["w_d2"], params["b_d2"],
    ]
    hbm_inputs = [params["w_ih1"], params["w_hh1"], params["w_att"], params["w_d1"]]
    inputs = vmem_inputs + hbm_inputs
    in_specs = [_VMEM] * len(vmem_inputs) + [_ANY] * len(hbm_inputs)

    scratch_shapes = [
        pltpu.VMEM((sb, 2 * h), jnp.float32),       # layer-0 encoder outputs
        pltpu.VMEM((sb, 2 * h), jnp.float32),       # layer-1 encoder outputs
        pltpu.VMEM((2 * h, 8 * h), jnp.bfloat16),   # w_ih1 landing buffer
        pltpu.VMEM((h, 8 * h), jnp.bfloat16),       # w_hh1 landing buffer
        pltpu.VMEM((2 * h, 2 * h), jnp.bfloat16),   # w_att landing buffer
        pltpu.VMEM((4 * h, 4 * h), jnp.bfloat16),   # w_d1  landing buffer
        pltpu.SemaphoreType.DMA((4,)),
    ]

    flops = 2 * (
        sb * VOCAB_PAD * EMBED                   # embedding one-hot matmul
        + sb * EMBED * 8 * h                     # layer-0 input projection
        + sb * 2 * h * 8 * h                     # layer-1 input projection
        + 2 * seq_len * (2 * bs) * h * 8 * h     # fused recurrent matmuls (2 layers)
        + bs * (2 * h) * (2 * h)                 # attention projection
        + bs * (4 * h) * (4 * h)                 # decoder layer 1
        + bs * (4 * h) * N_LABELS)               # decoder layer 2
    transcendentals = 2 * seq_len * 2 * bs * 5 * h + bs * seq_len + bs * N_LABELS
    bytes_accessed = sum(int(a.size) * a.dtype.itemsize for a in inputs) + bs * N_LABELS * 4

    out = pl.pallas_call(
        fused_forward_kernel,
        out_shape=jax.ShapeDtypeStruct((bs, N_LABELS), jnp.float32),
        in_specs=in_specs,
        out_specs=_VMEM,
        scratch_shapes=scratch_shapes,
        cost_estimate=pl.CostEstimate(flops=flops,
                                      transcendentals=transcendentals,
                                      bytes_accessed=bytes_accessed),
    )(*inputs)
    return out


# --------------------------------------------------------------------------
# Parameter creation: PyTorch-convention weights, repacked + bf16-cast for the kernel
# --------------------------------------------------------------------------
def _reorder_gates(w, hidden):
    # PyTorch packed gate order (i, f, g, o) along axis 0 -> kernel order (i, f, o, g)
    i = w[0 * hidden:1 * hidden]
    f = w[1 * hidden:2 * hidden]
    g = w[2 * hidden:3 * hidden]
    o = w[3 * hidden:4 * hidden]
    return jnp.concatenate([i, f, o, g], axis=0)


def pack_lstm_layer(pt, layer, hidden):
    packs = []
    for suffix in ("", "_reverse"):
        w_ih = pt[f"weight_ih_l{layer}{suffix}"]              # [4H, in]
        w_hh = pt[f"weight_hh_l{layer}{suffix}"]              # [4H, H]
        b = pt[f"bias_ih_l{layer}{suffix}"] + pt[f"bias_hh_l{layer}{suffix}"]   # [4H]
        packs.append((_reorder_gates(w_ih, hidden).T,          # [in, 4H]
                      _reorder_gates(w_hh, hidden).T,          # [H, 4H]
                      _reorder_gates(b, hidden)))              # [4H]
    w_ih_cat = jnp.concatenate([packs[0][0], packs[1][0]], axis=1).astype(jnp.bfloat16)
    w_hh_cat = jnp.concatenate([packs[0][1], packs[1][1]], axis=1).astype(jnp.bfloat16)
    b_cat = jnp.concatenate([packs[0][2], packs[1][2]], axis=0)[None, :]   # [1, 8H] f32
    return w_ih_cat, w_hh_cat, b_cat


def init_params(key):
    ks = jax.random.split(key, 32)
    ki = iter(ks)

    def rnd(shape, scale=0.05):
        return jax.random.normal(next(ki), shape, dtype=jnp.float32) * scale

    # Embedding (padding_idx=1 row zeroed), vocab zero-padded to VOCAB_PAD, bf16
    emb = rnd((VOCAB, EMBED), 0.1).at[PAD_IDX].set(0.0)
    emb = jnp.zeros((VOCAB_PAD, EMBED), jnp.float32).at[:VOCAB].set(emb).astype(jnp.bfloat16)

    # LSTM weights in native PyTorch layout: [4H, in] / [4H, H], gate order (i,f,g,o)
    pt = {}
    for layer, in_size in ((0, EMBED), (1, 2 * HIDDEN)):
        for suffix in ("", "_reverse"):
            pt[f"weight_ih_l{layer}{suffix}"] = rnd((4 * HIDDEN, in_size))
            pt[f"weight_hh_l{layer}{suffix}"] = rnd((4 * HIDDEN, HIDDEN))
            pt[f"bias_ih_l{layer}{suffix}"] = rnd((4 * HIDDEN,))
            pt[f"bias_hh_l{layer}{suffix}"] = rnd((4 * HIDDEN,))

    w_ih0, w_hh0, b0 = pack_lstm_layer(pt, 0, HIDDEN)
    w_ih1, w_hh1, b1 = pack_lstm_layer(pt, 1, HIDDEN)

    params = {
        "embedding": emb,
        "w_ih0": w_ih0, "w_hh0": w_hh0, "b0": b0,
        "w_ih1": w_ih1, "w_hh1": w_hh1, "b1": b1,
        # Attention Linear(2H, 2H, bias=False): y = x @ W.T, stored transposed, bf16.
        "w_att": rnd((2 * HIDDEN, 2 * HIDDEN)).T.astype(jnp.bfloat16),
        # Intent decoder: Linear(512,512) -> LeakyReLU(0.2) -> Linear(512, n_labels)
        "w_d1": rnd((4 * HIDDEN, 4 * HIDDEN)).T.astype(jnp.bfloat16),
        "b_d1": rnd((4 * HIDDEN,))[None, :],
        "w_d2": rnd((N_LABELS, 4 * HIDDEN)).T.astype(jnp.bfloat16),
        "b_d2": rnd((N_LABELS,))[None, :],
        # init_hidden(): torch.randn -> deterministic seeded normals here.
        # PyTorch index convention: [layer*2 + direction] (0=fwd, 1=bwd).
        "h0": jax.random.normal(next(ki), (N_LAYERS * 2, BS, HIDDEN), dtype=jnp.float32),
        "c0": jax.random.normal(next(ki), (N_LAYERS * 2, BS, HIDDEN), dtype=jnp.float32),
    }
    return params


if __name__ == "__main__":
    key = jax.random.PRNGKey(0)
    k_param, k_tok = jax.random.split(key)

    params = init_params(k_param)
    word_vector = jax.random.randint(k_tok, (BS, SEQ), 0, VOCAB, dtype=jnp.int32)
    mask = jnp.ones((BS, SEQ), dtype=jnp.float32)

    fwd = jax.jit(multi_intent_forward)
    out = jax.block_until_ready(fwd(params, word_vector, mask))

    assert out.shape == (BS, N_LABELS)
    assert bool(jnp.all(jnp.isfinite(out)))
    assert bool(jnp.all((out >= 0.0) & (out <= 1.0)))   # sigmoid output
    print("KERNEL_OK")
</pallas_src>

<mosaic_0001>
module attributes {stable_mosaic.version = 11 : i64} {
  func.func @fused_forward_kernel(%arg0: memref<16x1xi32, #tpu.memory_space<vmem>>, %arg1: memref<64x32xbf16, #tpu.memory_space<vmem>>, %arg2: memref<8x128xf32, #tpu.memory_space<vmem>>, %arg3: memref<8x128xf32, #tpu.memory_space<vmem>>, %arg4: memref<32x1024xbf16, #tpu.memory_space<vmem>>, %arg5: memref<128x1024xbf16, #tpu.memory_space<vmem>>, %arg6: memref<1x1024xf32, #tpu.memory_space<vmem>>, %arg7: memref<1x1024xf32, #tpu.memory_space<vmem>>, %arg8: memref<2x8xf32, #tpu.memory_space<vmem>>, %arg9: memref<1x512xf32, #tpu.memory_space<vmem>>, %arg10: memref<512x8xbf16, #tpu.memory_space<vmem>>, %arg11: memref<1x8xf32, #tpu.memory_space<vmem>>, %arg12: memref<256x1024xbf16, #tpu.memory_space<any>>, %arg13: memref<128x1024xbf16, #tpu.memory_space<any>>, %arg14: memref<256x256xbf16, #tpu.memory_space<any>>, %arg15: memref<512x512xbf16, #tpu.memory_space<any>>, %arg16: memref<2x8xf32, #tpu.memory_space<vmem>>, %arg17: memref<16x256xf32, #tpu.memory_space<vmem>>, %arg18: memref<16x256xf32, #tpu.memory_space<vmem>>, %arg19: memref<256x1024xbf16, #tpu.memory_space<vmem>>, %arg20: memref<128x1024xbf16, #tpu.memory_space<vmem>>, %arg21: memref<256x256xbf16, #tpu.memory_space<vmem>>, %arg22: memref<512x512xbf16, #tpu.memory_space<vmem>>, %arg23: memref<4x!tpu.dma_semaphore, #tpu.memory_space<semaphore_mem>>) attributes {dimension_semantics = [], scalar_prefetch = 0 : i64, scratch_operands = 7 : i64, tpu.core_type = #tpu.core_type<tc>} {
    %c0_i32 = arith.constant 0 : i32
    %0 = tpu.memref_slice %arg23[%c0_i32] : memref<4x!tpu.dma_semaphore, #tpu.memory_space<semaphore_mem>> -> memref<1x!tpu.dma_semaphore, #tpu.memory_space<semaphore_mem>>
    %1 = tpu.memref_squeeze %0 : memref<1x!tpu.dma_semaphore, #tpu.memory_space<semaphore_mem>> -> memref<!tpu.dma_semaphore, #tpu.memory_space<semaphore_mem>>
    tpu.enqueue_dma source(%arg12 : memref<256x1024xbf16, #tpu.memory_space<any>>) target(%arg19 : memref<256x1024xbf16, #tpu.memory_space<vmem>>) target_semaphore(%1 : memref<!tpu.dma_semaphore, #tpu.memory_space<semaphore_mem>>)
    %c1_i32 = arith.constant 1 : i32
    %2 = tpu.memref_slice %arg23[%c1_i32] : memref<4x!tpu.dma_semaphore, #tpu.memory_space<semaphore_mem>> -> memref<1x!tpu.dma_semaphore, #tpu.memory_space<semaphore_mem>>
    %3 = tpu.memref_squeeze %2 : memref<1x!tpu.dma_semaphore, #tpu.memory_space<semaphore_mem>> -> memref<!tpu.dma_semaphore, #tpu.memory_space<semaphore_mem>>
    tpu.enqueue_dma source(%arg13 : memref<128x1024xbf16, #tpu.memory_space<any>>) target(%arg20 : memref<128x1024xbf16, #tpu.memory_space<vmem>>) target_semaphore(%3 : memref<!tpu.dma_semaphore, #tpu.memory_space<semaphore_mem>>)
    %c2_i32 = arith.constant 2 : i32
    %4 = tpu.memref_slice %arg23[%c2_i32] : memref<4x!tpu.dma_semaphore, #tpu.memory_space<semaphore_mem>> -> memref<1x!tpu.dma_semaphore, #tpu.memory_space<semaphore_mem>>
    %5 = tpu.memref_squeeze %4 : memref<1x!tpu.dma_semaphore, #tpu.memory_space<semaphore_mem>> -> memref<!tpu.dma_semaphore, #tpu.memory_space<semaphore_mem>>
    tpu.enqueue_dma source(%arg14 : memref<256x256xbf16, #tpu.memory_space<any>>) target(%arg21 : memref<256x256xbf16, #tpu.memory_space<vmem>>) target_semaphore(%5 : memref<!tpu.dma_semaphore, #tpu.memory_space<semaphore_mem>>)
    %c3_i32 = arith.constant 3 : i32
    %6 = tpu.memref_slice %arg23[%c3_i32] : memref<4x!tpu.dma_semaphore, #tpu.memory_space<semaphore_mem>> -> memref<1x!tpu.dma_semaphore, #tpu.memory_space<semaphore_mem>>
    %7 = tpu.memref_squeeze %6 : memref<1x!tpu.dma_semaphore, #tpu.memory_space<semaphore_mem>> -> memref<!tpu.dma_semaphore, #tpu.memory_space<semaphore_mem>>
    tpu.enqueue_dma source(%arg15 : memref<512x512xbf16, #tpu.memory_space<any>>) target(%arg22 : memref<512x512xbf16, #tpu.memory_space<vmem>>) target_semaphore(%7 : memref<!tpu.dma_semaphore, #tpu.memory_space<semaphore_mem>>)
    %c0 = arith.constant 0 : index
    %c0_0 = arith.constant 0 : index
    %8 = vector.load %arg0[%c0, %c0_0] : memref<16x1xi32, #tpu.memory_space<vmem>>, vector<16x1xi32>
    %9 = tpu.iota {dimensions = array<i32: 1>} : vector<16x64xi32>
    %10 = vector.broadcast %8 : vector<16x1xi32> to vector<16x64xi32>
    %11 = arith.cmpi eq, %10, %9 : vector<16x64xi32>
    %12 = arith.extui %11 : vector<16x64xi1> to vector<16x64xi32>
    %13 = arith.sitofp %12 : vector<16x64xi32> to vector<16x64xf32>
    %14 = arith.truncf %13 : vector<16x64xf32> to vector<16x64xbf16>
    %c0_1 = arith.constant 0 : index
    %c0_2 = arith.constant 0 : index
    %15 = vector.load %arg1[%c0_1, %c0_2] : memref<64x32xbf16, #tpu.memory_space<vmem>>, vector<64x32xbf16>
    %cst = arith.constant dense<0.000000e+00> : vector<16x32xf32>
    %16 = tpu.matmul %14, %15, %cst {dimension_numbers = #tpu.dot_dimension_numbers<[1], [0], [0], [1], [0, 0, 1, 1], [], []>} : vector<16x64xbf16>, vector<64x32xbf16>, vector<16x32xf32> -> vector<16x32xf32>
    %17 = arith.truncf %16 : vector<16x32xf32> to vector<16x32xbf16>
    %c0_3 = arith.constant 0 : index
    %c0_4 = arith.constant 0 : index
    %18 = vector.load %arg4[%c0_3, %c0_4] : memref<32x1024xbf16, #tpu.memory_space<vmem>>, vector<32x1024xbf16>
    %cst_5 = arith.constant dense<0.000000e+00> : vector<16x1024xf32>
    %19 = tpu.matmul %17, %18, %cst_5 {dimension_numbers = #tpu.dot_dimension_numbers<[1], [0], [0], [1], [0, 0, 1, 1], [], []>} : vector<16x32xbf16>, vector<32x1024xbf16>, vector<16x1024xf32> -> vector<16x1024xf32>
    %c0_6 = arith.constant 0 : index
    %c0_7 = arith.constant 0 : index
    %20 = vector.load %arg6[%c0_6, %c0_7] : memref<1x1024xf32, #tpu.memory_space<vmem>>, vector<1x1024xf32>
    %21 = vector.broadcast %20 : vector<1x1024xf32> to vector<16x1024xf32>
    %22 = arith.addf %19, %21 : vector<16x1024xf32>
    %c0_8 = arith.constant 0 : index
    %c0_9 = arith.constant 0 : index
    %23 = vector.load %arg5[%c0_8, %c0_9] : memref<128x1024xbf16, #tpu.memory_space<vmem>>, vector<128x1024xbf16>
    %c0_10 = arith.constant 0 : index
    %c0_11 = arith.constant 0 : index
    %24 = vector.load %arg2[%c0_10, %c0_11] : memref<8x128xf32, #tpu.memory_space<vmem>>, vector<4x128xf32>
    %c0_12 = arith.constant 0 : index
    %c0_13 = arith.constant 0 : index
    %25 = vector.load %arg3[%c0_12, %c0_13] : memref<8x128xf32, #tpu.memory_space<vmem>>, vector<4x128xf32>
    %26 = arith.truncf %24 : vector<4x128xf32> to vector<4x128xbf16>
    %cst_14 = arith.constant dense<0.000000e+00> : vector<4x1024xf32>
    %27 = tpu.matmul %26, %23, %cst_14 {dimension_numbers = #tpu.dot_dimension_numbers<[1], [0], [0], [1], [0, 0, 1, 1], [], []>} : vector<4x128xbf16>, vector<128x1024xbf16>, vector<4x1024xf32> -> vector<4x1024xf32>
    %28 = vector.extract_strided_slice %22 {offsets = [0, 0], sizes = [2, 512], strides = [1, 1]} : vector<16x1024xf32> to vector<2x512xf32>
    %29 = vector.extract_strided_slice %27 {offsets = [0, 0], sizes = [2, 512], strides = [1, 1]} : vector<4x1024xf32> to vector<2x512xf32>
    %30 = arith.addf %28, %29 : vector<2x512xf32>
    %31 = vector.extract_strided_slice %22 {offsets = [14, 512], sizes = [2, 512], strides = [1, 1]} : vector<16x1024xf32> to vector<2x512xf32>
    %32 = vector.extract_strided_slice %27 {offsets = [2, 512], sizes = [2, 512], strides = [1, 1]} : vector<4x1024xf32> to vector<2x512xf32>
    %33 = arith.addf %31, %32 : vector<2x512xf32>
    %34 = tpu.concatenate %30, %33 in 0 : vector<2x512xf32>, vector<2x512xf32> -> vector<4x512xf32>
    %35 = vector.extract_strided_slice %34 {offsets = [0, 0], sizes = [4, 384], strides = [1, 1]} : vector<4x512xf32> to vector<4x384xf32>
    %36 = arith.negf %35 : vector<4x384xf32>
    %37 = math.exp %36 : vector<4x384xf32>
    %cst_15 = arith.constant 1.000000e+00 : f32
    %38 = vector.broadcast %cst_15 : f32 to vector<4x384xf32>
    %39 = arith.addf %38, %37 : vector<4x384xf32>
    %40 = arith.divf %38, %39 : vector<4x384xf32>
    %41 = vector.extract_strided_slice %34 {offsets = [0, 384], sizes = [4, 128], strides = [1, 1]} : vector<4x512xf32> to vector<4x128xf32>
    %42 = math.tanh %41 : vector<4x128xf32>
    %43 = vector.extract_strided_slice %40 {offsets = [0, 128], sizes = [4, 128], strides = [1, 1]} : vector<4x384xf32> to vector<4x128xf32>
    %44 = arith.mulf %43, %25 : vector<4x128xf32>
    %45 = vector.extract_strided_slice %40 {offsets = [0, 0], sizes = [4, 128], strides = [1, 1]} : vector<4x384xf32> to vector<4x128xf32>
    %46 = arith.mulf %45, %42 : vector<4x128xf32>
    %47 = arith.addf %44, %46 : vector<4x128xf32>
    %48 = vector.extract_strided_slice %40 {offsets = [0, 256], sizes = [4, 128], strides = [1, 1]} : vector<4x384xf32> to vector<4x128xf32>
    %49 = math.tanh %47 : vector<4x128xf32>
    %50 = arith.mulf %48, %49 : vector<4x128xf32>
    %51 = vector.extract_strided_slice %50 {offsets = [0, 0], sizes = [2, 128], strides = [1, 1]} : vector<4x128xf32> to vector<2x128xf32>
    %c0_16 = arith.constant 0 : index
    %c0_17 = arith.constant 0 : index
    %52 = vector.load %arg17[%c0_16, %c0_17] : memref<16x256xf32, #tpu.memory_space<vmem>>, vector<2x128xf32>
    tpu.vector_store %arg17[%c0_16, %c0_17], %51 {strides = array<i32>} : memref<16x256xf32, #tpu.memory_space<vmem>>, vector<2x128xf32>,
    %53 = vector.extract_strided_slice %50 {offsets = [2, 0], sizes = [2, 128], strides = [1, 1]} : vector<4x128xf32> to vector<2x128xf32>
    %c14 = arith.constant 14 : index
    %c128 = arith.constant 128 : index
    %54 = vector.load %arg17[%c14, %c128] : memref<16x256xf32, #tpu.memory_space<vmem>>, vector<2x128xf32>
    tpu.vector_store %arg17[%c14, %c128], %53 {strides = array<i32>} : memref<16x256xf32, #tpu.memory_space<vmem>>, vector<2x128xf32>,
    %55 = arith.truncf %50 : vector<4x128xf32> to vector<4x128xbf16>
    %cst_18 = arith.constant dense<0.000000e+00> : vector<4x1024xf32>
    %56 = tpu.matmul %55, %23, %cst_18 {dimension_numbers = #tpu.dot_dimension_numbers<[1], [0], [0], [1], [0, 0, 1, 1], [], []>} : vector<4x128xbf16>, vector<128x1024xbf16>, vector<4x1024xf32> -> vector<4x1024xf32>
    %57 = vector.extract_strided_slice %22 {offsets = [2, 0], sizes = [2, 512], strides = [1, 1]} : vector<16x1024xf32> to vector<2x512xf32>
    %58 = vector.extract_strided_slice %56 {offsets = [0, 0], sizes = [2, 512], strides = [1, 1]} : vector<4x1024xf32> to vector<2x512xf32>
    %59 = arith.addf %57, %58 : vector<2x512xf32>
    %60 = vector.extract_strided_slice %22 {offsets = [12, 512], sizes = [2, 512], strides = [1, 1]} : vector<16x1024xf32> to vector<2x512xf32>
    %61 = vector.extract_strided_slice %56 {offsets = [2, 512], sizes = [2, 512], strides = [1, 1]} : vector<4x1024xf32> to vector<2x512xf32>
    %62 = arith.addf %60, %61 : vector<2x512xf32>
    %63 = tpu.concatenate %59, %62 in 0 : vector<2x512xf32>, vector<2x512xf32> -> vector<4x512xf32>
    %64 = vector.extract_strided_slice %63 {offsets = [0, 0], sizes = [4, 384], strides = [1, 1]} : vector<4x512xf32> to vector<4x384xf32>
    %65 = arith.negf %64 : vector<4x384xf32>
    %66 = math.exp %65 : vector<4x384xf32>
    %cst_19 = arith.constant 1.000000e+00 : f32
    %67 = vector.broadcast %cst_19 : f32 to vector<4x384xf32>
    %68 = arith.addf %67, %66 : vector<4x384xf32>
    %69 = arith.divf %67, %68 : vector<4x384xf32>
    %70 = vector.extract_strided_slice %63 {offsets = [0, 384], sizes = [4, 128], strides = [1, 1]} : vector<4x512xf32> to vector<4x128xf32>
    %71 = math.tanh %70 : vector<4x128xf32>
    %72 = vector.extract_strided_slice %69 {offsets = [0, 128], sizes = [4, 128], strides = [1, 1]} : vector<4x384xf32> to vector<4x128xf32>
    %73 = arith.mulf %72, %47 : vector<4x128xf32>
    %74 = vector.extract_strided_slice %69 {offsets = [0, 0], sizes = [4, 128], strides = [1, 1]} : vector<4x384xf32> to vector<4x128xf32>
    %75 = arith.mulf %74, %71 : vector<4x128xf32>
    %76 = arith.addf %73, %75 : vector<4x128xf32>
    %77 = vector.extract_strided_slice %69 {offsets = [0, 256], sizes = [4, 128], strides = [1, 1]} : vector<4x384xf32> to vector<4x128xf32>
    %78 = math.tanh %76 : vector<4x128xf32>
    %79 = arith.mulf %77, %78 : vector<4x128xf32>
    %80 = vector.extract_strided_slice %79 {offsets = [0, 0], sizes = [2, 128], strides = [1, 1]} : vector<4x128xf32> to vector<2x128xf32>
    %c2 = arith.constant 2 : index
    %c0_20 = arith.constant 0 : index
    %81 = vector.load %arg17[%c2, %c0_20] : memref<16x256xf32, #tpu.memory_space<vmem>>, vector<2x128xf32>
    tpu.vector_store %arg17[%c2, %c0_20], %80 {strides = array<i32>} : memref<16x256xf32, #tpu.memory_space<vmem>>, vector<2x128xf32>,
    %82 = vector.extract_strided_slice %79 {offsets = [2, 0], sizes = [2, 128], strides = [1, 1]} : vector<4x128xf32> to vector<2x128xf32>
    %c12 = arith.constant 12 : index
    %c128_21 = arith.constant 128 : index
    %83 = vector.load %arg17[%c12, %c128_21] : memref<16x256xf32, #tpu.memory_space<vmem>>, vector<2x128xf32>
    tpu.vector_store %arg17[%c12, %c128_21], %82 {strides = array<i32>} : memref<16x256xf32, #tpu.memory_space<vmem>>, vector<2x128xf32>,
    %84 = arith.truncf %79 : vector<4x128xf32> to vector<4x128xbf16>
    %cst_22 = arith.constant dense<0.000000e+00> : vector<4x1024xf32>
    %85 = tpu.matmul %84, %23, %cst_22 {dimension_numbers = #tpu.dot_dimension_numbers<[1], [0], [0], [1], [0, 0, 1, 1], [], []>} : vector<4x128xbf16>, vector<128x1024xbf16>, vector<4x1024xf32> -> vector<4x1024xf32>
    %86 = vector.extract_strided_slice %22 {offsets = [4, 0], sizes = [2, 512], strides = [1, 1]} : vector<16x1024xf32> to vector<2x512xf32>
    %87 = vector.extract_strided_slice %85 {offsets = [0, 0], sizes = [2, 512], strides = [1, 1]} : vector<4x1024xf32> to vector<2x512xf32>
    %88 = arith.addf %86, %87 : vector<2x512xf32>
    %89 = vector.extract_strided_slice %22 {offsets = [10, 512], sizes = [2, 512], strides = [1, 1]} : vector<16x1024xf32> to vector<2x512xf32>
    %90 = vector.extract_strided_slice %85 {offsets = [2, 512], sizes = [2, 512], strides = [1, 1]} : vector<4x1024xf32> to vector<2x512xf32>
    %91 = arith.addf %89, %90 : vector<2x512xf32>
    %92 = tpu.concatenate %88, %91 in 0 : vector<2x512xf32>, vector<2x512xf32> -> vector<4x512xf32>
    %93 = vector.extract_strided_slice %92 {offsets = [0, 0], sizes = [4, 384], strides = [1, 1]} : vector<4x512xf32> to vector<4x384xf32>
    %94 = arith.negf %93 : vector<4x384xf32>
    %95 = math.exp %94 : vector<4x384xf32>
    %cst_23 = arith.constant 1.000000e+00 : f32
    %96 = vector.broadcast %cst_23 : f32 to vector<4x384xf32>
    %97 = arith.addf %96, %95 : vector<4x384xf32>
    %98 = arith.divf %96, %97 : vector<4x384xf32>
    %99 = vector.extract_strided_slice %92 {offsets = [0, 384], sizes = [4, 128], strides = [1, 1]} : vector<4x512xf32> to vector<4x128xf32>
    %100 = math.tanh %99 : vector<4x128xf32>
    %101 = vector.extract_strided_slice %98 {offsets = [0, 128], sizes = [4, 128], strides = [1, 1]} : vector<4x384xf32> to vector<4x128xf32>
    %102 = arith.mulf %101, %76 : vector<4x128xf32>
    %103 = vector.extract_strided_slice %98 {offsets = [0, 0], sizes = [4, 128], strides = [1, 1]} : vector<4x384xf32> to vector<4x128xf32>
    %104 = arith.mulf %103, %100 : vector<4x128xf32>
    %105 = arith.addf %102, %104 : vector<4x128xf32>
    %106 = vector.extract_strided_slice %98 {offsets = [0, 256], sizes = [4, 128], strides = [1, 1]} : vector<4x384xf32> to vector<4x128xf32>
    %107 = math.tanh %105 : vector<4x128xf32>
    %108 = arith.mulf %106, %107 : vector<4x128xf32>
    %109 = vector.extract_strided_slice %108 {offsets = [0, 0], sizes = [2, 128], strides = [1, 1]} : vector<4x128xf32> to vector<2x128xf32>
    %c4 = arith.constant 4 : index
    %c0_24 = arith.constant 0 : index
    %110 = vector.load %arg17[%c4, %c0_24] : memref<16x256xf32, #tpu.memory_space<vmem>>, vector<2x128xf32>
    tpu.vector_store %arg17[%c4, %c0_24], %109 {strides = array<i32>} : memref<16x256xf32, #tpu.memory_space<vmem>>, vector<2x128xf32>,
    %111 = vector.extract_strided_slice %108 {offsets = [2, 0], sizes = [2, 128], strides = [1, 1]} : vector<4x128xf32> to vector<2x128xf32>
    %c10 = arith.constant 10 : index
    %c128_25 = arith.constant 128 : index
    %112 = vector.load %arg17[%c10, %c128_25] : memref<16x256xf32, #tpu.memory_space<vmem>>, vector<2x128xf32>
    tpu.vector_store %arg17[%c10, %c128_25], %111 {strides = array<i32>} : memref<16x256xf32, #tpu.memory_space<vmem>>, vector<2x128xf32>,
    %113 = arith.truncf %108 : vector<4x128xf32> to vector<4x128xbf16>
    %cst_26 = arith.constant dense<0.000000e+00> : vector<4x1024xf32>
    %114 = tpu.matmul %113, %23, %cst_26 {dimension_numbers = #tpu.dot_dimension_numbers<[1], [0], [0], [1], [0, 0, 1, 1], [], []>} : vector<4x128xbf16>, vector<128x1024xbf16>, vector<4x1024xf32> -> vector<4x1024xf32>
    %115 = vector.extract_strided_slice %22 {offsets = [6, 0], sizes = [2, 512], strides = [1, 1]} : vector<16x1024xf32> to vector<2x512xf32>
    %116 = vector.extract_strided_slice %114 {offsets = [0, 0], sizes = [2, 512], strides = [1, 1]} : vector<4x1024xf32> to vector<2x512xf32>
    %117 = arith.addf %115, %116 : vector<2x512xf32>
    %118 = vector.extract_strided_slice %22 {offsets = [8, 512], sizes = [2, 512], strides = [1, 1]} : vector<16x1024xf32> to vector<2x512xf32>
    %119 = vector.extract_strided_slice %114 {offsets = [2, 512], sizes = [2, 512], strides = [1, 1]} : vector<4x1024xf32> to vector<2x512xf32>
    %120 = arith.addf %118, %119 : vector<2x512xf32>
    %121 = tpu.concatenate %117, %120 in 0 : vector<2x512xf32>, vector<2x512xf32> -> vector<4x512xf32>
    %122 = vector.extract_strided_slice %121 {offsets = [0, 0], sizes = [4, 384], strides = [1, 1]} : vector<4x512xf32> to vector<4x384xf32>
    %123 = arith.negf %122 : vector<4x384xf32>
    %124 = math.exp %123 : vector<4x384xf32>
    %cst_27 = arith.constant 1.000000e+00 : f32
    %125 = vector.broadcast %cst_27 : f32 to vector<4x384xf32>
    %126 = arith.addf %125, %124 : vector<4x384xf32>
    %127 = arith.divf %125, %126 : vector<4x384xf32>
    %128 = vector.extract_strided_slice %121 {offsets = [0, 384], sizes = [4, 128], strides = [1, 1]} : vector<4x512xf32> to vector<4x128xf32>
    %129 = math.tanh %128 : vector<4x128xf32>
    %130 = vector.extract_strided_slice %127 {offsets = [0, 128], sizes = [4, 128], strides = [1, 1]} : vector<4x384xf32> to vector<4x128xf32>
    %131 = arith.mulf %130, %105 : vector<4x128xf32>
    %132 = vector.extract_strided_slice %127 {offsets = [0, 0], sizes = [4, 128], strides = [1, 1]} : vector<4x384xf32> to vector<4x128xf32>
    %133 = arith.mulf %132, %129 : vector<4x128xf32>
    %134 = arith.addf %131, %133 : vector<4x128xf32>
    %135 = vector.extract_strided_slice %127 {offsets = [0, 256], sizes = [4, 128], strides = [1, 1]} : vector<4x384xf32> to vector<4x128xf32>
    %136 = math.tanh %134 : vector<4x128xf32>
    %137 = arith.mulf %135, %136 : vector<4x128xf32>
    %138 = vector.extract_strided_slice %137 {offsets = [0, 0], sizes = [2, 128], strides = [1, 1]} : vector<4x128xf32> to vector<2x128xf32>
    %c6 = arith.constant 6 : index
    %c0_28 = arith.constant 0 : index
    %139 = vector.load %arg17[%c6, %c0_28] : memref<16x256xf32, #tpu.memory_space<vmem>>, vector<2x128xf32>
    tpu.vector_store %arg17[%c6, %c0_28], %138 {strides = array<i32>} : memref<16x256xf32, #tpu.memory_space<vmem>>, vector<2x128xf32>,
    %140 = vector.extract_strided_slice %137 {offsets = [2, 0], sizes = [2, 128], strides = [1, 1]} : vector<4x128xf32> to vector<2x128xf32>
    %c8 = arith.constant 8 : index
    %c128_29 = arith.constant 128 : index
    %141 = vector.load %arg17[%c8, %c128_29] : memref<16x256xf32, #tpu.memory_space<vmem>>, vector<2x128xf32>
    tpu.vector_store %arg17[%c8, %c128_29], %140 {strides = array<i32>} : memref<16x256xf32, #tpu.memory_space<vmem>>, vector<2x128xf32>,
    %142 = arith.truncf %137 : vector<4x128xf32> to vector<4x128xbf16>
    %cst_30 = arith.constant dense<0.000000e+00> : vector<4x1024xf32>
    %143 = tpu.matmul %142, %23, %cst_30 {dimension_numbers = #tpu.dot_dimension_numbers<[1], [0], [0], [1], [0, 0, 1, 1], [], []>} : vector<4x128xbf16>, vector<128x1024xbf16>, vector<4x1024xf32> -> vector<4x1024xf32>
    %144 = vector.extract_strided_slice %22 {offsets = [8, 0], sizes = [2, 512], strides = [1, 1]} : vector<16x1024xf32> to vector<2x512xf32>
    %145 = vector.extract_strided_slice %143 {offsets = [0, 0], sizes = [2, 512], strides = [1, 1]} : vector<4x1024xf32> to vector<2x512xf32>
    %146 = arith.addf %144, %145 : vector<2x512xf32>
    %147 = vector.extract_strided_slice %22 {offsets = [6, 512], sizes = [2, 512], strides = [1, 1]} : vector<16x1024xf32> to vector<2x512xf32>
    %148 = vector.extract_strided_slice %143 {offsets = [2, 512], sizes = [2, 512], strides = [1, 1]} : vector<4x1024xf32> to vector<2x512xf32>
    %149 = arith.addf %147, %148 : vector<2x512xf32>
    %150 = tpu.concatenate %146, %149 in 0 : vector<2x512xf32>, vector<2x512xf32> -> vector<4x512xf32>
    %151 = vector.extract_strided_slice %150 {offsets = [0, 0], sizes = [4, 384], strides = [1, 1]} : vector<4x512xf32> to vector<4x384xf32>
    %152 = arith.negf %151 : vector<4x384xf32>
    %153 = math.exp %152 : vector<4x384xf32>
    %cst_31 = arith.constant 1.000000e+00 : f32
    %154 = vector.broadcast %cst_31 : f32 to vector<4x384xf32>
    %155 = arith.addf %154, %153 : vector<4x384xf32>
    %156 = arith.divf %154, %155 : vector<4x384xf32>
    %157 = vector.extract_strided_slice %150 {offsets = [0, 384], sizes = [4, 128], strides = [1, 1]} : vector<4x512xf32> to vector<4x128xf32>
    %158 = math.tanh %157 : vector<4x128xf32>
    %159 = vector.extract_strided_slice %156 {offsets = [0, 128], sizes = [4, 128], strides = [1, 1]} : vector<4x384xf32> to vector<4x128xf32>
    %160 = arith.mulf %159, %134 : vector<4x128xf32>
    %161 = vector.extract_strided_slice %156 {offsets = [0, 0], sizes = [4, 128], strides = [1, 1]} : vector<4x384xf32> to vector<4x128xf32>
    %162 = arith.mulf %161, %158 : vector<4x128xf32>
    %163 = arith.addf %160, %162 : vector<4x128xf32>
    %164 = vector.extract_strided_slice %156 {offsets = [0, 256], sizes = [4, 128], strides = [1, 1]} : vector<4x384xf32> to vector<4x128xf32>
    %165 = math.tanh %163 : vector<4x128xf32>
    %166 = arith.mulf %164, %165 : vector<4x128xf32>
    %167 = vector.extract_strided_slice %166 {offsets = [0, 0], sizes = [2, 128], strides = [1, 1]} : vector<4x128xf32> to vector<2x128xf32>
    %c8_32 = arith.constant 8 : index
    %c0_33 = arith.constant 0 : index
    %168 = vector.load %arg17[%c8_32, %c0_33] : memref<16x256xf32, #tpu.memory_space<vmem>>, vector<2x128xf32>
    tpu.vector_store %arg17[%c8_32, %c0_33], %167 {strides = array<i32>} : memref<16x256xf32, #tpu.memory_space<vmem>>, vector<2x128xf32>,
    %169 = vector.extract_strided_slice %166 {offsets = [2, 0], sizes = [2, 128], strides = [1, 1]} : vector<4x128xf32> to vector<2x128xf32>
    %c6_34 = arith.constant 6 : index
    %c128_35 = arith.constant 128 : index
    %170 = vector.load %arg17[%c6_34, %c128_35] : memref<16x256xf32, #tpu.memory_space<vmem>>, vector<2x128xf32>
    tpu.vector_store %arg17[%c6_34, %c128_35], %169 {strides = array<i32>} : memref<16x256xf32, #tpu.memory_space<vmem>>, vector<2x128xf32>,
    %171 = arith.truncf %166 : vector<4x128xf32> to vector<4x128xbf16>
    %cst_36 = arith.constant dense<0.000000e+00> : vector<4x1024xf32>
    %172 = tpu.matmul %171, %23, %cst_36 {dimension_numbers = #tpu.dot_dimension_numbers<[1], [0], [0], [1], [0, 0, 1, 1], [], []>} : vector<4x128xbf16>, vector<128x1024xbf16>, vector<4x1024xf32> -> vector<4x1024xf32>
    %173 = vector.extract_strided_slice %22 {offsets = [10, 0], sizes = [2, 512], strides = [1, 1]} : vector<16x1024xf32> to vector<2x512xf32>
    %174 = vector.extract_strided_slice %172 {offsets = [0, 0], sizes = [2, 512], strides = [1, 1]} : vector<4x1024xf32> to vector<2x512xf32>
    %175 = arith.addf %173, %174 : vector<2x512xf32>
    %176 = vector.extract_strided_slice %22 {offsets = [4, 512], sizes = [2, 512], strides = [1, 1]} : vector<16x1024xf32> to vector<2x512xf32>
    %177 = vector.extract_strided_slice %172 {offsets = [2, 512], sizes = [2, 512], strides = [1, 1]} : vector<4x1024xf32> to vector<2x512xf32>
    %178 = arith.addf %176, %177 : vector<2x512xf32>
    %179 = tpu.concatenate %175, %178 in 0 : vector<2x512xf32>, vector<2x512xf32> -> vector<4x512xf32>
    %180 = vector.extract_strided_slice %179 {offsets = [0, 0], sizes = [4, 384], strides = [1, 1]} : vector<4x512xf32> to vector<4x384xf32>
    %181 = arith.negf %180 : vector<4x384xf32>
    %182 = math.exp %181 : vector<4x384xf32>
    %cst_37 = arith.constant 1.000000e+00 : f32
    %183 = vector.broadcast %cst_37 : f32 to vector<4x384xf32>
    %184 = arith.addf %183, %182 : vector<4x384xf32>
    %185 = arith.divf %183, %184 : vector<4x384xf32>
    %186 = vector.extract_strided_slice %179 {offsets = [0, 384], sizes = [4, 128], strides = [1, 1]} : vector<4x512xf32> to vector<4x128xf32>
    %187 = math.tanh %186 : vector<4x128xf32>
    %188 = vector.extract_strided_slice %185 {offsets = [0, 128], sizes = [4, 128], strides = [1, 1]} : vector<4x384xf32> to vector<4x128xf32>
    %189 = arith.mulf %188, %163 : vector<4x128xf32>
    %190 = vector.extract_strided_slice %185 {offsets = [0, 0], sizes = [4, 128], strides = [1, 1]} : vector<4x384xf32> to vector<4x128xf32>
    %191 = arith.mulf %190, %187 : vector<4x128xf32>
    %192 = arith.addf %189, %191 : vector<4x128xf32>
    %193 = vector.extract_strided_slice %185 {offsets = [0, 256], sizes = [4, 128], strides = [1, 1]} : vector<4x384xf32> to vector<4x128xf32>
    %194 = math.tanh %192 : vector<4x128xf32>
    %195 = arith.mulf %193, %194 : vector<4x128xf32>
    %196 = vector.extract_strided_slice %195 {offsets = [0, 0], sizes = [2, 128], strides = [1, 1]} : vector<4x128xf32> to vector<2x128xf32>
    %c10_38 = arith.constant 10 : index
    %c0_39 = arith.constant 0 : index
    %197 = vector.load %arg17[%c10_38, %c0_39] : memref<16x256xf32, #tpu.memory_space<vmem>>, vector<2x128xf32>
    tpu.vector_store %arg17[%c10_38, %c0_39], %196 {strides = array<i32>} : memref<16x256xf32, #tpu.memory_space<vmem>>, vector<2x128xf32>,
    %198 = vector.extract_strided_slice %195 {offsets = [2, 0], sizes = [2, 128], strides = [1, 1]} : vector<4x128xf32> to vector<2x128xf32>
    %c4_40 = arith.constant 4 : index
    %c128_41 = arith.constant 128 : index
    %199 = vector.load %arg17[%c4_40, %c128_41] : memref<16x256xf32, #tpu.memory_space<vmem>>, vector<2x128xf32>
    tpu.vector_store %arg17[%c4_40, %c128_41], %198 {strides = array<i32>} : memref<16x256xf32, #tpu.memory_space<vmem>>, vector<2x128xf32>,
    %200 = arith.truncf %195 : vector<4x128xf32> to vector<4x128xbf16>
    %cst_42 = arith.constant dense<0.000000e+00> : vector<4x1024xf32>
    %201 = tpu.matmul %200, %23, %cst_42 {dimension_numbers = #tpu.dot_dimension_numbers<[1], [0], [0], [1], [0, 0, 1, 1], [], []>} : vector<4x128xbf16>, vector<128x1024xbf16>, vector<4x1024xf32> -> vector<4x1024xf32>
    %202 = vector.extract_strided_slice %22 {offsets = [12, 0], sizes = [2, 512], strides = [1, 1]} : vector<16x1024xf32> to vector<2x512xf32>
    %203 = vector.extract_strided_slice %201 {offsets = [0, 0], sizes = [2, 512], strides = [1, 1]} : vector<4x1024xf32> to vector<2x512xf32>
    %204 = arith.addf %202, %203 : vector<2x512xf32>
    %205 = vector.extract_strided_slice %22 {offsets = [2, 512], sizes = [2, 512], strides = [1, 1]} : vector<16x1024xf32> to vector<2x512xf32>
    %206 = vector.extract_strided_slice %201 {offsets = [2, 512], sizes = [2, 512], strides = [1, 1]} : vector<4x1024xf32> to vector<2x512xf32>
    %207 = arith.addf %205, %206 : vector<2x512xf32>
    %208 = tpu.concatenate %204, %207 in 0 : vector<2x512xf32>, vector<2x512xf32> -> vector<4x512xf32>
    %209 = vector.extract_strided_slice %208 {offsets = [0, 0], sizes = [4, 384], strides = [1, 1]} : vector<4x512xf32> to vector<4x384xf32>
    %210 = arith.negf %209 : vector<4x384xf32>
    %211 = math.exp %210 : vector<4x384xf32>
    %cst_43 = arith.constant 1.000000e+00 : f32
    %212 = vector.broadcast %cst_43 : f32 to vector<4x384xf32>
    %213 = arith.addf %212, %211 : vector<4x384xf32>
    %214 = arith.divf %212, %213 : vector<4x384xf32>
    %215 = vector.extract_strided_slice %208 {offsets = [0, 384], sizes = [4, 128], strides = [1, 1]} : vector<4x512xf32> to vector<4x128xf32>
    %216 = math.tanh %215 : vector<4x128xf32>
    %217 = vector.extract_strided_slice %214 {offsets = [0, 128], sizes = [4, 128], strides = [1, 1]} : vector<4x384xf32> to vector<4x128xf32>
    %218 = arith.mulf %217, %192 : vector<4x128xf32>
    %219 = vector.extract_strided_slice %214 {offsets = [0, 0], sizes = [4, 128], strides = [1, 1]} : vector<4x384xf32> to vector<4x128xf32>
    %220 = arith.mulf %219, %216 : vector<4x128xf32>
    %221 = arith.addf %218, %220 : vector<4x128xf32>
    %222 = vector.extract_strided_slice %214 {offsets = [0, 256], sizes = [4, 128], strides = [1, 1]} : vector<4x384xf32> to vector<4x128xf32>
    %223 = math.tanh %221 : vector<4x128xf32>
    %224 = arith.mulf %222, %223 : vector<4x128xf32>
    %225 = vector.extract_strided_slice %224 {offsets = [0, 0], sizes = [2, 128], strides = [1, 1]} : vector<4x128xf32> to vector<2x128xf32>
    %c12_44 = arith.constant 12 : index
    %c0_45 = arith.constant 0 : index
    %226 = vector.load %arg17[%c12_44, %c0_45] : memref<16x256xf32, #tpu.memory_space<vmem>>, vector<2x128xf32>
    tpu.vector_store %arg17[%c12_44, %c0_45], %225 {strides = array<i32>} : memref<16x256xf32, #tpu.memory_space<vmem>>, vector<2x128xf32>,
    %227 = vector.extract_strided_slice %224 {offsets = [2, 0], sizes = [2, 128], strides = [1, 1]} : vector<4x128xf32> to vector<2x128xf32>
    %c2_46 = arith.constant 2 : index
    %c128_47 = arith.constant 128 : index
    %228 = vector.load %arg17[%c2_46, %c128_47] : memref<16x256xf32, #tpu.memory_space<vmem>>, vector<2x128xf32>
    tpu.vector_store %arg17[%c2_46, %c128_47], %227 {strides = array<i32>} : memref<16x256xf32, #tpu.memory_space<vmem>>, vector<2x128xf32>,
    %229 = arith.truncf %224 : vector<4x128xf32> to vector<4x128xbf16>
    %cst_48 = arith.constant dense<0.000000e+00> : vector<4x1024xf32>
    %230 = tpu.matmul %229, %23, %cst_48 {dimension_numbers = #tpu.dot_dimension_numbers<[1], [0], [0], [1], [0, 0, 1, 1], [], []>} : vector<4x128xbf16>, vector<128x1024xbf16>, vector<4x1024xf32> -> vector<4x1024xf32>
    %231 = vector.extract_strided_slice %22 {offsets = [14, 0], sizes = [2, 512], strides = [1, 1]} : vector<16x1024xf32> to vector<2x512xf32>
    %232 = vector.extract_strided_slice %230 {offsets = [0, 0], sizes = [2, 512], strides = [1, 1]} : vector<4x1024xf32> to vector<2x512xf32>
    %233 = arith.addf %231, %232 : vector<2x512xf32>
    %234 = vector.extract_strided_slice %22 {offsets = [0, 512], sizes = [2, 512], strides = [1, 1]} : vector<16x1024xf32> to vector<2x512xf32>
    %235 = vector.extract_strided_slice %230 {offsets = [2, 512], sizes = [2, 512], strides = [1, 1]} : vector<4x1024xf32> to vector<2x512xf32>
    %236 = arith.addf %234, %235 : vector<2x512xf32>
    %237 = tpu.concatenate %233, %236 in 0 : vector<2x512xf32>, vector<2x512xf32> -> vector<4x512xf32>
    %238 = vector.extract_strided_slice %237 {offsets = [0, 0], sizes = [4, 384], strides = [1, 1]} : vector<4x512xf32> to vector<4x384xf32>
    %239 = arith.negf %238 : vector<4x384xf32>
    %240 = math.exp %239 : vector<4x384xf32>
    %cst_49 = arith.constant 1.000000e+00 : f32
    %241 = vector.broadcast %cst_49 : f32 to vector<4x384xf32>
    %242 = arith.addf %241, %240 : vector<4x384xf32>
    %243 = arith.divf %241, %242 : vector<4x384xf32>
    %244 = vector.extract_strided_slice %237 {offsets = [0, 384], sizes = [4, 128], strides = [1, 1]} : vector<4x512xf32> to vector<4x128xf32>
    %245 = math.tanh %244 : vector<4x128xf32>
    %246 = vector.extract_strided_slice %243 {offsets = [0, 128], sizes = [4, 128], strides = [1, 1]} : vector<4x384xf32> to vector<4x128xf32>
    %247 = arith.mulf %246, %221 : vector<4x128xf32>
    %248 = vector.extract_strided_slice %243 {offsets = [0, 0], sizes = [4, 128], strides = [1, 1]} : vector<4x384xf32> to vector<4x128xf32>
    %249 = arith.mulf %248, %245 : vector<4x128xf32>
    %250 = arith.addf %247, %249 : vector<4x128xf32>
    %251 = vector.extract_strided_slice %243 {offsets = [0, 256], sizes = [4, 128], strides = [1, 1]} : vector<4x384xf32> to vector<4x128xf32>
    %252 = math.tanh %250 : vector<4x128xf32>
    %253 = arith.mulf %251, %252 : vector<4x128xf32>
    %254 = vector.extract_strided_slice %253 {offsets = [0, 0], sizes = [2, 128], strides = [1, 1]} : vector<4x128xf32> to vector<2x128xf32>
    %c14_50 = arith.constant 14 : index
    %c0_51 = arith.constant 0 : index
    %255 = vector.load %arg17[%c14_50, %c0_51] : memref<16x256xf32, #tpu.memory_space<vmem>>, vector<2x128xf32>
    tpu.vector_store %arg17[%c14_50, %c0_51], %254 {strides = array<i32>} : memref<16x256xf32, #tpu.memory_space<vmem>>, vector<2x128xf32>,
    %256 = vector.extract_strided_slice %253 {offsets = [2, 0], sizes = [2, 128], strides = [1, 1]} : vector<4x128xf32> to vector<2x128xf32>
    %c0_52 = arith.constant 0 : index
    %c128_53 = arith.constant 128 : index
    %257 = vector.load %arg17[%c0_52, %c128_53] : memref<16x256xf32, #tpu.memory_space<vmem>>, vector<2x128xf32>
    tpu.vector_store %arg17[%c0_52, %c128_53], %256 {strides = array<i32>} : memref<16x256xf32, #tpu.memory_space<vmem>>, vector<2x128xf32>,
    %c0_i32_54 = arith.constant 0 : i32
    %258 = tpu.memref_slice %arg23[%c0_i32_54] : memref<4x!tpu.dma_semaphore, #tpu.memory_space<semaphore_mem>> -> memref<1x!tpu.dma_semaphore, #tpu.memory_space<semaphore_mem>>
    %259 = tpu.memref_squeeze %258 : memref<1x!tpu.dma_semaphore, #tpu.memory_space<semaphore_mem>> -> memref<!tpu.dma_semaphore, #tpu.memory_space<semaphore_mem>>
    tpu.wait_dma2 semaphore(%259 : memref<!tpu.dma_semaphore, #tpu.memory_space<semaphore_mem>>) src(%arg12 : memref<256x1024xbf16, #tpu.memory_space<any>>) dst(%arg19 : memref<256x1024xbf16, #tpu.memory_space<vmem>>)
    %c1_i32_55 = arith.constant 1 : i32
    %260 = tpu.memref_slice %arg23[%c1_i32_55] : memref<4x!tpu.dma_semaphore, #tpu.memory_space<semaphore_mem>> -> memref<1x!tpu.dma_semaphore, #tpu.memory_space<semaphore_mem>>
    %261 = tpu.memref_squeeze %260 : memref<1x!tpu.dma_semaphore, #tpu.memory_space<semaphore_mem>> -> memref<!tpu.dma_semaphore, #tpu.memory_space<semaphore_mem>>
    tpu.wait_dma2 semaphore(%261 : memref<!tpu.dma_semaphore, #tpu.memory_space<semaphore_mem>>) src(%arg13 : memref<128x1024xbf16, #tpu.memory_space<any>>) dst(%arg20 : memref<128x1024xbf16, #tpu.memory_space<vmem>>)
    %c0_56 = arith.constant 0 : index
    %c0_57 = arith.constant 0 : index
    %262 = vector.load %arg17[%c0_56, %c0_57] : memref<16x256xf32, #tpu.memory_space<vmem>>, vector<16x256xf32>
    %263 = arith.truncf %262 : vector<16x256xf32> to vector<16x256xbf16>
    %c0_58 = arith.constant 0 : index
    %c0_59 = arith.constant 0 : index
    %264 = vector.load %arg19[%c0_58, %c0_59] : memref<256x1024xbf16, #tpu.memory_space<vmem>>, vector<256x1024xbf16>
    %cst_60 = arith.constant dense<0.000000e+00> : vector<16x1024xf32>
    %265 = tpu.matmul %263, %264, %cst_60 {dimension_numbers = #tpu.dot_dimension_numbers<[1], [0], [0], [1], [0, 0, 1, 1], [], []>} : vector<16x256xbf16>, vector<256x1024xbf16>, vector<16x1024xf32> -> vector<16x1024xf32>
    %c0_61 = arith.constant 0 : index
    %c0_62 = arith.constant 0 : index
    %266 = vector.load %arg7[%c0_61, %c0_62] : memref<1x1024xf32, #tpu.memory_space<vmem>>, vector<1x1024xf32>
    %267 = vector.broadcast %266 : vector<1x1024xf32> to vector<16x1024xf32>
    %268 = arith.addf %265, %267 : vector<16x1024xf32>
    %c0_63 = arith.constant 0 : index
    %c0_64 = arith.constant 0 : index
    %269 = vector.load %arg20[%c0_63, %c0_64] : memref<128x1024xbf16, #tpu.memory_space<vmem>>, vector<128x1024xbf16>
    %c4_65 = arith.constant 4 : index
    %c0_66 = arith.constant 0 : index
    %270 = vector.load %arg2[%c4_65, %c0_66] : memref<8x128xf32, #tpu.memory_space<vmem>>, vector<4x128xf32>
    %c4_67 = arith.constant 4 : index
    %c0_68 = arith.constant 0 : index
    %271 = vector.load %arg3[%c4_67, %c0_68] : memref<8x128xf32, #tpu.memory_space<vmem>>, vector<4x128xf32>
    %272 = arith.truncf %270 : vector<4x128xf32> to vector<4x128xbf16>
    %cst_69 = arith.constant dense<0.000000e+00> : vector<4x1024xf32>
    %273 = tpu.matmul %272, %269, %cst_69 {dimension_numbers = #tpu.dot_dimension_numbers<[1], [0], [0], [1], [0, 0, 1, 1], [], []>} : vector<4x128xbf16>, vector<128x1024xbf16>, vector<4x1024xf32> -> vector<4x1024xf32>
    %274 = vector.extract_strided_slice %268 {offsets = [0, 0], sizes = [2, 512], strides = [1, 1]} : vector<16x1024xf32> to vector<2x512xf32>
    %275 = vector.extract_strided_slice %273 {offsets = [0, 0], sizes = [2, 512], strides = [1, 1]} : vector<4x1024xf32> to vector<2x512xf32>
    %276 = arith.addf %274, %275 : vector<2x512xf32>
    %277 = vector.extract_strided_slice %268 {offsets = [14, 512], sizes = [2, 512], strides = [1, 1]} : vector<16x1024xf32> to vector<2x512xf32>
    %278 = vector.extract_strided_slice %273 {offsets = [2, 512], sizes = [2, 512], strides = [1, 1]} : vector<4x1024xf32> to vector<2x512xf32>
    %279 = arith.addf %277, %278 : vector<2x512xf32>
    %280 = tpu.concatenate %276, %279 in 0 : vector<2x512xf32>, vector<2x512xf32> -> vector<4x512xf32>
    %281 = vector.extract_strided_slice %280 {offsets = [0, 0], sizes = [4, 384], strides = [1, 1]} : vector<4x512xf32> to vector<4x384xf32>
    %282 = arith.negf %281 : vector<4x384xf32>
    %283 = math.exp %282 : vector<4x384xf32>
    %cst_70 = arith.constant 1.000000e+00 : f32
    %284 = vector.broadcast %cst_70 : f32 to vector<4x384xf32>
    %285 = arith.addf %284, %283 : vector<4x384xf32>
    %286 = arith.divf %284, %285 : vector<4x384xf32>
    %287 = vector.extract_strided_slice %280 {offsets = [0, 384], sizes = [4, 128], strides = [1, 1]} : vector<4x512xf32> to vector<4x128xf32>
    %288 = math.tanh %287 : vector<4x128xf32>
    %289 = vector.extract_strided_slice %286 {offsets = [0, 128], sizes = [4, 128], strides = [1, 1]} : vector<4x384xf32> to vector<4x128xf32>
    %290 = arith.mulf %289, %271 : vector<4x128xf32>
    %291 = vector.extract_strided_slice %286 {offsets = [0, 0], sizes = [4, 128], strides = [1, 1]} : vector<4x384xf32> to vector<4x128xf32>
    %292 = arith.mulf %291, %288 : vector<4x128xf32>
    %293 = arith.addf %290, %292 : vector<4x128xf32>
    %294 = vector.extract_strided_slice %286 {offsets = [0, 256], sizes = [4, 128], strides = [1, 1]} : vector<4x384xf32> to vector<4x128xf32>
    %295 = math.tanh %293 : vector<4x128xf32>
    %296 = arith.mulf %294, %295 : vector<4x128xf32>
    %297 = vector.extract_strided_slice %296 {offsets = [0, 0], sizes = [2, 128], strides = [1, 1]} : vector<4x128xf32> to vector<2x128xf32>
    %c0_71 = arith.constant 0 : index
    %c0_72 = arith.constant 0 : index
    %298 = vector.load %arg18[%c0_71, %c0_72] : memref<16x256xf32, #tpu.memory_space<vmem>>, vector<2x128xf32>
    tpu.vector_store %arg18[%c0_71, %c0_72], %297 {strides = array<i32>} : memref<16x256xf32, #tpu.memory_space<vmem>>, vector<2x128xf32>,
    %299 = vector.extract_strided_slice %296 {offsets = [2, 0], sizes = [2, 128], strides = [1, 1]} : vector<4x128xf32> to vector<2x128xf32>
    %c14_73 = arith.constant 14 : index
    %c128_74 = arith.constant 128 : index
    %300 = vector.load %arg18[%c14_73, %c128_74] : memref<16x256xf32, #tpu.memory_space<vmem>>, vector<2x128xf32>
    tpu.vector_store %arg18[%c14_73, %c128_74], %299 {strides = array<i32>} : memref<16x256xf32, #tpu.memory_space<vmem>>, vector<2x128xf32>,
    %301 = arith.truncf %296 : vector<4x128xf32> to vector<4x128xbf16>
    %cst_75 = arith.constant dense<0.000000e+00> : vector<4x1024xf32>
    %302 = tpu.matmul %301, %269, %cst_75 {dimension_numbers = #tpu.dot_dimension_numbers<[1], [0], [0], [1], [0, 0, 1, 1], [], []>} : vector<4x128xbf16>, vector<128x1024xbf16>, vector<4x1024xf32> -> vector<4x1024xf32>
    %303 = vector.extract_strided_slice %268 {offsets = [2, 0], sizes = [2, 512], strides = [1, 1]} : vector<16x1024xf32> to vector<2x512xf32>
    %304 = vector.extract_strided_slice %302 {offsets = [0, 0], sizes = [2, 512], strides = [1, 1]} : vector<4x1024xf32> to vector<2x512xf32>
    %305 = arith.addf %303, %304 : vector<2x512xf32>
    %306 = vector.extract_strided_slice %268 {offsets = [12, 512], sizes = [2, 512], strides = [1, 1]} : vector<16x1024xf32> to vector<2x512xf32>
    %307 = vector.extract_strided_slice %302 {offsets = [2, 512], sizes = [2, 512], strides = [1, 1]} : vector<4x1024xf32> to vector<2x512xf32>
    %308 = arith.addf %306, %307 : vector<2x512xf32>
    %309 = tpu.concatenate %305, %308 in 0 : vector<2x512xf32>, vector<2x512xf32> -> vector<4x512xf32>
    %310 = vector.extract_strided_slice %309 {offsets = [0, 0], sizes = [4, 384], strides = [1, 1]} : vector<4x512xf32> to vector<4x384xf32>
    %311 = arith.negf %310 : vector<4x384xf32>
    %312 = math.exp %311 : vector<4x384xf32>
    %cst_76 = arith.constant 1.000000e+00 : f32
    %313 = vector.broadcast %cst_76 : f32 to vector<4x384xf32>
    %314 = arith.addf %313, %312 : vector<4x384xf32>
    %315 = arith.divf %313, %314 : vector<4x384xf32>
    %316 = vector.extract_strided_slice %309 {offsets = [0, 384], sizes = [4, 128], strides = [1, 1]} : vector<4x512xf32> to vector<4x128xf32>
    %317 = math.tanh %316 : vector<4x128xf32>
    %318 = vector.extract_strided_slice %315 {offsets = [0, 128], sizes = [4, 128], strides = [1, 1]} : vector<4x384xf32> to vector<4x128xf32>
    %319 = arith.mulf %318, %293 : vector<4x128xf32>
    %320 = vector.extract_strided_slice %315 {offsets = [0, 0], sizes = [4, 128], strides = [1, 1]} : vector<4x384xf32> to vector<4x128xf32>
    %321 = arith.mulf %320, %317 : vector<4x128xf32>
    %322 = arith.addf %319, %321 : vector<4x128xf32>
    %323 = vector.extract_strided_slice %315 {offsets = [0, 256], sizes = [4, 128], strides = [1, 1]} : vector<4x384xf32> to vector<4x128xf32>
    %324 = math.tanh %322 : vector<4x128xf32>
    %325 = arith.mulf %323, %324 : vector<4x128xf32>
    %326 = vector.extract_strided_slice %325 {offsets = [0, 0], sizes = [2, 128], strides = [1, 1]} : vector<4x128xf32> to vector<2x128xf32>
    %c2_77 = arith.constant 2 : index
    %c0_78 = arith.constant 0 : index
    %327 = vector.load %arg18[%c2_77, %c0_78] : memref<16x256xf32, #tpu.memory_space<vmem>>, vector<2x128xf32>
    tpu.vector_store %arg18[%c2_77, %c0_78], %326 {strides = array<i32>} : memref<16x256xf32, #tpu.memory_space<vmem>>, vector<2x128xf32>,
    %328 = vector.extract_strided_slice %325 {offsets = [2, 0], sizes = [2, 128], strides = [1, 1]} : vector<4x128xf32> to vector<2x128xf32>
    %c12_79 = arith.constant 12 : index
    %c128_80 = arith.constant 128 : index
    %329 = vector.load %arg18[%c12_79, %c128_80] : memref<16x256xf32, #tpu.memory_space<vmem>>, vector<2x128xf32>
    tpu.vector_store %arg18[%c12_79, %c128_80], %328 {strides = array<i32>} : memref<16x256xf32, #tpu.memory_space<vmem>>, vector<2x128xf32>,
    %330 = arith.truncf %325 : vector<4x128xf32> to vector<4x128xbf16>
    %cst_81 = arith.constant dense<0.000000e+00> : vector<4x1024xf32>
    %331 = tpu.matmul %330, %269, %cst_81 {dimension_numbers = #tpu.dot_dimension_numbers<[1], [0], [0], [1], [0, 0, 1, 1], [], []>} : vector<4x128xbf16>, vector<128x1024xbf16>, vector<4x1024xf32> -> vector<4x1024xf32>
    %332 = vector.extract_strided_slice %268 {offsets = [4, 0], sizes = [2, 512], strides = [1, 1]} : vector<16x1024xf32> to vector<2x512xf32>
    %333 = vector.extract_strided_slice %331 {offsets = [0, 0], sizes = [2, 512], strides = [1, 1]} : vector<4x1024xf32> to vector<2x512xf32>
    %334 = arith.addf %332, %333 : vector<2x512xf32>
    %335 = vector.extract_strided_slice %268 {offsets = [10, 512], sizes = [2, 512], strides = [1, 1]} : vector<16x1024xf32> to vector<2x512xf32>
    %336 = vector.extract_strided_slice %331 {offsets = [2, 512], sizes = [2, 512], strides = [1, 1]} : vector<4x1024xf32> to vector<2x512xf32>
    %337 = arith.addf %335, %336 : vector<2x512xf32>
    %338 = tpu.concatenate %334, %337 in 0 : vector<2x512xf32>, vector<2x512xf32> -> vector<4x512xf32>
    %339 = vector.extract_strided_slice %338 {offsets = [0, 0], sizes = [4, 384], strides = [1, 1]} : vector<4x512xf32> to vector<4x384xf32>
    %340 = arith.negf %339 : vector<4x384xf32>
    %341 = math.exp %340 : vector<4x384xf32>
    %cst_82 = arith.constant 1.000000e+00 : f32
    %342 = vector.broadcast %cst_82 : f32 to vector<4x384xf32>
    %343 = arith.addf %342, %341 : vector<4x384xf32>
    %344 = arith.divf %342, %343 : vector<4x384xf32>
    %345 = vector.extract_strided_slice %338 {offsets = [0, 384], sizes = [4, 128], strides = [1, 1]} : vector<4x512xf32> to vector<4x128xf32>
    %346 = math.tanh %345 : vector<4x128xf32>
    %347 = vector.extract_strided_slice %344 {offsets = [0, 128], sizes = [4, 128], strides = [1, 1]} : vector<4x384xf32> to vector<4x128xf32>
    %348 = arith.mulf %347, %322 : vector<4x128xf32>
    %349 = vector.extract_strided_slice %344 {offsets = [0, 0], sizes = [4, 128], strides = [1, 1]} : vector<4x384xf32> to vector<4x128xf32>
    %350 = arith.mulf %349, %346 : vector<4x128xf32>
    %351 = arith.addf %348, %350 : vector<4x128xf32>
    %352 = vector.extract_strided_slice %344 {offsets = [0, 256], sizes = [4, 128], strides = [1, 1]} : vector<4x384xf32> to vector<4x128xf32>
    %353 = math.tanh %351 : vector<4x128xf32>
    %354 = arith.mulf %352, %353 : vector<4x128xf32>
    %355 = vector.extract_strided_slice %354 {offsets = [0, 0], sizes = [2, 128], strides = [1, 1]} : vector<4x128xf32> to vector<2x128xf32>
    %c4_83 = arith.constant 4 : index
    %c0_84 = arith.constant 0 : index
    %356 = vector.load %arg18[%c4_83, %c0_84] : memref<16x256xf32, #tpu.memory_space<vmem>>, vector<2x128xf32>
    tpu.vector_store %arg18[%c4_83, %c0_84], %355 {strides = array<i32>} : memref<16x256xf32, #tpu.memory_space<vmem>>, vector<2x128xf32>,
    %357 = vector.extract_strided_slice %354 {offsets = [2, 0], sizes = [2, 128], strides = [1, 1]} : vector<4x128xf32> to vector<2x128xf32>
    %c10_85 = arith.constant 10 : index
    %c128_86 = arith.constant 128 : index
    %358 = vector.load %arg18[%c10_85, %c128_86] : memref<16x256xf32, #tpu.memory_space<vmem>>, vector<2x128xf32>
    tpu.vector_store %arg18[%c10_85, %c128_86], %357 {strides = array<i32>} : memref<16x256xf32, #tpu.memory_space<vmem>>, vector<2x128xf32>,
    %359 = arith.truncf %354 : vector<4x128xf32> to vector<4x128xbf16>
    %cst_87 = arith.constant dense<0.000000e+00> : vector<4x1024xf32>
    %360 = tpu.matmul %359, %269, %cst_87 {dimension_numbers = #tpu.dot_dimension_numbers<[1], [0], [0], [1], [0, 0, 1, 1], [], []>} : vector<4x128xbf16>, vector<128x1024xbf16>, vector<4x1024xf32> -> vector<4x1024xf32>
    %361 = vector.extract_strided_slice %268 {offsets = [6, 0], sizes = [2, 512], strides = [1, 1]} : vector<16x1024xf32> to vector<2x512xf32>
    %362 = vector.extract_strided_slice %360 {offsets = [0, 0], sizes = [2, 512], strides = [1, 1]} : vector<4x1024xf32> to vector<2x512xf32>
    %363 = arith.addf %361, %362 : vector<2x512xf32>
    %364 = vector.extract_strided_slice %268 {offsets = [8, 512], sizes = [2, 512], strides = [1, 1]} : vector<16x1024xf32> to vector<2x512xf32>
    %365 = vector.extract_strided_slice %360 {offsets = [2, 512], sizes = [2, 512], strides = [1, 1]} : vector<4x1024xf32> to vector<2x512xf32>
    %366 = arith.addf %364, %365 : vector<2x512xf32>
    %367 = tpu.concatenate %363, %366 in 0 : vector<2x512xf32>, vector<2x512xf32> -> vector<4x512xf32>
    %368 = vector.extract_strided_slice %367 {offsets = [0, 0], sizes = [4, 384], strides = [1, 1]} : vector<4x512xf32> to vector<4x384xf32>
    %369 = arith.negf %368 : vector<4x384xf32>
    %370 = math.exp %369 : vector<4x384xf32>
    %cst_88 = arith.constant 1.000000e+00 : f32
    %371 = vector.broadcast %cst_88 : f32 to vector<4x384xf32>
    %372 = arith.addf %371, %370 : vector<4x384xf32>
    %373 = arith.divf %371, %372 : vector<4x384xf32>
    %374 = vector.extract_strided_slice %367 {offsets = [0, 384], sizes = [4, 128], strides = [1, 1]} : vector<4x512xf32> to vector<4x128xf32>
    %375 = math.tanh %374 : vector<4x128xf32>
    %376 = vector.extract_strided_slice %373 {offsets = [0, 128], sizes = [4, 128], strides = [1, 1]} : vector<4x384xf32> to vector<4x128xf32>
    %377 = arith.mulf %376, %351 : vector<4x128xf32>
    %378 = vector.extract_strided_slice %373 {offsets = [0, 0], sizes = [4, 128], strides = [1, 1]} : vector<4x384xf32> to vector<4x128xf32>
    %379 = arith.mulf %378, %375 : vector<4x128xf32>
    %380 = arith.addf %377, %379 : vector<4x128xf32>
    %381 = vector.extract_strided_slice %373 {offsets = [0, 256], sizes = [4, 128], strides = [1, 1]} : vector<4x384xf32> to vector<4x128xf32>
    %382 = math.tanh %380 : vector<4x128xf32>
    %383 = arith.mulf %381, %382 : vector<4x128xf32>
    %384 = vector.extract_strided_slice %383 {offsets = [0, 0], sizes = [2, 128], strides = [1, 1]} : vector<4x128xf32> to vector<2x128xf32>
    %c6_89 = arith.constant 6 : index
    %c0_90 = arith.constant 0 : index
    %385 = vector.load %arg18[%c6_89, %c0_90] : memref<16x256xf32, #tpu.memory_space<vmem>>, vector<2x128xf32>
    tpu.vector_store %arg18[%c6_89, %c0_90], %384 {strides = array<i32>} : memref<16x256xf32, #tpu.memory_space<vmem>>, vector<2x128xf32>,
    %386 = vector.extract_strided_slice %383 {offsets = [2, 0], sizes = [2, 128], strides = [1, 1]} : vector<4x128xf32> to vector<2x128xf32>
    %c8_91 = arith.constant 8 : index
    %c128_92 = arith.constant 128 : index
    %387 = vector.load %arg18[%c8_91, %c128_92] : memref<16x256xf32, #tpu.memory_space<vmem>>, vector<2x128xf32>
    tpu.vector_store %arg18[%c8_91, %c128_92], %386 {strides = array<i32>} : memref<16x256xf32, #tpu.memory_space<vmem>>, vector<2x128xf32>,
    %388 = arith.truncf %383 : vector<4x128xf32> to vector<4x128xbf16>
    %cst_93 = arith.constant dense<0.000000e+00> : vector<4x1024xf32>
    %389 = tpu.matmul %388, %269, %cst_93 {dimension_numbers = #tpu.dot_dimension_numbers<[1], [0], [0], [1], [0, 0, 1, 1], [], []>} : vector<4x128xbf16>, vector<128x1024xbf16>, vector<4x1024xf32> -> vector<4x1024xf32>
    %390 = vector.extract_strided_slice %268 {offsets = [8, 0], sizes = [2, 512], strides = [1, 1]} : vector<16x1024xf32> to vector<2x512xf32>
    %391 = vector.extract_strided_slice %389 {offsets = [0, 0], sizes = [2, 512], strides = [1, 1]} : vector<4x1024xf32> to vector<2x512xf32>
    %392 = arith.addf %390, %391 : vector<2x512xf32>
    %393 = vector.extract_strided_slice %268 {offsets = [6, 512], sizes = [2, 512], strides = [1, 1]} : vector<16x1024xf32> to vector<2x512xf32>
    %394 = vector.extract_strided_slice %389 {offsets = [2, 512], sizes = [2, 512], strides = [1, 1]} : vector<4x1024xf32> to vector<2x512xf32>
    %395 = arith.addf %393, %394 : vector<2x512xf32>
    %396 = tpu.concatenate %392, %395 in 0 : vector<2x512xf32>, vector<2x512xf32> -> vector<4x512xf32>
    %397 = vector.extract_strided_slice %396 {offsets = [0, 0], sizes = [4, 384], strides = [1, 1]} : vector<4x512xf32> to vector<4x384xf32>
    %398 = arith.negf %397 : vector<4x384xf32>
    %399 = math.exp %398 : vector<4x384xf32>
    %cst_94 = arith.constant 1.000000e+00 : f32
    %400 = vector.broadcast %cst_94 : f32 to vector<4x384xf32>
    %401 = arith.addf %400, %399 : vector<4x384xf32>
    %402 = arith.divf %400, %401 : vector<4x384xf32>
    %403 = vector.extract_strided_slice %396 {offsets = [0, 384], sizes = [4, 128], strides = [1, 1]} : vector<4x512xf32> to vector<4x128xf32>
    %404 = math.tanh %403 : vector<4x128xf32>
    %405 = vector.extract_strided_slice %402 {offsets = [0, 128], sizes = [4, 128], strides = [1, 1]} : vector<4x384xf32> to vector<4x128xf32>
    %406 = arith.mulf %405, %380 : vector<4x128xf32>
    %407 = vector.extract_strided_slice %402 {offsets = [0, 0], sizes = [4, 128], strides = [1, 1]} : vector<4x384xf32> to vector<4x128xf32>
    %408 = arith.mulf %407, %404 : vector<4x128xf32>
    %409 = arith.addf %406, %408 : vector<4x128xf32>
    %410 = vector.extract_strided_slice %402 {offsets = [0, 256], sizes = [4, 128], strides = [1, 1]} : vector<4x384xf32> to vector<4x128xf32>
    %411 = math.tanh %409 : vector<4x128xf32>
    %412 = arith.mulf %410, %411 : vector<4x128xf32>
    %413 = vector.extract_strided_slice %412 {offsets = [0, 0], sizes = [2, 128], strides = [1, 1]} : vector<4x128xf32> to vector<2x128xf32>
    %c8_95 = arith.constant 8 : index
    %c0_96 = arith.constant 0 : index
    %414 = vector.load %arg18[%c8_95, %c0_96] : memref<16x256xf32, #tpu.memory_space<vmem>>, vector<2x128xf32>
    tpu.vector_store %arg18[%c8_95, %c0_96], %413 {strides = array<i32>} : memref<16x256xf32, #tpu.memory_space<vmem>>, vector<2x128xf32>,
    %415 = vector.extract_strided_slice %412 {offsets = [2, 0], sizes = [2, 128], strides = [1, 1]} : vector<4x128xf32> to vector<2x128xf32>
    %c6_97 = arith.constant 6 : index
    %c128_98 = arith.constant 128 : index
    %416 = vector.load %arg18[%c6_97, %c128_98] : memref<16x256xf32, #tpu.memory_space<vmem>>, vector<2x128xf32>
    tpu.vector_store %arg18[%c6_97, %c128_98], %415 {strides = array<i32>} : memref<16x256xf32, #tpu.memory_space<vmem>>, vector<2x128xf32>,
    %417 = arith.truncf %412 : vector<4x128xf32> to vector<4x128xbf16>
    %cst_99 = arith.constant dense<0.000000e+00> : vector<4x1024xf32>
    %418 = tpu.matmul %417, %269, %cst_99 {dimension_numbers = #tpu.dot_dimension_numbers<[1], [0], [0], [1], [0, 0, 1, 1], [], []>} : vector<4x128xbf16>, vector<128x1024xbf16>, vector<4x1024xf32> -> vector<4x1024xf32>
    %419 = vector.extract_strided_slice %268 {offsets = [10, 0], sizes = [2, 512], strides = [1, 1]} : vector<16x1024xf32> to vector<2x512xf32>
    %420 = vector.extract_strided_slice %418 {offsets = [0, 0], sizes = [2, 512], strides = [1, 1]} : vector<4x1024xf32> to vector<2x512xf32>
    %421 = arith.addf %419, %420 : vector<2x512xf32>
    %422 = vector.extract_strided_slice %268 {offsets = [4, 512], sizes = [2, 512], strides = [1, 1]} : vector<16x1024xf32> to vector<2x512xf32>
    %423 = vector.extract_strided_slice %418 {offsets = [2, 512], sizes = [2, 512], strides = [1, 1]} : vector<4x1024xf32> to vector<2x512xf32>
    %424 = arith.addf %422, %423 : vector<2x512xf32>
    %425 = tpu.concatenate %421, %424 in 0 : vector<2x512xf32>, vector<2x512xf32> -> vector<4x512xf32>
    %426 = vector.extract_strided_slice %425 {offsets = [0, 0], sizes = [4, 384], strides = [1, 1]} : vector<4x512xf32> to vector<4x384xf32>
    %427 = arith.negf %426 : vector<4x384xf32>
    %428 = math.exp %427 : vector<4x384xf32>
    %cst_100 = arith.constant 1.000000e+00 : f32
    %429 = vector.broadcast %cst_100 : f32 to vector<4x384xf32>
    %430 = arith.addf %429, %428 : vector<4x384xf32>
    %431 = arith.divf %429, %430 : vector<4x384xf32>
    %432 = vector.extract_strided_slice %425 {offsets = [0, 384], sizes = [4, 128], strides = [1, 1]} : vector<4x512xf32> to vector<4x128xf32>
    %433 = math.tanh %432 : vector<4x128xf32>
    %434 = vector.extract_strided_slice %431 {offsets = [0, 128], sizes = [4, 128], strides = [1, 1]} : vector<4x384xf32> to vector<4x128xf32>
    %435 = arith.mulf %434, %409 : vector<4x128xf32>
    %436 = vector.extract_strided_slice %431 {offsets = [0, 0], sizes = [4, 128], strides = [1, 1]} : vector<4x384xf32> to vector<4x128xf32>
    %437 = arith.mulf %436, %433 : vector<4x128xf32>
    %438 = arith.addf %435, %437 : vector<4x128xf32>
    %439 = vector.extract_strided_slice %431 {offsets = [0, 256], sizes = [4, 128], strides = [1, 1]} : vector<4x384xf32> to vector<4x128xf32>
    %440 = math.tanh %438 : vector<4x128xf32>
    %441 = arith.mulf %439, %440 : vector<4x128xf32>
    %442 = vector.extract_strided_slice %441 {offsets = [0, 0], sizes = [2, 128], strides = [1, 1]} : vector<4x128xf32> to vector<2x128xf32>
    %c10_101 = arith.constant 10 : index
    %c0_102 = arith.constant 0 : index
    %443 = vector.load %arg18[%c10_101, %c0_102] : memref<16x256xf32, #tpu.memory_space<vmem>>, vector<2x128xf32>
    tpu.vector_store %arg18[%c10_101, %c0_102], %442 {strides = array<i32>} : memref<16x256xf32, #tpu.memory_space<vmem>>, vector<2x128xf32>,
    %444 = vector.extract_strided_slice %441 {offsets = [2, 0], sizes = [2, 128], strides = [1, 1]} : vector<4x128xf32> to vector<2x128xf32>
    %c4_103 = arith.constant 4 : index
    %c128_104 = arith.constant 128 : index
    %445 = vector.load %arg18[%c4_103, %c128_104] : memref<16x256xf32, #tpu.memory_space<vmem>>, vector<2x128xf32>
    tpu.vector_store %arg18[%c4_103, %c128_104], %444 {strides = array<i32>} : memref<16x256xf32, #tpu.memory_space<vmem>>, vector<2x128xf32>,
    %446 = arith.truncf %441 : vector<4x128xf32> to vector<4x128xbf16>
    %cst_105 = arith.constant dense<0.000000e+00> : vector<4x1024xf32>
    %447 = tpu.matmul %446, %269, %cst_105 {dimension_numbers = #tpu.dot_dimension_numbers<[1], [0], [0], [1], [0, 0, 1, 1], [], []>} : vector<4x128xbf16>, vector<128x1024xbf16>, vector<4x1024xf32> -> vector<4x1024xf32>
    %448 = vector.extract_strided_slice %268 {offsets = [12, 0], sizes = [2, 512], strides = [1, 1]} : vector<16x1024xf32> to vector<2x512xf32>
    %449 = vector.extract_strided_slice %447 {offsets = [0, 0], sizes = [2, 512], strides = [1, 1]} : vector<4x1024xf32> to vector<2x512xf32>
    %450 = arith.addf %448, %449 : vector<2x512xf32>
    %451 = vector.extract_strided_slice %268 {offsets = [2, 512], sizes = [2, 512], strides = [1, 1]} : vector<16x1024xf32> to vector<2x512xf32>
    %452 = vector.extract_strided_slice %447 {offsets = [2, 512], sizes = [2, 512], strides = [1, 1]} : vector<4x1024xf32> to vector<2x512xf32>
    %453 = arith.addf %451, %452 : vector<2x512xf32>
    %454 = tpu.concatenate %450, %453 in 0 : vector<2x512xf32>, vector<2x512xf32> -> vector<4x512xf32>
    %455 = vector.extract_strided_slice %454 {offsets = [0, 0], sizes = [4, 384], strides = [1, 1]} : vector<4x512xf32> to vector<4x384xf32>
    %456 = arith.negf %455 : vector<4x384xf32>
    %457 = math.exp %456 : vector<4x384xf32>
    %cst_106 = arith.constant 1.000000e+00 : f32
    %458 = vector.broadcast %cst_106 : f32 to vector<4x384xf32>
    %459 = arith.addf %458, %457 : vector<4x384xf32>
    %460 = arith.divf %458, %459 : vector<4x384xf32>
    %461 = vector.extract_strided_slice %454 {offsets = [0, 384], sizes = [4, 128], strides = [1, 1]} : vector<4x512xf32> to vector<4x128xf32>
    %462 = math.tanh %461 : vector<4x128xf32>
    %463 = vector.extract_strided_slice %460 {offsets = [0, 128], sizes = [4, 128], strides = [1, 1]} : vector<4x384xf32> to vector<4x128xf32>
    %464 = arith.mulf %463, %438 : vector<4x128xf32>
    %465 = vector.extract_strided_slice %460 {offsets = [0, 0], sizes = [4, 128], strides = [1, 1]} : vector<4x384xf32> to vector<4x128xf32>
    %466 = arith.mulf %465, %462 : vector<4x128xf32>
    %467 = arith.addf %464, %466 : vector<4x128xf32>
    %468 = vector.extract_strided_slice %460 {offsets = [0, 256], sizes = [4, 128], strides = [1, 1]} : vector<4x384xf32> to vector<4x128xf32>
    %469 = math.tanh %467 : vector<4x128xf32>
    %470 = arith.mulf %468, %469 : vector<4x128xf32>
    %471 = vector.extract_strided_slice %470 {offsets = [0, 0], sizes = [2, 128], strides = [1, 1]} : vector<4x128xf32> to vector<2x128xf32>
    %c12_107 = arith.constant 12 : index
    %c0_108 = arith.constant 0 : index
    %472 = vector.load %arg18[%c12_107, %c0_108] : memref<16x256xf32, #tpu.memory_space<vmem>>, vector<2x128xf32>
    tpu.vector_store %arg18[%c12_107, %c0_108], %471 {strides = array<i32>} : memref<16x256xf32, #tpu.memory_space<vmem>>, vector<2x128xf32>,
    %473 = vector.extract_strided_slice %470 {offsets = [2, 0], sizes = [2, 128], strides = [1, 1]} : vector<4x128xf32> to vector<2x128xf32>
    %c2_109 = arith.constant 2 : index
    %c128_110 = arith.constant 128 : index
    %474 = vector.load %arg18[%c2_109, %c128_110] : memref<16x256xf32, #tpu.memory_space<vmem>>, vector<2x128xf32>
    tpu.vector_store %arg18[%c2_109, %c128_110], %473 {strides = array<i32>} : memref<16x256xf32, #tpu.memory_space<vmem>>, vector<2x128xf32>,
    %475 = arith.truncf %470 : vector<4x128xf32> to vector<4x128xbf16>
    %cst_111 = arith.constant dense<0.000000e+00> : vector<4x1024xf32>
    %476 = tpu.matmul %475, %269, %cst_111 {dimension_numbers = #tpu.dot_dimension_numbers<[1], [0], [0], [1], [0, 0, 1, 1], [], []>} : vector<4x128xbf16>, vector<128x1024xbf16>, vector<4x1024xf32> -> vector<4x1024xf32>
    %477 = vector.extract_strided_slice %268 {offsets = [14, 0], sizes = [2, 512], strides = [1, 1]} : vector<16x1024xf32> to vector<2x512xf32>
    %478 = vector.extract_strided_slice %476 {offsets = [0, 0], sizes = [2, 512], strides = [1, 1]} : vector<4x1024xf32> to vector<2x512xf32>
    %479 = arith.addf %477, %478 : vector<2x512xf32>
    %480 = vector.extract_strided_slice %268 {offsets = [0, 512], sizes = [2, 512], strides = [1, 1]} : vector<16x1024xf32> to vector<2x512xf32>
    %481 = vector.extract_strided_slice %476 {offsets = [2, 512], sizes = [2, 512], strides = [1, 1]} : vector<4x1024xf32> to vector<2x512xf32>
    %482 = arith.addf %480, %481 : vector<2x512xf32>
    %483 = tpu.concatenate %479, %482 in 0 : vector<2x512xf32>, vector<2x512xf32> -> vector<4x512xf32>
    %484 = vector.extract_strided_slice %483 {offsets = [0, 0], sizes = [4, 384], strides = [1, 1]} : vector<4x512xf32> to vector<4x384xf32>
    %485 = arith.negf %484 : vector<4x384xf32>
    %486 = math.exp %485 : vector<4x384xf32>
    %cst_112 = arith.constant 1.000000e+00 : f32
    %487 = vector.broadcast %cst_112 : f32 to vector<4x384xf32>
    %488 = arith.addf %487, %486 : vector<4x384xf32>
    %489 = arith.divf %487, %488 : vector<4x384xf32>
    %490 = vector.extract_strided_slice %483 {offsets = [0, 384], sizes = [4, 128], strides = [1, 1]} : vector<4x512xf32> to vector<4x128xf32>
    %491 = math.tanh %490 : vector<4x128xf32>
    %492 = vector.extract_strided_slice %489 {offsets = [0, 128], sizes = [4, 128], strides = [1, 1]} : vector<4x384xf32> to vector<4x128xf32>
    %493 = arith.mulf %492, %467 : vector<4x128xf32>
    %494 = vector.extract_strided_slice %489 {offsets = [0, 0], sizes = [4, 128], strides = [1, 1]} : vector<4x384xf32> to vector<4x128xf32>
    %495 = arith.mulf %494, %491 : vector<4x128xf32>
    %496 = arith.addf %493, %495 : vector<4x128xf32>
    %497 = vector.extract_strided_slice %489 {offsets = [0, 256], sizes = [4, 128], strides = [1, 1]} : vector<4x384xf32> to vector<4x128xf32>
    %498 = math.tanh %496 : vector<4x128xf32>
    %499 = arith.mulf %497, %498 : vector<4x128xf32>
    %500 = vector.extract_strided_slice %499 {offsets = [0, 0], sizes = [2, 128], strides = [1, 1]} : vector<4x128xf32> to vector<2x128xf32>
    %c14_113 = arith.constant 14 : index
    %c0_114 = arith.constant 0 : index
    %501 = vector.load %arg18[%c14_113, %c0_114] : memref<16x256xf32, #tpu.memory_space<vmem>>, vector<2x128xf32>
    tpu.vector_store %arg18[%c14_113, %c0_114], %500 {strides = array<i32>} : memref<16x256xf32, #tpu.memory_space<vmem>>, vector<2x128xf32>,
    %502 = vector.extract_strided_slice %499 {offsets = [2, 0], sizes = [2, 128], strides = [1, 1]} : vector<4x128xf32> to vector<2x128xf32>
    %c0_115 = arith.constant 0 : index
    %c128_116 = arith.constant 128 : index
    %503 = vector.load %arg18[%c0_115, %c128_116] : memref<16x256xf32, #tpu.memory_space<vmem>>, vector<2x128xf32>
    tpu.vector_store %arg18[%c0_115, %c128_116], %502 {strides = array<i32>} : memref<16x256xf32, #tpu.memory_space<vmem>>, vector<2x128xf32>,
    %504 = vector.extract_strided_slice %499 {offsets = [0, 0], sizes = [2, 128], strides = [1, 1]} : vector<4x128xf32> to vector<2x128xf32>
    %505 = vector.extract_strided_slice %499 {offsets = [2, 0], sizes = [2, 128], strides = [1, 1]} : vector<4x128xf32> to vector<2x128xf32>
    %506 = tpu.concatenate %504, %505 in 1 : vector<2x128xf32>, vector<2x128xf32> -> vector<2x256xf32>
    %c2_i32_117 = arith.constant 2 : i32
    %507 = tpu.memref_slice %arg23[%c2_i32_117] : memref<4x!tpu.dma_semaphore, #tpu.memory_space<semaphore_mem>> -> memref<1x!tpu.dma_semaphore, #tpu.memory_space<semaphore_mem>>
    %508 = tpu.memref_squeeze %507 : memref<1x!tpu.dma_semaphore, #tpu.memory_space<semaphore_mem>> -> memref<!tpu.dma_semaphore, #tpu.memory_space<semaphore_mem>>
    tpu.wait_dma2 semaphore(%508 : memref<!tpu.dma_semaphore, #tpu.memory_space<semaphore_mem>>) src(%arg14 : memref<256x256xbf16, #tpu.memory_space<any>>) dst(%arg21 : memref<256x256xbf16, #tpu.memory_space<vmem>>)
    %c0_118 = arith.constant 0 : index
    %c0_119 = arith.constant 0 : index
    %509 = vector.load %arg18[%c0_118, %c0_119] : memref<16x256xf32, #tpu.memory_space<vmem>>, vector<2x256xf32>
    %c2_120 = arith.constant 2 : index
    %c0_121 = arith.constant 0 : index
    %510 = vector.load %arg18[%c2_120, %c0_121] : memref<16x256xf32, #tpu.memory_space<vmem>>, vector<2x256xf32>
    %c4_122 = arith.constant 4 : index
    %c0_123 = arith.constant 0 : index
    %511 = vector.load %arg18[%c4_122, %c0_123] : memref<16x256xf32, #tpu.memory_space<vmem>>, vector<2x256xf32>
    %c6_124 = arith.constant 6 : index
    %c0_125 = arith.constant 0 : index
    %512 = vector.load %arg18[%c6_124, %c0_125] : memref<16x256xf32, #tpu.memory_space<vmem>>, vector<2x256xf32>
    %c8_126 = arith.constant 8 : index
    %c0_127 = arith.constant 0 : index
    %513 = vector.load %arg18[%c8_126, %c0_127] : memref<16x256xf32, #tpu.memory_space<vmem>>, vector<2x256xf32>
    %c10_128 = arith.constant 10 : index
    %c0_129 = arith.constant 0 : index
    %514 = vector.load %arg18[%c10_128, %c0_129] : memref<16x256xf32, #tpu.memory_space<vmem>>, vector<2x256xf32>
    %c12_130 = arith.constant 12 : index
    %c0_131 = arith.constant 0 : index
    %515 = vector.load %arg18[%c12_130, %c0_131] : memref<16x256xf32, #tpu.memory_space<vmem>>, vector<2x256xf32>
    %c14_132 = arith.constant 14 : index
    %c0_133 = arith.constant 0 : index
    %516 = vector.load %arg18[%c14_132, %c0_133] : memref<16x256xf32, #tpu.memory_space<vmem>>, vector<2x256xf32>
    %517 = vector.shape_cast %509 : vector<2x256xf32> to vector<2x1x256xf32>
    %518 = vector.shape_cast %510 : vector<2x256xf32> to vector<2x1x256xf32>
    %519 = vector.shape_cast %511 : vector<2x256xf32> to vector<2x1x256xf32>
    %520 = vector.shape_cast %512 : vector<2x256xf32> to vector<2x1x256xf32>
    %521 = vector.shape_cast %513 : vector<2x256xf32> to vector<2x1x256xf32>
    %522 = vector.shape_cast %514 : vector<2x256xf32> to vector<2x1x256xf32>
    %523 = vector.shape_cast %515 : vector<2x256xf32> to vector<2x1x256xf32>
    %524 = vector.shape_cast %516 : vector<2x256xf32> to vector<2x1x256xf32>
    %525 = tpu.concatenate %517, %518, %519, %520, %521, %522, %523, %524 in 1 : vector<2x1x256xf32>, vector<2x1x256xf32>, vector<2x1x256xf32>, vector<2x1x256xf32>, vector<2x1x256xf32>, vector<2x1x256xf32>, vector<2x1x256xf32>, vector<2x1x256xf32> -> vector<2x8x256xf32>
    %c0_134 = arith.constant 0 : index
    %c0_135 = arith.constant 0 : index
    %526 = vector.load %arg8[%c0_134, %c0_135] : memref<2x8xf32, #tpu.memory_space<vmem>>, vector<2x8xf32>
    %527 = arith.truncf %506 : vector<2x256xf32> to vector<2x256xbf16>
    %c0_136 = arith.constant 0 : index
    %c0_137 = arith.constant 0 : index
    %528 = vector.load %arg21[%c0_136, %c0_137] : memref<256x256xbf16, #tpu.memory_space<vmem>>, vector<256x256xbf16>
    %cst_138 = arith.constant dense<0.000000e+00> : vector<2x256xf32>
    %529 = tpu.matmul %527, %528, %cst_138 {dimension_numbers = #tpu.dot_dimension_numbers<[1], [0], [0], [1], [0, 0, 1, 1], [], []>} : vector<2x256xbf16>, vector<256x256xbf16>, vector<2x256xf32> -> vector<2x256xf32>
    %530 = vector.shape_cast %529 : vector<2x256xf32> to vector<2x1x256xf32>
    %531 = vector.broadcast %530 : vector<2x1x256xf32> to vector<2x8x256xf32>
    %532 = arith.mulf %525, %531 : vector<2x8x256xf32>
    %cst_139 = arith.constant dense<0.000000e+00> : vector<2x8xf32>
    %533 = vector.multi_reduction <add>, %532, %cst_139 [2] : vector<2x8x256xf32> to vector<2x8xf32>
    %534 = arith.mulf %533, %526 : vector<2x8xf32>
    %cst_140 = arith.constant dense<0xFF800000> : vector<2xf32>
    %535 = vector.multi_reduction <maximumf>, %534, %cst_140 [1] : vector<2x8xf32> to vector<2xf32>
    %536 = vector.shape_cast %535 : vector<2xf32> to vector<2x1xf32>
    %537 = vector.broadcast %536 : vector<2x1xf32> to vector<2x8xf32>
    %538 = arith.subf %534, %537 : vector<2x8xf32>
    %539 = math.exp %538 : vector<2x8xf32>
    %cst_141 = arith.constant dense<0.000000e+00> : vector<2xf32>
    %540 = vector.multi_reduction <add>, %539, %cst_141 [1] : vector<2x8xf32> to vector<2xf32>
    %541 = vector.shape_cast %540 : vector<2xf32> to vector<2x1xf32>
    %542 = tpu.reciprocal %541 {approx = true} : vector<2x1xf32> -> vector<2x1xf32>
    %543 = vector.broadcast %542 : vector<2x1xf32> to vector<2x8xf32>
    %544 = arith.mulf %539, %543 : vector<2x8xf32>
    %545 = arith.mulf %544, %526 : vector<2x8xf32>
    %546 = vector.shape_cast %545 : vector<2x8xf32> to vector<2x8x1xf32>
    %547 = vector.broadcast %546 : vector<2x8x1xf32> to vector<2x8x256xf32>
    %548 = arith.mulf %525, %547 : vector<2x8x256xf32>
    %cst_142 = arith.constant dense<0.000000e+00> : vector<2x256xf32>
    %549 = vector.multi_reduction <add>, %548, %cst_142 [1] : vector<2x8x256xf32> to vector<2x256xf32>
    %c3_i32_143 = arith.constant 3 : i32
    %550 = tpu.memref_slice %arg23[%c3_i32_143] : memref<4x!tpu.dma_semaphore, #tpu.memory_space<semaphore_mem>> -> memref<1x!tpu.dma_semaphore, #tpu.memory_space<semaphore_mem>>
    %551 = tpu.memref_squeeze %550 : memref<1x!tpu.dma_semaphore, #tpu.memory_space<semaphore_mem>> -> memref<!tpu.dma_semaphore, #tpu.memory_space<semaphore_mem>>
    tpu.wait_dma2 semaphore(%551 : memref<!tpu.dma_semaphore, #tpu.memory_space<semaphore_mem>>) src(%arg15 : memref<512x512xbf16, #tpu.memory_space<any>>) dst(%arg22 : memref<512x512xbf16, #tpu.memory_space<vmem>>)
    %552 = tpu.concatenate %549, %506 in 1 : vector<2x256xf32>, vector<2x256xf32> -> vector<2x512xf32>
    %553 = arith.truncf %552 : vector<2x512xf32> to vector<2x512xbf16>
    %c0_144 = arith.constant 0 : index
    %c0_145 = arith.constant 0 : index
    %554 = vector.load %arg22[%c0_144, %c0_145] : memref<512x512xbf16, #tpu.memory_space<vmem>>, vector<512x512xbf16>
    %cst_146 = arith.constant dense<0.000000e+00> : vector<2x512xf32>
    %555 = tpu.matmul %553, %554, %cst_146 {dimension_numbers = #tpu.dot_dimension_numbers<[1], [0], [0], [1], [0, 0, 1, 1], [], []>} : vector<2x512xbf16>, vector<512x512xbf16>, vector<2x512xf32> -> vector<2x512xf32>
    %c0_147 = arith.constant 0 : index
    %c0_148 = arith.constant 0 : index
    %556 = vector.load %arg9[%c0_147, %c0_148] : memref<1x512xf32, #tpu.memory_space<vmem>>, vector<1x512xf32>
    %557 = vector.broadcast %556 : vector<1x512xf32> to vector<2x512xf32>
    %558 = arith.addf %555, %557 : vector<2x512xf32>
    %cst_149 = arith.constant 0.000000e+00 : f32
    %559 = vector.broadcast %cst_149 : f32 to vector<2x512xf32>
    %560 = arith.cmpf oge, %558, %559 : vector<2x512xf32>
    %cst_150 = arith.constant 2.000000e-01 : f32
    %561 = vector.broadcast %cst_150 : f32 to vector<2x512xf32>
    %562 = arith.mulf %561, %558 : vector<2x512xf32>
    %563 = arith.select %560, %558, %562 : vector<2x512xi1>, vector<2x512xf32>
    %564 = arith.truncf %563 : vector<2x512xf32> to vector<2x512xbf16>
    %c0_151 = arith.constant 0 : index
    %c0_152 = arith.constant 0 : index
    %565 = vector.load %arg10[%c0_151, %c0_152] : memref<512x8xbf16, #tpu.memory_space<vmem>>, vector<512x8xbf16>
    %cst_153 = arith.constant dense<0.000000e+00> : vector<2x8xf32>
    %566 = tpu.matmul %564, %565, %cst_153 {dimension_numbers = #tpu.dot_dimension_numbers<[1], [0], [0], [1], [0, 0, 1, 1], [], []>} : vector<2x512xbf16>, vector<512x8xbf16>, vector<2x8xf32> -> vector<2x8xf32>
    %c0_154 = arith.constant 0 : index
    %c0_155 = arith.constant 0 : index
    %567 = vector.load %arg11[%c0_154, %c0_155] : memref<1x8xf32, #tpu.memory_space<vmem>>, vector<1x8xf32>
    %568 = vector.broadcast %567 : vector<1x8xf32> to vector<2x8xf32>
    %569 = arith.addf %566, %568 : vector<2x8xf32>
    %570 = arith.negf %569 : vector<2x8xf32>
    %571 = math.exp %570 : vector<2x8xf32>
    %cst_156 = arith.constant 1.000000e+00 : f32
    %572 = vector.broadcast %cst_156 : f32 to vector<2x8xf32>
    %573 = arith.addf %572, %571 : vector<2x8xf32>
    %574 = arith.divf %572, %573 : vector<2x8xf32>
    %c0_157 = arith.constant 0 : index
    %c0_158 = arith.constant 0 : index
    %575 = vector.load %arg16[%c0_157, %c0_158] : memref<2x8xf32, #tpu.memory_space<vmem>>, vector<2x8xf32>
    tpu.vector_store %arg16[%c0_157, %c0_158], %574 {strides = array<i32>} : memref<2x8xf32, #tpu.memory_space<vmem>>, vector<2x8xf32>,
    return
  }
}

</mosaic_0001>

<llo_original>
// kernel: multi_intent_forward.1
$region0: #{multi_intent_forward.1}
  #allocation0 [shape = 'u32[]', space=smem, size = 0x4, offset = 0x4, fixed_abs, tag = 'smem constant byte address 0x4 - core index']
  #allocation1 [shape = 'u32[144,128]{1,0:T(1,128)}', space=vmem, size = 0x12000, scoped, tag = 'internal scratch']
  #allocation2 [shape = 'f32[16,256]{1,0:T(8,128)}', space=vmem, size = 0x4000, scoped, tag = 'scratch operand']
  #allocation3 [shape = 'f32[16,256]{1,0:T(8,128)}', space=vmem, size = 0x4000, scoped, tag = 'scratch operand']
  #allocation4 [shape = 'bf16[256,1024]{1,0:T(16,128)(2,1)}', space=vmem, size = 0x80000, scoped, tag = 'scratch operand']
  #allocation5 [shape = 'bf16[128,1024]{1,0:T(16,128)(2,1)}', space=vmem, size = 0x40000, scoped, tag = 'scratch operand']
  #allocation6 [shape = 'bf16[256,256]{1,0:T(16,128)(2,1)}', space=vmem, size = 0x20000, scoped, tag = 'scratch operand']
  #allocation7 [shape = 'bf16[512,512]{1,0:T(16,128)(2,1)}', space=vmem, size = 0x80000, scoped, tag = 'scratch operand']
  #allocation8 [shape = 's32[4]{0}', space=sflag, size = 0x10, scoped, tag = 'scratch operand']
  #allocation19 [shape = 's32[]', space=sflag, size = 0x4, offset = 0, fixed_abs, tag = 'sflag constant byte address 0x0 - dummy sync flag']
  #allocation21 [shape = 's32[]', space=sflag, size = 0x4, offset = 0, fixed_abs, tag = 'sflag constant byte address 0x0 - dummy sync flag']
  #allocation23 [shape = 's32[]', space=sflag, size = 0x4, offset = 0, fixed_abs, tag = 'sflag constant byte address 0x0 - dummy sync flag']
  #allocation24 [shape = 's32[]', space=sflag, size = 0x4, offset = 0, fixed_abs, tag = 'sflag constant byte address 0x0 - dummy sync flag']
  %s0 = inlined_call_operand.vmem [shape: s32[16,1], index: 0, kind: input, shape index: {}]
  %s1 = inlined_call_operand.vmem [shape: bf16[64,32], index: 1, kind: input, shape index: {}]
  %s2 = inlined_call_operand.hbm [shape: f32[8,128], index: 2, kind: input, shape index: {}]
  %s3 = inlined_call_operand.hbm [shape: f32[8,128], index: 3, kind: input, shape index: {}]
  %s4 = inlined_call_operand.vmem [shape: bf16[32,1024], index: 4, kind: input, shape index: {}]
  %s5 = inlined_call_operand.hbm [shape: bf16[128,1024], index: 5, kind: input, shape index: {}]
  %s6 = inlined_call_operand.hbm [shape: f32[1,1024], index: 6, kind: input, shape index: {}]
  %s7 = inlined_call_operand.hbm [shape: f32[1,1024], index: 7, kind: input, shape index: {}]
  %s8 = inlined_call_operand.vmem [shape: f32[2,8], index: 8, kind: input, shape index: {}]
  %s9 = inlined_call_operand.vmem [shape: f32[1,512], index: 9, kind: input, shape index: {}]
  %s10 = inlined_call_operand.vmem [shape: bf16[512,8], index: 10, kind: input, shape index: {}]
  %s11 = inlined_call_operand.vmem [shape: f32[1,8], index: 11, kind: input, shape index: {}]
  %s12 = inlined_call_operand.hbm [shape: bf16[256,1024], index: 12, kind: input, shape index: {}]
  %s13 = inlined_call_operand.hbm [shape: bf16[128,1024], index: 13, kind: input, shape index: {}]
  %s14 = inlined_call_operand.vmem [shape: bf16[256,256], index: 14, kind: input, shape index: {}]
  %s15 = inlined_call_operand.hbm [shape: bf16[512,512], index: 15, kind: input, shape index: {}]
  %s16 = inlined_call_operand.hbm [shape: f32[2,8], index: 16, kind: output, shape index: {}]
  %s17 = sld [smem:[#allocation0]]
  $region115: #{multi_intent_forward.1} parent=0
    _
  %s19 = ssub.s32 1, %s17
  %s20 = scalar_select 0, %s19, %s17
  $region1: #{multi_intent_forward.1} parent=0
    #allocation9 [shape = 'u8[4096]{0}', space=vmem, size = 0x1000, scoped, tag = 'input window, operand 2, single buffered']
    #allocation10 [shape = 's32[1]{0}', space=sflag, size = 0x4, scoped, tag = 'scoped memory for multi_intent_forward.1']
    #allocation11 [shape = 's32[1]{0}', space=sflag, size = 0x4, scoped, tag = 'scoped memory for multi_intent_forward.1']
    #allocation12 [shape = 'u8[4096]{0}', space=vmem, size = 0x1000, scoped, tag = 'input window, operand 3, single buffered']
    #allocation13 [shape = 's32[1]{0}', space=sflag, size = 0x4, scoped, tag = 'scoped memory for multi_intent_forward.1']
    #allocation14 [shape = 'u8[262144]{0}', space=vmem, size = 0x40000, scoped, tag = 'input window, operand 5, single buffered']
    #allocation15 [shape = 'u8[4096]{0}', space=vmem, size = 0x1000, scoped, tag = 'input window, operand 6, single buffered']
    #allocation16 [shape = 's32[1]{0}', space=sflag, size = 0x4, scoped, tag = 'scoped memory for multi_intent_forward.1']
    #allocation17 [shape = 'u8[4096]{0}', space=vmem, size = 0x1000, scoped, tag = 'input window, operand 7, single buffered']
    #allocation18 [shape = 'u8[1024]{0}', space=vmem, size = 0x400, scoped, tag = 'output window, operand 0, single buffered']
    #allocation20 [shape = 'u32[9]{0}', space=smem, size = 0x24, scoped, tag = 'DMA stride descriptor']
    #allocation22 [shape = 'u32[9]{0}', space=smem, size = 0x24, scoped, tag = 'DMA stride descriptor']
    #allocation25 [shape = 'u32[9]{0}', space=smem, size = 0x24, scoped, tag = 'DMA stride descriptor']
    %21 = vsyncpa [#allocation10], 0
    %22 = vsyncpa [#allocation13], 0
    %23 = vsyncpa [#allocation16], 0
    %24 = vsyncpa [#allocation11], 0
    // Predicated region
    $region2: #{multi_intent_forward.1} parent=1 // pred_check
      _
    $region3: #{multi_intent_forward.1} parent=1 // pred_check_branch
      %26 = sbr.rel (0) target = $region5
    $region4: #{multi_intent_forward.1} parent=1 // pred_region
      _
    $region5: #{multi_intent_forward.1} parent=1 // pred_fallthru
      _
    // Predicated region
    $region6: #{multi_intent_forward.1} parent=1 // pred_check
      _
    $region7: #{multi_intent_forward.1} parent=1 // pred_check_branch
      %28 = sbr.rel (0) target = $region9
    $region8: #{multi_intent_forward.1} parent=1 // pred_region
      _
    $region9: #{multi_intent_forward.1} parent=1 // pred_fallthru
      _
    // Predicated region
    $region10: #{multi_intent_forward.1} parent=1 // pred_check
      _
    $region11: #{multi_intent_forward.1} parent=1 // pred_check_branch
      %30 = sbr.rel (0) target = $region13
    $region12: #{multi_intent_forward.1} parent=1 // pred_region
      %s32 = ssub.s32 128, 128
      %33 = vsyncadd [#allocation10], %s32
      %s35 = sshll.u32 [#allocation9], 4
      %s36 = int_to_ptr.vmem [resolvable:$true] %s35
      %38 = dma.hbm_to_vmem [thread:$0]  %s2, 128, %s36, [#allocation10]
    $region13: #{multi_intent_forward.1} parent=1 // pred_fallthru
      _
    // Predicated region
    $region14: #{multi_intent_forward.1} parent=1 // pred_check
      _
    $region15: #{multi_intent_forward.1} parent=1 // pred_check_branch
      %40 = sbr.rel (0) target = $region17
    $region16: #{multi_intent_forward.1} parent=1 // pred_region
      %s42 = ssub.s32 128, 128
      %43 = vsyncadd [#allocation13], %s42
      %s45 = sshll.u32 [#allocation12], 4
      %s46 = int_to_ptr.vmem [resolvable:$true] %s45
      %48 = dma.hbm_to_vmem [thread:$0]  %s3, 128, %s46, [#allocation13]
    $region17: #{multi_intent_forward.1} parent=1 // pred_fallthru
      _
    // Predicated region
    $region18: #{multi_intent_forward.1} parent=1 // pred_check
      _
    $region19: #{multi_intent_forward.1} parent=1 // pred_check_branch
      %50 = sbr.rel (0) target = $region21
    $region20: #{multi_intent_forward.1} parent=1 // pred_region
      _
    $region21: #{multi_intent_forward.1} parent=1 // pred_fallthru
      _
    // Predicated region
    $region22: #{multi_intent_forward.1} parent=1 // pred_check
      _
    $region23: #{multi_intent_forward.1} parent=1 // pred_check_branch
      %52 = sbr.rel (0) target = $region25
    $region24: #{multi_intent_forward.1} parent=1 // pred_region
      %s54 = ssub.s32 8192, 8192
      %55 = vsyncadd [#allocation13], %s54
      %s56 = sshll.u32 [#allocation14], 4
      %s57 = int_to_ptr.vmem [resolvable:$true] %s56
      %62 = dma.hbm_to_vmem [thread:$0]  %s5, 8192, %s57, [#allocation13], 512, 512, 32
    $region25: #{multi_intent_forward.1} parent=1 // pred_fallthru
      _
    // Predicated region
    $region26: #{multi_intent_forward.1} parent=1 // pred_check
      _
    $region27: #{multi_intent_forward.1} parent=1 // pred_check_branch
      %64 = sbr.rel (0) target = $region29
    $region28: #{multi_intent_forward.1} parent=1 // pred_region
      %s66 = ssub.s32 128, 128
      %67 = vsyncadd [#allocation16], %s66
      %s69 = sshll.u32 [#allocation15], 4
      %s70 = int_to_ptr.vmem [resolvable:$true] %s69
      %72 = dma.hbm_to_vmem [thread:$0]  %s6, 128, %s70, [#allocation16]
    $region29: #{multi_intent_forward.1} parent=1 // pred_fallthru
      _
    // Predicated region
    $region30: #{multi_intent_forward.1} parent=1 // pred_check
      _
    $region31: #{multi_intent_forward.1} parent=1 // pred_check_branch
      %74 = sbr.rel (0) target = $region33
    $region32: #{multi_intent_forward.1} parent=1 // pred_region
      %s76 = ssub.s32 128, 128
      %77 = vsyncadd [#allocation16], %s76
      %s79 = sshll.u32 [#allocation17], 4
      %s80 = int_to_ptr.vmem [resolvable:$true] %s79
      %82 = dma.hbm_to_vmem [thread:$0]  %s7, 128, %s80, [#allocation16]
    $region33: #{multi_intent_forward.1} parent=1 // pred_fallthru
      _
    // Predicated region
    $region34: #{multi_intent_forward.1} parent=1 // pred_check
      _
    $region35: #{multi_intent_forward.1} parent=1 // pred_check_branch
      %84 = sbr.rel (0) target = $region37
    $region36: #{multi_intent_forward.1} parent=1 // pred_region
      _
    $region37: #{multi_intent_forward.1} parent=1 // pred_fallthru
      _
    // Predicated region
    $region38: #{multi_intent_forward.1} parent=1 // pred_check
      _
    $region39: #{multi_intent_forward.1} parent=1 // pred_check_branch
      %86 = sbr.rel (0) target = $region41
    $region40: #{multi_intent_forward.1} parent=1 // pred_region
      _
    $region41: #{multi_intent_forward.1} parent=1 // pred_fallthru
      _
    // Predicated region
    $region42: #{multi_intent_forward.1} parent=1 // pred_check
      _
    $region43: #{multi_intent_forward.1} parent=1 // pred_check_branch
      %88 = sbr.rel (0) target = $region45
    $region44: #{multi_intent_forward.1} parent=1 // pred_region
      _
    $region45: #{multi_intent_forward.1} parent=1 // pred_fallthru
      _
    // Predicated region
    $region46: #{multi_intent_forward.1} parent=1 // pred_check
      _
    $region47: #{multi_intent_forward.1} parent=1 // pred_check_branch
      %90 = sbr.rel (0) target = $region49
    $region48: #{multi_intent_forward.1} parent=1 // pred_region
      _
    $region49: #{multi_intent_forward.1} parent=1 // pred_fallthru
      _
    // Predicated region
    $region50: #{multi_intent_forward.1} parent=1 // pred_check
      _
    $region51: #{multi_intent_forward.1} parent=1 // pred_check_branch
      %92 = sbr.rel (0) target = $region53
    $region52: #{multi_intent_forward.1} parent=1 // pred_region
      %93 = dma.done [#allocation10], 128
    $region53: #{multi_intent_forward.1} parent=1 // pred_fallthru
      _
    // Predicated region
    $region54: #{multi_intent_forward.1} parent=1 // pred_check
      _
    $region55: #{multi_intent_forward.1} parent=1 // pred_check_branch
      %95 = sbr.rel (0) target = $region57
    $region56: #{multi_intent_forward.1} parent=1 // pred_region
      %96 = dma.done [#allocation13], 128
    $region57: #{multi_intent_forward.1} parent=1 // pred_fallthru
      _
    // Predicated region
    $region58: #{multi_intent_forward.1} parent=1 // pred_check
      _
    $region59: #{multi_intent_forward.1} parent=1 // pred_check_branch
      %98 = sbr.rel (0) target = $region61
    $region60: #{multi_intent_forward.1} parent=1 // pred_region
      %99 = dma.done [#allocation13], 8192
    $region61: #{multi_intent_forward.1} parent=1 // pred_fallthru
      _
    // Predicated region
    $region62: #{multi_intent_forward.1} parent=1 // pred_check
      _
    $region63: #{multi_intent_forward.1} parent=1 // pred_check_branch
      %101 = sbr.rel (0) target = $region65
    $region64: #{multi_intent_forward.1} parent=1 // pred_region
      %102 = dma.done [#allocation16], 128
    $region65: #{multi_intent_forward.1} parent=1 // pred_fallthru
      _
    // Predicated region
    $region66: #{multi_intent_forward.1} parent=1 // pred_check
      _
    $region67: #{multi_intent_forward.1} parent=1 // pred_check_branch
      %104 = sbr.rel (0) target = $region69
    $region68: #{multi_intent_forward.1} parent=1 // pred_region
      %105 = dma.done [#allocation16], 128
    $region69: #{multi_intent_forward.1} parent=1 // pred_fallthru
      _
    %s108 = sshll.u32 1, 14
    %s109 = sxor.u32 4294967295, %s108
    %s111 = sld [smem:[#allocation0]]
    %s112 = sadd.s32 2, %s111
    %s114 = sshll.u32 7, 26
    %s115 = sxor.u32 4294967295, %s114
    %s116 = sand.u32 0, %s115
    %s117 = sshll.u32 %s112, 26
    %s118 = sor.u32 %s116, %s117
    %s119 = sshll.u32 [#allocation4], 4
    %s120 = int_to_ptr.vmem [resolvable:$true] %s119
    %123 = sst [smem:[#allocation20]] 1024
    %s124 = scalar_lea.smem [#allocation20], 1
    %125 = sst [smem:[%s124]] 1024
    %s126 = scalar_lea.smem [#allocation20], 2
    %127 = sst [smem:[%s126]] 8
    %s128 = scalar_lea.smem [#allocation20], 3
    %129 = sst [smem:[%s128]] 64
    %s130 = scalar_lea.smem [#allocation20], 4
    %131 = sst [smem:[%s130]] 128
    %s132 = scalar_lea.smem [#allocation20], 5
    %133 = sst [smem:[%s132]] 2
    %s134 = scalar_lea.smem [#allocation20], 6
    %135 = sst [smem:[%s134]] 512
    %s136 = scalar_lea.smem [#allocation20], 7
    %137 = sst [smem:[%s136]] 64
    %s138 = scalar_lea.smem [#allocation20], 8
    %139 = sst [smem:[%s138]] 4
    %141 = dma.general %s12, 16384, %s120, [#allocation8], [#allocation19], [#allocation20], %s118, 0
    %s142 = scalar_lea.sflag [#allocation8], 1
    %s144 = sshll.u32 1, 14
    %s145 = sxor.u32 4294967295, %s144
    %s147 = sadd.s32 2, %s111
    %s149 = sshll.u32 7, 26
    %s150 = sxor.u32 4294967295, %s149
    %s151 = sand.u32 0, %s150
    %s152 = sshll.u32 %s147, 26
    %s153 = sor.u32 %s151, %s152
    %s154 = sshll.u32 [#allocation5], 4
    %s155 = int_to_ptr.vmem [resolvable:$true] %s154
    %158 = sst [smem:[#allocation22]] 1024
    %s159 = scalar_lea.smem [#allocation22], 1
    %160 = sst [smem:[%s159]] 1024
    %s161 = scalar_lea.smem [#allocation22], 2
    %162 = sst [smem:[%s161]] 8
    %s163 = scalar_lea.smem [#allocation22], 3
    %164 = sst [smem:[%s163]] 64
    %s165 = scalar_lea.smem [#allocation22], 4
    %166 = sst [smem:[%s165]] 128
    %s167 = scalar_lea.smem [#allocation22], 5
    %168 = sst [smem:[%s167]] 2
    %s169 = scalar_lea.smem [#allocation22], 6
    %170 = sst [smem:[%s169]] 512
    %s171 = scalar_lea.smem [#allocation22], 7
    %172 = sst [smem:[%s171]] 64
    %s173 = scalar_lea.smem [#allocation22], 8
    %174 = sst [smem:[%s173]] 4
    %176 = dma.general %s13, 8192, %s155, %s142, [#allocation21], [#allocation22], %s153, 0
    %s177 = scalar_lea.sflag [#allocation8], 2
    %p179 = scmp.lt.u32.totalorder 4, 8
    %p180 = pneg %p179
    // Predicated region
    $region70: #{multi_intent_forward.1} parent=1 // pred_check
      _
    $region71: #{multi_intent_forward.1} parent=1 // pred_check_branch
      %182 = sbr.rel (%p179) target = $region73
    $region72: #{multi_intent_forward.1} parent=1 // pred_region
      %s323 = sand.u32 4, 7
      %p324 = scmp.eq.s32.totalorder %s323, 0
      %p325 = pneg %p324
      // Predicated region
      $region85: #{multi_intent_forward.1} parent=72 // pred_check
        _
      $region86: #{multi_intent_forward.1} parent=72 // pred_check_branch
        %327 = sbr.rel (%p324) target = $region88
      $region87: #{multi_intent_forward.1} parent=72 // pred_region
        %s328 = sand.u32 4, 7
        %s329 = ssub.s32 4, %s328
        %s330 = scalar_lea.vmem %s14, %s329
        %s331 = ssub.s32 4, %s328
        %s332 = scalar_lea.vmem [#allocation6], %s331
        loop: start=0, step=1, limit=1
        $region89: #{multi_intent_forward.1} parent=87 // loop_pre_header
          _
        $region90: #{multi_intent_forward.1} parent=87 // loop_header
          %s334 = sphi 0, %s338
          %p335 = scmp.ge.s32.totalorder %s334, 1
          %s339 = sphi %s14, %s14
          %s340 = sphi [#allocation6], [#allocation6]
        $region91: #{multi_intent_forward.1} parent=87 // loop_header_branch
          %337 = sbr.rel (%p335) target = $region95
        $region92: #{multi_intent_forward.1} parent=87 // loop_body
          _
        $region93: #{multi_intent_forward.1} parent=87 // loop_footer
          %s338 = sadd.s32 1, %s334
        $region94: #{multi_intent_forward.1} parent=87 // loop_footer_branch
          %333 = sbr.rel target = $region90
        $region95: #{multi_intent_forward.1} parent=87 // loop_exit
          _
        %s341 = sshllo.u32 0, %s328
        loop: start=0, step=1, limit=1
        $region96: #{multi_intent_forward.1} parent=87 // loop_pre_header
          _
        $region97: #{multi_intent_forward.1} parent=87 // loop_header
          %s343 = sphi 0, %s347
          %p344 = scmp.ge.s32.totalorder %s343, 1
          %s348 = sphi %s330, %s330
          %s349 = sphi %s332, %s332
        $region98: #{multi_intent_forward.1} parent=87 // loop_header_branch
          %346 = sbr.rel (%p344) target = $region102
        $region99: #{multi_intent_forward.1} parent=87 // loop_body
          %v350 = vld [vmem:[%s348] sm:%s341]
          %351 = vst [vmem:[%s349] sm:%s341] %v350
          %v352 = vld [vmem:[%s348 + $0x8] sm:%s341]
          %353 = vst [vmem:[%s349 + $0x4] sm:%s341] %v352
          %v354 = vld [vmem:[%s348 + $0x4] sm:%s341]
          %355 = vst [vmem:[%s349 + $0x8] sm:%s341] %v354
          %v356 = vld [vmem:[%s348 + $0xc] sm:%s341]
          %357 = vst [vmem:[%s349 + $0xc] sm:%s341] %v356
          %v358 = vld [vmem:[%s348 + $0x10] sm:%s341]
          %359 = vst [vmem:[%s349 + $0x10] sm:%s341] %v358
          %v360 = vld [vmem:[%s348 + $0x18] sm:%s341]
          %361 = vst [vmem:[%s349 + $0x14] sm:%s341] %v360
          %v362 = vld [vmem:[%s348 + $0x14] sm:%s341]
          %363 = vst [vmem:[%s349 + $0x18] sm:%s341] %v362
          %v364 = vld [vmem:[%s348 + $0x1c] sm:%s341]
          %365 = vst [vmem:[%s349 + $0x1c] sm:%s341] %v364
          %v366 = vld [vmem:[%s348 + $0x20] sm:%s341]
          %367 = vst [vmem:[%s349 + $0x20] sm:%s341] %v366
          %v368 = vld [vmem:[%s348 + $0x28] sm:%s341]
          %369 = vst [vmem:[%s349 + $0x24] sm:%s341] %v368
          %v370 = vld [vmem:[%s348 + $0x24] sm:%s341]
          %371 = vst [vmem:[%s349 + $0x28] sm:%s341] %v370
          %v372 = vld [vmem:[%s348 + $0x2c] sm:%s341]
          %373 = vst [vmem:[%s349 + $0x2c] sm:%s341] %v372
          %v374 = vld [vmem:[%s348 + $0x30] sm:%s341]
          %375 = vst [vmem:[%s349 + $0x30] sm:%s341] %v374
          %v376 = vld [vmem:[%s348 + $0x38] sm:%s341]
          %377 = vst [vmem:[%s349 + $0x34] sm:%s341] %v376
          %v378 = vld [vmem:[%s348 + $0x34] sm:%s341]
          %379 = vst [vmem:[%s349 + $0x38] sm:%s341] %v378
          %v380 = vld [vmem:[%s348 + $0x3c] sm:%s341]
          %381 = vst [vmem:[%s349 + $0x3c] sm:%s341] %v380
          %v382 = vld [vmem:[%s348 + $0x40] sm:%s341]
          %383 = vst [vmem:[%s349 + $0x40] sm:%s341] %v382
          %v384 = vld [vmem:[%s348 + $0x48] sm:%s341]
          %385 = vst [vmem:[%s349 + $0x44] sm:%s341] %v384
          %v386 = vld [vmem:[%s348 + $0x44] sm:%s341]
          %387 = vst [vmem:[%s349 + $0x48] sm:%s341] %v386
          %v388 = vld [vmem:[%s348 + $0x4c] sm:%s341]
          %389 = vst [vmem:[%s349 + $0x4c] sm:%s341] %v388
          %v390 = vld [vmem:[%s348 + $0x50] sm:%s341]
          %391 = vst [vmem:[%s349 + $0x50] sm:%s341] %v390
          %v392 = vld [vmem:[%s348 + $0x58] sm:%s341]
          %393 = vst [vmem:[%s349 + $0x54] sm:%s341] %v392
          %v394 = vld [vmem:[%s348 + $0x54] sm:%s341]
          %395 = vst [vmem:[%s349 + $0x58] sm:%s341] %v394
          %v396 = vld [vmem:[%s348 + $0x5c] sm:%s341]
          %397 = vst [vmem:[%s349 + $0x5c] sm:%s341] %v396
          %v398 = vld [vmem:[%s348 + $0x60] sm:%s341]
          %399 = vst [vmem:[%s349 + $0x60] sm:%s341] %v398
          %v400 = vld [vmem:[%s348 + $0x68] sm:%s341]
          %401 = vst [vmem:[%s349 + $0x64] sm:%s341] %v400
          %v402 = vld [vmem:[%s348 + $0x64] sm:%s341]
          %403 = vst [vmem:[%s349 + $0x68] sm:%s341] %v402
          %v404 = vld [vmem:[%s348 + $0x6c] sm:%s341]
          %405 = vst [vmem:[%s349 + $0x6c] sm:%s341] %v404
          %v406 = vld [vmem:[%s348 + $0x70] sm:%s341]
          %407 = vst [vmem:[%s349 + $0x70] sm:%s341] %v406
          %v408 = vld [vmem:[%s348 + $0x78] sm:%s341]
          %409 = vst [vmem:[%s349 + $0x74] sm:%s341] %v408
          %v410 = vld [vmem:[%s348 + $0x74] sm:%s341]
          %411 = vst [vmem:[%s349 + $0x78] sm:%s341] %v410
          %v412 = vld [vmem:[%s348 + $0x7c] sm:%s341]
          %413 = vst [vmem:[%s349 + $0x7c] sm:%s341] %v412
          %v414 = vld [vmem:[%s348 + $0x80] sm:%s341]
          %415 = vst [vmem:[%s349 + $0x80] sm:%s341] %v414
          %v416 = vld [vmem:[%s348 + $0x88] sm:%s341]
          %417 = vst [vmem:[%s349 + $0x84] sm:%s341] %v416
          %v418 = vld [vmem:[%s348 + $0x84] sm:%s341]
          %419 = vst [vmem:[%s349 + $0x88] sm:%s341] %v418
          %v420 = vld [vmem:[%s348 + $0x8c] sm:%s341]
          %421 = vst [vmem:[%s349 + $0x8c] sm:%s341] %v420
          %v422 = vld [vmem:[%s348 + $0x90] sm:%s341]
          %423 = vst [vmem:[%s349 + $0x90] sm:%s341] %v422
          %v424 = vld [vmem:[%s348 + $0x98] sm:%s341]
          %425 = vst [vmem:[%s349 + $0x94] sm:%s341] %v424
          %v426 = vld [vmem:[%s348 + $0x94] sm:%s341]
          %427 = vst [vmem:[%s349 + $0x98] sm:%s341] %v426
          %v428 = vld [vmem:[%s348 + $0x9c] sm:%s341]
          %429 = vst [vmem:[%s349 + $0x9c] sm:%s341] %v428
          %v430 = vld [vmem:[%s348 + $0xa0] sm:%s341]
          %431 = vst [vmem:[%s349 + $0xa0] sm:%s341] %v430
          %v432 = vld [vmem:[%s348 + $0xa8] sm:%s341]
          %433 = vst [vmem:[%s349 + $0xa4] sm:%s341] %v432
          %v434 = vld [vmem:[%s348 + $0xa4] sm:%s341]
          %435 = vst [vmem:[%s349 + $0xa8] sm:%s341] %v434
          %v436 = vld [vmem:[%s348 + $0xac] sm:%s341]
          %437 = vst [vmem:[%s349 + $0xac] sm:%s341] %v436
          %v438 = vld [vmem:[%s348 + $0xb0] sm:%s341]
          %439 = vst [vmem:[%s349 + $0xb0] sm:%s341] %v438
          %v440 = vld [vmem:[%s348 + $0xb8] sm:%s341]
          %441 = vst [vmem:[%s349 + $0xb4] sm:%s341] %v440
          %v442 = vld [vmem:[%s348 + $0xb4] sm:%s341]
          %443 = vst [vmem:[%s349 + $0xb8] sm:%s341] %v442
          %v444 = vld [vmem:[%s348 + $0xbc] sm:%s341]
          %445 = vst [vmem:[%s349 + $0xbc] sm:%s341] %v444
          %v446 = vld [vmem:[%s348 + $0xc0] sm:%s341]
          %447 = vst [vmem:[%s349 + $0xc0] sm:%s341] %v446
          %v448 = vld [vmem:[%s348 + $0xc8] sm:%s341]
          %449 = vst [vmem:[%s349 + $0xc4] sm:%s341] %v448
          %v450 = vld [vmem:[%s348 + $0xc4] sm:%s341]
          %451 = vst [vmem:[%s349 + $0xc8] sm:%s341] %v450
          %v452 = vld [vmem:[%s348 + $0xcc] sm:%s341]
          %453 = vst [vmem:[%s349 + $0xcc] sm:%s341] %v452
          %v454 = vld [vmem:[%s348 + $0xd0] sm:%s341]
          %455 = vst [vmem:[%s349 + $0xd0] sm:%s341] %v454
          %v456 = vld [vmem:[%s348 + $0xd8] sm:%s341]
          %457 = vst [vmem:[%s349 + $0xd4] sm:%s341] %v456
          %v458 = vld [vmem:[%s348 + $0xd4] sm:%s341]
          %459 = vst [vmem:[%s349 + $0xd8] sm:%s341] %v458
          %v460 = vld [vmem:[%s348 + $0xdc] sm:%s341]
          %461 = vst [vmem:[%s349 + $0xdc] sm:%s341] %v460
          %v462 = vld [vmem:[%s348 + $0xe0] sm:%s341]
          %463 = vst [vmem:[%s349 + $0xe0] sm:%s341] %v462
          %v464 = vld [vmem:[%s348 + $0xe8] sm:%s341]
          %465 = vst [vmem:[%s349 + $0xe4] sm:%s341] %v464
          %v466 = vld [vmem:[%s348 + $0xe4] sm:%s341]
          %467 = vst [vmem:[%s349 + $0xe8] sm:%s341] %v466
          %v468 = vld [vmem:[%s348 + $0xec] sm:%s341]
          %469 = vst [vmem:[%s349 + $0xec] sm:%s341] %v468
          %v470 = vld [vmem:[%s348 + $0xf0] sm:%s341]
          %471 = vst [vmem:[%s349 + $0xf0] sm:%s341] %v470
          %v472 = vld [vmem:[%s348 + $0xf8] sm:%s341]
          %473 = vst [vmem:[%s349 + $0xf4] sm:%s341] %v472
          %v474 = vld [vmem:[%s348 + $0xf4] sm:%s341]
          %475 = vst [vmem:[%s349 + $0xf8] sm:%s341] %v474
          %v476 = vld [vmem:[%s348 + $0xfc] sm:%s341]
          %477 = vst [vmem:[%s349 + $0xfc] sm:%s341] %v476
        $region100: #{multi_intent_forward.1} parent=87 // loop_footer
          %s347 = sadd.s32 1, %s343
        $region101: #{multi_intent_forward.1} parent=87 // loop_footer_branch
          %342 = sbr.rel target = $region97
        $region102: #{multi_intent_forward.1} parent=87 // loop_exit
          _
      $region88: #{multi_intent_forward.1} parent=72 // pred_fallthru
        _
    $region73: #{multi_intent_forward.1} parent=1 // pred_fallthru
      _
    // Predicated region
    $region74: #{multi_intent_forward.1} parent=1 // pred_check
      %p183 = pneg %p179
    $region75: #{multi_intent_forward.1} parent=1 // pred_check_branch
      %185 = sbr.rel (%p183) target = $region77
    $region76: #{multi_intent_forward.1} parent=1 // pred_region
      %s186 = sshllo.u32 0, 4
      loop: start=0, step=1, limit=1
      $region78: #{multi_intent_forward.1} parent=76 // loop_pre_header
        _
      $region79: #{multi_intent_forward.1} parent=76 // loop_header
        %s188 = sphi 0, %s192
        %p189 = scmp.ge.s32.totalorder %s188, 1
        %s193 = sphi %s14, %s14
        %s194 = sphi [#allocation6], [#allocation6]
      $region80: #{multi_intent_forward.1} parent=76 // loop_header_branch
        %191 = sbr.rel (%p189) target = $region84
      $region81: #{multi_intent_forward.1} parent=76 // loop_body
        %v195 = vld [vmem:[%s193] sm:%s186]
        %196 = vst [vmem:[%s194] sm:%s186] %v195
        %v197 = vld [vmem:[%s193 + $0x8] sm:%s186]
        %198 = vst [vmem:[%s194 + $0x4] sm:%s186] %v197
        %v199 = vld [vmem:[%s193 + $0x4] sm:%s186]
        %200 = vst [vmem:[%s194 + $0x8] sm:%s186] %v199
        %v201 = vld [vmem:[%s193 + $0xc] sm:%s186]
        %202 = vst [vmem:[%s194 + $0xc] sm:%s186] %v201
        %v203 = vld [vmem:[%s193 + $0x10] sm:%s186]
        %204 = vst [vmem:[%s194 + $0x10] sm:%s186] %v203
        %v205 = vld [vmem:[%s193 + $0x18] sm:%s186]
        %206 = vst [vmem:[%s194 + $0x14] sm:%s186] %v205
        %v207 = vld [vmem:[%s193 + $0x14] sm:%s186]
        %208 = vst [vmem:[%s194 + $0x18] sm:%s186] %v207
        %v209 = vld [vmem:[%s193 + $0x1c] sm:%s186]
        %210 = vst [vmem:[%s194 + $0x1c] sm:%s186] %v209
        %v211 = vld [vmem:[%s193 + $0x20] sm:%s186]
        %212 = vst [vmem:[%s194 + $0x20] sm:%s186] %v211
        %v213 = vld [vmem:[%s193 + $0x28] sm:%s186]
        %214 = vst [vmem:[%s194 + $0x24] sm:%s186] %v213
        %v215 = vld [vmem:[%s193 + $0x24] sm:%s186]
        %216 = vst [vmem:[%s194 + $0x28] sm:%s186] %v215
        %v217 = vld [vmem:[%s193 + $0x2c] sm:%s186]
        %218 = vst [vmem:[%s194 + $0x2c] sm:%s186] %v217
        %v219 = vld [vmem:[%s193 + $0x30] sm:%s186]
        %220 = vst [vmem:[%s194 + $0x30] sm:%s186] %v219
        %v221 = vld [vmem:[%s193 + $0x38] sm:%s186]
        %222 = vst [vmem:[%s194 + $0x34] sm:%s186] %v221
        %v223 = vld [vmem:[%s193 + $0x34] sm:%s186]
        %224 = vst [vmem:[%s194 + $0x38] sm:%s186] %v223
        %v225 = vld [vmem:[%s193 + $0x3c] sm:%s186]
        %226 = vst [vmem:[%s194 + $0x3c] sm:%s186] %v225
        %v227 = vld [vmem:[%s193 + $0x40] sm:%s186]
        %228 = vst [vmem:[%s194 + $0x40] sm:%s186] %v227
        %v229 = vld [vmem:[%s193 + $0x48] sm:%s186]
        %230 = vst [vmem:[%s194 + $0x44] sm:%s186] %v229
        %v231 = vld [vmem:[%s193 + $0x44] sm:%s186]
        %232 = vst [vmem:[%s194 + $0x48] sm:%s186] %v231
        %v233 = vld [vmem:[%s193 + $0x4c] sm:%s186]
        %234 = vst [vmem:[%s194 + $0x4c] sm:%s186] %v233
        %v235 = vld [vmem:[%s193 + $0x50] sm:%s186]
        %236 = vst [vmem:[%s194 + $0x50] sm:%s186] %v235
        %v237 = vld [vmem:[%s193 + $0x58] sm:%s186]
        %238 = vst [vmem:[%s194 + $0x54] sm:%s186] %v237
        %v239 = vld [vmem:[%s193 + $0x54] sm:%s186]
        %240 = vst [vmem:[%s194 + $0x58] sm:%s186] %v239
        %v241 = vld [vmem:[%s193 + $0x5c] sm:%s186]
        %242 = vst [vmem:[%s194 + $0x5c] sm:%s186] %v241
        %v243 = vld [vmem:[%s193 + $0x60] sm:%s186]
        %244 = vst [vmem:[%s194 + $0x60] sm:%s186] %v243
        %v245 = vld [vmem:[%s193 + $0x68] sm:%s186]
        %246 = vst [vmem:[%s194 + $0x64] sm:%s186] %v245
        %v247 = vld [vmem:[%s193 + $0x64] sm:%s186]
        %248 = vst [vmem:[%s194 + $0x68] sm:%s186] %v247
        %v249 = vld [vmem:[%s193 + $0x6c] sm:%s186]
        %250 = vst [vmem:[%s194 + $0x6c] sm:%s186] %v249
        %v251 = vld [vmem:[%s193 + $0x70] sm:%s186]
        %252 = vst [vmem:[%s194 + $0x70] sm:%s186] %v251
        %v253 = vld [vmem:[%s193 + $0x78] sm:%s186]
        %254 = vst [vmem:[%s194 + $0x74] sm:%s186] %v253
        %v255 = vld [vmem:[%s193 + $0x74] sm:%s186]
        %256 = vst [vmem:[%s194 + $0x78] sm:%s186] %v255
        %v257 = vld [vmem:[%s193 + $0x7c] sm:%s186]
        %258 = vst [vmem:[%s194 + $0x7c] sm:%s186] %v257
        %v259 = vld [vmem:[%s193 + $0x80] sm:%s186]
        %260 = vst [vmem:[%s194 + $0x80] sm:%s186] %v259
        %v261 = vld [vmem:[%s193 + $0x88] sm:%s186]
        %262 = vst [vmem:[%s194 + $0x84] sm:%s186] %v261
        %v263 = vld [vmem:[%s193 + $0x84] sm:%s186]
        %264 = vst [vmem:[%s194 + $0x88] sm:%s186] %v263
        %v265 = vld [vmem:[%s193 + $0x8c] sm:%s186]
        %266 = vst [vmem:[%s194 + $0x8c] sm:%s186] %v265
        %v267 = vld [vmem:[%s193 + $0x90] sm:%s186]
        %268 = vst [vmem:[%s194 + $0x90] sm:%s186] %v267
        %v269 = vld [vmem:[%s193 + $0x98] sm:%s186]
        %270 = vst [vmem:[%s194 + $0x94] sm:%s186] %v269
        %v271 = vld [vmem:[%s193 + $0x94] sm:%s186]
        %272 = vst [vmem:[%s194 + $0x98] sm:%s186] %v271
        %v273 = vld [vmem:[%s193 + $0x9c] sm:%s186]
        %274 = vst [vmem:[%s194 + $0x9c] sm:%s186] %v273
        %v275 = vld [vmem:[%s193 + $0xa0] sm:%s186]
        %276 = vst [vmem:[%s194 + $0xa0] sm:%s186] %v275
        %v277 = vld [vmem:[%s193 + $0xa8] sm:%s186]
        %278 = vst [vmem:[%s194 + $0xa4] sm:%s186] %v277
        %v279 = vld [vmem:[%s193 + $0xa4] sm:%s186]
        %280 = vst [vmem:[%s194 + $0xa8] sm:%s186] %v279
        %v281 = vld [vmem:[%s193 + $0xac] sm:%s186]
        %282 = vst [vmem:[%s194 + $0xac] sm:%s186] %v281
        %v283 = vld [vmem:[%s193 + $0xb0] sm:%s186]
        %284 = vst [vmem:[%s194 + $0xb0] sm:%s186] %v283
        %v285 = vld [vmem:[%s193 + $0xb8] sm:%s186]
        %286 = vst [vmem:[%s194 + $0xb4] sm:%s186] %v285
        %v287 = vld [vmem:[%s193 + $0xb4] sm:%s186]
        %288 = vst [vmem:[%s194 + $0xb8] sm:%s186] %v287
        %v289 = vld [vmem:[%s193 + $0xbc] sm:%s186]
        %290 = vst [vmem:[%s194 + $0xbc] sm:%s186] %v289
        %v291 = vld [vmem:[%s193 + $0xc0] sm:%s186]
        %292 = vst [vmem:[%s194 + $0xc0] sm:%s186] %v291
        %v293 = vld [vmem:[%s193 + $0xc8] sm:%s186]
        %294 = vst [vmem:[%s194 + $0xc4] sm:%s186] %v293
        %v295 = vld [vmem:[%s193 + $0xc4] sm:%s186]
        %296 = vst [vmem:[%s194 + $0xc8] sm:%s186] %v295
        %v297 = vld [vmem:[%s193 + $0xcc] sm:%s186]
        %298 = vst [vmem:[%s194 + $0xcc] sm:%s186] %v297
        %v299 = vld [vmem:[%s193 + $0xd0] sm:%s186]
        %300 = vst [vmem:[%s194 + $0xd0] sm:%s186] %v299
        %v301 = vld [vmem:[%s193 + $0xd8] sm:%s186]
        %302 = vst [vmem:[%s194 + $0xd4] sm:%s186] %v301
        %v303 = vld [vmem:[%s193 + $0xd4] sm:%s186]
        %304 = vst [vmem:[%s194 + $0xd8] sm:%s186] %v303
        %v305 = vld [vmem:[%s193 + $0xdc] sm:%s186]
        %306 = vst [vmem:[%s194 + $0xdc] sm:%s186] %v305
        %v307 = vld [vmem:[%s193 + $0xe0] sm:%s186]
        %308 = vst [vmem:[%s194 + $0xe0] sm:%s186] %v307
        %v309 = vld [vmem:[%s193 + $0xe8] sm:%s186]
        %310 = vst [vmem:[%s194 + $0xe4] sm:%s186] %v309
        %v311 = vld [vmem:[%s193 + $0xe4] sm:%s186]
        %312 = vst [vmem:[%s194 + $0xe8] sm:%s186] %v311
        %v313 = vld [vmem:[%s193 + $0xec] sm:%s186]
        %314 = vst [vmem:[%s194 + $0xec] sm:%s186] %v313
        %v315 = vld [vmem:[%s193 + $0xf0] sm:%s186]
        %316 = vst [vmem:[%s194 + $0xf0] sm:%s186] %v315
        %v317 = vld [vmem:[%s193 + $0xf8] sm:%s186]
        %318 = vst [vmem:[%s194 + $0xf4] sm:%s186] %v317
        %v319 = vld [vmem:[%s193 + $0xf4] sm:%s186]
        %320 = vst [vmem:[%s194 + $0xf8] sm:%s186] %v319
        %v321 = vld [vmem:[%s193 + $0xfc] sm:%s186]
        %322 = vst [vmem:[%s194 + $0xfc] sm:%s186] %v321
      $region82: #{multi_intent_forward.1} parent=76 // loop_footer
        %s192 = sadd.s32 1, %s188
      $region83: #{multi_intent_forward.1} parent=76 // loop_footer_branch
        %187 = sbr.rel target = $region79
      $region84: #{multi_intent_forward.1} parent=76 // loop_exit
        _
    $region77: #{multi_intent_forward.1} parent=1 // pred_fallthru
      _
    // Predicated region
    $region103: #{multi_intent_forward.1} parent=1 // pred_check
      _
    $region104: #{multi_intent_forward.1} parent=1 // pred_check_branch
      %480 = sbr.rel (0) target = $region106
    $region105: #{multi_intent_forward.1} parent=1 // pred_region
      %481 = vsyncadd %s177, 4096
    $region106: #{multi_intent_forward.1} parent=1 // pred_fallthru
      _
    %s482 = scalar_lea.sflag [#allocation8], 3
    %s484 = sshll.u32 1, 14
    %s485 = sxor.u32 4294967295, %s484
    %s487 = sadd.s32 2, %s111
    %s489 = sshll.u32 7, 26
    %s490 = sxor.u32 4294967295, %s489
    %s491 = sand.u32 0, %s490
    %s492 = sshll.u32 %s487, 26
    %s493 = sor.u32 %s491, %s492
    %s494 = sshll.u32 [#allocation7], 4
    %s495 = int_to_ptr.vmem [resolvable:$true] %s494
    %498 = sst [smem:[#allocation25]] 512
    %s499 = scalar_lea.smem [#allocation25], 1
    %500 = sst [smem:[%s499]] 512
    %s501 = scalar_lea.smem [#allocation25], 2
    %502 = sst [smem:[%s501]] 4
    %s503 = scalar_lea.smem [#allocation25], 3
    %504 = sst [smem:[%s503]] 64
    %s505 = scalar_lea.smem [#allocation25], 4
    %506 = sst [smem:[%s505]] 128
    %s507 = scalar_lea.smem [#allocation25], 5
    %508 = sst [smem:[%s507]] 2
    %s509 = scalar_lea.smem [#allocation25], 6
    %510 = sst [smem:[%s509]] 256
    %s511 = scalar_lea.smem [#allocation25], 7
    %512 = sst [smem:[%s511]] 64
    %s513 = scalar_lea.smem [#allocation25], 8
    %514 = sst [smem:[%s513]] 4
    %516 = dma.general %s15, 16384, %s495, %s482, [#allocation24], [#allocation25], %s493, 0
    %v517 = vld [vmem:[%s0] sm:$0xff]
    %v518 = vld [vmem:[%s0 + $0x8] sm:$0xff]
    %v519 = vlaneseq
    %v520 = vand.u32 %v519, 127
    %521 = vset.pattern.permute.xlu0 0
    %522 = vperm.xlu0 %521, %v517
    %v523 = vpop.permute.xlu0 %522
    %524 = vset.pattern.permute.xlu0 0
    %525 = vperm.xlu0 %524, %v518
    %v526 = vpop.permute.xlu0 %525
    %vm527 = vcmp.eq.s32.totalorder %v523, %v520
    %vm528 = vcmp.eq.s32.totalorder %v526, %v520
    %v529 = vsel %vm527, 1, 0
    %v530 = vsel %vm528, 1, 0
    %v531 = vcvt.s32.f32 %v529
    %v532 = vcvt.s32.f32 %v530
    %v533 = vpack.c.bf16 %v532, %v531
    %v534 = vld [vmem:[%s1] sm:$0xf]
    %v535 = vld [vmem:[%s1 + $0x4] sm:$0xf]
    %v536 = vld [vmem:[%s1 + $0x8] sm:$0xf]
    %v537 = vld [vmem:[%s1 + $0xc] sm:$0xf]
    %v538 = vld [vmem:[%s1 + $0x10] sm:$0xf]
    %v539 = vld [vmem:[%s1 + $0x14] sm:$0xf]
    %v540 = vld [vmem:[%s1 + $0x18] sm:$0xf]
    %v541 = vld [vmem:[%s1 + $0x1c] sm:$0xf]
    %v550 = vunpack.c.l.b16 %v534
    %v551 = vunpack.c.l.b16 %v535
    %v552 = vunpack.c.l.b16 %v536
    %v553 = vunpack.c.l.b16 %v537
    %v554 = vunpack.c.l.b16 %v538
    %v555 = vunpack.c.l.b16 %v539
    %v556 = vunpack.c.l.b16 %v540
    %v557 = vunpack.c.l.b16 %v541
    %v558 = vpack.c.b16 %v551, %v550
    %v559 = vpack.c.b16 %v553, %v552
    %v560 = vpack.c.b16 %v555, %v554
    %v561 = vpack.c.b16 %v557, %v556
    %vm566 = vcmask 523264
    %v568 = vsel %vm566, %v533, 0
    %570 = vmatprep.subr.bf16.mxu0 0
    %571 = vmatpush1.bf16.msra.mxu0 %v558
    %572 = vmatprep.subr.bf16.mxu0 0
    %573 = vmatpush1.bf16.msra.mxu0 %v559
    %574 = vmatprep.subr.bf16.mxu0 0
    %575 = vmatpush1.bf16.msra.mxu0 %v560
    %576 = vmatprep.subr.bf16.mxu0 0
    %577 = vmatpush1.bf16.msra.mxu0 %v561
    %578 = vmatprep.subr.bf16.mxu0 0
    %579 = vmatpush1.bf16.msra.mxu0 0
    %580 = vmatprep.subr.bf16.mxu0 0
    %581 = vmatpush1.bf16.msra.mxu0 0
    %582 = vmatprep.subr.bf16.mxu0 0
    %583 = vmatpush1.bf16.msra.mxu0 0
    %584 = vmatprep.subr.bf16.mxu0 0
    %585 = vmatpush1.bf16.msra.mxu0 0
    %586 = vmatprep.subr.bf16.mxu0 0
    %587 = vmatpush1.bf16.msra.mxu0 0
    %588 = vmatprep.subr.bf16.mxu0 0
    %589 = vmatpush1.bf16.msra.mxu0 0
    %590 = vmatprep.subr.bf16.mxu0 0
    %591 = vmatpush1.bf16.msra.mxu0 0
    %592 = vmatprep.subr.bf16.mxu0 0
    %593 = vmatpush1.bf16.msra.mxu0 0
    %594 = vmatprep.subr.bf16.mxu0 0
    %595 = vmatpush1.bf16.msra.mxu0 0
    %596 = vmatprep.subr.bf16.mxu0 0
    %597 = vmatpush1.bf16.msra.mxu0 0
    %598 = vmatprep.subr.bf16.mxu0 0
    %599 = vmatpush1.bf16.msra.mxu0 0
    %600 = vmatprep.subr.bf16.mxu0 0
    %601 = vmatpush1.bf16.msra.mxu0 0
    %602 = vmatprep.mubr.bf16.mxu0 0
    %603 = vmatmul.mubr.bf16.gmra.mrb[0].mxu0 %v568
    %v604 = vpop.f32.mrb[0].mxu0
    %v605 = vadd.f32 0.0, %v604
    %v606 = vpop.f32.mrb[0].mxu0
    %v607 = vpop.f32.mrb[0].mxu0
    %v608 = vadd.f32 0.0, %v607
    %v609 = vpop.f32.mrb[0].mxu0
    %610 = vdwg.mxu0
    %v611 = vpack.c.bf16 %v608, %v605
    %v612 = vld [vmem:[%s4] sm:$0xff]
    %v613 = vld [vmem:[%s4 + $0x8] sm:$0xff]
    %v614 = vld [vmem:[%s4 + $0x10] sm:$0xff]
    %v615 = vld [vmem:[%s4 + $0x18] sm:$0xff]
    %v616 = vld [vmem:[%s4 + $0x20] sm:$0xff]
    %v617 = vld [vmem:[%s4 + $0x28] sm:$0xff]
    %v618 = vld [vmem:[%s4 + $0x30] sm:$0xff]
    %v619 = vld [vmem:[%s4 + $0x38] sm:$0xff]
    %v620 = vld [vmem:[%s4 + $0x40] sm:$0xff]
    %v621 = vld [vmem:[%s4 + $0x48] sm:$0xff]
    %v622 = vld [vmem:[%s4 + $0x50] sm:$0xff]
    %v623 = vld [vmem:[%s4 + $0x58] sm:$0xff]
    %v624 = vld [vmem:[%s4 + $0x60] sm:$0xff]
    %v625 = vld [vmem:[%s4 + $0x68] sm:$0xff]
    %v626 = vld [vmem:[%s4 + $0x70] sm:$0xff]
    %v627 = vld [vmem:[%s4 + $0x78] sm:$0xff]
    %v628 = vld [vmem:[#allocation15] sm:$0xff]
    %v630 = vlaneseq
    %v631 = vshrl.u32 %v630, 7
    %v632 = vsub.s32 0, %v631
    %v633 = vrot.slane %v628, %v632
    %v634 = vlaneseq
    %v635 = vshrl.u32 %v634, 7
    %v636 = vsub.s32 1, %v635
    %v637 = vrot.slane %v628, %v636
    %v638 = vlaneseq
    %v639 = vshrl.u32 %v638, 7
    %v640 = vsub.s32 2, %v639
    %v641 = vrot.slane %v628, %v640
    %v642 = vlaneseq
    %v643 = vshrl.u32 %v642, 7
    %v644 = vsub.s32 3, %v643
    %v645 = vrot.slane %v628, %v644
    %v646 = vlaneseq
    %v647 = vshrl.u32 %v646, 7
    %v648 = vsub.s32 4, %v647
    %v649 = vrot.slane %v628, %v648
    %v650 = vlaneseq
    %v651 = vshrl.u32 %v650, 7
    %v652 = vsub.s32 5, %v651
    %v653 = vrot.slane %v628, %v652
    %v654 = vlaneseq
    %v655 = vshrl.u32 %v654, 7
    %v656 = vsub.s32 6, %v655
    %v657 = vrot.slane %v628, %v656
    %v658 = vlaneseq
    %v659 = vshrl.u32 %v658, 7
    %v660 = vsub.s32 7, %v659
    %v661 = vrot.slane %v628, %v660
    %v686 = vunpack.c.l.b16 %v612
    %v687 = vunpack.c.h.b16 %v612
    %v688 = vunpack.c.l.b16 %v613
    %v689 = vunpack.c.h.b16 %v613
    %v690 = vunpack.c.l.b16 %v614
    %v691 = vunpack.c.h.b16 %v614
    %v692 = vunpack.c.l.b16 %v615
    %v693 = vunpack.c.h.b16 %v615
    %v694 = vunpack.c.l.b16 %v616
    %v695 = vunpack.c.h.b16 %v616
    %v696 = vunpack.c.l.b16 %v617
    %v697 = vunpack.c.h.b16 %v617
    %v698 = vunpack.c.l.b16 %v618
    %v699 = vunpack.c.h.b16 %v618
    %v700 = vunpack.c.l.b16 %v619
    %v701 = vunpack.c.h.b16 %v619
    %v702 = vunpack.c.l.b16 %v620
    %v703 = vunpack.c.h.b16 %v620
    %v704 = vunpack.c.l.b16 %v621
    %v705 = vunpack.c.h.b16 %v621
    %v706 = vunpack.c.l.b16 %v622
    %v707 = vunpack.c.h.b16 %v622
    %v708 = vunpack.c.l.b16 %v623
    %v709 = vunpack.c.h.b16 %v623
    %v710 = vunpack.c.l.b16 %v624
    %v711 = vunpack.c.h.b16 %v624
    %v712 = vunpack.c.l.b16 %v625
    %v713 = vunpack.c.h.b16 %v625
    %v714 = vunpack.c.l.b16 %v626
    %v715 = vunpack.c.h.b16 %v626
    %v716 = vunpack.c.l.b16 %v627
    %v717 = vunpack.c.h.b16 %v627
    %v718 = vpack.c.b16 %v694, %v686
    %v719 = vpack.c.b16 %v695, %v687
    %v720 = vpack.c.b16 %v696, %v688
    %v721 = vpack.c.b16 %v697, %v689
    %v722 = vpack.c.b16 %v698, %v690
    %v723 = vpack.c.b16 %v699, %v691
    %v724 = vpack.c.b16 %v700, %v692
    %v725 = vpack.c.b16 %v701, %v693
    %v726 = vpack.c.b16 %v710, %v702
    %v727 = vpack.c.b16 %v711, %v703
    %v728 = vpack.c.b16 %v712, %v704
    %v729 = vpack.c.b16 %v713, %v705
    %v730 = vpack.c.b16 %v714, %v706
    %v731 = vpack.c.b16 %v715, %v707
    %v732 = vpack.c.b16 %v716, %v708
    %v733 = vpack.c.b16 %v717, %v709
    %vm750 = vcmask 261120
    %v752 = vsel %vm750, %v611, 0
    %754 = vmatprep.subr.bf16.mxu0 %v719
    %755 = vmatpush1.bf16.msra.mxu0 %v718
    %756 = vmatprep.subr.bf16.mxu0 %v727
    %757 = vmatpush1.bf16.msra.mxu0 %v726
    %758 = vmatprep.subr.bf16.mxu0 0
    %759 = vmatpush1.bf16.msra.mxu0 0
    %760 = vmatprep.subr.bf16.mxu0 0
    %761 = vmatpush1.bf16.msra.mxu0 0
    %762 = vmatprep.subr.bf16.mxu0 0
    %763 = vmatpush1.bf16.msra.mxu0 0
    %764 = vmatprep.subr.bf16.mxu0 0
    %765 = vmatpush1.bf16.msra.mxu0 0
    %766 = vmatprep.subr.bf16.mxu0 0
    %767 = vmatpush1.bf16.msra.mxu0 0
    %768 = vmatprep.subr.bf16.mxu0 0
    %769 = vmatpush1.bf16.msra.mxu0 0
    %770 = vmatprep.subr.bf16.mxu0 0
    %771 = vmatpush1.bf16.msra.mxu0 0
    %772 = vmatprep.subr.bf16.mxu0 0
    %773 = vmatpush1.bf16.msra.mxu0 0
    %774 = vmatprep.subr.bf16.mxu0 0
    %775 = vmatpush1.bf16.msra.mxu0 0
    %776 = vmatprep.subr.bf16.mxu0 0
    %777 = vmatpush1.bf16.msra.mxu0 0
    %778 = vmatprep.subr.bf16.mxu0 0
    %779 = vmatpush1.bf16.msra.mxu0 0
    %780 = vmatprep.subr.bf16.mxu0 0
    %781 = vmatpush1.bf16.msra.mxu0 0
    %782 = vmatprep.subr.bf16.mxu0 0
    %783 = vmatpush1.bf16.msra.mxu0 0
    %784 = vmatprep.subr.bf16.mxu0 0
    %785 = vmatpush1.bf16.msra.mxu0 0
    %786 = vmatprep.mubr.bf16.mxu0 0
    %787 = vmatmul.mubr.bf16.gmra.mrb[0].mxu0 %v752
    %v788 = vpop.f32.mrb[0].mxu0
    %v789 = vadd.f32 %v633, %v788
    %v790 = vpop.f32.mrb[0].mxu0
    %v791 = vadd.f32 %v637, %v790
    %v792 = vpop.f32.mrb[0].mxu0
    %v793 = vadd.f32 %v633, %v792
    %v794 = vpop.f32.mrb[0].mxu0
    %v795 = vadd.f32 %v637, %v794
    %796 = vdwg.mxu0
    %797 = vmatprep.subr.bf16.mxu0 %v721
    %798 = vmatpush1.bf16.msra.mxu0 %v720
    %799 = vmatprep.subr.bf16.mxu0 %v729
    %800 = vmatpush1.bf16.msra.mxu0 %v728
    %801 = vmatprep.subr.bf16.mxu0 0
    %802 = vmatpush1.bf16.msra.mxu0 0
    %803 = vmatprep.subr.bf16.mxu0 0
    %804 = vmatpush1.bf16.msra.mxu0 0
    %805 = vmatprep.subr.bf16.mxu0 0
    %806 = vmatpush1.bf16.msra.mxu0 0
    %807 = vmatprep.subr.bf16.mxu0 0
    %808 = vmatpush1.bf16.msra.mxu0 0
    %809 = vmatprep.subr.bf16.mxu0 0
    %810 = vmatpush1.bf16.msra.mxu0 0
    %811 = vmatprep.subr.bf16.mxu0 0
    %812 = vmatpush1.bf16.msra.mxu0 0
    %813 = vmatprep.subr.bf16.mxu0 0
    %814 = vmatpush1.bf16.msra.mxu0 0
    %815 = vmatprep.subr.bf16.mxu0 0
    %816 = vmatpush1.bf16.msra.mxu0 0
    %817 = vmatprep.subr.bf16.mxu0 0
    %818 = vmatpush1.bf16.msra.mxu0 0
    %819 = vmatprep.subr.bf16.mxu0 0
    %820 = vmatpush1.bf16.msra.mxu0 0
    %821 = vmatprep.subr.bf16.mxu0 0
    %822 = vmatpush1.bf16.msra.mxu0 0
    %823 = vmatprep.subr.bf16.mxu0 0
    %824 = vmatpush1.bf16.msra.mxu0 0
    %825 = vmatprep.subr.bf16.mxu0 0
    %826 = vmatpush1.bf16.msra.mxu0 0
    %827 = vmatprep.subr.bf16.mxu0 0
    %828 = vmatpush1.bf16.msra.mxu0 0
    %829 = vmatprep.mubr.bf16.mxu0 0
    %830 = vmatmul.mubr.bf16.gmra.mrb[0].mxu0 %v752
    %v831 = vpop.f32.mrb[0].mxu0
    %v832 = vadd.f32 %v641, %v831
    %v833 = vpop.f32.mrb[0].mxu0
    %v834 = vadd.f32 %v645, %v833
    %v835 = vpop.f32.mrb[0].mxu0
    %v836 = vadd.f32 %v641, %v835
    %v837 = vpop.f32.mrb[0].mxu0
    %v838 = vadd.f32 %v645, %v837
    %839 = vdwg.mxu0
    %840 = vmatprep.subr.bf16.mxu0 %v723
    %841 = vmatpush1.bf16.msra.mxu0 %v722
    %842 = vmatprep.subr.bf16.mxu0 %v731
    %843 = vmatpush1.bf16.msra.mxu0 %v730
    %844 = vmatprep.subr.bf16.mxu0 0
    %845 = vmatpush1.bf16.msra.mxu0 0
    %846 = vmatprep.subr.bf16.mxu0 0
    %847 = vmatpush1.bf16.msra.mxu0 0
    %848 = vmatprep.subr.bf16.mxu0 0
    %849 = vmatpush1.bf16.msra.mxu0 0
    %850 = vmatprep.subr.bf16.mxu0 0
    %851 = vmatpush1.bf16.msra.mxu0 0
    %852 = vmatprep.subr.bf16.mxu0 0
    %853 = vmatpush1.bf16.msra.mxu0 0
    %854 = vmatprep.subr.bf16.mxu0 0
    %855 = vmatpush1.bf16.msra.mxu0 0
    %856 = vmatprep.subr.bf16.mxu0 0
    %857 = vmatpush1.bf16.msra.mxu0 0
    %858 = vmatprep.subr.bf16.mxu0 0
    %859 = vmatpush1.bf16.msra.mxu0 0
    %860 = vmatprep.subr.bf16.mxu0 0
    %861 = vmatpush1.bf16.msra.mxu0 0
    %862 = vmatprep.subr.bf16.mxu0 0
    %863 = vmatpush1.bf16.msra.mxu0 0
    %864 = vmatprep.subr.bf16.mxu0 0
    %865 = vmatpush1.bf16.msra.mxu0 0
    %866 = vmatprep.subr.bf16.mxu0 0
    %867 = vmatpush1.bf16.msra.mxu0 0
    %868 = vmatprep.subr.bf16.mxu0 0
    %869 = vmatpush1.bf16.msra.mxu0 0
    %870 = vmatprep.subr.bf16.mxu0 0
    %871 = vmatpush1.bf16.msra.mxu0 0
    %872 = vmatprep.mubr.bf16.mxu0 0
    %873 = vmatmul.mubr.bf16.gmra.mrb[0].mxu0 %v752
    %v874 = vpop.f32.mrb[0].mxu0
    %v875 = vadd.f32 %v649, %v874
    %v876 = vpop.f32.mrb[0].mxu0
    %v877 = vadd.f32 %v653, %v876
    %v878 = vpop.f32.mrb[0].mxu0
    %v879 = vadd.f32 %v649, %v878
    %v880 = vpop.f32.mrb[0].mxu0
    %v881 = vadd.f32 %v653, %v880
    %882 = vdwg.mxu0
    %883 = vmatprep.subr.bf16.mxu0 %v725
    %884 = vmatpush1.bf16.msra.mxu0 %v724
    %885 = vmatprep.subr.bf16.mxu0 %v733
    %886 = vmatpush1.bf16.msra.mxu0 %v732
    %887 = vmatprep.subr.bf16.mxu0 0
    %888 = vmatpush1.bf16.msra.mxu0 0
    %889 = vmatprep.subr.bf16.mxu0 0
    %890 = vmatpush1.bf16.msra.mxu0 0
    %891 = vmatprep.subr.bf16.mxu0 0
    %892 = vmatpush1.bf16.msra.mxu0 0
    %893 = vmatprep.subr.bf16.mxu0 0
    %894 = vmatpush1.bf16.msra.mxu0 0
    %895 = vmatprep.subr.bf16.mxu0 0
    %896 = vmatpush1.bf16.msra.mxu0 0
    %897 = vmatprep.subr.bf16.mxu0 0
    %898 = vmatpush1.bf16.msra.mxu0 0
    %899 = vmatprep.subr.bf16.mxu0 0
    %900 = vmatpush1.bf16.msra.mxu0 0
    %901 = vmatprep.subr.bf16.mxu0 0
    %902 = vmatpush1.bf16.msra.mxu0 0
    %903 = vmatprep.subr.bf16.mxu0 0
    %904 = vmatpush1.bf16.msra.mxu0 0
    %905 = vmatprep.subr.bf16.mxu0 0
    %906 = vmatpush1.bf16.msra.mxu0 0
    %907 = vmatprep.subr.bf16.mxu0 0
    %908 = vmatpush1.bf16.msra.mxu0 0
    %909 = vmatprep.subr.bf16.mxu0 0
    %910 = vmatpush1.bf16.msra.mxu0 0
    %911 = vmatprep.subr.bf16.mxu0 0
    %912 = vmatpush1.bf16.msra.mxu0 0
    %913 = vmatprep.subr.bf16.mxu0 0
    %914 = vmatpush1.bf16.msra.mxu0 0
    %915 = vmatprep.mubr.bf16.mxu0 0
    %916 = vmatmul.mubr.bf16.gmra.mrb[0].mxu0 %v752
    %v917 = vpop.f32.mrb[0].mxu0
    %v918 = vadd.f32 %v657, %v917
    %v919 = vpop.f32.mrb[0].mxu0
    %v920 = vadd.f32 %v661, %v919
    %v921 = vpop.f32.mrb[0].mxu0
    %v922 = vadd.f32 %v657, %v921
    %v923 = vpop.f32.mrb[0].mxu0
    %v924 = vadd.f32 %v661, %v923
    %925 = vdwg.mxu0
    %v926 = vld [vmem:[#allocation14] sm:$0xff]
    %v927 = vld [vmem:[#allocation14 + $0x8] sm:$0xff]
    %v928 = vld [vmem:[#allocation14 + $0x10] sm:$0xff]
    %v929 = vld [vmem:[#allocation14 + $0x18] sm:$0xff]
    %v930 = vld [vmem:[#allocation14 + $0x20] sm:$0xff]
    %v931 = vld [vmem:[#allocation14 + $0x28] sm:$0xff]
    %v932 = vld [vmem:[#allocation14 + $0x30] sm:$0xff]
    %v933 = vld [vmem:[#allocation14 + $0x38] sm:$0xff]
    %v934 = vld [vmem:[#allocation14 + $0x40] sm:$0xff]
    %v935 = vld [vmem:[#allocation14 + $0x48] sm:$0xff]
    %v936 = vld [vmem:[#allocation14 + $0x50] sm:$0xff]
    %v937 = vld [vmem:[#allocation14 + $0x58] sm:$0xff]
    %v938 = vld [vmem:[#allocation14 + $0x60] sm:$0xff]
    %v939 = vld [vmem:[#allocation14 + $0x68] sm:$0xff]
    %v940 = vld [vmem:[#allocation14 + $0x70] sm:$0xff]
    %v941 = vld [vmem:[#allocation14 + $0x78] sm:$0xff]
    %v942 = vld [vmem:[#allocation14 + $0x80] sm:$0xff]
    %v943 = vld [vmem:[#allocation14 + $0x88] sm:$0xff]
    %v944 = vld [vmem:[#allocation14 + $0x90] sm:$0xff]
    %v945 = vld [vmem:[#allocation14 + $0x98] sm:$0xff]
    %v946 = vld [vmem:[#allocation14 + $0xa0] sm:$0xff]
    %v947 = vld [vmem:[#allocation14 + $0xa8] sm:$0xff]
    %v948 = vld [vmem:[#allocation14 + $0xb0] sm:$0xff]
    %v949 = vld [vmem:[#allocation14 + $0xb8] sm:$0xff]
    %v950 = vld [vmem:[#allocation14 + $0xc0] sm:$0xff]
    %v951 = vld [vmem:[#allocation14 + $0xc8] sm:$0xff]
    %v952 = vld [vmem:[#allocation14 + $0xd0] sm:$0xff]
    %v953 = vld [vmem:[#allocation14 + $0xd8] sm:$0xff]
    %v954 = vld [vmem:[#allocation14 + $0xe0] sm:$0xff]
    %v955 = vld [vmem:[#allocation14 + $0xe8] sm:$0xff]
    %v956 = vld [vmem:[#allocation14 + $0xf0] sm:$0xff]
    %v957 = vld [vmem:[#allocation14 + $0xf8] sm:$0xff]
    %v958 = vld [vmem:[#allocation14 + $0x100] sm:$0xff]
    %v959 = vld [vmem:[#allocation14 + $0x108] sm:$0xff]
    %v960 = vld [vmem:[#allocation14 + $0x110] sm:$0xff]
    %v961 = vld [vmem:[#allocation14 + $0x118] sm:$0xff]
    %v962 = vld [vmem:[#allocation14 + $0x120] sm:$0xff]
    %v963 = vld [vmem:[#allocation14 + $0x128] sm:$0xff]
    %v964 = vld [vmem:[#allocation14 + $0x130] sm:$0xff]
    %v965 = vld [vmem:[#allocation14 + $0x138] sm:$0xff]
    %v966 = vld [vmem:[#allocation14 + $0x140] sm:$0xff]
    %v967 = vld [vmem:[#allocation14 + $0x148] sm:$0xff]
    %v968 = vld [vmem:[#allocation14 + $0x150] sm:$0xff]
    %v969 = vld [vmem:[#allocation14 + $0x158] sm:$0xff]
    %v970 = vld [vmem:[#allocation14 + $0x160] sm:$0xff]
    %v971 = vld [vmem:[#allocation14 + $0x168] sm:$0xff]
    %v972 = vld [vmem:[#allocation14 + $0x170] sm:$0xff]
    %v973 = vld [vmem:[#allocation14 + $0x178] sm:$0xff]
    %v974 = vld [vmem:[#allocation14 + $0x180] sm:$0xff]
    %v975 = vld [vmem:[#allocation14 + $0x188] sm:$0xff]
    %v976 = vld [vmem:[#allocation14 + $0x190] sm:$0xff]
    %v977 = vld [vmem:[#allocation14 + $0x198] sm:$0xff]
    %v978 = vld [vmem:[#allocation14 + $0x1a0] sm:$0xff]
    %v979 = vld [vmem:[#allocation14 + $0x1a8] sm:$0xff]
    %v980 = vld [vmem:[#allocation14 + $0x1b0] sm:$0xff]
    %v981 = vld [vmem:[#allocation14 + $0x1b8] sm:$0xff]
    %v982 = vld [vmem:[#allocation14 + $0x1c0] sm:$0xff]
    %v983 = vld [vmem:[#allocation14 + $0x1c8] sm:$0xff]
    %v984 = vld [vmem:[#allocation14 + $0x1d0] sm:$0xff]
    %v985 = vld [vmem:[#allocation14 + $0x1d8] sm:$0xff]
    %v986 = vld [vmem:[#allocation14 + $0x1e0] sm:$0xff]
    %v987 = vld [vmem:[#allocation14 + $0x1e8] sm:$0xff]
    %v988 = vld [vmem:[#allocation14 + $0x1f0] sm:$0xff]
    %v989 = vld [vmem:[#allocation14 + $0x1f8] sm:$0xff]
    %v990 = vld [vmem:[#allocation9] sm:$0xf]
    %v991 = vld [vmem:[#allocation12] sm:$0xf]
    %v992 = vpack.c.bf16 %v990, %v990
    %v1057 = vunpack.c.l.b16 %v926
    %v1058 = vunpack.c.h.b16 %v926
    %v1059 = vunpack.c.l.b16 %v927
    %v1060 = vunpack.c.h.b16 %v927
    %v1061 = vunpack.c.l.b16 %v928
    %v1062 = vunpack.c.h.b16 %v928
    %v1063 = vunpack.c.l.b16 %v929
    %v1064 = vunpack.c.h.b16 %v929
    %v1065 = vunpack.c.l.b16 %v930
    %v1066 = vunpack.c.h.b16 %v930
    %v1067 = vunpack.c.l.b16 %v931
    %v1068 = vunpack.c.h.b16 %v931
    %v1069 = vunpack.c.l.b16 %v932
    %v1070 = vunpack.c.h.b16 %v932
    %v1071 = vunpack.c.l.b16 %v933
    %v1072 = vunpack.c.h.b16 %v933
    %v1073 = vunpack.c.l.b16 %v934
    %v1074 = vunpack.c.h.b16 %v934
    %v1075 = vunpack.c.l.b16 %v935
    %v1076 = vunpack.c.h.b16 %v935
    %v1077 = vunpack.c.l.b16 %v936
    %v1078 = vunpack.c.h.b16 %v936
    %v1079 = vunpack.c.l.b16 %v937
    %v1080 = vunpack.c.h.b16 %v937
    %v1081 = vunpack.c.l.b16 %v938
    %v1082 = vunpack.c.h.b16 %v938
    %v1083 = vunpack.c.l.b16 %v939
    %v1084 = vunpack.c.h.b16 %v939
    %v1085 = vunpack.c.l.b16 %v940
    %v1086 = vunpack.c.h.b16 %v940
    %v1087 = vunpack.c.l.b16 %v941
    %v1088 = vunpack.c.h.b16 %v941
    %v1089 = vunpack.c.l.b16 %v942
    %v1090 = vunpack.c.h.b16 %v942
    %v1091 = vunpack.c.l.b16 %v943
    %v1092 = vunpack.c.h.b16 %v943
    %v1093 = vunpack.c.l.b16 %v944
    %v1094 = vunpack.c.h.b16 %v944
    %v1095 = vunpack.c.l.b16 %v945
    %v1096 = vunpack.c.h.b16 %v945
    %v1097 = vunpack.c.l.b16 %v946
    %v1098 = vunpack.c.h.b16 %v946
    %v1099 = vunpack.c.l.b16 %v947
    %v1100 = vunpack.c.h.b16 %v947
    %v1101 = vunpack.c.l.b16 %v948
    %v1102 = vunpack.c.h.b16 %v948
    %v1103 = vunpack.c.l.b16 %v949
    %v1104 = vunpack.c.h.b16 %v949
    %v1105 = vunpack.c.l.b16 %v950
    %v1106 = vunpack.c.h.b16 %v950
    %v1107 = vunpack.c.l.b16 %v951
    %v1108 = vunpack.c.h.b16 %v951
    %v1109 = vunpack.c.l.b16 %v952
    %v1110 = vunpack.c.h.b16 %v952
    %v1111 = vunpack.c.l.b16 %v953
    %v1112 = vunpack.c.h.b16 %v953
    %v1113 = vunpack.c.l.b16 %v954
    %v1114 = vunpack.c.h.b16 %v954
    %v1115 = vunpack.c.l.b16 %v955
    %v1116 = vunpack.c.h.b16 %v955
    %v1117 = vunpack.c.l.b16 %v956
    %v1118 = vunpack.c.h.b16 %v956
    %v1119 = vunpack.c.l.b16 %v957
    %v1120 = vunpack.c.h.b16 %v957
    %v1121 = vunpack.c.l.b16 %v958
    %v1122 = vunpack.c.h.b16 %v958
    %v1123 = vunpack.c.l.b16 %v959
    %v1124 = vunpack.c.h.b16 %v959
    %v1125 = vunpack.c.l.b16 %v960
    %v1126 = vunpack.c.h.b16 %v960
    %v1127 = vunpack.c.l.b16 %v961
    %v1128 = vunpack.c.h.b16 %v961
    %v1129 = vunpack.c.l.b16 %v962
    %v1130 = vunpack.c.h.b16 %v962
    %v1131 = vunpack.c.l.b16 %v963
    %v1132 = vunpack.c.h.b16 %v963
    %v1133 = vunpack.c.l.b16 %v964
    %v1134 = vunpack.c.h.b16 %v964
    %v1135 = vunpack.c.l.b16 %v965
    %v1136 = vunpack.c.h.b16 %v965
    %v1137 = vunpack.c.l.b16 %v966
    %v1138 = vunpack.c.h.b16 %v966
    %v1139 = vunpack.c.l.b16 %v967
    %v1140 = vunpack.c.h.b16 %v967
    %v1141 = vunpack.c.l.b16 %v968
    %v1142 = vunpack.c.h.b16 %v968
    %v1143 = vunpack.c.l.b16 %v969
    %v1144 = vunpack.c.h.b16 %v969
    %v1145 = vunpack.c.l.b16 %v970
    %v1146 = vunpack.c.h.b16 %v970
    %v1147 = vunpack.c.l.b16 %v971
    %v1148 = vunpack.c.h.b16 %v971
    %v1149 = vunpack.c.l.b16 %v972
    %v1150 = vunpack.c.h.b16 %v972
    %v1151 = vunpack.c.l.b16 %v973
    %v1152 = vunpack.c.h.b16 %v973
    %v1153 = vunpack.c.l.b16 %v974
    %v1154 = vunpack.c.h.b16 %v974
    %v1155 = vunpack.c.l.b16 %v975
    %v1156 = vunpack.c.h.b16 %v975
    %v1157 = vunpack.c.l.b16 %v976
    %v1158 = vunpack.c.h.b16 %v976
    %v1159 = vunpack.c.l.b16 %v977
    %v1160 = vunpack.c.h.b16 %v977
    %v1161 = vunpack.c.l.b16 %v978
    %v1162 = vunpack.c.h.b16 %v978
    %v1163 = vunpack.c.l.b16 %v979
    %v1164 = vunpack.c.h.b16 %v979
    %v1165 = vunpack.c.l.b16 %v980
    %v1166 = vunpack.c.h.b16 %v980
    %v1167 = vunpack.c.l.b16 %v981
    %v1168 = vunpack.c.h.b16 %v981
    %v1169 = vunpack.c.l.b16 %v982
    %v1170 = vunpack.c.h.b16 %v982
    %v1171 = vunpack.c.l.b16 %v983
    %v1172 = vunpack.c.h.b16 %v983
    %v1173 = vunpack.c.l.b16 %v984
    %v1174 = vunpack.c.h.b16 %v984
    %v1175 = vunpack.c.l.b16 %v985
    %v1176 = vunpack.c.h.b16 %v985
    %v1177 = vunpack.c.l.b16 %v986
    %v1178 = vunpack.c.h.b16 %v986
    %v1179 = vunpack.c.l.b16 %v987
    %v1180 = vunpack.c.h.b16 %v987
    %v1181 = vunpack.c.l.b16 %v988
    %v1182 = vunpack.c.h.b16 %v988
    %v1183 = vunpack.c.l.b16 %v989
    %v1184 = vunpack.c.h.b16 %v989
    %v1185 = vpack.c.b16 %v1065, %v1057
    %v1186 = vpack.c.b16 %v1066, %v1058
    %v1187 = vpack.c.b16 %v1067, %v1059
    %v1188 = vpack.c.b16 %v1068, %v1060
    %v1189 = vpack.c.b16 %v1069, %v1061
    %v1190 = vpack.c.b16 %v1070, %v1062
    %v1191 = vpack.c.b16 %v1071, %v1063
    %v1192 = vpack.c.b16 %v1072, %v1064
    %v1193 = vpack.c.b16 %v1081, %v1073
    %v1194 = vpack.c.b16 %v1082, %v1074
    %v1195 = vpack.c.b16 %v1083, %v1075
    %v1196 = vpack.c.b16 %v1084, %v1076
    %v1197 = vpack.c.b16 %v1085, %v1077
    %v1198 = vpack.c.b16 %v1086, %v1078
    %v1199 = vpack.c.b16 %v1087, %v1079
    %v1200 = vpack.c.b16 %v1088, %v1080
    %v1201 = vpack.c.b16 %v1097, %v1089
    %v1202 = vpack.c.b16 %v1098, %v1090
    %v1203 = vpack.c.b16 %v1099, %v1091
    %v1204 = vpack.c.b16 %v1100, %v1092
    %v1205 = vpack.c.b16 %v1101, %v1093
    %v1206 = vpack.c.b16 %v1102, %v1094
    %v1207 = vpack.c.b16 %v1103, %v1095
    %v1208 = vpack.c.b16 %v1104, %v1096
    %v1209 = vpack.c.b16 %v1113, %v1105
    %v1210 = vpack.c.b16 %v1114, %v1106
    %v1211 = vpack.c.b16 %v1115, %v1107
    %v1212 = vpack.c.b16 %v1116, %v1108
    %v1213 = vpack.c.b16 %v1117, %v1109
    %v1214 = vpack.c.b16 %v1118, %v1110
    %v1215 = vpack.c.b16 %v1119, %v1111
    %v1216 = vpack.c.b16 %v1120, %v1112
    %v1217 = vpack.c.b16 %v1129, %v1121
    %v1218 = vpack.c.b16 %v1130, %v1122
    %v1219 = vpack.c.b16 %v1131, %v1123
    %v1220 = vpack.c.b16 %v1132, %v1124
    %v1221 = vpack.c.b16 %v1133, %v1125
    %v1222 = vpack.c.b16 %v1134, %v1126
    %v1223 = vpack.c.b16 %v1135, %v1127
    %v1224 = vpack.c.b16 %v1136, %v1128
    %v1225 = vpack.c.b16 %v1145, %v1137
    %v1226 = vpack.c.b16 %v1146, %v1138
    %v1227 = vpack.c.b16 %v1147, %v1139
    %v1228 = vpack.c.b16 %v1148, %v1140
    %v1229 = vpack.c.b16 %v1149, %v1141
    %v1230 = vpack.c.b16 %v1150, %v1142
    %v1231 = vpack.c.b16 %v1151, %v1143
    %v1232 = vpack.c.b16 %v1152, %v1144
    %v1233 = vpack.c.b16 %v1161, %v1153
    %v1234 = vpack.c.b16 %v1162, %v1154
    %v1235 = vpack.c.b16 %v1163, %v1155
    %v1236 = vpack.c.b16 %v1164, %v1156
    %v1237 = vpack.c.b16 %v1165, %v1157
    %v1238 = vpack.c.b16 %v1166, %v1158
    %v1239 = vpack.c.b16 %v1167, %v1159
    %v1240 = vpack.c.b16 %v1168, %v1160
    %v1241 = vpack.c.b16 %v1177, %v1169
    %v1242 = vpack.c.b16 %v1178, %v1170
    %v1243 = vpack.c.b16 %v1179, %v1171
    %v1244 = vpack.c.b16 %v1180, %v1172
    %v1245 = vpack.c.b16 %v1181, %v1173
    %v1246 = vpack.c.b16 %v1182, %v1174
    %v1247 = vpack.c.b16 %v1183, %v1175
    %v1248 = vpack.c.b16 %v1184, %v1176
    %1313 = vmatprep.subr.bf16.mxu0 %v1186
    %1314 = vmatpush1.bf16.msra.mxu0 %v1185
    %1315 = vmatprep.subr.bf16.mxu0 %v1194
    %1316 = vmatpush1.bf16.msra.mxu0 %v1193
    %1317 = vmatprep.subr.bf16.mxu0 %v1202
    %1318 = vmatpush1.bf16.msra.mxu0 %v1201
    %1319 = vmatprep.subr.bf16.mxu0 %v1210
    %1320 = vmatpush1.bf16.msra.mxu0 %v1209
    %1321 = vmatprep.subr.bf16.mxu0 %v1218
    %1322 = vmatpush1.bf16.msra.mxu0 %v1217
    %1323 = vmatprep.subr.bf16.mxu0 %v1226
    %1324 = vmatpush1.bf16.msra.mxu0 %v1225
    %1325 = vmatprep.subr.bf16.mxu0 %v1234
    %1326 = vmatpush1.bf16.msra.mxu0 %v1233
    %1327 = vmatprep.subr.bf16.mxu0 %v1242
    %1328 = vmatpush1.bf16.msra.mxu0 %v1241
    %1329 = vmatprep.subr.bf16.mxu0 0
    %1330 = vmatpush1.bf16.msra.mxu0 0
    %1331 = vmatprep.subr.bf16.mxu0 0
    %1332 = vmatpush1.bf16.msra.mxu0 0
    %1333 = vmatprep.subr.bf16.mxu0 0
    %1334 = vmatpush1.bf16.msra.mxu0 0
    %1335 = vmatprep.subr.bf16.mxu0 0
    %1336 = vmatpush1.bf16.msra.mxu0 0
    %1337 = vmatprep.subr.bf16.mxu0 0
    %1338 = vmatpush1.bf16.msra.mxu0 0
    %1339 = vmatprep.subr.bf16.mxu0 0
    %1340 = vmatpush1.bf16.msra.mxu0 0
    %1341 = vmatprep.subr.bf16.mxu0 0
    %1342 = vmatpush1.bf16.msra.mxu0 0
    %1343 = vmatprep.subr.bf16.mxu0 0
    %1344 = vmatpush1.bf16.msra.mxu0 0
    %1345 = vmatprep.mubr.bf16.mxu0 0
    %1346 = vmatmul.mubr.bf16.gmra.mrb[0].mxu0 %v992
    %v1347 = vpop.f32.mrb[0].mxu0
    %v1348 = vadd.f32 0.0, %v1347
    %v1349 = vpop.f32.mrb[0].mxu0
    %v1350 = vadd.f32 0.0, %v1349
    %v1351 = vpop.f32.mrb[0].mxu0
    %v1352 = vpop.f32.mrb[0].mxu0
    %1353 = vdwg.mxu0
    %1354 = vmatprep.subr.bf16.mxu0 %v1188
    %1355 = vmatpush1.bf16.msra.mxu0 %v1187
    %1356 = vmatprep.subr.bf16.mxu0 %v1196
    %1357 = vmatpush1.bf16.msra.mxu0 %v1195
    %1358 = vmatprep.subr.bf16.mxu0 %v1204
    %1359 = vmatpush1.bf16.msra.mxu0 %v1203
    %1360 = vmatprep.subr.bf16.mxu0 %v1212
    %1361 = vmatpush1.bf16.msra.mxu0 %v1211
    %1362 = vmatprep.subr.bf16.mxu0 %v1220
    %1363 = vmatpush1.bf16.msra.mxu0 %v1219
    %1364 = vmatprep.subr.bf16.mxu0 %v1228
    %1365 = vmatpush1.bf16.msra.mxu0 %v1227
    %1366 = vmatprep.subr.bf16.mxu0 %v1236
    %1367 = vmatpush1.bf16.msra.mxu0 %v1235
    %1368 = vmatprep.subr.bf16.mxu0 %v1244
    %1369 = vmatpush1.bf16.msra.mxu0 %v1243
    %1370 = vmatprep.subr.bf16.mxu0 0
    %1371 = vmatpush1.bf16.msra.mxu0 0
    %1372 = vmatprep.subr.bf16.mxu0 0
    %1373 = vmatpush1.bf16.msra.mxu0 0
    %1374 = vmatprep.subr.bf16.mxu0 0
    %1375 = vmatpush1.bf16.msra.mxu0 0
    %1376 = vmatprep.subr.bf16.mxu0 0
    %1377 = vmatpush1.bf16.msra.mxu0 0
    %1378 = vmatprep.subr.bf16.mxu0 0
    %1379 = vmatpush1.bf16.msra.mxu0 0
    %1380 = vmatprep.subr.bf16.mxu0 0
    %1381 = vmatpush1.bf16.msra.mxu0 0
    %1382 = vmatprep.subr.bf16.mxu0 0
    %1383 = vmatpush1.bf16.msra.mxu0 0
    %1384 = vmatprep.subr.bf16.mxu0 0
    %1385 = vmatpush1.bf16.msra.mxu0 0
    %1386 = vmatprep.mubr.bf16.mxu0 0
    %1387 = vmatmul.mubr.bf16.gmra.mrb[0].mxu0 %v992
    %v1388 = vpop.f32.mrb[0].mxu0
    %v1389 = vadd.f32 0.0, %v1388
    %v1390 = vpop.f32.mrb[0].mxu0
    %v1391 = vadd.f32 0.0, %v1390
    %v1392 = vpop.f32.mrb[0].mxu0
    %v1393 = vpop.f32.mrb[0].mxu0
    %1394 = vdwg.mxu0
    %1395 = vmatprep.subr.bf16.mxu0 %v1190
    %1396 = vmatpush1.bf16.msra.mxu0 %v1189
    %1397 = vmatprep.subr.bf16.mxu0 %v1198
    %1398 = vmatpush1.bf16.msra.mxu0 %v1197
    %1399 = vmatprep.subr.bf16.mxu0 %v1206
    %1400 = vmatpush1.bf16.msra.mxu0 %v1205
    %1401 = vmatprep.subr.bf16.mxu0 %v1214
    %1402 = vmatpush1.bf16.msra.mxu0 %v1213
    %1403 = vmatprep.subr.bf16.mxu0 %v1222
    %1404 = vmatpush1.bf16.msra.mxu0 %v1221
    %1405 = vmatprep.subr.bf16.mxu0 %v1230
    %1406 = vmatpush1.bf16.msra.mxu0 %v1229
    %1407 = vmatprep.subr.bf16.mxu0 %v1238
    %1408 = vmatpush1.bf16.msra.mxu0 %v1237
    %1409 = vmatprep.subr.bf16.mxu0 %v1246
    %1410 = vmatpush1.bf16.msra.mxu0 %v1245
    %1411 = vmatprep.subr.bf16.mxu0 0
    %1412 = vmatpush1.bf16.msra.mxu0 0
    %1413 = vmatprep.subr.bf16.mxu0 0
    %1414 = vmatpush1.bf16.msra.mxu0 0
    %1415 = vmatprep.subr.bf16.mxu0 0
    %1416 = vmatpush1.bf16.msra.mxu0 0
    %1417 = vmatprep.subr.bf16.mxu0 0
    %1418 = vmatpush1.bf16.msra.mxu0 0
    %1419 = vmatprep.subr.bf16.mxu0 0
    %1420 = vmatpush1.bf16.msra.mxu0 0
    %1421 = vmatprep.subr.bf16.mxu0 0
    %1422 = vmatpush1.bf16.msra.mxu0 0
    %1423 = vmatprep.subr.bf16.mxu0 0
    %1424 = vmatpush1.bf16.msra.mxu0 0
    %1425 = vmatprep.subr.bf16.mxu0 0
    %1426 = vmatpush1.bf16.msra.mxu0 0
    %1427 = vmatprep.mubr.bf16.mxu0 0
    %1428 = vmatmul.mubr.bf16.gmra.mrb[0].mxu0 %v992
    %v1429 = vpop.f32.mrb[0].mxu0
    %v1430 = vadd.f32 0.0, %v1429
    %v1431 = vpop.f32.mrb[0].mxu0
    %v1432 = vadd.f32 0.0, %v1431
    %v1433 = vpop.f32.mrb[0].mxu0
    %v1434 = vpop.f32.mrb[0].mxu0
    %1435 = vdwg.mxu0
    %1436 = vmatprep.subr.bf16.mxu0 %v1192
    %1437 = vmatpush1.bf16.msra.mxu0 %v1191
    %1438 = vmatprep.subr.bf16.mxu0 %v1200
    %1439 = vmatpush1.bf16.msra.mxu0 %v1199
    %1440 = vmatprep.subr.bf16.mxu0 %v1208
    %1441 = vmatpush1.bf16.msra.mxu0 %v1207
    %1442 = vmatprep.subr.bf16.mxu0 %v1216
    %1443 = vmatpush1.bf16.msra.mxu0 %v1215
    %1444 = vmatprep.subr.bf16.mxu0 %v1224
    %1445 = vmatpush1.bf16.msra.mxu0 %v1223
    %1446 = vmatprep.subr.bf16.mxu0 %v1232
    %1447 = vmatpush1.bf16.msra.mxu0 %v1231
    %1448 = vmatprep.subr.bf16.mxu0 %v1240
    %1449 = vmatpush1.bf16.msra.mxu0 %v1239
    %1450 = vmatprep.subr.bf16.mxu0 %v1248
    %1451 = vmatpush1.bf16.msra.mxu0 %v1247
    %1452 = vmatprep.subr.bf16.mxu0 0
    %1453 = vmatpush1.bf16.msra.mxu0 0
    %1454 = vmatprep.subr.bf16.mxu0 0
    %1455 = vmatpush1.bf16.msra.mxu0 0
    %1456 = vmatprep.subr.bf16.mxu0 0
    %1457 = vmatpush1.bf16.msra.mxu0 0
    %1458 = vmatprep.subr.bf16.mxu0 0
    %1459 = vmatpush1.bf16.msra.mxu0 0
    %1460 = vmatprep.subr.bf16.mxu0 0
    %1461 = vmatpush1.bf16.msra.mxu0 0
    %1462 = vmatprep.subr.bf16.mxu0 0
    %1463 = vmatpush1.bf16.msra.mxu0 0
    %1464 = vmatprep.subr.bf16.mxu0 0
    %1465 = vmatpush1.bf16.msra.mxu0 0
    %1466 = vmatprep.subr.bf16.mxu0 0
    %1467 = vmatpush1.bf16.msra.mxu0 0
    %1468 = vmatprep.mubr.bf16.mxu0 0
    %1469 = vmatmul.mubr.bf16.gmra.mrb[0].mxu0 %v992
    %v1470 = vpop.f32.mrb[0].mxu0
    %v1471 = vadd.f32 0.0, %v1470
    %v1472 = vpop.f32.mrb[0].mxu0
    %v1473 = vadd.f32 0.0, %v1472
    %v1474 = vpop.f32.mrb[0].mxu0
    %v1475 = vpop.f32.mrb[0].mxu0
    %1476 = vdwg.mxu0
    %v1477 = vadd.f32 %v789, %v1348
    %v1478 = vadd.f32 %v791, %v1350
    %v1479 = vadd.f32 %v832, %v1389
    %v1480 = vadd.f32 %v834, %v1391
    %v1485 = vrot.slane %v1430, 4
    %v1486 = vrot.slane %v1432, 4
    %v1487 = vrot.slane %v1471, 4
    %v1488 = vrot.slane %v1473, 4
    %v1493 = vadd.f32 %v879, %v1485
    %v1494 = vadd.f32 %v881, %v1486
    %v1495 = vadd.f32 %v922, %v1487
    %v1496 = vadd.f32 %v924, %v1488
    %v1501 = vrot.slane %v1493, 4
    %v1502 = vrot.slane %v1494, 4
    %v1503 = vrot.slane %v1495, 4
    %v1504 = vrot.slane %v1496, 4
    %vm1509 = vcmask 1041408
    %v1510 = vsel %vm1509, %v1477, %v1501
    %v1511 = vsel %vm1509, %v1478, %v1502
    %v1512 = vsel %vm1509, %v1479, %v1503
    %v1513 = vsel %vm1509, %v1480, %v1504
    %v1514 = vxor.u32 %v1510, 2147483648
    %v1515 = vxor.u32 %v1511, 2147483648
    %v1516 = vxor.u32 %v1512, 2147483648
    %v1517 = vmul.f32 %v1514, 1.442695
    %v1518 = vpow.pop %v1517
    %v1519 = vmul.f32 %v1515, 1.442695
    %v1520 = vpow.pop %v1519
    %v1521 = vmul.f32 %v1516, 1.442695
    %v1522 = vpow.pop %v1521
    %v1523 = vadd.f32 %v1518, 1.0
    %v1524 = vadd.f32 %v1520, 1.0
    %v1525 = vadd.f32 %v1522, 1.0
    %v1526 = vrcp.pop %v1523
    %v1527 = vmul.f32 1.0, %v1526
    %v1528 = vrcp.pop %v1524
    %v1529 = vmul.f32 1.0, %v1528
    %v1530 = vrcp.pop %v1525
    %v1531 = vmul.f32 1.0, %v1530
    %v1532 = vtanh.pop %v1513
    %v1533 = vmul.f32 %v1529, %v991
    %v1534 = vmul.f32 %v1527, %v1532
    %v1535 = vadd.f32 %v1533, %v1534
    %v1536 = vtanh.pop %v1535
    %v1537 = vmul.f32 %v1531, %v1536
    %1538 = vst [vmem:[#allocation2] sm:$0x3] %v1537
    %v1540 = vrot.slane %v1537, 4
    %1542 = vst [vmem:[#allocation2 + $0x18] sm:$0xc0] %v1540
    %v1543 = vpack.c.bf16 %v1537, %v1537
    %1544 = vmatprep.subr.bf16.mxu0 %v1186
    %1545 = vmatpush1.bf16.msra.mxu0 %v1185
    %1546 = vmatprep.subr.bf16.mxu0 %v1194
    %1547 = vmatpush1.bf16.msra.mxu0 %v1193
    %1548 = vmatprep.subr.bf16.mxu0 %v1202
    %1549 = vmatpush1.bf16.msra.mxu0 %v1201
    %1550 = vmatprep.subr.bf16.mxu0 %v1210
    %1551 = vmatpush1.bf16.msra.mxu0 %v1209
    %1552 = vmatprep.subr.bf16.mxu0 %v1218
    %1553 = vmatpush1.bf16.msra.mxu0 %v1217
    %1554 = vmatprep.subr.bf16.mxu0 %v1226
    %1555 = vmatpush1.bf16.msra.mxu0 %v1225
    %1556 = vmatprep.subr.bf16.mxu0 %v1234
    %1557 = vmatpush1.bf16.msra.mxu0 %v1233
    %1558 = vmatprep.subr.bf16.mxu0 %v1242
    %1559 = vmatpush1.bf16.msra.mxu0 %v1241
    %1560 = vmatprep.subr.bf16.mxu0 0
    %1561 = vmatpush1.bf16.msra.mxu0 0
    %1562 = vmatprep.subr.bf16.mxu0 0
    %1563 = vmatpush1.bf16.msra.mxu0 0
    %1564 = vmatprep.subr.bf16.mxu0 0
    %1565 = vmatpush1.bf16.msra.mxu0 0
    %1566 = vmatprep.subr.bf16.mxu0 0
    %1567 = vmatpush1.bf16.msra.mxu0 0
    %1568 = vmatprep.subr.bf16.mxu0 0
    %1569 = vmatpush1.bf16.msra.mxu0 0
    %1570 = vmatprep.subr.bf16.mxu0 0
    %1571 = vmatpush1.bf16.msra.mxu0 0
    %1572 = vmatprep.subr.bf16.mxu0 0
    %1573 = vmatpush1.bf16.msra.mxu0 0
    %1574 = vmatprep.subr.bf16.mxu0 0
    %1575 = vmatpush1.bf16.msra.mxu0 0
    %1576 = vmatprep.mubr.bf16.mxu0 0
    %1577 = vmatmul.mubr.bf16.gmra.mrb[0].mxu0 %v1543
    %v1578 = vpop.f32.mrb[0].mxu0
    %v1579 = vadd.f32 0.0, %v1578
    %v1580 = vpop.f32.mrb[0].mxu0
    %v1581 = vadd.f32 0.0, %v1580
    %v1582 = vpop.f32.mrb[0].mxu0
    %v1583 = vpop.f32.mrb[0].mxu0
    %1584 = vdwg.mxu0
    %1585 = vmatprep.subr.bf16.mxu0 %v1188
    %1586 = vmatpush1.bf16.msra.mxu0 %v1187
    %1587 = vmatprep.subr.bf16.mxu0 %v1196
    %1588 = vmatpush1.bf16.msra.mxu0 %v1195
    %1589 = vmatprep.subr.bf16.mxu0 %v1204
    %1590 = vmatpush1.bf16.msra.mxu0 %v1203
    %1591 = vmatprep.subr.bf16.mxu0 %v1212
    %1592 = vmatpush1.bf16.msra.mxu0 %v1211
    %1593 = vmatprep.subr.bf16.mxu0 %v1220
    %1594 = vmatpush1.bf16.msra.mxu0 %v1219
    %1595 = vmatprep.subr.bf16.mxu0 %v1228
    %1596 = vmatpush1.bf16.msra.mxu0 %v1227
    %1597 = vmatprep.subr.bf16.mxu0 %v1236
    %1598 = vmatpush1.bf16.msra.mxu0 %v1235
    %1599 = vmatprep.subr.bf16.mxu0 %v1244
    %1600 = vmatpush1.bf16.msra.mxu0 %v1243
    %1601 = vmatprep.subr.bf16.mxu0 0
    %1602 = vmatpush1.bf16.msra.mxu0 0
    %1603 = vmatprep.subr.bf16.mxu0 0
    %1604 = vmatpush1.bf16.msra.mxu0 0
    %1605 = vmatprep.subr.bf16.mxu0 0
    %1606 = vmatpush1.bf16.msra.mxu0 0
    %1607 = vmatprep.subr.bf16.mxu0 0
    %1608 = vmatpush1.bf16.msra.mxu0 0
    %1609 = vmatprep.subr.bf16.mxu0 0
    %1610 = vmatpush1.bf16.msra.mxu0 0
    %1611 = vmatprep.subr.bf16.mxu0 0
    %1612 = vmatpush1.bf16.msra.mxu0 0
    %1613 = vmatprep.subr.bf16.mxu0 0
    %1614 = vmatpush1.bf16.msra.mxu0 0
    %1615 = vmatprep.subr.bf16.mxu0 0
    %1616 = vmatpush1.bf16.msra.mxu0 0
    %1617 = vmatprep.mubr.bf16.mxu0 0
    %1618 = vmatmul.mubr.bf16.gmra.mrb[0].mxu0 %v1543
    %v1619 = vpop.f32.mrb[0].mxu0
    %v1620 = vadd.f32 0.0, %v1619
    %v1621 = vpop.f32.mrb[0].mxu0
    %v1622 = vadd.f32 0.0, %v1621
    %v1623 = vpop.f32.mrb[0].mxu0
    %v1624 = vpop.f32.mrb[0].mxu0
    %1625 = vdwg.mxu0
    %1626 = vmatprep.subr.bf16.mxu0 %v1190
    %1627 = vmatpush1.bf16.msra.mxu0 %v1189
    %1628 = vmatprep.subr.bf16.mxu0 %v1198
    %1629 = vmatpush1.bf16.msra.mxu0 %v1197
    %1630 = vmatprep.subr.bf16.mxu0 %v1206
    %1631 = vmatpush1.bf16.msra.mxu0 %v1205
    %1632 = vmatprep.subr.bf16.mxu0 %v1214
    %1633 = vmatpush1.bf16.msra.mxu0 %v1213
    %1634 = vmatprep.subr.bf16.mxu0 %v1222
    %1635 = vmatpush1.bf16.msra.mxu0 %v1221
    %1636 = vmatprep.subr.bf16.mxu0 %v1230
    %1637 = vmatpush1.bf16.msra.mxu0 %v1229
    %1638 = vmatprep.subr.bf16.mxu0 %v1238
    %1639 = vmatpush1.bf16.msra.mxu0 %v1237
    %1640 = vmatprep.subr.bf16.mxu0 %v1246
    %1641 = vmatpush1.bf16.msra.mxu0 %v1245
    %1642 = vmatprep.subr.bf16.mxu0 0
    %1643 = vmatpush1.bf16.msra.mxu0 0
    %1644 = vmatprep.subr.bf16.mxu0 0
    %1645 = vmatpush1.bf16.msra.mxu0 0
    %1646 = vmatprep.subr.bf16.mxu0 0
    %1647 = vmatpush1.bf16.msra.mxu0 0
    %1648 = vmatprep.subr.bf16.mxu0 0
    %1649 = vmatpush1.bf16.msra.mxu0 0
    %1650 = vmatprep.subr.bf16.mxu0 0
    %1651 = vmatpush1.bf16.msra.mxu0 0
    %1652 = vmatprep.subr.bf16.mxu0 0
    %1653 = vmatpush1.bf16.msra.mxu0 0
    %1654 = vmatprep.subr.bf16.mxu0 0
    %1655 = vmatpush1.bf16.msra.mxu0 0
    %1656 = vmatprep.subr.bf16.mxu0 0
    %1657 = vmatpush1.bf16.msra.mxu0 0
    %1658 = vmatprep.mubr.bf16.mxu0 0
    %1659 = vmatmul.mubr.bf16.gmra.mrb[0].mxu0 %v1543
    %v1660 = vpop.f32.mrb[0].mxu0
    %v1661 = vadd.f32 0.0, %v1660
    %v1662 = vpop.f32.mrb[0].mxu0
    %v1663 = vadd.f32 0.0, %v1662
    %v1664 = vpop.f32.mrb[0].mxu0
    %v1665 = vpop.f32.mrb[0].mxu0
    %1666 = vdwg.mxu0
    %1667 = vmatprep.subr.bf16.mxu0 %v1192
    %1668 = vmatpush1.bf16.msra.mxu0 %v1191
    %1669 = vmatprep.subr.bf16.mxu0 %v1200
    %1670 = vmatpush1.bf16.msra.mxu0 %v1199
    %1671 = vmatprep.subr.bf16.mxu0 %v1208
    %1672 = vmatpush1.bf16.msra.mxu0 %v1207
    %1673 = vmatprep.subr.bf16.mxu0 %v1216
    %1674 = vmatpush1.bf16.msra.mxu0 %v1215
    %1675 = vmatprep.subr.bf16.mxu0 %v1224
    %1676 = vmatpush1.bf16.msra.mxu0 %v1223
    %1677 = vmatprep.subr.bf16.mxu0 %v1232
    %1678 = vmatpush1.bf16.msra.mxu0 %v1231
    %1679 = vmatprep.subr.bf16.mxu0 %v1240
    %1680 = vmatpush1.bf16.msra.mxu0 %v1239
    %1681 = vmatprep.subr.bf16.mxu0 %v1248
    %1682 = vmatpush1.bf16.msra.mxu0 %v1247
    %1683 = vmatprep.subr.bf16.mxu0 0
    %1684 = vmatpush1.bf16.msra.mxu0 0
    %1685 = vmatprep.subr.bf16.mxu0 0
    %1686 = vmatpush1.bf16.msra.mxu0 0
    %1687 = vmatprep.subr.bf16.mxu0 0
    %1688 = vmatpush1.bf16.msra.mxu0 0
    %1689 = vmatprep.subr.bf16.mxu0 0
    %1690 = vmatpush1.bf16.msra.mxu0 0
    %1691 = vmatprep.subr.bf16.mxu0 0
    %1692 = vmatpush1.bf16.msra.mxu0 0
    %1693 = vmatprep.subr.bf16.mxu0 0
    %1694 = vmatpush1.bf16.msra.mxu0 0
    %1695 = vmatprep.subr.bf16.mxu0 0
    %1696 = vmatpush1.bf16.msra.mxu0 0
    %1697 = vmatprep.subr.bf16.mxu0 0
    %1698 = vmatpush1.bf16.msra.mxu0 0
    %1699 = vmatprep.mubr.bf16.mxu0 0
    %1700 = vmatmul.mubr.bf16.gmra.mrb[0].mxu0 %v1543
    %v1701 = vpop.f32.mrb[0].mxu0
    %v1702 = vadd.f32 0.0, %v1701
    %v1703 = vpop.f32.mrb[0].mxu0
    %v1704 = vadd.f32 0.0, %v1703
    %v1705 = vpop.f32.mrb[0].mxu0
    %v1706 = vpop.f32.mrb[0].mxu0
    %1707 = vdwg.mxu0
    %v1712 = vrot.slane %v1579, 6
    %v1713 = vrot.slane %v1581, 6
    %v1714 = vrot.slane %v1620, 6
    %v1715 = vrot.slane %v1622, 6
    %v1720 = vadd.f32 %v789, %v1712
    %v1721 = vadd.f32 %v791, %v1713
    %v1722 = vadd.f32 %v832, %v1714
    %v1723 = vadd.f32 %v834, %v1715
    %v1728 = vrot.slane %v1661, 6
    %v1729 = vrot.slane %v1663, 6
    %v1730 = vrot.slane %v1702, 6
    %v1731 = vrot.slane %v1704, 6
    %v1736 = vadd.f32 %v879, %v1728
    %v1737 = vadd.f32 %v881, %v1729
    %v1738 = vadd.f32 %v922, %v1730
    %v1739 = vadd.f32 %v924, %v1731
    %v1744 = vrot.slane %v1720, 2
    %v1745 = vrot.slane %v1721, 2
    %v1746 = vrot.slane %v1722, 2
    %v1747 = vrot.slane %v1723, 2
    %v1756 = vrot.slane %v1736, 2
    %v1757 = vrot.slane %v1737, 2
    %v1758 = vrot.slane %v1738, 2
    %v1759 = vrot.slane %v1739, 2
    %v1764 = vsel %vm1509, %v1744, %v1756
    %v1765 = vsel %vm1509, %v1745, %v1757
    %v1766 = vsel %vm1509, %v1746, %v1758
    %v1767 = vsel %vm1509, %v1747, %v1759
    %v1768 = vxor.u32 %v1764, 2147483648
    %v1769 = vxor.u32 %v1765, 2147483648
    %v1770 = vxor.u32 %v1766, 2147483648
    %v1771 = vmul.f32 %v1768, 1.442695
    %v1772 = vpow.pop %v1771
    %v1773 = vmul.f32 %v1769, 1.442695
    %v1774 = vpow.pop %v1773
    %v1775 = vmul.f32 %v1770, 1.442695
    %v1776 = vpow.pop %v1775
    %v1777 = vadd.f32 %v1772, 1.0
    %v1778 = vadd.f32 %v1774, 1.0
    %v1779 = vadd.f32 %v1776, 1.0
    %v1780 = vrcp.pop %v1777
    %v1781 = vmul.f32 1.0, %v1780
    %v1782 = vrcp.pop %v1778
    %v1783 = vmul.f32 1.0, %v1782
    %v1784 = vrcp.pop %v1779
    %v1785 = vmul.f32 1.0, %v1784
    %v1786 = vtanh.pop %v1767
    %v1787 = vmul.f32 %v1783, %v1535
    %v1788 = vmul.f32 %v1781, %v1786
    %v1789 = vadd.f32 %v1787, %v1788
    %v1790 = vtanh.pop %v1789
    %v1791 = vmul.f32 %v1785, %v1790
    %v1793 = vrot.slane %v1791, 6
    %1795 = vst [vmem:[#allocation2] sm:$0xc] %v1793
    %1796 = vst [vmem:[#allocation2 + $0x18] sm:$0x30] %v1793
    %v1797 = vpack.c.bf16 %v1791, %v1791
    %1798 = vmatprep.subr.bf16.mxu0 %v1186
    %1799 = vmatpush1.bf16.msra.mxu0 %v1185
    %1800 = vmatprep.subr.bf16.mxu0 %v1194
    %1801 = vmatpush1.bf16.msra.mxu0 %v1193
    %1802 = vmatprep.subr.bf16.mxu0 %v1202
    %1803 = vmatpush1.bf16.msra.mxu0 %v1201
    %1804 = vmatprep.subr.bf16.mxu0 %v1210
    %1805 = vmatpush1.bf16.msra.mxu0 %v1209
    %1806 = vmatprep.subr.bf16.mxu0 %v1218
    %1807 = vmatpush1.bf16.msra.mxu0 %v1217
    %1808 = vmatprep.subr.bf16.mxu0 %v1226
    %1809 = vmatpush1.bf16.msra.mxu0 %v1225
    %1810 = vmatprep.subr.bf16.mxu0 %v1234
    %1811 = vmatpush1.bf16.msra.mxu0 %v1233
    %1812 = vmatprep.subr.bf16.mxu0 %v1242
    %1813 = vmatpush1.bf16.msra.mxu0 %v1241
    %1814 = vmatprep.subr.bf16.mxu0 0
    %1815 = vmatpush1.bf16.msra.mxu0 0
    %1816 = vmatprep.subr.bf16.mxu0 0
    %1817 = vmatpush1.bf16.msra.mxu0 0
    %1818 = vmatprep.subr.bf16.mxu0 0
    %1819 = vmatpush1.bf16.msra.mxu0 0
    %1820 = vmatprep.subr.bf16.mxu0 0
    %1821 = vmatpush1.bf16.msra.mxu0 0
    %1822 = vmatprep.subr.bf16.mxu0 0
    %1823 = vmatpush1.bf16.msra.mxu0 0
    %1824 = vmatprep.subr.bf16.mxu0 0
    %1825 = vmatpush1.bf16.msra.mxu0 0
    %1826 = vmatprep.subr.bf16.mxu0 0
    %1827 = vmatpush1.bf16.msra.mxu0 0
    %1828 = vmatprep.subr.bf16.mxu0 0
    %1829 = vmatpush1.bf16.msra.mxu0 0
    %1830 = vmatprep.mubr.bf16.mxu0 0
    %1831 = vmatmul.mubr.bf16.gmra.mrb[0].mxu0 %v1797
    %v1832 = vpop.f32.mrb[0].mxu0
    %v1833 = vadd.f32 0.0, %v1832
    %v1834 = vpop.f32.mrb[0].mxu0
    %v1835 = vadd.f32 0.0, %v1834
    %v1836 = vpop.f32.mrb[0].mxu0
    %v1837 = vpop.f32.mrb[0].mxu0
    %1838 = vdwg.mxu0
    %1839 = vmatprep.subr.bf16.mxu0 %v1188
    %1840 = vmatpush1.bf16.msra.mxu0 %v1187
    %1841 = vmatprep.subr.bf16.mxu0 %v1196
    %1842 = vmatpush1.bf16.msra.mxu0 %v1195
    %1843 = vmatprep.subr.bf16.mxu0 %v1204
    %1844 = vmatpush1.bf16.msra.mxu0 %v1203
    %1845 = vmatprep.subr.bf16.mxu0 %v1212
    %1846 = vmatpush1.bf16.msra.mxu0 %v1211
    %1847 = vmatprep.subr.bf16.mxu0 %v1220
    %1848 = vmatpush1.bf16.msra.mxu0 %v1219
    %1849 = vmatprep.subr.bf16.mxu0 %v1228
    %1850 = vmatpush1.bf16.msra.mxu0 %v1227
    %1851 = vmatprep.subr.bf16.mxu0 %v1236
    %1852 = vmatpush1.bf16.msra.mxu0 %v1235
    %1853 = vmatprep.subr.bf16.mxu0 %v1244
    %1854 = vmatpush1.bf16.msra.mxu0 %v1243
    %1855 = vmatprep.subr.bf16.mxu0 0
    %1856 = vmatpush1.bf16.msra.mxu0 0
    %1857 = vmatprep.subr.bf16.mxu0 0
    %1858 = vmatpush1.bf16.msra.mxu0 0
    %1859 = vmatprep.subr.bf16.mxu0 0
    %1860 = vmatpush1.bf16.msra.mxu0 0
    %1861 = vmatprep.subr.bf16.mxu0 0
    %1862 = vmatpush1.bf16.msra.mxu0 0
    %1863 = vmatprep.subr.bf16.mxu0 0
    %1864 = vmatpush1.bf16.msra.mxu0 0
    %1865 = vmatprep.subr.bf16.mxu0 0
    %1866 = vmatpush1.bf16.msra.mxu0 0
    %1867 = vmatprep.subr.bf16.mxu0 0
    %1868 = vmatpush1.bf16.msra.mxu0 0
    %1869 = vmatprep.subr.bf16.mxu0 0
    %1870 = vmatpush1.bf16.msra.mxu0 0
    %1871 = vmatprep.mubr.bf16.mxu0 0
    %1872 = vmatmul.mubr.bf16.gmra.mrb[0].mxu0 %v1797
    %v1873 = vpop.f32.mrb[0].mxu0
    %v1874 = vadd.f32 0.0, %v1873
    %v1875 = vpop.f32.mrb[0].mxu0
    %v1876 = vadd.f32 0.0, %v1875
    %v1877 = vpop.f32.mrb[0].mxu0
    %v1878 = vpop.f32.mrb[0].mxu0
    %1879 = vdwg.mxu0
    %1880 = vmatprep.subr.bf16.mxu0 %v1190
    %1881 = vmatpush1.bf16.msra.mxu0 %v1189
    %1882 = vmatprep.subr.bf16.mxu0 %v1198
    %1883 = vmatpush1.bf16.msra.mxu0 %v1197
    %1884 = vmatprep.subr.bf16.mxu0 %v1206
    %1885 = vmatpush1.bf16.msra.mxu0 %v1205
    %1886 = vmatprep.subr.bf16.mxu0 %v1214
    %1887 = vmatpush1.bf16.msra.mxu0 %v1213
    %1888 = vmatprep.subr.bf16.mxu0 %v1222
    %1889 = vmatpush1.bf16.msra.mxu0 %v1221
    %1890 = vmatprep.subr.bf16.mxu0 %v1230
    %1891 = vmatpush1.bf16.msra.mxu0 %v1229
    %1892 = vmatprep.subr.bf16.mxu0 %v1238
    %1893 = vmatpush1.bf16.msra.mxu0 %v1237
    %1894 = vmatprep.subr.bf16.mxu0 %v1246
    %1895 = vmatpush1.bf16.msra.mxu0 %v1245
    %1896 = vmatprep.subr.bf16.mxu0 0
    %1897 = vmatpush1.bf16.msra.mxu0 0
    %1898 = vmatprep.subr.bf16.mxu0 0
    %1899 = vmatpush1.bf16.msra.mxu0 0
    %1900 = vmatprep.subr.bf16.mxu0 0
    %1901 = vmatpush1.bf16.msra.mxu0 0
    %1902 = vmatprep.subr.bf16.mxu0 0
    %1903 = vmatpush1.bf16.msra.mxu0 0
    %1904 = vmatprep.subr.bf16.mxu0 0
    %1905 = vmatpush1.bf16.msra.mxu0 0
    %1906 = vmatprep.subr.bf16.mxu0 0
    %1907 = vmatpush1.bf16.msra.mxu0 0
    %1908 = vmatprep.subr.bf16.mxu0 0
    %1909 = vmatpush1.bf16.msra.mxu0 0
    %1910 = vmatprep.subr.bf16.mxu0 0
    %1911 = vmatpush1.bf16.msra.mxu0 0
    %1912 = vmatprep.mubr.bf16.mxu0 0
    %1913 = vmatmul.mubr.bf16.gmra.mrb[0].mxu0 %v1797
    %v1914 = vpop.f32.mrb[0].mxu0
    %v1915 = vadd.f32 0.0, %v1914
    %v1916 = vpop.f32.mrb[0].mxu0
    %v1917 = vadd.f32 0.0, %v1916
    %v1918 = vpop.f32.mrb[0].mxu0
    %v1919 = vpop.f32.mrb[0].mxu0
    %1920 = vdwg.mxu0
    %1921 = vmatprep.subr.bf16.mxu0 %v1192
    %1922 = vmatpush1.bf16.msra.mxu0 %v1191
    %1923 = vmatprep.subr.bf16.mxu0 %v1200
    %1924 = vmatpush1.bf16.msra.mxu0 %v1199
    %1925 = vmatprep.subr.bf16.mxu0 %v1208
    %1926 = vmatpush1.bf16.msra.mxu0 %v1207
    %1927 = vmatprep.subr.bf16.mxu0 %v1216
    %1928 = vmatpush1.bf16.msra.mxu0 %v1215
    %1929 = vmatprep.subr.bf16.mxu0 %v1224
    %1930 = vmatpush1.bf16.msra.mxu0 %v1223
    %1931 = vmatprep.subr.bf16.mxu0 %v1232
    %1932 = vmatpush1.bf16.msra.mxu0 %v1231
    %1933 = vmatprep.subr.bf16.mxu0 %v1240
    %1934 = vmatpush1.bf16.msra.mxu0 %v1239
    %1935 = vmatprep.subr.bf16.mxu0 %v1248
    %1936 = vmatpush1.bf16.msra.mxu0 %v1247
    %1937 = vmatprep.subr.bf16.mxu0 0
    %1938 = vmatpush1.bf16.msra.mxu0 0
    %1939 = vmatprep.subr.bf16.mxu0 0
    %1940 = vmatpush1.bf16.msra.mxu0 0
    %1941 = vmatprep.subr.bf16.mxu0 0
    %1942 = vmatpush1.bf16.msra.mxu0 0
    %1943 = vmatprep.subr.bf16.mxu0 0
    %1944 = vmatpush1.bf16.msra.mxu0 0
    %1945 = vmatprep.subr.bf16.mxu0 0
    %1946 = vmatpush1.bf16.msra.mxu0 0
    %1947 = vmatprep.subr.bf16.mxu0 0
    %1948 = vmatpush1.bf16.msra.mxu0 0
    %1949 = vmatprep.subr.bf16.mxu0 0
    %1950 = vmatpush1.bf16.msra.mxu0 0
    %1951 = vmatprep.subr.bf16.mxu0 0
    %1952 = vmatpush1.bf16.msra.mxu0 0
    %1953 = vmatprep.mubr.bf16.mxu0 0
    %1954 = vmatmul.mubr.bf16.gmra.mrb[0].mxu0 %v1797
    %v1955 = vpop.f32.mrb[0].mxu0
    %v1956 = vadd.f32 0.0, %v1955
    %v1957 = vpop.f32.mrb[0].mxu0
    %v1958 = vadd.f32 0.0, %v1957
    %v1959 = vpop.f32.mrb[0].mxu0
    %v1960 = vpop.f32.mrb[0].mxu0
    %1961 = vdwg.mxu0
    %v1966 = vrot.slane %v1833, 4
    %v1967 = vrot.slane %v1835, 4
    %v1968 = vrot.slane %v1874, 4
    %v1969 = vrot.slane %v1876, 4
    %v1974 = vadd.f32 %v789, %v1966
    %v1975 = vadd.f32 %v791, %v1967
    %v1976 = vadd.f32 %v832, %v1968
    %v1977 = vadd.f32 %v834, %v1969
    %v1978 = vadd.f32 %v879, %v1915
    %v1979 = vadd.f32 %v881, %v1917
    %v1980 = vadd.f32 %v922, %v1956
    %v1981 = vadd.f32 %v924, %v1958
    %v1986 = vrot.slane %v1974, 4
    %v1987 = vrot.slane %v1975, 4
    %v1988 = vrot.slane %v1976, 4
    %v1989 = vrot.slane %v1977, 4
    %v1994 = vsel %vm1509, %v1986, %v1978
    %v1995 = vsel %vm1509, %v1987, %v1979
    %v1996 = vsel %vm1509, %v1988, %v1980
    %v1997 = vsel %vm1509, %v1989, %v1981
    %v1998 = vxor.u32 %v1994, 2147483648
    %v1999 = vxor.u32 %v1995, 2147483648
    %v2000 = vxor.u32 %v1996, 2147483648
    %v2001 = vmul.f32 %v1998, 1.442695
    %v2002 = vpow.pop %v2001
    %v2003 = vmul.f32 %v1999, 1.442695
    %v2004 = vpow.pop %v2003
    %v2005 = vmul.f32 %v2000, 1.442695
    %v2006 = vpow.pop %v2005
    %v2007 = vadd.f32 %v2002, 1.0
    %v2008 = vadd.f32 %v2004, 1.0
    %v2009 = vadd.f32 %v2006, 1.0
    %v2010 = vrcp.pop %v2007
    %v2011 = vmul.f32 1.0, %v2010
    %v2012 = vrcp.pop %v2008
    %v2013 = vmul.f32 1.0, %v2012
    %v2014 = vrcp.pop %v2009
    %v2015 = vmul.f32 1.0, %v2014
    %v2016 = vtanh.pop %v1997
    %v2017 = vmul.f32 %v2013, %v1789
    %v2018 = vmul.f32 %v2011, %v2016
    %v2019 = vadd.f32 %v2017, %v2018
    %v2020 = vtanh.pop %v2019
    %v2021 = vmul.f32 %v2015, %v2020
    %v2023 = vrot.slane %v2021, 4
    %2025 = vst [vmem:[#allocation2] sm:$0x30] %v2023
    %2026 = vst [vmem:[#allocation2 + $0x18] sm:$0xc] %v2021
    %v2027 = vpack.c.bf16 %v2021, %v2021
    %2028 = vmatprep.subr.bf16.mxu0 %v1186
    %2029 = vmatpush1.bf16.msra.mxu0 %v1185
    %2030 = vmatprep.subr.bf16.mxu0 %v1194
    %2031 = vmatpush1.bf16.msra.mxu0 %v1193
    %2032 = vmatprep.subr.bf16.mxu0 %v1202
    %2033 = vmatpush1.bf16.msra.mxu0 %v1201
    %2034 = vmatprep.subr.bf16.mxu0 %v1210
    %2035 = vmatpush1.bf16.msra.mxu0 %v1209
    %2036 = vmatprep.subr.bf16.mxu0 %v1218
    %2037 = vmatpush1.bf16.msra.mxu0 %v1217
    %2038 = vmatprep.subr.bf16.mxu0 %v1226
    %2039 = vmatpush1.bf16.msra.mxu0 %v1225
    %2040 = vmatprep.subr.bf16.mxu0 %v1234
    %2041 = vmatpush1.bf16.msra.mxu0 %v1233
    %2042 = vmatprep.subr.bf16.mxu0 %v1242
    %2043 = vmatpush1.bf16.msra.mxu0 %v1241
    %2044 = vmatprep.subr.bf16.mxu0 0
    %2045 = vmatpush1.bf16.msra.mxu0 0
    %2046 = vmatprep.subr.bf16.mxu0 0
    %2047 = vmatpush1.bf16.msra.mxu0 0
    %2048 = vmatprep.subr.bf16.mxu0 0
    %2049 = vmatpush1.bf16.msra.mxu0 0
    %2050 = vmatprep.subr.bf16.mxu0 0
    %2051 = vmatpush1.bf16.msra.mxu0 0
    %2052 = vmatprep.subr.bf16.mxu0 0
    %2053 = vmatpush1.bf16.msra.mxu0 0
    %2054 = vmatprep.subr.bf16.mxu0 0
    %2055 = vmatpush1.bf16.msra.mxu0 0
    %2056 = vmatprep.subr.bf16.mxu0 0
    %2057 = vmatpush1.bf16.msra.mxu0 0
    %2058 = vmatprep.subr.bf16.mxu0 0
    %2059 = vmatpush1.bf16.msra.mxu0 0
    %2060 = vmatprep.mubr.bf16.mxu0 0
    %2061 = vmatmul.mubr.bf16.gmra.mrb[0].mxu0 %v2027
    %v2062 = vpop.f32.mrb[0].mxu0
    %v2063 = vadd.f32 0.0, %v2062
    %v2064 = vpop.f32.mrb[0].mxu0
    %v2065 = vadd.f32 0.0, %v2064
    %v2066 = vpop.f32.mrb[0].mxu0
    %v2067 = vpop.f32.mrb[0].mxu0
    %2068 = vdwg.mxu0
    %2069 = vmatprep.subr.bf16.mxu0 %v1188
    %2070 = vmatpush1.bf16.msra.mxu0 %v1187
    %2071 = vmatprep.subr.bf16.mxu0 %v1196
    %2072 = vmatpush1.bf16.msra.mxu0 %v1195
    %2073 = vmatprep.subr.bf16.mxu0 %v1204
    %2074 = vmatpush1.bf16.msra.mxu0 %v1203
    %2075 = vmatprep.subr.bf16.mxu0 %v1212
    %2076 = vmatpush1.bf16.msra.mxu0 %v1211
    %2077 = vmatprep.subr.bf16.mxu0 %v1220
    %2078 = vmatpush1.bf16.msra.mxu0 %v1219
    %2079 = vmatprep.subr.bf16.mxu0 %v1228
    %2080 = vmatpush1.bf16.msra.mxu0 %v1227
    %2081 = vmatprep.subr.bf16.mxu0 %v1236
    %2082 = vmatpush1.bf16.msra.mxu0 %v1235
    %2083 = vmatprep.subr.bf16.mxu0 %v1244
    %2084 = vmatpush1.bf16.msra.mxu0 %v1243
    %2085 = vmatprep.subr.bf16.mxu0 0
    %2086 = vmatpush1.bf16.msra.mxu0 0
    %2087 = vmatprep.subr.bf16.mxu0 0
    %2088 = vmatpush1.bf16.msra.mxu0 0
    %2089 = vmatprep.subr.bf16.mxu0 0
    %2090 = vmatpush1.bf16.msra.mxu0 0
    %2091 = vmatprep.subr.bf16.mxu0 0
    %2092 = vmatpush1.bf16.msra.mxu0 0
    %2093 = vmatprep.subr.bf16.mxu0 0
    %2094 = vmatpush1.bf16.msra.mxu0 0
    %2095 = vmatprep.subr.bf16.mxu0 0
    %2096 = vmatpush1.bf16.msra.mxu0 0
    %2097 = vmatprep.subr.bf16.mxu0 0
    %2098 = vmatpush1.bf16.msra.mxu0 0
    %2099 = vmatprep.subr.bf16.mxu0 0
    %2100 = vmatpush1.bf16.msra.mxu0 0
    %2101 = vmatprep.mubr.bf16.mxu0 0
    %2102 = vmatmul.mubr.bf16.gmra.mrb[0].mxu0 %v2027
    %v2103 = vpop.f32.mrb[0].mxu0
    %v2104 = vadd.f32 0.0, %v2103
    %v2105 = vpop.f32.mrb[0].mxu0
    %v2106 = vadd.f32 0.0, %v2105
    %v2107 = vpop.f32.mrb[0].mxu0
    %v2108 = vpop.f32.mrb[0].mxu0
    %2109 = vdwg.mxu0
    %2110 = vmatprep.subr.bf16.mxu0 %v1190
    %2111 = vmatpush1.bf16.msra.mxu0 %v1189
    %2112 = vmatprep.subr.bf16.mxu0 %v1198
    %2113 = vmatpush1.bf16.msra.mxu0 %v1197
    %2114 = vmatprep.subr.bf16.mxu0 %v1206
    %2115 = vmatpush1.bf16.msra.mxu0 %v1205
    %2116 = vmatprep.subr.bf16.mxu0 %v1214
    %2117 = vmatpush1.bf16.msra.mxu0 %v1213
    %2118 = vmatprep.subr.bf16.mxu0 %v1222
    %2119 = vmatpush1.bf16.msra.mxu0 %v1221
    %2120 = vmatprep.subr.bf16.mxu0 %v1230
    %2121 = vmatpush1.bf16.msra.mxu0 %v1229
    %2122 = vmatprep.subr.bf16.mxu0 %v1238
    %2123 = vmatpush1.bf16.msra.mxu0 %v1237
    %2124 = vmatprep.subr.bf16.mxu0 %v1246
    %2125 = vmatpush1.bf16.msra.mxu0 %v1245
    %2126 = vmatprep.subr.bf16.mxu0 0
    %2127 = vmatpush1.bf16.msra.mxu0 0
    %2128 = vmatprep.subr.bf16.mxu0 0
    %2129 = vmatpush1.bf16.msra.mxu0 0
    %2130 = vmatprep.subr.bf16.mxu0 0
    %2131 = vmatpush1.bf16.msra.mxu0 0
    %2132 = vmatprep.subr.bf16.mxu0 0
    %2133 = vmatpush1.bf16.msra.mxu0 0
    %2134 = vmatprep.subr.bf16.mxu0 0
    %2135 = vmatpush1.bf16.msra.mxu0 0
    %2136 = vmatprep.subr.bf16.mxu0 0
    %2137 = vmatpush1.bf16.msra.mxu0 0
    %2138 = vmatprep.subr.bf16.mxu0 0
    %2139 = vmatpush1.bf16.msra.mxu0 0
    %2140 = vmatprep.subr.bf16.mxu0 0
    %2141 = vmatpush1.bf16.msra.mxu0 0
    %2142 = vmatprep.mubr.bf16.mxu0 0
    %2143 = vmatmul.mubr.bf16.gmra.mrb[0].mxu0 %v2027
    %v2144 = vpop.f32.mrb[0].mxu0
    %v2145 = vadd.f32 0.0, %v2144
    %v2146 = vpop.f32.mrb[0].mxu0
    %v2147 = vadd.f32 0.0, %v2146
    %v2148 = vpop.f32.mrb[0].mxu0
    %v2149 = vpop.f32.mrb[0].mxu0
    %2150 = vdwg.mxu0
    %2151 = vmatprep.subr.bf16.mxu0 %v1192
    %2152 = vmatpush1.bf16.msra.mxu0 %v1191
    %2153 = vmatprep.subr.bf16.mxu0 %v1200
    %2154 = vmatpush1.bf16.msra.mxu0 %v1199
    %2155 = vmatprep.subr.bf16.mxu0 %v1208
    %2156 = vmatpush1.bf16.msra.mxu0 %v1207
    %2157 = vmatprep.subr.bf16.mxu0 %v1216
    %2158 = vmatpush1.bf16.msra.mxu0 %v1215
    %2159 = vmatprep.subr.bf16.mxu0 %v1224
    %2160 = vmatpush1.bf16.msra.mxu0 %v1223
    %2161 = vmatprep.subr.bf16.mxu0 %v1232
    %2162 = vmatpush1.bf16.msra.mxu0 %v1231
    %2163 = vmatprep.subr.bf16.mxu0 %v1240
    %2164 = vmatpush1.bf16.msra.mxu0 %v1239
    %2165 = vmatprep.subr.bf16.mxu0 %v1248
    %2166 = vmatpush1.bf16.msra.mxu0 %v1247
    %2167 = vmatprep.subr.bf16.mxu0 0
    %2168 = vmatpush1.bf16.msra.mxu0 0
    %2169 = vmatprep.subr.bf16.mxu0 0
    %2170 = vmatpush1.bf16.msra.mxu0 0
    %2171 = vmatprep.subr.bf16.mxu0 0
    %2172 = vmatpush1.bf16.msra.mxu0 0
    %2173 = vmatprep.subr.bf16.mxu0 0
    %2174 = vmatpush1.bf16.msra.mxu0 0
    %2175 = vmatprep.subr.bf16.mxu0 0
    %2176 = vmatpush1.bf16.msra.mxu0 0
    %2177 = vmatprep.subr.bf16.mxu0 0
    %2178 = vmatpush1.bf16.msra.mxu0 0
    %2179 = vmatprep.subr.bf16.mxu0 0
    %2180 = vmatpush1.bf16.msra.mxu0 0
    %2181 = vmatprep.subr.bf16.mxu0 0
    %2182 = vmatpush1.bf16.msra.mxu0 0
    %2183 = vmatprep.mubr.bf16.mxu0 0
    %2184 = vmatmul.mubr.bf16.gmra.mrb[0].mxu0 %v2027
    %v2185 = vpop.f32.mrb[0].mxu0
    %v2186 = vadd.f32 0.0, %v2185
    %v2187 = vpop.f32.mrb[0].mxu0
    %v2188 = vadd.f32 0.0, %v2187
    %v2189 = vpop.f32.mrb[0].mxu0
    %v2190 = vpop.f32.mrb[0].mxu0
    %2191 = vdwg.mxu0
    %v2196 = vrot.slane %v2063, 2
    %v2197 = vrot.slane %v2065, 2
    %v2198 = vrot.slane %v2104, 2
    %v2199 = vrot.slane %v2106, 2
    %v2204 = vadd.f32 %v789, %v2196
    %v2205 = vadd.f32 %v791, %v2197
    %v2206 = vadd.f32 %v832, %v2198
    %v2207 = vadd.f32 %v834, %v2199
    %v2212 = vrot.slane %v2145, 2
    %v2213 = vrot.slane %v2147, 2
    %v2214 = vrot.slane %v2186, 2
    %v2215 = vrot.slane %v2188, 2
    %v2220 = vadd.f32 %v879, %v2212
    %v2221 = vadd.f32 %v881, %v2213
    %v2222 = vadd.f32 %v922, %v2214
    %v2223 = vadd.f32 %v924, %v2215
    %v2228 = vrot.slane %v2204, 6
    %v2229 = vrot.slane %v2205, 6
    %v2230 = vrot.slane %v2206, 6
    %v2231 = vrot.slane %v2207, 6
    %v2240 = vrot.slane %v2220, 6
    %v2241 = vrot.slane %v2221, 6
    %v2242 = vrot.slane %v2222, 6
    %v2243 = vrot.slane %v2223, 6
    %v2248 = vsel %vm1509, %v2228, %v2240
    %v2249 = vsel %vm1509, %v2229, %v2241
    %v2250 = vsel %vm1509, %v2230, %v2242
    %v2251 = vsel %vm1509, %v2231, %v2243
    %v2252 = vxor.u32 %v2248, 2147483648
    %v2253 = vxor.u32 %v2249, 2147483648
    %v2254 = vxor.u32 %v2250, 2147483648
    %v2255 = vmul.f32 %v2252, 1.442695
    %v2256 = vpow.pop %v2255
    %v2257 = vmul.f32 %v2253, 1.442695
    %v2258 = vpow.pop %v2257
    %v2259 = vmul.f32 %v2254, 1.442695
    %v2260 = vpow.pop %v2259
    %v2261 = vadd.f32 %v2256, 1.0
    %v2262 = vadd.f32 %v2258, 1.0
    %v2263 = vadd.f32 %v2260, 1.0
    %v2264 = vrcp.pop %v2261
    %v2265 = vmul.f32 1.0, %v2264
    %v2266 = vrcp.pop %v2262
    %v2267 = vmul.f32 1.0, %v2266
    %v2268 = vrcp.pop %v2263
    %v2269 = vmul.f32 1.0, %v2268
    %v2270 = vtanh.pop %v2251
    %v2271 = vmul.f32 %v2267, %v2019
    %v2272 = vmul.f32 %v2265, %v2270
    %v2273 = vadd.f32 %v2271, %v2272
    %v2274 = vtanh.pop %v2273
    %v2275 = vmul.f32 %v2269, %v2274
    %v2277 = vrot.slane %v2275, 2
    %2279 = vst [vmem:[#allocation2] sm:$0xc0] %v2277
    %2280 = vst [vmem:[#allocation2 + $0x18] sm:$0x3] %v2277
    %v2281 = vpack.c.bf16 %v2275, %v2275
    %2282 = vmatprep.subr.bf16.mxu0 %v1186
    %2283 = vmatpush1.bf16.msra.mxu0 %v1185
    %2284 = vmatprep.subr.bf16.mxu0 %v1194
    %2285 = vmatpush1.bf16.msra.mxu0 %v1193
    %2286 = vmatprep.subr.bf16.mxu0 %v1202
    %2287 = vmatpush1.bf16.msra.mxu0 %v1201
    %2288 = vmatprep.subr.bf16.mxu0 %v1210
    %2289 = vmatpush1.bf16.msra.mxu0 %v1209
    %2290 = vmatprep.subr.bf16.mxu0 %v1218
    %2291 = vmatpush1.bf16.msra.mxu0 %v1217
    %2292 = vmatprep.subr.bf16.mxu0 %v1226
    %2293 = vmatpush1.bf16.msra.mxu0 %v1225
    %2294 = vmatprep.subr.bf16.mxu0 %v1234
    %2295 = vmatpush1.bf16.msra.mxu0 %v1233
    %2296 = vmatprep.subr.bf16.mxu0 %v1242
    %2297 = vmatpush1.bf16.msra.mxu0 %v1241
    %2298 = vmatprep.subr.bf16.mxu0 0
    %2299 = vmatpush1.bf16.msra.mxu0 0
    %2300 = vmatprep.subr.bf16.mxu0 0
    %2301 = vmatpush1.bf16.msra.mxu0 0
    %2302 = vmatprep.subr.bf16.mxu0 0
    %2303 = vmatpush1.bf16.msra.mxu0 0
    %2304 = vmatprep.subr.bf16.mxu0 0
    %2305 = vmatpush1.bf16.msra.mxu0 0
    %2306 = vmatprep.subr.bf16.mxu0 0
    %2307 = vmatpush1.bf16.msra.mxu0 0
    %2308 = vmatprep.subr.bf16.mxu0 0
    %2309 = vmatpush1.bf16.msra.mxu0 0
    %2310 = vmatprep.subr.bf16.mxu0 0
    %2311 = vmatpush1.bf16.msra.mxu0 0
    %2312 = vmatprep.subr.bf16.mxu0 0
    %2313 = vmatpush1.bf16.msra.mxu0 0
    %2314 = vmatprep.mubr.bf16.mxu0 0
    %2315 = vmatmul.mubr.bf16.gmra.mrb[0].mxu0 %v2281
    %v2316 = vpop.f32.mrb[0].mxu0
    %v2317 = vadd.f32 0.0, %v2316
    %v2318 = vpop.f32.mrb[0].mxu0
    %v2319 = vadd.f32 0.0, %v2318
    %v2320 = vpop.f32.mrb[0].mxu0
    %v2321 = vpop.f32.mrb[0].mxu0
    %2322 = vdwg.mxu0
    %2323 = vmatprep.subr.bf16.mxu0 %v1188
    %2324 = vmatpush1.bf16.msra.mxu0 %v1187
    %2325 = vmatprep.subr.bf16.mxu0 %v1196
    %2326 = vmatpush1.bf16.msra.mxu0 %v1195
    %2327 = vmatprep.subr.bf16.mxu0 %v1204
    %2328 = vmatpush1.bf16.msra.mxu0 %v1203
    %2329 = vmatprep.subr.bf16.mxu0 %v1212
    %2330 = vmatpush1.bf16.msra.mxu0 %v1211
    %2331 = vmatprep.subr.bf16.mxu0 %v1220
    %2332 = vmatpush1.bf16.msra.mxu0 %v1219
    %2333 = vmatprep.subr.bf16.mxu0 %v1228
    %2334 = vmatpush1.bf16.msra.mxu0 %v1227
    %2335 = vmatprep.subr.bf16.mxu0 %v1236
    %2336 = vmatpush1.bf16.msra.mxu0 %v1235
    %2337 = vmatprep.subr.bf16.mxu0 %v1244
    %2338 = vmatpush1.bf16.msra.mxu0 %v1243
    %2339 = vmatprep.subr.bf16.mxu0 0
    %2340 = vmatpush1.bf16.msra.mxu0 0
    %2341 = vmatprep.subr.bf16.mxu0 0
    %2342 = vmatpush1.bf16.msra.mxu0 0
    %2343 = vmatprep.subr.bf16.mxu0 0
    %2344 = vmatpush1.bf16.msra.mxu0 0
    %2345 = vmatprep.subr.bf16.mxu0 0
    %2346 = vmatpush1.bf16.msra.mxu0 0
    %2347 = vmatprep.subr.bf16.mxu0 0
    %2348 = vmatpush1.bf16.msra.mxu0 0
    %2349 = vmatprep.subr.bf16.mxu0 0
    %2350 = vmatpush1.bf16.msra.mxu0 0
    %2351 = vmatprep.subr.bf16.mxu0 0
    %2352 = vmatpush1.bf16.msra.mxu0 0
    %2353 = vmatprep.subr.bf16.mxu0 0
    %2354 = vmatpush1.bf16.msra.mxu0 0
    %2355 = vmatprep.mubr.bf16.mxu0 0
    %2356 = vmatmul.mubr.bf16.gmra.mrb[0].mxu0 %v2281
    %v2357 = vpop.f32.mrb[0].mxu0
    %v2358 = vadd.f32 0.0, %v2357
    %v2359 = vpop.f32.mrb[0].mxu0
    %v2360 = vadd.f32 0.0, %v2359
    %v2361 = vpop.f32.mrb[0].mxu0
    %v2362 = vpop.f32.mrb[0].mxu0
    %2363 = vdwg.mxu0
    %2364 = vmatprep.subr.bf16.mxu0 %v1190
    %2365 = vmatpush1.bf16.msra.mxu0 %v1189
    %2366 = vmatprep.subr.bf16.mxu0 %v1198
    %2367 = vmatpush1.bf16.msra.mxu0 %v1197
    %2368 = vmatprep.subr.bf16.mxu0 %v1206
    %2369 = vmatpush1.bf16.msra.mxu0 %v1205
    %2370 = vmatprep.subr.bf16.mxu0 %v1214
    %2371 = vmatpush1.bf16.msra.mxu0 %v1213
    %2372 = vmatprep.subr.bf16.mxu0 %v1222
    %2373 = vmatpush1.bf16.msra.mxu0 %v1221
    %2374 = vmatprep.subr.bf16.mxu0 %v1230
    %2375 = vmatpush1.bf16.msra.mxu0 %v1229
    %2376 = vmatprep.subr.bf16.mxu0 %v1238
    %2377 = vmatpush1.bf16.msra.mxu0 %v1237
    %2378 = vmatprep.subr.bf16.mxu0 %v1246
    %2379 = vmatpush1.bf16.msra.mxu0 %v1245
    %2380 = vmatprep.subr.bf16.mxu0 0
    %2381 = vmatpush1.bf16.msra.mxu0 0
    %2382 = vmatprep.subr.bf16.mxu0 0
    %2383 = vmatpush1.bf16.msra.mxu0 0
    %2384 = vmatprep.subr.bf16.mxu0 0
    %2385 = vmatpush1.bf16.msra.mxu0 0
    %2386 = vmatprep.subr.bf16.mxu0 0
    %2387 = vmatpush1.bf16.msra.mxu0 0
    %2388 = vmatprep.subr.bf16.mxu0 0
    %2389 = vmatpush1.bf16.msra.mxu0 0
    %2390 = vmatprep.subr.bf16.mxu0 0
    %2391 = vmatpush1.bf16.msra.mxu0 0
    %2392 = vmatprep.subr.bf16.mxu0 0
    %2393 = vmatpush1.bf16.msra.mxu0 0
    %2394 = vmatprep.subr.bf16.mxu0 0
    %2395 = vmatpush1.bf16.msra.mxu0 0
    %2396 = vmatprep.mubr.bf16.mxu0 0
    %2397 = vmatmul.mubr.bf16.gmra.mrb[0].mxu0 %v2281
    %v2398 = vpop.f32.mrb[0].mxu0
    %v2399 = vadd.f32 0.0, %v2398
    %v2400 = vpop.f32.mrb[0].mxu0
    %v2401 = vadd.f32 0.0, %v2400
    %v2402 = vpop.f32.mrb[0].mxu0
    %v2403 = vpop.f32.mrb[0].mxu0
    %2404 = vdwg.mxu0
    %2405 = vmatprep.subr.bf16.mxu0 %v1192
    %2406 = vmatpush1.bf16.msra.mxu0 %v1191
    %2407 = vmatprep.subr.bf16.mxu0 %v1200
    %2408 = vmatpush1.bf16.msra.mxu0 %v1199
    %2409 = vmatprep.subr.bf16.mxu0 %v1208
    %2410 = vmatpush1.bf16.msra.mxu0 %v1207
    %2411 = vmatprep.subr.bf16.mxu0 %v1216
    %2412 = vmatpush1.bf16.msra.mxu0 %v1215
    %2413 = vmatprep.subr.bf16.mxu0 %v1224
    %2414 = vmatpush1.bf16.msra.mxu0 %v1223
    %2415 = vmatprep.subr.bf16.mxu0 %v1232
    %2416 = vmatpush1.bf16.msra.mxu0 %v1231
    %2417 = vmatprep.subr.bf16.mxu0 %v1240
    %2418 = vmatpush1.bf16.msra.mxu0 %v1239
    %2419 = vmatprep.subr.bf16.mxu0 %v1248
    %2420 = vmatpush1.bf16.msra.mxu0 %v1247
    %2421 = vmatprep.subr.bf16.mxu0 0
    %2422 = vmatpush1.bf16.msra.mxu0 0
    %2423 = vmatprep.subr.bf16.mxu0 0
    %2424 = vmatpush1.bf16.msra.mxu0 0
    %2425 = vmatprep.subr.bf16.mxu0 0
    %2426 = vmatpush1.bf16.msra.mxu0 0
    %2427 = vmatprep.subr.bf16.mxu0 0
    %2428 = vmatpush1.bf16.msra.mxu0 0
    %2429 = vmatprep.subr.bf16.mxu0 0
    %2430 = vmatpush1.bf16.msra.mxu0 0
    %2431 = vmatprep.subr.bf16.mxu0 0
    %2432 = vmatpush1.bf16.msra.mxu0 0
    %2433 = vmatprep.subr.bf16.mxu0 0
    %2434 = vmatpush1.bf16.msra.mxu0 0
    %2435 = vmatprep.subr.bf16.mxu0 0
    %2436 = vmatpush1.bf16.msra.mxu0 0
    %2437 = vmatprep.mubr.bf16.mxu0 0
    %2438 = vmatmul.mubr.bf16.gmra.mrb[0].mxu0 %v2281
    %v2439 = vpop.f32.mrb[0].mxu0
    %v2440 = vadd.f32 0.0, %v2439
    %v2441 = vpop.f32.mrb[0].mxu0
    %v2442 = vadd.f32 0.0, %v2441
    %v2443 = vpop.f32.mrb[0].mxu0
    %v2444 = vpop.f32.mrb[0].mxu0
    %2445 = vdwg.mxu0
    %v2446 = vadd.f32 %v793, %v2317
    %v2447 = vadd.f32 %v795, %v2319
    %v2448 = vadd.f32 %v836, %v2358
    %v2449 = vadd.f32 %v838, %v2360
    %v2454 = vrot.slane %v2399, 4
    %v2455 = vrot.slane %v2401, 4
    %v2456 = vrot.slane %v2440, 4
    %v2457 = vrot.slane %v2442, 4
    %v2462 = vadd.f32 %v875, %v2454
    %v2463 = vadd.f32 %v877, %v2455
    %v2464 = vadd.f32 %v918, %v2456
    %v2465 = vadd.f32 %v920, %v2457
    %v2470 = vrot.slane %v2462, 4
    %v2471 = vrot.slane %v2463, 4
    %v2472 = vrot.slane %v2464, 4
    %v2473 = vrot.slane %v2465, 4
    %v2478 = vsel %vm1509, %v2446, %v2470
    %v2479 = vsel %vm1509, %v2447, %v2471
    %v2480 = vsel %vm1509, %v2448, %v2472
    %v2481 = vsel %vm1509, %v2449, %v2473
    %v2482 = vxor.u32 %v2478, 2147483648
    %v2483 = vxor.u32 %v2479, 2147483648
    %v2484 = vxor.u32 %v2480, 2147483648
    %v2485 = vmul.f32 %v2482, 1.442695
    %v2486 = vpow.pop %v2485
    %v2487 = vmul.f32 %v2483, 1.442695
    %v2488 = vpow.pop %v2487
    %v2489 = vmul.f32 %v2484, 1.442695
    %v2490 = vpow.pop %v2489
    %v2491 = vadd.f32 %v2486, 1.0
    %v2492 = vadd.f32 %v2488, 1.0
    %v2493 = vadd.f32 %v2490, 1.0
    %v2494 = vrcp.pop %v2491
    %v2495 = vmul.f32 1.0, %v2494
    %v2496 = vrcp.pop %v2492
    %v2497 = vmul.f32 1.0, %v2496
    %v2498 = vrcp.pop %v2493
    %v2499 = vmul.f32 1.0, %v2498
    %v2500 = vtanh.pop %v2481
    %v2501 = vmul.f32 %v2497, %v2273
    %v2502 = vmul.f32 %v2495, %v2500
    %v2503 = vadd.f32 %v2501, %v2502
    %v2504 = vtanh.pop %v2503
    %v2505 = vmul.f32 %v2499, %v2504
    %2506 = vst [vmem:[#allocation2 + $0x10] sm:$0x3] %v2505
    %v2508 = vrot.slane %v2505, 4
    %2510 = vst [vmem:[#allocation2 + $0x8] sm:$0xc0] %v2508
    %v2511 = vpack.c.bf16 %v2505, %v2505
    %2512 = vmatprep.subr.bf16.mxu0 %v1186
    %2513 = vmatpush1.bf16.msra.mxu0 %v1185
    %2514 = vmatprep.subr.bf16.mxu0 %v1194
    %2515 = vmatpush1.bf16.msra.mxu0 %v1193
    %2516 = vmatprep.subr.bf16.mxu0 %v1202
    %2517 = vmatpush1.bf16.msra.mxu0 %v1201
    %2518 = vmatprep.subr.bf16.mxu0 %v1210
    %2519 = vmatpush1.bf16.msra.mxu0 %v1209
    %2520 = vmatprep.subr.bf16.mxu0 %v1218
    %2521 = vmatpush1.bf16.msra.mxu0 %v1217
    %2522 = vmatprep.subr.bf16.mxu0 %v1226
    %2523 = vmatpush1.bf16.msra.mxu0 %v1225
    %2524 = vmatprep.subr.bf16.mxu0 %v1234
    %2525 = vmatpush1.bf16.msra.mxu0 %v1233
    %2526 = vmatprep.subr.bf16.mxu0 %v1242
    %2527 = vmatpush1.bf16.msra.mxu0 %v1241
    %2528 = vmatprep.subr.bf16.mxu0 0
    %2529 = vmatpush1.bf16.msra.mxu0 0
    %2530 = vmatprep.subr.bf16.mxu0 0
    %2531 = vmatpush1.bf16.msra.mxu0 0
    %2532 = vmatprep.subr.bf16.mxu0 0
    %2533 = vmatpush1.bf16.msra.mxu0 0
    %2534 = vmatprep.subr.bf16.mxu0 0
    %2535 = vmatpush1.bf16.msra.mxu0 0
    %2536 = vmatprep.subr.bf16.mxu0 0
    %2537 = vmatpush1.bf16.msra.mxu0 0
    %2538 = vmatprep.subr.bf16.mxu0 0
    %2539 = vmatpush1.bf16.msra.mxu0 0
    %2540 = vmatprep.subr.bf16.mxu0 0
    %2541 = vmatpush1.bf16.msra.mxu0 0
    %2542 = vmatprep.subr.bf16.mxu0 0
    %2543 = vmatpush1.bf16.msra.mxu0 0
    %2544 = vmatprep.mubr.bf16.mxu0 0
    %2545 = vmatmul.mubr.bf16.gmra.mrb[0].mxu0 %v2511
    %v2546 = vpop.f32.mrb[0].mxu0
    %v2547 = vadd.f32 0.0, %v2546
    %v2548 = vpop.f32.mrb[0].mxu0
    %v2549 = vadd.f32 0.0, %v2548
    %v2550 = vpop.f32.mrb[0].mxu0
    %v2551 = vpop.f32.mrb[0].mxu0
    %2552 = vdwg.mxu0
    %2553 = vmatprep.subr.bf16.mxu0 %v1188
    %2554 = vmatpush1.bf16.msra.mxu0 %v1187
    %2555 = vmatprep.subr.bf16.mxu0 %v1196
    %2556 = vmatpush1.bf16.msra.mxu0 %v1195
    %2557 = vmatprep.subr.bf16.mxu0 %v1204
    %2558 = vmatpush1.bf16.msra.mxu0 %v1203
    %2559 = vmatprep.subr.bf16.mxu0 %v1212
    %2560 = vmatpush1.bf16.msra.mxu0 %v1211
    %2561 = vmatprep.subr.bf16.mxu0 %v1220
    %2562 = vmatpush1.bf16.msra.mxu0 %v1219
    %2563 = vmatprep.subr.bf16.mxu0 %v1228
    %2564 = vmatpush1.bf16.msra.mxu0 %v1227
    %2565 = vmatprep.subr.bf16.mxu0 %v1236
    %2566 = vmatpush1.bf16.msra.mxu0 %v1235
    %2567 = vmatprep.subr.bf16.mxu0 %v1244
    %2568 = vmatpush1.bf16.msra.mxu0 %v1243
    %2569 = vmatprep.subr.bf16.mxu0 0
    %2570 = vmatpush1.bf16.msra.mxu0 0
    %2571 = vmatprep.subr.bf16.mxu0 0
    %2572 = vmatpush1.bf16.msra.mxu0 0
    %2573 = vmatprep.subr.bf16.mxu0 0
    %2574 = vmatpush1.bf16.msra.mxu0 0
    %2575 = vmatprep.subr.bf16.mxu0 0
    %2576 = vmatpush1.bf16.msra.mxu0 0
    %2577 = vmatprep.subr.bf16.mxu0 0
    %2578 = vmatpush1.bf16.msra.mxu0 0
    %2579 = vmatprep.subr.bf16.mxu0 0
    %2580 = vmatpush1.bf16.msra.mxu0 0
    %2581 = vmatprep.subr.bf16.mxu0 0
    %2582 = vmatpush1.bf16.msra.mxu0 0
    %2583 = vmatprep.subr.bf16.mxu0 0
    %2584 = vmatpush1.bf16.msra.mxu0 0
    %2585 = vmatprep.mubr.bf16.mxu0 0
    %2586 = vmatmul.mubr.bf16.gmra.mrb[0].mxu0 %v2511
    %v2587 = vpop.f32.mrb[0].mxu0
    %v2588 = vadd.f32 0.0, %v2587
    %v2589 = vpop.f32.mrb[0].mxu0
    %v2590 = vadd.f32 0.0, %v2589
    %v2591 = vpop.f32.mrb[0].mxu0
    %v2592 = vpop.f32.mrb[0].mxu0
    %2593 = vdwg.mxu0
    %2594 = vmatprep.subr.bf16.mxu0 %v1190
    %2595 = vmatpush1.bf16.msra.mxu0 %v1189
    %2596 = vmatprep.subr.bf16.mxu0 %v1198
    %2597 = vmatpush1.bf16.msra.mxu0 %v1197
    %2598 = vmatprep.subr.bf16.mxu0 %v1206
    %2599 = vmatpush1.bf16.msra.mxu0 %v1205
    %2600 = vmatprep.subr.bf16.mxu0 %v1214
    %2601 = vmatpush1.bf16.msra.mxu0 %v1213
    %2602 = vmatprep.subr.bf16.mxu0 %v1222
    %2603 = vmatpush1.bf16.msra.mxu0 %v1221
    %2604 = vmatprep.subr.bf16.mxu0 %v1230
    %2605 = vmatpush1.bf16.msra.mxu0 %v1229
    %2606 = vmatprep.subr.bf16.mxu0 %v1238
    %2607 = vmatpush1.bf16.msra.mxu0 %v1237
    %2608 = vmatprep.subr.bf16.mxu0 %v1246
    %2609 = vmatpush1.bf16.msra.mxu0 %v1245
    %2610 = vmatprep.subr.bf16.mxu0 0
    %2611 = vmatpush1.bf16.msra.mxu0 0
    %2612 = vmatprep.subr.bf16.mxu0 0
    %2613 = vmatpush1.bf16.msra.mxu0 0
    %2614 = vmatprep.subr.bf16.mxu0 0
    %2615 = vmatpush1.bf16.msra.mxu0 0
    %2616 = vmatprep.subr.bf16.mxu0 0
    %2617 = vmatpush1.bf16.msra.mxu0 0
    %2618 = vmatprep.subr.bf16.mxu0 0
    %2619 = vmatpush1.bf16.msra.mxu0 0
    %2620 = vmatprep.subr.bf16.mxu0 0
    %2621 = vmatpush1.bf16.msra.mxu0 0
    %2622 = vmatprep.subr.bf16.mxu0 0
    %2623 = vmatpush1.bf16.msra.mxu0 0
    %2624 = vmatprep.subr.bf16.mxu0 0
    %2625 = vmatpush1.bf16.msra.mxu0 0
    %2626 = vmatprep.mubr.bf16.mxu0 0
    %2627 = vmatmul.mubr.bf16.gmra.mrb[0].mxu0 %v2511
    %v2628 = vpop.f32.mrb[0].mxu0
    %v2629 = vadd.f32 0.0, %v2628
    %v2630 = vpop.f32.mrb[0].mxu0
    %v2631 = vadd.f32 0.0, %v2630
    %v2632 = vpop.f32.mrb[0].mxu0
    %v2633 = vpop.f32.mrb[0].mxu0
    %2634 = vdwg.mxu0
    %2635 = vmatprep.subr.bf16.mxu0 %v1192
    %2636 = vmatpush1.bf16.msra.mxu0 %v1191
    %2637 = vmatprep.subr.bf16.mxu0 %v1200
    %2638 = vmatpush1.bf16.msra.mxu0 %v1199
    %2639 = vmatprep.subr.bf16.mxu0 %v1208
    %2640 = vmatpush1.bf16.msra.mxu0 %v1207
    %2641 = vmatprep.subr.bf16.mxu0 %v1216
    %2642 = vmatpush1.bf16.msra.mxu0 %v1215
    %2643 = vmatprep.subr.bf16.mxu0 %v1224
    %2644 = vmatpush1.bf16.msra.mxu0 %v1223
    %2645 = vmatprep.subr.bf16.mxu0 %v1232
    %2646 = vmatpush1.bf16.msra.mxu0 %v1231
    %2647 = vmatprep.subr.bf16.mxu0 %v1240
    %2648 = vmatpush1.bf16.msra.mxu0 %v1239
    %2649 = vmatprep.subr.bf16.mxu0 %v1248
    %2650 = vmatpush1.bf16.msra.mxu0 %v1247
    %2651 = vmatprep.subr.bf16.mxu0 0
    %2652 = vmatpush1.bf16.msra.mxu0 0
    %2653 = vmatprep.subr.bf16.mxu0 0
    %2654 = vmatpush1.bf16.msra.mxu0 0
    %2655 = vmatprep.subr.bf16.mxu0 0
    %2656 = vmatpush1.bf16.msra.mxu0 0
    %2657 = vmatprep.subr.bf16.mxu0 0
    %2658 = vmatpush1.bf16.msra.mxu0 0
    %2659 = vmatprep.subr.bf16.mxu0 0
    %2660 = vmatpush1.bf16.msra.mxu0 0
    %2661 = vmatprep.subr.bf16.mxu0 0
    %2662 = vmatpush1.bf16.msra.mxu0 0
    %2663 = vmatprep.subr.bf16.mxu0 0
    %2664 = vmatpush1.bf16.msra.mxu0 0
    %2665 = vmatprep.subr.bf16.mxu0 0
    %2666 = vmatpush1.bf16.msra.mxu0 0
    %2667 = vmatprep.mubr.bf16.mxu0 0
    %2668 = vmatmul.mubr.bf16.gmra.mrb[0].mxu0 %v2511
    %v2669 = vpop.f32.mrb[0].mxu0
    %v2670 = vadd.f32 0.0, %v2669
    %v2671 = vpop.f32.mrb[0].mxu0
    %v2672 = vadd.f32 0.0, %v2671
    %v2673 = vpop.f32.mrb[0].mxu0
    %v2674 = vpop.f32.mrb[0].mxu0
    %2675 = vdwg.mxu0
    %v2680 = vrot.slane %v2547, 6
    %v2681 = vrot.slane %v2549, 6
    %v2682 = vrot.slane %v2588, 6
    %v2683 = vrot.slane %v2590, 6
    %v2688 = vadd.f32 %v793, %v2680
    %v2689 = vadd.f32 %v795, %v2681
    %v2690 = vadd.f32 %v836, %v2682
    %v2691 = vadd.f32 %v838, %v2683
    %v2696 = vrot.slane %v2629, 6
    %v2697 = vrot.slane %v2631, 6
    %v2698 = vrot.slane %v2670, 6
    %v2699 = vrot.slane %v2672, 6
    %v2704 = vadd.f32 %v875, %v2696
    %v2705 = vadd.f32 %v877, %v2697
    %v2706 = vadd.f32 %v918, %v2698
    %v2707 = vadd.f32 %v920, %v2699
    %v2712 = vrot.slane %v2688, 2
    %v2713 = vrot.slane %v2689, 2
    %v2714 = vrot.slane %v2690, 2
    %v2715 = vrot.slane %v2691, 2
    %v2724 = vrot.slane %v2704, 2
    %v2725 = vrot.slane %v2705, 2
    %v2726 = vrot.slane %v2706, 2
    %v2727 = vrot.slane %v2707, 2
    %v2732 = vsel %vm1509, %v2712, %v2724
    %v2733 = vsel %vm1509, %v2713, %v2725
    %v2734 = vsel %vm1509, %v2714, %v2726
    %v2735 = vsel %vm1509, %v2715, %v2727
    %v2736 = vxor.u32 %v2732, 2147483648
    %v2737 = vxor.u32 %v2733, 2147483648
    %v2738 = vxor.u32 %v2734, 2147483648
    %v2739 = vmul.f32 %v2736, 1.442695
    %v2740 = vpow.pop %v2739
    %v2741 = vmul.f32 %v2737, 1.442695
    %v2742 = vpow.pop %v2741
    %v2743 = vmul.f32 %v2738, 1.442695
    %v2744 = vpow.pop %v2743
    %v2745 = vadd.f32 %v2740, 1.0
    %v2746 = vadd.f32 %v2742, 1.0
    %v2747 = vadd.f32 %v2744, 1.0
    %v2748 = vrcp.pop %v2745
    %v2749 = vmul.f32 1.0, %v2748
    %v2750 = vrcp.pop %v2746
    %v2751 = vmul.f32 1.0, %v2750
    %v2752 = vrcp.pop %v2747
    %v2753 = vmul.f32 1.0, %v2752
    %v2754 = vtanh.pop %v2735
    %v2755 = vmul.f32 %v2751, %v2503
    %v2756 = vmul.f32 %v2749, %v2754
    %v2757 = vadd.f32 %v2755, %v2756
    %v2758 = vtanh.pop %v2757
    %v2759 = vmul.f32 %v2753, %v2758
    %v2761 = vrot.slane %v2759, 6
    %2763 = vst [vmem:[#allocation2 + $0x10] sm:$0xc] %v2761
    %2764 = vst [vmem:[#allocation2 + $0x8] sm:$0x30] %v2761
    %v2765 = vpack.c.bf16 %v2759, %v2759
    %2766 = vmatprep.subr.bf16.mxu0 %v1186
    %2767 = vmatpush1.bf16.msra.mxu0 %v1185
    %2768 = vmatprep.subr.bf16.mxu0 %v1194
    %2769 = vmatpush1.bf16.msra.mxu0 %v1193
    %2770 = vmatprep.subr.bf16.mxu0 %v1202
    %2771 = vmatpush1.bf16.msra.mxu0 %v1201
    %2772 = vmatprep.subr.bf16.mxu0 %v1210
    %2773 = vmatpush1.bf16.msra.mxu0 %v1209
    %2774 = vmatprep.subr.bf16.mxu0 %v1218
    %2775 = vmatpush1.bf16.msra.mxu0 %v1217
    %2776 = vmatprep.subr.bf16.mxu0 %v1226
    %2777 = vmatpush1.bf16.msra.mxu0 %v1225
    %2778 = vmatprep.subr.bf16.mxu0 %v1234
    %2779 = vmatpush1.bf16.msra.mxu0 %v1233
    %2780 = vmatprep.subr.bf16.mxu0 %v1242
    %2781 = vmatpush1.bf16.msra.mxu0 %v1241
    %2782 = vmatprep.subr.bf16.mxu0 0
    %2783 = vmatpush1.bf16.msra.mxu0 0
    %2784 = vmatprep.subr.bf16.mxu0 0
    %2785 = vmatpush1.bf16.msra.mxu0 0
    %2786 = vmatprep.subr.bf16.mxu0 0
    %2787 = vmatpush1.bf16.msra.mxu0 0
    %2788 = vmatprep.subr.bf16.mxu0 0
    %2789 = vmatpush1.bf16.msra.mxu0 0
    %2790 = vmatprep.subr.bf16.mxu0 0
    %2791 = vmatpush1.bf16.msra.mxu0 0
    %2792 = vmatprep.subr.bf16.mxu0 0
    %2793 = vmatpush1.bf16.msra.mxu0 0
    %2794 = vmatprep.subr.bf16.mxu0 0
    %2795 = vmatpush1.bf16.msra.mxu0 0
    %2796 = vmatprep.subr.bf16.mxu0 0
    %2797 = vmatpush1.bf16.msra.mxu0 0
    %2798 = vmatprep.mubr.bf16.mxu0 0
    %2799 = vmatmul.mubr.bf16.gmra.mrb[0].mxu0 %v2765
    %v2800 = vpop.f32.mrb[0].mxu0
    %v2801 = vadd.f32 0.0, %v2800
    %v2802 = vpop.f32.mrb[0].mxu0
    %v2803 = vadd.f32 0.0, %v2802
    %v2804 = vpop.f32.mrb[0].mxu0
    %v2805 = vpop.f32.mrb[0].mxu0
    %2806 = vdwg.mxu0
    %2807 = vmatprep.subr.bf16.mxu0 %v1188
    %2808 = vmatpush1.bf16.msra.mxu0 %v1187
    %2809 = vmatprep.subr.bf16.mxu0 %v1196
    %2810 = vmatpush1.bf16.msra.mxu0 %v1195
    %2811 = vmatprep.subr.bf16.mxu0 %v1204
    %2812 = vmatpush1.bf16.msra.mxu0 %v1203
    %2813 = vmatprep.subr.bf16.mxu0 %v1212
    %2814 = vmatpush1.bf16.msra.mxu0 %v1211
    %2815 = vmatprep.subr.bf16.mxu0 %v1220
    %2816 = vmatpush1.bf16.msra.mxu0 %v1219
    %2817 = vmatprep.subr.bf16.mxu0 %v1228
    %2818 = vmatpush1.bf16.msra.mxu0 %v1227
    %2819 = vmatprep.subr.bf16.mxu0 %v1236
    %2820 = vmatpush1.bf16.msra.mxu0 %v1235
    %2821 = vmatprep.subr.bf16.mxu0 %v1244
    %2822 = vmatpush1.bf16.msra.mxu0 %v1243
    %2823 = vmatprep.subr.bf16.mxu0 0
    %2824 = vmatpush1.bf16.msra.mxu0 0
    %2825 = vmatprep.subr.bf16.mxu0 0
    %2826 = vmatpush1.bf16.msra.mxu0 0
    %2827 = vmatprep.subr.bf16.mxu0 0
    %2828 = vmatpush1.bf16.msra.mxu0 0
    %2829 = vmatprep.subr.bf16.mxu0 0
    %2830 = vmatpush1.bf16.msra.mxu0 0
    %2831 = vmatprep.subr.bf16.mxu0 0
    %2832 = vmatpush1.bf16.msra.mxu0 0
    %2833 = vmatprep.subr.bf16.mxu0 0
    %2834 = vmatpush1.bf16.msra.mxu0 0
    %2835 = vmatprep.subr.bf16.mxu0 0
    %2836 = vmatpush1.bf16.msra.mxu0 0
    %2837 = vmatprep.subr.bf16.mxu0 0
    %2838 = vmatpush1.bf16.msra.mxu0 0
    %2839 = vmatprep.mubr.bf16.mxu0 0
    %2840 = vmatmul.mubr.bf16.gmra.mrb[0].mxu0 %v2765
    %v2841 = vpop.f32.mrb[0].mxu0
    %v2842 = vadd.f32 0.0, %v2841
    %v2843 = vpop.f32.mrb[0].mxu0
    %v2844 = vadd.f32 0.0, %v2843
    %v2845 = vpop.f32.mrb[0].mxu0
    %v2846 = vpop.f32.mrb[0].mxu0
    %2847 = vdwg.mxu0
    %2848 = vmatprep.subr.bf16.mxu0 %v1190
    %2849 = vmatpush1.bf16.msra.mxu0 %v1189
    %2850 = vmatprep.subr.bf16.mxu0 %v1198
    %2851 = vmatpush1.bf16.msra.mxu0 %v1197
    %2852 = vmatprep.subr.bf16.mxu0 %v1206
    %2853 = vmatpush1.bf16.msra.mxu0 %v1205
    %2854 = vmatprep.subr.bf16.mxu0 %v1214
    %2855 = vmatpush1.bf16.msra.mxu0 %v1213
    %2856 = vmatprep.subr.bf16.mxu0 %v1222
    %2857 = vmatpush1.bf16.msra.mxu0 %v1221
    %2858 = vmatprep.subr.bf16.mxu0 %v1230
    %2859 = vmatpush1.bf16.msra.mxu0 %v1229
    %2860 = vmatprep.subr.bf16.mxu0 %v1238
    %2861 = vmatpush1.bf16.msra.mxu0 %v1237
    %2862 = vmatprep.subr.bf16.mxu0 %v1246
    %2863 = vmatpush1.bf16.msra.mxu0 %v1245
    %2864 = vmatprep.subr.bf16.mxu0 0
    %2865 = vmatpush1.bf16.msra.mxu0 0
    %2866 = vmatprep.subr.bf16.mxu0 0
    %2867 = vmatpush1.bf16.msra.mxu0 0
    %2868 = vmatprep.subr.bf16.mxu0 0
    %2869 = vmatpush1.bf16.msra.mxu0 0
    %2870 = vmatprep.subr.bf16.mxu0 0
    %2871 = vmatpush1.bf16.msra.mxu0 0
    %2872 = vmatprep.subr.bf16.mxu0 0
    %2873 = vmatpush1.bf16.msra.mxu0 0
    %2874 = vmatprep.subr.bf16.mxu0 0
    %2875 = vmatpush1.bf16.msra.mxu0 0
    %2876 = vmatprep.subr.bf16.mxu0 0
    %2877 = vmatpush1.bf16.msra.mxu0 0
    %2878 = vmatprep.subr.bf16.mxu0 0
    %2879 = vmatpush1.bf16.msra.mxu0 0
    %2880 = vmatprep.mubr.bf16.mxu0 0
    %2881 = vmatmul.mubr.bf16.gmra.mrb[0].mxu0 %v2765
    %v2882 = vpop.f32.mrb[0].mxu0
    %v2883 = vadd.f32 0.0, %v2882
    %v2884 = vpop.f32.mrb[0].mxu0
    %v2885 = vadd.f32 0.0, %v2884
    %v2886 = vpop.f32.mrb[0].mxu0
    %v2887 = vpop.f32.mrb[0].mxu0
    %2888 = vdwg.mxu0
    %2889 = vmatprep.subr.bf16.mxu0 %v1192
    %2890 = vmatpush1.bf16.msra.mxu0 %v1191
    %2891 = vmatprep.subr.bf16.mxu0 %v1200
    %2892 = vmatpush1.bf16.msra.mxu0 %v1199
    %2893 = vmatprep.subr.bf16.mxu0 %v1208
    %2894 = vmatpush1.bf16.msra.mxu0 %v1207
    %2895 = vmatprep.subr.bf16.mxu0 %v1216
    %2896 = vmatpush1.bf16.msra.mxu0 %v1215
    %2897 = vmatprep.subr.bf16.mxu0 %v1224
    %2898 = vmatpush1.bf16.msra.mxu0 %v1223
    %2899 = vmatprep.subr.bf16.mxu0 %v1232
    %2900 = vmatpush1.bf16.msra.mxu0 %v1231
    %2901 = vmatprep.subr.bf16.mxu0 %v1240
    %2902 = vmatpush1.bf16.msra.mxu0 %v1239
    %2903 = vmatprep.subr.bf16.mxu0 %v1248
    %2904 = vmatpush1.bf16.msra.mxu0 %v1247
    %2905 = vmatprep.subr.bf16.mxu0 0
    %2906 = vmatpush1.bf16.msra.mxu0 0
    %2907 = vmatprep.subr.bf16.mxu0 0
    %2908 = vmatpush1.bf16.msra.mxu0 0
    %2909 = vmatprep.subr.bf16.mxu0 0
    %2910 = vmatpush1.bf16.msra.mxu0 0
    %2911 = vmatprep.subr.bf16.mxu0 0
    %2912 = vmatpush1.bf16.msra.mxu0 0
    %2913 = vmatprep.subr.bf16.mxu0 0
    %2914 = vmatpush1.bf16.msra.mxu0 0
    %2915 = vmatprep.subr.bf16.mxu0 0
    %2916 = vmatpush1.bf16.msra.mxu0 0
    %2917 = vmatprep.subr.bf16.mxu0 0
    %2918 = vmatpush1.bf16.msra.mxu0 0
    %2919 = vmatprep.subr.bf16.mxu0 0
    %2920 = vmatpush1.bf16.msra.mxu0 0
    %2921 = vmatprep.mubr.bf16.mxu0 0
    %2922 = vmatmul.mubr.bf16.gmra.mrb[0].mxu0 %v2765
    %v2923 = vpop.f32.mrb[0].mxu0
    %v2924 = vadd.f32 0.0, %v2923
    %v2925 = vpop.f32.mrb[0].mxu0
    %v2926 = vadd.f32 0.0, %v2925
    %v2927 = vpop.f32.mrb[0].mxu0
    %v2928 = vpop.f32.mrb[0].mxu0
    %2929 = vdwg.mxu0
    %v2934 = vrot.slane %v2801, 4
    %v2935 = vrot.slane %v2803, 4
    %v2936 = vrot.slane %v2842, 4
    %v2937 = vrot.slane %v2844, 4
    %v2942 = vadd.f32 %v793, %v2934
    %v2943 = vadd.f32 %v795, %v2935
    %v2944 = vadd.f32 %v836, %v2936
    %v2945 = vadd.f32 %v838, %v2937
    %v2946 = vadd.f32 %v875, %v2883
    %v2947 = vadd.f32 %v877, %v2885
    %v2948 = vadd.f32 %v918, %v2924
    %v2949 = vadd.f32 %v920, %v2926
    %v2954 = vrot.slane %v2942, 4
    %v2955 = vrot.slane %v2943, 4
    %v2956 = vrot.slane %v2944, 4
    %v2957 = vrot.slane %v2945, 4
    %v2962 = vsel %vm1509, %v2954, %v2946
    %v2963 = vsel %vm1509, %v2955, %v2947
    %v2964 = vsel %vm1509, %v2956, %v2948
    %v2965 = vsel %vm1509, %v2957, %v2949
    %v2966 = vxor.u32 %v2962, 2147483648
    %v2967 = vxor.u32 %v2963, 2147483648
    %v2968 = vxor.u32 %v2964, 2147483648
    %v2969 = vmul.f32 %v2966, 1.442695
    %v2970 = vpow.pop %v2969
    %v2971 = vmul.f32 %v2967, 1.442695
    %v2972 = vpow.pop %v2971
    %v2973 = vmul.f32 %v2968, 1.442695
    %v2974 = vpow.pop %v2973
    %v2975 = vadd.f32 %v2970, 1.0
    %v2976 = vadd.f32 %v2972, 1.0
    %v2977 = vadd.f32 %v2974, 1.0
    %v2978 = vrcp.pop %v2975
    %v2979 = vmul.f32 1.0, %v2978
    %v2980 = vrcp.pop %v2976
    %v2981 = vmul.f32 1.0, %v2980
    %v2982 = vrcp.pop %v2977
    %v2983 = vmul.f32 1.0, %v2982
    %v2984 = vtanh.pop %v2965
    %v2985 = vmul.f32 %v2981, %v2757
    %v2986 = vmul.f32 %v2979, %v2984
    %v2987 = vadd.f32 %v2985, %v2986
    %v2988 = vtanh.pop %v2987
    %v2989 = vmul.f32 %v2983, %v2988
    %v2991 = vrot.slane %v2989, 4
    %2993 = vst [vmem:[#allocation2 + $0x10] sm:$0x30] %v2991
    %2994 = vst [vmem:[#allocation2 + $0x8] sm:$0xc] %v2989
    %v2995 = vpack.c.bf16 %v2989, %v2989
    %2996 = vmatprep.subr.bf16.mxu0 %v1186
    %2997 = vmatpush1.bf16.msra.mxu0 %v1185
    %2998 = vmatprep.subr.bf16.mxu0 %v1194
    %2999 = vmatpush1.bf16.msra.mxu0 %v1193
    %3000 = vmatprep.subr.bf16.mxu0 %v1202
    %3001 = vmatpush1.bf16.msra.mxu0 %v1201
    %3002 = vmatprep.subr.bf16.mxu0 %v1210
    %3003 = vmatpush1.bf16.msra.mxu0 %v1209
    %3004 = vmatprep.subr.bf16.mxu0 %v1218
    %3005 = vmatpush1.bf16.msra.mxu0 %v1217
    %3006 = vmatprep.subr.bf16.mxu0 %v1226
    %3007 = vmatpush1.bf16.msra.mxu0 %v1225
    %3008 = vmatprep.subr.bf16.mxu0 %v1234
    %3009 = vmatpush1.bf16.msra.mxu0 %v1233
    %3010 = vmatprep.subr.bf16.mxu0 %v1242
    %3011 = vmatpush1.bf16.msra.mxu0 %v1241
    %3012 = vmatprep.subr.bf16.mxu0 0
    %3013 = vmatpush1.bf16.msra.mxu0 0
    %3014 = vmatprep.subr.bf16.mxu0 0
    %3015 = vmatpush1.bf16.msra.mxu0 0
    %3016 = vmatprep.subr.bf16.mxu0 0
    %3017 = vmatpush1.bf16.msra.mxu0 0
    %3018 = vmatprep.subr.bf16.mxu0 0
    %3019 = vmatpush1.bf16.msra.mxu0 0
    %3020 = vmatprep.subr.bf16.mxu0 0
    %3021 = vmatpush1.bf16.msra.mxu0 0
    %3022 = vmatprep.subr.bf16.mxu0 0
    %3023 = vmatpush1.bf16.msra.mxu0 0
    %3024 = vmatprep.subr.bf16.mxu0 0
    %3025 = vmatpush1.bf16.msra.mxu0 0
    %3026 = vmatprep.subr.bf16.mxu0 0
    %3027 = vmatpush1.bf16.msra.mxu0 0
    %3028 = vmatprep.mubr.bf16.mxu0 0
    %3029 = vmatmul.mubr.bf16.gmra.mrb[0].mxu0 %v2995
    %v3030 = vpop.f32.mrb[0].mxu0
    %v3031 = vadd.f32 0.0, %v3030
    %v3032 = vpop.f32.mrb[0].mxu0
    %v3033 = vadd.f32 0.0, %v3032
    %v3034 = vpop.f32.mrb[0].mxu0
    %v3035 = vpop.f32.mrb[0].mxu0
    %3036 = vdwg.mxu0
    %3037 = vmatprep.subr.bf16.mxu0 %v1188
    %3038 = vmatpush1.bf16.msra.mxu0 %v1187
    %3039 = vmatprep.subr.bf16.mxu0 %v1196
    %3040 = vmatpush1.bf16.msra.mxu0 %v1195
    %3041 = vmatprep.subr.bf16.mxu0 %v1204
    %3042 = vmatpush1.bf16.msra.mxu0 %v1203
    %3043 = vmatprep.subr.bf16.mxu0 %v1212
    %3044 = vmatpush1.bf16.msra.mxu0 %v1211
    %3045 = vmatprep.subr.bf16.mxu0 %v1220
    %3046 = vmatpush1.bf16.msra.mxu0 %v1219
    %3047 = vmatprep.subr.bf16.mxu0 %v1228
    %3048 = vmatpush1.bf16.msra.mxu0 %v1227
    %3049 = vmatprep.subr.bf16.mxu0 %v1236
    %3050 = vmatpush1.bf16.msra.mxu0 %v1235
    %3051 = vmatprep.subr.bf16.mxu0 %v1244
    %3052 = vmatpush1.bf16.msra.mxu0 %v1243
    %3053 = vmatprep.subr.bf16.mxu0 0
    %3054 = vmatpush1.bf16.msra.mxu0 0
    %3055 = vmatprep.subr.bf16.mxu0 0
    %3056 = vmatpush1.bf16.msra.mxu0 0
    %3057 = vmatprep.subr.bf16.mxu0 0
    %3058 = vmatpush1.bf16.msra.mxu0 0
    %3059 = vmatprep.subr.bf16.mxu0 0
    %3060 = vmatpush1.bf16.msra.mxu0 0
    %3061 = vmatprep.subr.bf16.mxu0 0
    %3062 = vmatpush1.bf16.msra.mxu0 0
    %3063 = vmatprep.subr.bf16.mxu0 0
    %3064 = vmatpush1.bf16.msra.mxu0 0
    %3065 = vmatprep.subr.bf16.mxu0 0
    %3066 = vmatpush1.bf16.msra.mxu0 0
    %3067 = vmatprep.subr.bf16.mxu0 0
    %3068 = vmatpush1.bf16.msra.mxu0 0
    %3069 = vmatprep.mubr.bf16.mxu0 0
    %3070 = vmatmul.mubr.bf16.gmra.mrb[0].mxu0 %v2995
    %v3071 = vpop.f32.mrb[0].mxu0
    %v3072 = vadd.f32 0.0, %v3071
    %v3073 = vpop.f32.mrb[0].mxu0
    %v3074 = vadd.f32 0.0, %v3073
    %v3075 = vpop.f32.mrb[0].mxu0
    %v3076 = vpop.f32.mrb[0].mxu0
    %3077 = vdwg.mxu0
    %3078 = vmatprep.subr.bf16.mxu0 %v1190
    %3079 = vmatpush1.bf16.msra.mxu0 %v1189
    %3080 = vmatprep.subr.bf16.mxu0 %v1198
    %3081 = vmatpush1.bf16.msra.mxu0 %v1197
    %3082 = vmatprep.subr.bf16.mxu0 %v1206
    %3083 = vmatpush1.bf16.msra.mxu0 %v1205
    %3084 = vmatprep.subr.bf16.mxu0 %v1214
    %3085 = vmatpush1.bf16.msra.mxu0 %v1213
    %3086 = vmatprep.subr.bf16.mxu0 %v1222
    %3087 = vmatpush1.bf16.msra.mxu0 %v1221
    %3088 = vmatprep.subr.bf16.mxu0 %v1230
    %3089 = vmatpush1.bf16.msra.mxu0 %v1229
    %3090 = vmatprep.subr.bf16.mxu0 %v1238
    %3091 = vmatpush1.bf16.msra.mxu0 %v1237
    %3092 = vmatprep.subr.bf16.mxu0 %v1246
    %3093 = vmatpush1.bf16.msra.mxu0 %v1245
    %3094 = vmatprep.subr.bf16.mxu0 0
    %3095 = vmatpush1.bf16.msra.mxu0 0
    %3096 = vmatprep.subr.bf16.mxu0 0
    %3097 = vmatpush1.bf16.msra.mxu0 0
    %3098 = vmatprep.subr.bf16.mxu0 0
    %3099 = vmatpush1.bf16.msra.mxu0 0
    %3100 = vmatprep.subr.bf16.mxu0 0
    %3101 = vmatpush1.bf16.msra.mxu0 0
    %3102 = vmatprep.subr.bf16.mxu0 0
    %3103 = vmatpush1.bf16.msra.mxu0 0
    %3104 = vmatprep.subr.bf16.mxu0 0
    %3105 = vmatpush1.bf16.msra.mxu0 0
    %3106 = vmatprep.subr.bf16.mxu0 0
    %3107 = vmatpush1.bf16.msra.mxu0 0
    %3108 = vmatprep.subr.bf16.mxu0 0
    %3109 = vmatpush1.bf16.msra.mxu0 0
    %3110 = vmatprep.mubr.bf16.mxu0 0
    %3111 = vmatmul.mubr.bf16.gmra.mrb[0].mxu0 %v2995
    %v3112 = vpop.f32.mrb[0].mxu0
    %v3113 = vadd.f32 0.0, %v3112
    %v3114 = vpop.f32.mrb[0].mxu0
    %v3115 = vadd.f32 0.0, %v3114
    %v3116 = vpop.f32.mrb[0].mxu0
    %v3117 = vpop.f32.mrb[0].mxu0
    %3118 = vdwg.mxu0
    %3119 = vmatprep.subr.bf16.mxu0 %v1192
    %3120 = vmatpush1.bf16.msra.mxu0 %v1191
    %3121 = vmatprep.subr.bf16.mxu0 %v1200
    %3122 = vmatpush1.bf16.msra.mxu0 %v1199
    %3123 = vmatprep.subr.bf16.mxu0 %v1208
    %3124 = vmatpush1.bf16.msra.mxu0 %v1207
    %3125 = vmatprep.subr.bf16.mxu0 %v1216
    %3126 = vmatpush1.bf16.msra.mxu0 %v1215
    %3127 = vmatprep.subr.bf16.mxu0 %v1224
    %3128 = vmatpush1.bf16.msra.mxu0 %v1223
    %3129 = vmatprep.subr.bf16.mxu0 %v1232
    %3130 = vmatpush1.bf16.msra.mxu0 %v1231
    %3131 = vmatprep.subr.bf16.mxu0 %v1240
    %3132 = vmatpush1.bf16.msra.mxu0 %v1239
    %3133 = vmatprep.subr.bf16.mxu0 %v1248
    %3134 = vmatpush1.bf16.msra.mxu0 %v1247
    %3135 = vmatprep.subr.bf16.mxu0 0
    %3136 = vmatpush1.bf16.msra.mxu0 0
    %3137 = vmatprep.subr.bf16.mxu0 0
    %3138 = vmatpush1.bf16.msra.mxu0 0
    %3139 = vmatprep.subr.bf16.mxu0 0
    %3140 = vmatpush1.bf16.msra.mxu0 0
    %3141 = vmatprep.subr.bf16.mxu0 0
    %3142 = vmatpush1.bf16.msra.mxu0 0
    %3143 = vmatprep.subr.bf16.mxu0 0
    %3144 = vmatpush1.bf16.msra.mxu0 0
    %3145 = vmatprep.subr.bf16.mxu0 0
    %3146 = vmatpush1.bf16.msra.mxu0 0
    %3147 = vmatprep.subr.bf16.mxu0 0
    %3148 = vmatpush1.bf16.msra.mxu0 0
    %3149 = vmatprep.subr.bf16.mxu0 0
    %3150 = vmatpush1.bf16.msra.mxu0 0
    %3151 = vmatprep.mubr.bf16.mxu0 0
    %3152 = vmatmul.mubr.bf16.gmra.mrb[0].mxu0 %v2995
    %v3153 = vpop.f32.mrb[0].mxu0
    %v3154 = vadd.f32 0.0, %v3153
    %v3155 = vpop.f32.mrb[0].mxu0
    %v3156 = vadd.f32 0.0, %v3155
    %v3157 = vpop.f32.mrb[0].mxu0
    %v3158 = vpop.f32.mrb[0].mxu0
    %3159 = vdwg.mxu0
    %v3164 = vrot.slane %v3031, 2
    %v3165 = vrot.slane %v3033, 2
    %v3166 = vrot.slane %v3072, 2
    %v3167 = vrot.slane %v3074, 2
    %v3172 = vadd.f32 %v793, %v3164
    %v3173 = vadd.f32 %v795, %v3165
    %v3174 = vadd.f32 %v836, %v3166
    %v3175 = vadd.f32 %v838, %v3167
    %v3180 = vrot.slane %v3113, 2
    %v3181 = vrot.slane %v3115, 2
    %v3182 = vrot.slane %v3154, 2
    %v3183 = vrot.slane %v3156, 2
    %v3188 = vadd.f32 %v875, %v3180
    %v3189 = vadd.f32 %v877, %v3181
    %v3190 = vadd.f32 %v918, %v3182
    %v3191 = vadd.f32 %v920, %v3183
    %v3196 = vrot.slane %v3172, 6
    %v3197 = vrot.slane %v3173, 6
    %v3198 = vrot.slane %v3174, 6
    %v3199 = vrot.slane %v3175, 6
    %v3208 = vrot.slane %v3188, 6
    %v3209 = vrot.slane %v3189, 6
    %v3210 = vrot.slane %v3190, 6
    %v3211 = vrot.slane %v3191, 6
    %v3216 = vsel %vm1509, %v3196, %v3208
    %v3217 = vsel %vm1509, %v3197, %v3209
    %v3218 = vsel %vm1509, %v3198, %v3210
    %v3219 = vsel %vm1509, %v3199, %v3211
    %v3220 = vxor.u32 %v3216, 2147483648
    %v3221 = vxor.u32 %v3217, 2147483648
    %v3222 = vxor.u32 %v3218, 2147483648
    %v3223 = vmul.f32 %v3220, 1.442695
    %v3224 = vpow.pop %v3223
    %v3225 = vmul.f32 %v3221, 1.442695
    %v3226 = vpow.pop %v3225
    %v3227 = vmul.f32 %v3222, 1.442695
    %v3228 = vpow.pop %v3227
    %v3229 = vadd.f32 %v3224, 1.0
    %v3230 = vadd.f32 %v3226, 1.0
    %v3231 = vadd.f32 %v3228, 1.0
    %v3232 = vrcp.pop %v3229
    %v3233 = vmul.f32 1.0, %v3232
    %v3234 = vrcp.pop %v3230
    %v3235 = vmul.f32 1.0, %v3234
    %v3236 = vrcp.pop %v3231
    %v3237 = vmul.f32 1.0, %v3236
    %v3238 = vtanh.pop %v3219
    %v3239 = vmul.f32 %v3235, %v2987
    %v3240 = vmul.f32 %v3233, %v3238
    %v3241 = vadd.f32 %v3239, %v3240
    %v3242 = vtanh.pop %v3241
    %v3243 = vmul.f32 %v3237, %v3242
    %v3245 = vrot.slane %v3243, 2
    %3247 = vst [vmem:[#allocation2 + $0x10] sm:$0xc0] %v3245
    %3248 = vst [vmem:[#allocation2 + $0x8] sm:$0x3] %v3245
    %s3249 = smul.u32 4, 32
    %s3250 = smul.u32 %s3249, 8
    %s3251 = sshll.u32 %s3250, 4
    %3252 = dma.done [#allocation8], %s3251
    %s3253 = smul.u32 4, 16
    %s3254 = smul.u32 %s3253, 8
    %s3255 = sshll.u32 %s3254, 4
    %3256 = dma.done %s142, %s3255
    %v3257 = vld [vmem:[#allocation2] sm:$0xff]
    %v3258 = vld [vmem:[#allocation2 + $0x8] sm:$0xff]
    %v3259 = vld [vmem:[#allocation2 + $0x10] sm:$0xff]
    %v3260 = vld [vmem:[#allocation2 + $0x18] sm:$0xff]
    %v3261 = vpack.c.bf16 %v3259, %v3257
    %v3262 = vpack.c.bf16 %v3260, %v3258
    %v3263 = vld [vmem:[#allocation4] sm:$0xff]
    %v3264 = vld [vmem:[#allocation4 + $0x8] sm:$0xff]
    %v3265 = vld [vmem:[#allocation4 + $0x10] sm:$0xff]
    %v3266 = vld [vmem:[#allocation4 + $0x18] sm:$0xff]
    %v3267 = vld [vmem:[#allocation4 + $0x20] sm:$0xff]
    %v3268 = vld [vmem:[#allocation4 + $0x28] sm:$0xff]
    %v3269 = vld [vmem:[#allocation4 + $0x30] sm:$0xff]
    %v3270 = vld [vmem:[#allocation4 + $0x38] sm:$0xff]
    %v3271 = vld [vmem:[#allocation4 + $0x40] sm:$0xff]
    %v3272 = vld [vmem:[#allocation4 + $0x48] sm:$0xff]
    %v3273 = vld [vmem:[#allocation4 + $0x50] sm:$0xff]
    %v3274 = vld [vmem:[#allocation4 + $0x58] sm:$0xff]
    %v3275 = vld [vmem:[#allocation4 + $0x60] sm:$0xff]
    %v3276 = vld [vmem:[#allocation4 + $0x68] sm:$0xff]
    %v3277 = vld [vmem:[#allocation4 + $0x70] sm:$0xff]
    %v3278 = vld [vmem:[#allocation4 + $0x78] sm:$0xff]
    %v3279 = vld [vmem:[#allocation4 + $0x80] sm:$0xff]
    %v3280 = vld [vmem:[#allocation4 + $0x88] sm:$0xff]
    %v3281 = vld [vmem:[#allocation4 + $0x90] sm:$0xff]
    %v3282 = vld [vmem:[#allocation4 + $0x98] sm:$0xff]
    %v3283 = vld [vmem:[#allocation4 + $0xa0] sm:$0xff]
    %v3284 = vld [vmem:[#allocation4 + $0xa8] sm:$0xff]
    %v3285 = vld [vmem:[#allocation4 + $0xb0] sm:$0xff]
    %v3286 = vld [vmem:[#allocation4 + $0xb8] sm:$0xff]
    %v3287 = vld [vmem:[#allocation4 + $0xc0] sm:$0xff]
    %v3288 = vld [vmem:[#allocation4 + $0xc8] sm:$0xff]
    %v3289 = vld [vmem:[#allocation4 + $0xd0] sm:$0xff]
    %v3290 = vld [vmem:[#allocation4 + $0xd8] sm:$0xff]
    %v3291 = vld [vmem:[#allocation4 + $0xe0] sm:$0xff]
    %v3292 = vld [vmem:[#allocation4 + $0xe8] sm:$0xff]
    %v3293 = vld [vmem:[#allocation4 + $0xf0] sm:$0xff]
    %v3294 = vld [vmem:[#allocation4 + $0xf8] sm:$0xff]
    %v3295 = vld [vmem:[#allocation4 + $0x100] sm:$0xff]
    %v3296 = vld [vmem:[#allocation4 + $0x108] sm:$0xff]
    %v3297 = vld [vmem:[#allocation4 + $0x110] sm:$0xff]
    %v3298 = vld [vmem:[#allocation4 + $0x118] sm:$0xff]
    %v3299 = vld [vmem:[#allocation4 + $0x120] sm:$0xff]
    %v3300 = vld [vmem:[#allocation4 + $0x128] sm:$0xff]
    %v3301 = vld [vmem:[#allocation4 + $0x130] sm:$0xff]
    %v3302 = vld [vmem:[#allocation4 + $0x138] sm:$0xff]
    %v3303 = vld [vmem:[#allocation4 + $0x140] sm:$0xff]
    %v3304 = vld [vmem:[#allocation4 + $0x148] sm:$0xff]
    %v3305 = vld [vmem:[#allocation4 + $0x150] sm:$0xff]
    %v3306 = vld [vmem:[#allocation4 + $0x158] sm:$0xff]
    %v3307 = vld [vmem:[#allocation4 + $0x160] sm:$0xff]
    %v3308 = vld [vmem:[#allocation4 + $0x168] sm:$0xff]
    %v3309 = vld [vmem:[#allocation4 + $0x170] sm:$0xff]
    %v3310 = vld [vmem:[#allocation4 + $0x178] sm:$0xff]
    %v3311 = vld [vmem:[#allocation4 + $0x180] sm:$0xff]
    %v3312 = vld [vmem:[#allocation4 + $0x188] sm:$0xff]
    %v3313 = vld [vmem:[#allocation4 + $0x190] sm:$0xff]
    %v3314 = vld [vmem:[#allocation4 + $0x198] sm:$0xff]
    %v3315 = vld [vmem:[#allocation4 + $0x1a0] sm:$0xff]
    %v3316 = vld [vmem:[#allocation4 + $0x1a8] sm:$0xff]
    %v3317 = vld [vmem:[#allocation4 + $0x1b0] sm:$0xff]
    %v3318 = vld [vmem:[#allocation4 + $0x1b8] sm:$0xff]
    %v3319 = vld [vmem:[#allocation4 + $0x1c0] sm:$0xff]
    %v3320 = vld [vmem:[#allocation4 + $0x1c8] sm:$0xff]
    %v3321 = vld [vmem:[#allocation4 + $0x1d0] sm:$0xff]
    %v3322 = vld [vmem:[#allocation4 + $0x1d8] sm:$0xff]
    %v3323 = vld [vmem:[#allocation4 + $0x1e0] sm:$0xff]
    %v3324 = vld [vmem:[#allocation4 + $0x1e8] sm:$0xff]
    %v3325 = vld [vmem:[#allocation4 + $0x1f0] sm:$0xff]
    %v3326 = vld [vmem:[#allocation4 + $0x1f8] sm:$0xff]
    %v3327 = vld [vmem:[#allocation4 + $0x200] sm:$0xff]
    %v3328 = vld [vmem:[#allocation4 + $0x208] sm:$0xff]
    %v3329 = vld [vmem:[#allocation4 + $0x210] sm:$0xff]
    %v3330 = vld [vmem:[#allocation4 + $0x218] sm:$0xff]
    %v3331 = vld [vmem:[#allocation4 + $0x220] sm:$0xff]
    %v3332 = vld [vmem:[#allocation4 + $0x228] sm:$0xff]
    %v3333 = vld [vmem:[#allocation4 + $0x230] sm:$0xff]
    %v3334 = vld [vmem:[#allocation4 + $0x238] sm:$0xff]
    %v3335 = vld [vmem:[#allocation4 + $0x240] sm:$0xff]
    %v3336 = vld [vmem:[#allocation4 + $0x248] sm:$0xff]
    %v3337 = vld [vmem:[#allocation4 + $0x250] sm:$0xff]
    %v3338 = vld [vmem:[#allocation4 + $0x258] sm:$0xff]
    %v3339 = vld [vmem:[#allocation4 + $0x260] sm:$0xff]
    %v3340 = vld [vmem:[#allocation4 + $0x268] sm:$0xff]
    %v3341 = vld [vmem:[#allocation4 + $0x270] sm:$0xff]
    %v3342 = vld [vmem:[#allocation4 + $0x278] sm:$0xff]
    %v3343 = vld [vmem:[#allocation4 + $0x280] sm:$0xff]
    %v3344 = vld [vmem:[#allocation4 + $0x288] sm:$0xff]
    %v3345 = vld [vmem:[#allocation4 + $0x290] sm:$0xff]
    %v3346 = vld [vmem:[#allocation4 + $0x298] sm:$0xff]
    %v3347 = vld [vmem:[#allocation4 + $0x2a0] sm:$0xff]
    %v3348 = vld [vmem:[#allocation4 + $0x2a8] sm:$0xff]
    %v3349 = vld [vmem:[#allocation4 + $0x2b0] sm:$0xff]
    %v3350 = vld [vmem:[#allocation4 + $0x2b8] sm:$0xff]
    %v3351 = vld [vmem:[#allocation4 + $0x2c0] sm:$0xff]
    %v3352 = vld [vmem:[#allocation4 + $0x2c8] sm:$0xff]
    %v3353 = vld [vmem:[#allocation4 + $0x2d0] sm:$0xff]
    %v3354 = vld [vmem:[#allocation4 + $0x2d8] sm:$0xff]
    %v3355 = vld [vmem:[#allocation4 + $0x2e0] sm:$0xff]
    %v3356 = vld [vmem:[#allocation4 + $0x2e8] sm:$0xff]
    %v3357 = vld [vmem:[#allocation4 + $0x2f0] sm:$0xff]
    %v3358 = vld [vmem:[#allocation4 + $0x2f8] sm:$0xff]
    %v3359 = vld [vmem:[#allocation4 + $0x300] sm:$0xff]
    %v3360 = vld [vmem:[#allocation4 + $0x308] sm:$0xff]
    %v3361 = vld [vmem:[#allocation4 + $0x310] sm:$0xff]
    %v3362 = vld [vmem:[#allocation4 + $0x318] sm:$0xff]
    %v3363 = vld [vmem:[#allocation4 + $0x320] sm:$0xff]
    %v3364 = vld [vmem:[#allocation4 + $0x328] sm:$0xff]
    %v3365 = vld [vmem:[#allocation4 + $0x330] sm:$0xff]
    %v3366 = vld [vmem:[#allocation4 + $0x338] sm:$0xff]
    %v3367 = vld [vmem:[#allocation4 + $0x340] sm:$0xff]
    %v3368 = vld [vmem:[#allocation4 + $0x348] sm:$0xff]
    %v3369 = vld [vmem:[#allocation4 + $0x350] sm:$0xff]
    %v3370 = vld [vmem:[#allocation4 + $0x358] sm:$0xff]
    %v3371 = vld [vmem:[#allocation4 + $0x360] sm:$0xff]
    %v3372 = vld [vmem:[#allocation4 + $0x368] sm:$0xff]
    %v3373 = vld [vmem:[#allocation4 + $0x370] sm:$0xff]
    %v3374 = vld [vmem:[#allocation4 + $0x378] sm:$0xff]
    %v3375 = vld [vmem:[#allocation4 + $0x380] sm:$0xff]
    %v3376 = vld [vmem:[#allocation4 + $0x388] sm:$0xff]
    %v3377 = vld [vmem:[#allocation4 + $0x390] sm:$0xff]
    %v3378 = vld [vmem:[#allocation4 + $0x398] sm:$0xff]
    %v3379 = vld [vmem:[#allocation4 + $0x3a0] sm:$0xff]
    %v3380 = vld [vmem:[#allocation4 + $0x3a8] sm:$0xff]
    %v3381 = vld [vmem:[#allocation4 + $0x3b0] sm:$0xff]
    %v3382 = vld [vmem:[#allocation4 + $0x3b8] sm:$0xff]
    %v3383 = vld [vmem:[#allocation4 + $0x3c0] sm:$0xff]
    %v3384 = vld [vmem:[#allocation4 + $0x3c8] sm:$0xff]
    %v3385 = vld [vmem:[#allocation4 + $0x3d0] sm:$0xff]
    %v3386 = vld [vmem:[#allocation4 + $0x3d8] sm:$0xff]
    %v3387 = vld [vmem:[#allocation4 + $0x3e0] sm:$0xff]
    %v3388 = vld [vmem:[#allocation4 + $0x3e8] sm:$0xff]
    %v3389 = vld [vmem:[#allocation4 + $0x3f0] sm:$0xff]
    %v3390 = vld [vmem:[#allocation4 + $0x3f8] sm:$0xff]
    %v3391 = vld [vmem:[#allocation17] sm:$0xff]
    %v3393 = vlaneseq
    %v3394 = vshrl.u32 %v3393, 7
    %v3395 = vsub.s32 0, %v3394
    %v3396 = vrot.slane %v3391, %v3395
    %v3397 = vlaneseq
    %v3398 = vshrl.u32 %v3397, 7
    %v3399 = vsub.s32 1, %v3398
    %v3400 = vrot.slane %v3391, %v3399
    %v3401 = vlaneseq
    %v3402 = vshrl.u32 %v3401, 7
    %v3403 = vsub.s32 2, %v3402
    %v3404 = vrot.slane %v3391, %v3403
    %v3405 = vlaneseq
    %v3406 = vshrl.u32 %v3405, 7
    %v3407 = vsub.s32 3, %v3406
    %v3408 = vrot.slane %v3391, %v3407
    %v3409 = vlaneseq
    %v3410 = vshrl.u32 %v3409, 7
    %v3411 = vsub.s32 4, %v3410
    %v3412 = vrot.slane %v3391, %v3411
    %v3413 = vlaneseq
    %v3414 = vshrl.u32 %v3413, 7
    %v3415 = vsub.s32 5, %v3414
    %v3416 = vrot.slane %v3391, %v3415
    %v3417 = vlaneseq
    %v3418 = vshrl.u32 %v3417, 7
    %v3419 = vsub.s32 6, %v3418
    %v3420 = vrot.slane %v3391, %v3419
    %v3421 = vlaneseq
    %v3422 = vshrl.u32 %v3421, 7
    %v3423 = vsub.s32 7, %v3422
    %v3424 = vrot.slane %v3391, %v3423
    %3433 = vmatprep.subr.bf16.mxu0 %v3264
    %3434 = vmatpush1.bf16.msra.mxu0 %v3263
    %3435 = vmatprep.subr.bf16.mxu0 %v3272
    %3436 = vmatpush1.bf16.msra.mxu0 %v3271
    %3437 = vmatprep.subr.bf16.mxu0 %v3280
    %3438 = vmatpush1.bf16.msra.mxu0 %v3279
    %3439 = vmatprep.subr.bf16.mxu0 %v3288
    %3440 = vmatpush1.bf16.msra.mxu0 %v3287
    %3441 = vmatprep.subr.bf16.mxu0 %v3296
    %3442 = vmatpush1.bf16.msra.mxu0 %v3295
    %3443 = vmatprep.subr.bf16.mxu0 %v3304
    %3444 = vmatpush1.bf16.msra.mxu0 %v3303
    %3445 = vmatprep.subr.bf16.mxu0 %v3312
    %3446 = vmatpush1.bf16.msra.mxu0 %v3311
    %3447 = vmatprep.subr.bf16.mxu0 %v3320
    %3448 = vmatpush1.bf16.msra.mxu0 %v3319
    %3449 = vmatprep.subr.bf16.mxu0 %v3328
    %3450 = vmatpush1.bf16.msra.mxu0 %v3327
    %3451 = vmatprep.subr.bf16.mxu0 %v3336
    %3452 = vmatpush1.bf16.msra.mxu0 %v3335
    %3453 = vmatprep.subr.bf16.mxu0 %v3344
    %3454 = vmatpush1.bf16.msra.mxu0 %v3343
    %3455 = vmatprep.subr.bf16.mxu0 %v3352
    %3456 = vmatpush1.bf16.msra.mxu0 %v3351
    %3457 = vmatprep.subr.bf16.mxu0 %v3360
    %3458 = vmatpush1.bf16.msra.mxu0 %v3359
    %3459 = vmatprep.subr.bf16.mxu0 %v3368
    %3460 = vmatpush1.bf16.msra.mxu0 %v3367
    %3461 = vmatprep.subr.bf16.mxu0 %v3376
    %3462 = vmatpush1.bf16.msra.mxu0 %v3375
    %3463 = vmatprep.subr.bf16.mxu0 %v3384
    %3464 = vmatpush1.bf16.msra.mxu0 %v3383
    %3465 = vmatprep.mubr.bf16.mxu0 %v3262
    %3466 = vmatmul.mubr.bf16.gmra.mrb[0].mxu0 %v3261
    %v3467 = vpop.f32.mrb[0].mxu0
    %v3468 = vadd.f32 %v3396, %v3467
    %v3469 = vpop.f32.mrb[0].mxu0
    %v3470 = vadd.f32 %v3400, %v3469
    %v3471 = vpop.f32.mrb[0].mxu0
    %v3472 = vadd.f32 %v3396, %v3471
    %v3473 = vpop.f32.mrb[0].mxu0
    %v3474 = vadd.f32 %v3400, %v3473
    %3475 = vdwg.mxu0
    %3476 = vmatprep.subr.bf16.mxu0 %v3266
    %3477 = vmatpush1.bf16.msra.mxu0 %v3265
    %3478 = vmatprep.subr.bf16.mxu0 %v3274
    %3479 = vmatpush1.bf16.msra.mxu0 %v3273
    %3480 = vmatprep.subr.bf16.mxu0 %v3282
    %3481 = vmatpush1.bf16.msra.mxu0 %v3281
    %3482 = vmatprep.subr.bf16.mxu0 %v3290
    %3483 = vmatpush1.bf16.msra.mxu0 %v3289
    %3484 = vmatprep.subr.bf16.mxu0 %v3298
    %3485 = vmatpush1.bf16.msra.mxu0 %v3297
    %3486 = vmatprep.subr.bf16.mxu0 %v3306
    %3487 = vmatpush1.bf16.msra.mxu0 %v3305
    %3488 = vmatprep.subr.bf16.mxu0 %v3314
    %3489 = vmatpush1.bf16.msra.mxu0 %v3313
    %3490 = vmatprep.subr.bf16.mxu0 %v3322
    %3491 = vmatpush1.bf16.msra.mxu0 %v3321
    %3492 = vmatprep.subr.bf16.mxu0 %v3330
    %3493 = vmatpush1.bf16.msra.mxu0 %v3329
    %3494 = vmatprep.subr.bf16.mxu0 %v3338
    %3495 = vmatpush1.bf16.msra.mxu0 %v3337
    %3496 = vmatprep.subr.bf16.mxu0 %v3346
    %3497 = vmatpush1.bf16.msra.mxu0 %v3345
    %3498 = vmatprep.subr.bf16.mxu0 %v3354
    %3499 = vmatpush1.bf16.msra.mxu0 %v3353
    %3500 = vmatprep.subr.bf16.mxu0 %v3362
    %3501 = vmatpush1.bf16.msra.mxu0 %v3361
    %3502 = vmatprep.subr.bf16.mxu0 %v3370
    %3503 = vmatpush1.bf16.msra.mxu0 %v3369
    %3504 = vmatprep.subr.bf16.mxu0 %v3378
    %3505 = vmatpush1.bf16.msra.mxu0 %v3377
    %3506 = vmatprep.subr.bf16.mxu0 %v3386
    %3507 = vmatpush1.bf16.msra.mxu0 %v3385
    %3508 = vmatprep.mubr.bf16.mxu0 %v3262
    %3509 = vmatmul.mubr.bf16.gmra.mrb[0].mxu0 %v3261
    %v3510 = vpop.f32.mrb[0].mxu0
    %v3511 = vadd.f32 %v3404, %v3510
    %v3512 = vpop.f32.mrb[0].mxu0
    %v3513 = vadd.f32 %v3408, %v3512
    %v3514 = vpop.f32.mrb[0].mxu0
    %v3515 = vadd.f32 %v3404, %v3514
    %v3516 = vpop.f32.mrb[0].mxu0
    %v3517 = vadd.f32 %v3408, %v3516
    %3518 = vdwg.mxu0
    %3519 = vmatprep.subr.bf16.mxu0 %v3268
    %3520 = vmatpush1.bf16.msra.mxu0 %v3267
    %3521 = vmatprep.subr.bf16.mxu0 %v3276
    %3522 = vmatpush1.bf16.msra.mxu0 %v3275
    %3523 = vmatprep.subr.bf16.mxu0 %v3284
    %3524 = vmatpush1.bf16.msra.mxu0 %v3283
    %3525 = vmatprep.subr.bf16.mxu0 %v3292
    %3526 = vmatpush1.bf16.msra.mxu0 %v3291
    %3527 = vmatprep.subr.bf16.mxu0 %v3300
    %3528 = vmatpush1.bf16.msra.mxu0 %v3299
    %3529 = vmatprep.subr.bf16.mxu0 %v3308
    %3530 = vmatpush1.bf16.msra.mxu0 %v3307
    %3531 = vmatprep.subr.bf16.mxu0 %v3316
    %3532 = vmatpush1.bf16.msra.mxu0 %v3315
    %3533 = vmatprep.subr.bf16.mxu0 %v3324
    %3534 = vmatpush1.bf16.msra.mxu0 %v3323
    %3535 = vmatprep.subr.bf16.mxu0 %v3332
    %3536 = vmatpush1.bf16.msra.mxu0 %v3331
    %3537 = vmatprep.subr.bf16.mxu0 %v3340
    %3538 = vmatpush1.bf16.msra.mxu0 %v3339
    %3539 = vmatprep.subr.bf16.mxu0 %v3348
    %3540 = vmatpush1.bf16.msra.mxu0 %v3347
    %3541 = vmatprep.subr.bf16.mxu0 %v3356
    %3542 = vmatpush1.bf16.msra.mxu0 %v3355
    %3543 = vmatprep.subr.bf16.mxu0 %v3364
    %3544 = vmatpush1.bf16.msra.mxu0 %v3363
    %3545 = vmatprep.subr.bf16.mxu0 %v3372
    %3546 = vmatpush1.bf16.msra.mxu0 %v3371
    %3547 = vmatprep.subr.bf16.mxu0 %v3380
    %3548 = vmatpush1.bf16.msra.mxu0 %v3379
    %3549 = vmatprep.subr.bf16.mxu0 %v3388
    %3550 = vmatpush1.bf16.msra.mxu0 %v3387
    %3551 = vmatprep.mubr.bf16.mxu0 %v3262
    %3552 = vmatmul.mubr.bf16.gmra.mrb[0].mxu0 %v3261
    %v3553 = vpop.f32.mrb[0].mxu0
    %v3554 = vadd.f32 %v3412, %v3553
    %v3555 = vpop.f32.mrb[0].mxu0
    %v3556 = vadd.f32 %v3416, %v3555
    %v3557 = vpop.f32.mrb[0].mxu0
    %v3558 = vadd.f32 %v3412, %v3557
    %v3559 = vpop.f32.mrb[0].mxu0
    %v3560 = vadd.f32 %v3416, %v3559
    %3561 = vdwg.mxu0
    %3562 = vmatprep.subr.bf16.mxu0 %v3270
    %3563 = vmatpush1.bf16.msra.mxu0 %v3269
    %3564 = vmatprep.subr.bf16.mxu0 %v3278
    %3565 = vmatpush1.bf16.msra.mxu0 %v3277
    %3566 = vmatprep.subr.bf16.mxu0 %v3286
    %3567 = vmatpush1.bf16.msra.mxu0 %v3285
    %3568 = vmatprep.subr.bf16.mxu0 %v3294
    %3569 = vmatpush1.bf16.msra.mxu0 %v3293
    %3570 = vmatprep.subr.bf16.mxu0 %v3302
    %3571 = vmatpush1.bf16.msra.mxu0 %v3301
    %3572 = vmatprep.subr.bf16.mxu0 %v3310
    %3573 = vmatpush1.bf16.msra.mxu0 %v3309
    %3574 = vmatprep.subr.bf16.mxu0 %v3318
    %3575 = vmatpush1.bf16.msra.mxu0 %v3317
    %3576 = vmatprep.subr.bf16.mxu0 %v3326
    %3577 = vmatpush1.bf16.msra.mxu0 %v3325
    %3578 = vmatprep.subr.bf16.mxu0 %v3334
    %3579 = vmatpush1.bf16.msra.mxu0 %v3333
    %3580 = vmatprep.subr.bf16.mxu0 %v3342
    %3581 = vmatpush1.bf16.msra.mxu0 %v3341
    %3582 = vmatprep.subr.bf16.mxu0 %v3350
    %3583 = vmatpush1.bf16.msra.mxu0 %v3349
    %3584 = vmatprep.subr.bf16.mxu0 %v3358
    %3585 = vmatpush1.bf16.msra.mxu0 %v3357
    %3586 = vmatprep.subr.bf16.mxu0 %v3366
    %3587 = vmatpush1.bf16.msra.mxu0 %v3365
    %3588 = vmatprep.subr.bf16.mxu0 %v3374
    %3589 = vmatpush1.bf16.msra.mxu0 %v3373
    %3590 = vmatprep.subr.bf16.mxu0 %v3382
    %3591 = vmatpush1.bf16.msra.mxu0 %v3381
    %3592 = vmatprep.subr.bf16.mxu0 %v3390
    %3593 = vmatpush1.bf16.msra.mxu0 %v3389
    %3594 = vmatprep.mubr.bf16.mxu0 %v3262
    %3595 = vmatmul.mubr.bf16.gmra.mrb[0].mxu0 %v3261
    %v3596 = vpop.f32.mrb[0].mxu0
    %v3597 = vadd.f32 %v3420, %v3596
    %v3598 = vpop.f32.mrb[0].mxu0
    %v3599 = vadd.f32 %v3424, %v3598
    %v3600 = vpop.f32.mrb[0].mxu0
    %v3601 = vadd.f32 %v3420, %v3600
    %v3602 = vpop.f32.mrb[0].mxu0
    %v3603 = vadd.f32 %v3424, %v3602
    %3604 = vdwg.mxu0
    %v3605 = vld [vmem:[#allocation5] sm:$0xff]
    %v3606 = vld [vmem:[#allocation5 + $0x8] sm:$0xff]
    %v3607 = vld [vmem:[#allocation5 + $0x10] sm:$0xff]
    %v3608 = vld [vmem:[#allocation5 + $0x18] sm:$0xff]
    %v3609 = vld [vmem:[#allocation5 + $0x20] sm:$0xff]
    %v3610 = vld [vmem:[#allocation5 + $0x28] sm:$0xff]
    %v3611 = vld [vmem:[#allocation5 + $0x30] sm:$0xff]
    %v3612 = vld [vmem:[#allocation5 + $0x38] sm:$0xff]
    %v3613 = vld [vmem:[#allocation5 + $0x40] sm:$0xff]
    %v3614 = vld [vmem:[#allocation5 + $0x48] sm:$0xff]
    %v3615 = vld [vmem:[#allocation5 + $0x50] sm:$0xff]
    %v3616 = vld [vmem:[#allocation5 + $0x58] sm:$0xff]
    %v3617 = vld [vmem:[#allocation5 + $0x60] sm:$0xff]
    %v3618 = vld [vmem:[#allocation5 + $0x68] sm:$0xff]
    %v3619 = vld [vmem:[#allocation5 + $0x70] sm:$0xff]
    %v3620 = vld [vmem:[#allocation5 + $0x78] sm:$0xff]
    %v3621 = vld [vmem:[#allocation5 + $0x80] sm:$0xff]
    %v3622 = vld [vmem:[#allocation5 + $0x88] sm:$0xff]
    %v3623 = vld [vmem:[#allocation5 + $0x90] sm:$0xff]
    %v3624 = vld [vmem:[#allocation5 + $0x98] sm:$0xff]
    %v3625 = vld [vmem:[#allocation5 + $0xa0] sm:$0xff]
    %v3626 = vld [vmem:[#allocation5 + $0xa8] sm:$0xff]
    %v3627 = vld [vmem:[#allocation5 + $0xb0] sm:$0xff]
    %v3628 = vld [vmem:[#allocation5 + $0xb8] sm:$0xff]
    %v3629 = vld [vmem:[#allocation5 + $0xc0] sm:$0xff]
    %v3630 = vld [vmem:[#allocation5 + $0xc8] sm:$0xff]
    %v3631 = vld [vmem:[#allocation5 + $0xd0] sm:$0xff]
    %v3632 = vld [vmem:[#allocation5 + $0xd8] sm:$0xff]
    %v3633 = vld [vmem:[#allocation5 + $0xe0] sm:$0xff]
    %v3634 = vld [vmem:[#allocation5 + $0xe8] sm:$0xff]
    %v3635 = vld [vmem:[#allocation5 + $0xf0] sm:$0xff]
    %v3636 = vld [vmem:[#allocation5 + $0xf8] sm:$0xff]
    %v3637 = vld [vmem:[#allocation5 + $0x100] sm:$0xff]
    %v3638 = vld [vmem:[#allocation5 + $0x108] sm:$0xff]
    %v3639 = vld [vmem:[#allocation5 + $0x110] sm:$0xff]
    %v3640 = vld [vmem:[#allocation5 + $0x118] sm:$0xff]
    %v3641 = vld [vmem:[#allocation5 + $0x120] sm:$0xff]
    %v3642 = vld [vmem:[#allocation5 + $0x128] sm:$0xff]
    %v3643 = vld [vmem:[#allocation5 + $0x130] sm:$0xff]
    %v3644 = vld [vmem:[#allocation5 + $0x138] sm:$0xff]
    %v3645 = vld [vmem:[#allocation5 + $0x140] sm:$0xff]
    %v3646 = vld [vmem:[#allocation5 + $0x148] sm:$0xff]
    %v3647 = vld [vmem:[#allocation5 + $0x150] sm:$0xff]
    %v3648 = vld [vmem:[#allocation5 + $0x158] sm:$0xff]
    %v3649 = vld [vmem:[#allocation5 + $0x160] sm:$0xff]
    %v3650 = vld [vmem:[#allocation5 + $0x168] sm:$0xff]
    %v3651 = vld [vmem:[#allocation5 + $0x170] sm:$0xff]
    %v3652 = vld [vmem:[#allocation5 + $0x178] sm:$0xff]
    %v3653 = vld [vmem:[#allocation5 + $0x180] sm:$0xff]
    %v3654 = vld [vmem:[#allocation5 + $0x188] sm:$0xff]
    %v3655 = vld [vmem:[#allocation5 + $0x190] sm:$0xff]
    %v3656 = vld [vmem:[#allocation5 + $0x198] sm:$0xff]
    %v3657 = vld [vmem:[#allocation5 + $0x1a0] sm:$0xff]
    %v3658 = vld [vmem:[#allocation5 + $0x1a8] sm:$0xff]
    %v3659 = vld [vmem:[#allocation5 + $0x1b0] sm:$0xff]
    %v3660 = vld [vmem:[#allocation5 + $0x1b8] sm:$0xff]
    %v3661 = vld [vmem:[#allocation5 + $0x1c0] sm:$0xff]
    %v3662 = vld [vmem:[#allocation5 + $0x1c8] sm:$0xff]
    %v3663 = vld [vmem:[#allocation5 + $0x1d0] sm:$0xff]
    %v3664 = vld [vmem:[#allocation5 + $0x1d8] sm:$0xff]
    %v3665 = vld [vmem:[#allocation5 + $0x1e0] sm:$0xff]
    %v3666 = vld [vmem:[#allocation5 + $0x1e8] sm:$0xff]
    %v3667 = vld [vmem:[#allocation5 + $0x1f0] sm:$0xff]
    %v3668 = vld [vmem:[#allocation5 + $0x1f8] sm:$0xff]
    %v3669 = vld [vmem:[#allocation9 + $0x4] sm:$0xf]
    %v3670 = vld [vmem:[#allocation12 + $0x4] sm:$0xf]
    %v3671 = vpack.c.bf16 %v3669, %v3669
    %3672 = vmatprep.subr.bf16.mxu0 %v3606
    %3673 = vmatpush1.bf16.msra.mxu0 %v3605
    %3674 = vmatprep.subr.bf16.mxu0 %v3614
    %3675 = vmatpush1.bf16.msra.mxu0 %v3613
    %3676 = vmatprep.subr.bf16.mxu0 %v3622
    %3677 = vmatpush1.bf16.msra.mxu0 %v3621
    %3678 = vmatprep.subr.bf16.mxu0 %v3630
    %3679 = vmatpush1.bf16.msra.mxu0 %v3629
    %3680 = vmatprep.subr.bf16.mxu0 %v3638
    %3681 = vmatpush1.bf16.msra.mxu0 %v3637
    %3682 = vmatprep.subr.bf16.mxu0 %v3646
    %3683 = vmatpush1.bf16.msra.mxu0 %v3645
    %3684 = vmatprep.subr.bf16.mxu0 %v3654
    %3685 = vmatpush1.bf16.msra.mxu0 %v3653
    %3686 = vmatprep.subr.bf16.mxu0 %v3662
    %3687 = vmatpush1.bf16.msra.mxu0 %v3661
    %3688 = vmatprep.subr.bf16.mxu0 0
    %3689 = vmatpush1.bf16.msra.mxu0 0
    %3690 = vmatprep.subr.bf16.mxu0 0
    %3691 = vmatpush1.bf16.msra.mxu0 0
    %3692 = vmatprep.subr.bf16.mxu0 0
    %3693 = vmatpush1.bf16.msra.mxu0 0
    %3694 = vmatprep.subr.bf16.mxu0 0
    %3695 = vmatpush1.bf16.msra.mxu0 0
    %3696 = vmatprep.subr.bf16.mxu0 0
    %3697 = vmatpush1.bf16.msra.mxu0 0
    %3698 = vmatprep.subr.bf16.mxu0 0
    %3699 = vmatpush1.bf16.msra.mxu0 0
    %3700 = vmatprep.subr.bf16.mxu0 0
    %3701 = vmatpush1.bf16.msra.mxu0 0
    %3702 = vmatprep.subr.bf16.mxu0 0
    %3703 = vmatpush1.bf16.msra.mxu0 0
    %3704 = vmatprep.mubr.bf16.mxu0 0
    %3705 = vmatmul.mubr.bf16.gmra.mrb[0].mxu0 %v3671
    %v3706 = vpop.f32.mrb[0].mxu0
    %v3707 = vadd.f32 0.0, %v3706
    %v3708 = vpop.f32.mrb[0].mxu0
    %v3709 = vadd.f32 0.0, %v3708
    %v3710 = vpop.f32.mrb[0].mxu0
    %v3711 = vpop.f32.mrb[0].mxu0
    %3712 = vdwg.mxu0
    %3713 = vmatprep.subr.bf16.mxu0 %v3608
    %3714 = vmatpush1.bf16.msra.mxu0 %v3607
    %3715 = vmatprep.subr.bf16.mxu0 %v3616
    %3716 = vmatpush1.bf16.msra.mxu0 %v3615
    %3717 = vmatprep.subr.bf16.mxu0 %v3624
    %3718 = vmatpush1.bf16.msra.mxu0 %v3623
    %3719 = vmatprep.subr.bf16.mxu0 %v3632
    %3720 = vmatpush1.bf16.msra.mxu0 %v3631
    %3721 = vmatprep.subr.bf16.mxu0 %v3640
    %3722 = vmatpush1.bf16.msra.mxu0 %v3639
    %3723 = vmatprep.subr.bf16.mxu0 %v3648
    %3724 = vmatpush1.bf16.msra.mxu0 %v3647
    %3725 = vmatprep.subr.bf16.mxu0 %v3656
    %3726 = vmatpush1.bf16.msra.mxu0 %v3655
    %3727 = vmatprep.subr.bf16.mxu0 %v3664
    %3728 = vmatpush1.bf16.msra.mxu0 %v3663
    %3729 = vmatprep.subr.bf16.mxu0 0
    %3730 = vmatpush1.bf16.msra.mxu0 0
    %3731 = vmatprep.subr.bf16.mxu0 0
    %3732 = vmatpush1.bf16.msra.mxu0 0
    %3733 = vmatprep.subr.bf16.mxu0 0
    %3734 = vmatpush1.bf16.msra.mxu0 0
    %3735 = vmatprep.subr.bf16.mxu0 0
    %3736 = vmatpush1.bf16.msra.mxu0 0
    %3737 = vmatprep.subr.bf16.mxu0 0
    %3738 = vmatpush1.bf16.msra.mxu0 0
    %3739 = vmatprep.subr.bf16.mxu0 0
    %3740 = vmatpush1.bf16.msra.mxu0 0
    %3741 = vmatprep.subr.bf16.mxu0 0
    %3742 = vmatpush1.bf16.msra.mxu0 0
    %3743 = vmatprep.subr.bf16.mxu0 0
    %3744 = vmatpush1.bf16.msra.mxu0 0
    %3745 = vmatprep.mubr.bf16.mxu0 0
    %3746 = vmatmul.mubr.bf16.gmra.mrb[0].mxu0 %v3671
    %v3747 = vpop.f32.mrb[0].mxu0
    %v3748 = vadd.f32 0.0, %v3747
    %v3749 = vpop.f32.mrb[0].mxu0
    %v3750 = vadd.f32 0.0, %v3749
    %v3751 = vpop.f32.mrb[0].mxu0
    %v3752 = vpop.f32.mrb[0].mxu0
    %3753 = vdwg.mxu0
    %3754 = vmatprep.subr.bf16.mxu0 %v3610
    %3755 = vmatpush1.bf16.msra.mxu0 %v3609
    %3756 = vmatprep.subr.bf16.mxu0 %v3618
    %3757 = vmatpush1.bf16.msra.mxu0 %v3617
    %3758 = vmatprep.subr.bf16.mxu0 %v3626
    %3759 = vmatpush1.bf16.msra.mxu0 %v3625
    %3760 = vmatprep.subr.bf16.mxu0 %v3634
    %3761 = vmatpush1.bf16.msra.mxu0 %v3633
    %3762 = vmatprep.subr.bf16.mxu0 %v3642
    %3763 = vmatpush1.bf16.msra.mxu0 %v3641
    %3764 = vmatprep.subr.bf16.mxu0 %v3650
    %3765 = vmatpush1.bf16.msra.mxu0 %v3649
    %3766 = vmatprep.subr.bf16.mxu0 %v3658
    %3767 = vmatpush1.bf16.msra.mxu0 %v3657
    %3768 = vmatprep.subr.bf16.mxu0 %v3666
    %3769 = vmatpush1.bf16.msra.mxu0 %v3665
    %3770 = vmatprep.subr.bf16.mxu0 0
    %3771 = vmatpush1.bf16.msra.mxu0 0
    %3772 = vmatprep.subr.bf16.mxu0 0
    %3773 = vmatpush1.bf16.msra.mxu0 0
    %3774 = vmatprep.subr.bf16.mxu0 0
    %3775 = vmatpush1.bf16.msra.mxu0 0
    %3776 = vmatprep.subr.bf16.mxu0 0
    %3777 = vmatpush1.bf16.msra.mxu0 0
    %3778 = vmatprep.subr.bf16.mxu0 0
    %3779 = vmatpush1.bf16.msra.mxu0 0
    %3780 = vmatprep.subr.bf16.mxu0 0
    %3781 = vmatpush1.bf16.msra.mxu0 0
    %3782 = vmatprep.subr.bf16.mxu0 0
    %3783 = vmatpush1.bf16.msra.mxu0 0
    %3784 = vmatprep.subr.bf16.mxu0 0
    %3785 = vmatpush1.bf16.msra.mxu0 0
    %3786 = vmatprep.mubr.bf16.mxu0 0
    %3787 = vmatmul.mubr.bf16.gmra.mrb[0].mxu0 %v3671
    %v3788 = vpop.f32.mrb[0].mxu0
    %v3789 = vadd.f32 0.0, %v3788
    %v3790 = vpop.f32.mrb[0].mxu0
    %v3791 = vadd.f32 0.0, %v3790
    %v3792 = vpop.f32.mrb[0].mxu0
    %v3793 = vpop.f32.mrb[0].mxu0
    %3794 = vdwg.mxu0
    %3795 = vmatprep.subr.bf16.mxu0 %v3612
    %3796 = vmatpush1.bf16.msra.mxu0 %v3611
    %3797 = vmatprep.subr.bf16.mxu0 %v3620
    %3798 = vmatpush1.bf16.msra.mxu0 %v3619
    %3799 = vmatprep.subr.bf16.mxu0 %v3628
    %3800 = vmatpush1.bf16.msra.mxu0 %v3627
    %3801 = vmatprep.subr.bf16.mxu0 %v3636
    %3802 = vmatpush1.bf16.msra.mxu0 %v3635
    %3803 = vmatprep.subr.bf16.mxu0 %v3644
    %3804 = vmatpush1.bf16.msra.mxu0 %v3643
    %3805 = vmatprep.subr.bf16.mxu0 %v3652
    %3806 = vmatpush1.bf16.msra.mxu0 %v3651
    %3807 = vmatprep.subr.bf16.mxu0 %v3660
    %3808 = vmatpush1.bf16.msra.mxu0 %v3659
    %3809 = vmatprep.subr.bf16.mxu0 %v3668
    %3810 = vmatpush1.bf16.msra.mxu0 %v3667
    %3811 = vmatprep.subr.bf16.mxu0 0
    %3812 = vmatpush1.bf16.msra.mxu0 0
    %3813 = vmatprep.subr.bf16.mxu0 0
    %3814 = vmatpush1.bf16.msra.mxu0 0
    %3815 = vmatprep.subr.bf16.mxu0 0
    %3816 = vmatpush1.bf16.msra.mxu0 0
    %3817 = vmatprep.subr.bf16.mxu0 0
    %3818 = vmatpush1.bf16.msra.mxu0 0
    %3819 = vmatprep.subr.bf16.mxu0 0
    %3820 = vmatpush1.bf16.msra.mxu0 0
    %3821 = vmatprep.subr.bf16.mxu0 0
    %3822 = vmatpush1.bf16.msra.mxu0 0
    %3823 = vmatprep.subr.bf16.mxu0 0
    %3824 = vmatpush1.bf16.msra.mxu0 0
    %3825 = vmatprep.subr.bf16.mxu0 0
    %3826 = vmatpush1.bf16.msra.mxu0 0
    %3827 = vmatprep.mubr.bf16.mxu0 0
    %3828 = vmatmul.mubr.bf16.gmra.mrb[0].mxu0 %v3671
    %v3829 = vpop.f32.mrb[0].mxu0
    %v3830 = vadd.f32 0.0, %v3829
    %v3831 = vpop.f32.mrb[0].mxu0
    %v3832 = vadd.f32 0.0, %v3831
    %v3833 = vpop.f32.mrb[0].mxu0
    %v3834 = vpop.f32.mrb[0].mxu0
    %3835 = vdwg.mxu0
    %v3836 = vadd.f32 %v3468, %v3707
    %v3837 = vadd.f32 %v3470, %v3709
    %v3838 = vadd.f32 %v3511, %v3748
    %v3839 = vadd.f32 %v3513, %v3750
    %v3844 = vrot.slane %v3789, 4
    %v3845 = vrot.slane %v3791, 4
    %v3846 = vrot.slane %v3830, 4
    %v3847 = vrot.slane %v3832, 4
    %v3852 = vadd.f32 %v3558, %v3844
    %v3853 = vadd.f32 %v3560, %v3845
    %v3854 = vadd.f32 %v3601, %v3846
    %v3855 = vadd.f32 %v3603, %v3847
    %v3860 = vrot.slane %v3852, 4
    %v3861 = vrot.slane %v3853, 4
    %v3862 = vrot.slane %v3854, 4
    %v3863 = vrot.slane %v3855, 4
    %v3868 = vsel %vm1509, %v3836, %v3860
    %v3869 = vsel %vm1509, %v3837, %v3861
    %v3870 = vsel %vm1509, %v3838, %v3862
    %v3871 = vsel %vm1509, %v3839, %v3863
    %v3872 = vxor.u32 %v3868, 2147483648
    %v3873 = vxor.u32 %v3869, 2147483648
    %v3874 = vxor.u32 %v3870, 2147483648
    %v3875 = vmul.f32 %v3872, 1.442695
    %v3876 = vpow.pop %v3875
    %v3877 = vmul.f32 %v3873, 1.442695
    %v3878 = vpow.pop %v3877
    %v3879 = vmul.f32 %v3874, 1.442695
    %v3880 = vpow.pop %v3879
    %v3881 = vadd.f32 %v3876, 1.0
    %v3882 = vadd.f32 %v3878, 1.0
    %v3883 = vadd.f32 %v3880, 1.0
    %v3884 = vrcp.pop %v3881
    %v3885 = vmul.f32 1.0, %v3884
    %v3886 = vrcp.pop %v3882
    %v3887 = vmul.f32 1.0, %v3886
    %v3888 = vrcp.pop %v3883
    %v3889 = vmul.f32 1.0, %v3888
    %v3890 = vtanh.pop %v3871
    %v3891 = vmul.f32 %v3887, %v3670
    %v3892 = vmul.f32 %v3885, %v3890
    %v3893 = vadd.f32 %v3891, %v3892
    %v3894 = vtanh.pop %v3893
    %v3895 = vmul.f32 %v3889, %v3894
    %3896 = vst [vmem:[#allocation3] sm:$0x3] %v3895
    %v3898 = vrot.slane %v3895, 4
    %3900 = vst [vmem:[#allocation3 + $0x18] sm:$0xc0] %v3898
    %v3901 = vpack.c.bf16 %v3895, %v3895
    %3902 = vmatprep.subr.bf16.mxu0 %v3606
    %3903 = vmatpush1.bf16.msra.mxu0 %v3605
    %3904 = vmatprep.subr.bf16.mxu0 %v3614
    %3905 = vmatpush1.bf16.msra.mxu0 %v3613
    %3906 = vmatprep.subr.bf16.mxu0 %v3622
    %3907 = vmatpush1.bf16.msra.mxu0 %v3621
    %3908 = vmatprep.subr.bf16.mxu0 %v3630
    %3909 = vmatpush1.bf16.msra.mxu0 %v3629
    %3910 = vmatprep.subr.bf16.mxu0 %v3638
    %3911 = vmatpush1.bf16.msra.mxu0 %v3637
    %3912 = vmatprep.subr.bf16.mxu0 %v3646
    %3913 = vmatpush1.bf16.msra.mxu0 %v3645
    %3914 = vmatprep.subr.bf16.mxu0 %v3654
    %3915 = vmatpush1.bf16.msra.mxu0 %v3653
    %3916 = vmatprep.subr.bf16.mxu0 %v3662
    %3917 = vmatpush1.bf16.msra.mxu0 %v3661
    %3918 = vmatprep.subr.bf16.mxu0 0
    %3919 = vmatpush1.bf16.msra.mxu0 0
    %3920 = vmatprep.subr.bf16.mxu0 0
    %3921 = vmatpush1.bf16.msra.mxu0 0
    %3922 = vmatprep.subr.bf16.mxu0 0
    %3923 = vmatpush1.bf16.msra.mxu0 0
    %3924 = vmatprep.subr.bf16.mxu0 0
    %3925 = vmatpush1.bf16.msra.mxu0 0
    %3926 = vmatprep.subr.bf16.mxu0 0
    %3927 = vmatpush1.bf16.msra.mxu0 0
    %3928 = vmatprep.subr.bf16.mxu0 0
    %3929 = vmatpush1.bf16.msra.mxu0 0
    %3930 = vmatprep.subr.bf16.mxu0 0
    %3931 = vmatpush1.bf16.msra.mxu0 0
    %3932 = vmatprep.subr.bf16.mxu0 0
    %3933 = vmatpush1.bf16.msra.mxu0 0
    %3934 = vmatprep.mubr.bf16.mxu0 0
    %3935 = vmatmul.mubr.bf16.gmra.mrb[0].mxu0 %v3901
    %v3936 = vpop.f32.mrb[0].mxu0
    %v3937 = vadd.f32 0.0, %v3936
    %v3938 = vpop.f32.mrb[0].mxu0
    %v3939 = vadd.f32 0.0, %v3938
    %v3940 = vpop.f32.mrb[0].mxu0
    %v3941 = vpop.f32.mrb[0].mxu0
    %3942 = vdwg.mxu0
    %3943 = vmatprep.subr.bf16.mxu0 %v3608
    %3944 = vmatpush1.bf16.msra.mxu0 %v3607
    %3945 = vmatprep.subr.bf16.mxu0 %v3616
    %3946 = vmatpush1.bf16.msra.mxu0 %v3615
    %3947 = vmatprep.subr.bf16.mxu0 %v3624
    %3948 = vmatpush1.bf16.msra.mxu0 %v3623
    %3949 = vmatprep.subr.bf16.mxu0 %v3632
    %3950 = vmatpush1.bf16.msra.mxu0 %v3631
    %3951 = vmatprep.subr.bf16.mxu0 %v3640
    %3952 = vmatpush1.bf16.msra.mxu0 %v3639
    %3953 = vmatprep.subr.bf16.mxu0 %v3648
    %3954 = vmatpush1.bf16.msra.mxu0 %v3647
    %3955 = vmatprep.subr.bf16.mxu0 %v3656
    %3956 = vmatpush1.bf16.msra.mxu0 %v3655
    %3957 = vmatprep.subr.bf16.mxu0 %v3664
    %3958 = vmatpush1.bf16.msra.mxu0 %v3663
    %3959 = vmatprep.subr.bf16.mxu0 0
    %3960 = vmatpush1.bf16.msra.mxu0 0
    %3961 = vmatprep.subr.bf16.mxu0 0
    %3962 = vmatpush1.bf16.msra.mxu0 0
    %3963 = vmatprep.subr.bf16.mxu0 0
    %3964 = vmatpush1.bf16.msra.mxu0 0
    %3965 = vmatprep.subr.bf16.mxu0 0
    %3966 = vmatpush1.bf16.msra.mxu0 0
    %3967 = vmatprep.subr.bf16.mxu0 0
    %3968 = vmatpush1.bf16.msra.mxu0 0
    %3969 = vmatprep.subr.bf16.mxu0 0
    %3970 = vmatpush1.bf16.msra.mxu0 0
    %3971 = vmatprep.subr.bf16.mxu0 0
    %3972 = vmatpush1.bf16.msra.mxu0 0
    %3973 = vmatprep.subr.bf16.mxu0 0
    %3974 = vmatpush1.bf16.msra.mxu0 0
    %3975 = vmatprep.mubr.bf16.mxu0 0
    %3976 = vmatmul.mubr.bf16.gmra.mrb[0].mxu0 %v3901
    %v3977 = vpop.f32.mrb[0].mxu0
    %v3978 = vadd.f32 0.0, %v3977
    %v3979 = vpop.f32.mrb[0].mxu0
    %v3980 = vadd.f32 0.0, %v3979
    %v3981 = vpop.f32.mrb[0].mxu0
    %v3982 = vpop.f32.mrb[0].mxu0
    %3983 = vdwg.mxu0
    %3984 = vmatprep.subr.bf16.mxu0 %v3610
    %3985 = vmatpush1.bf16.msra.mxu0 %v3609
    %3986 = vmatprep.subr.bf16.mxu0 %v3618
    %3987 = vmatpush1.bf16.msra.mxu0 %v3617
    %3988 = vmatprep.subr.bf16.mxu0 %v3626
    %3989 = vmatpush1.bf16.msra.mxu0 %v3625
    %3990 = vmatprep.subr.bf16.mxu0 %v3634
    %3991 = vmatpush1.bf16.msra.mxu0 %v3633
    %3992 = vmatprep.subr.bf16.mxu0 %v3642
    %3993 = vmatpush1.bf16.msra.mxu0 %v3641
    %3994 = vmatprep.subr.bf16.mxu0 %v3650
    %3995 = vmatpush1.bf16.msra.mxu0 %v3649
    %3996 = vmatprep.subr.bf16.mxu0 %v3658
    %3997 = vmatpush1.bf16.msra.mxu0 %v3657
    %3998 = vmatprep.subr.bf16.mxu0 %v3666
    %3999 = vmatpush1.bf16.msra.mxu0 %v3665
    %4000 = vmatprep.subr.bf16.mxu0 0
    %4001 = vmatpush1.bf16.msra.mxu0 0
    %4002 = vmatprep.subr.bf16.mxu0 0
    %4003 = vmatpush1.bf16.msra.mxu0 0
    %4004 = vmatprep.subr.bf16.mxu0 0
    %4005 = vmatpush1.bf16.msra.mxu0 0
    %4006 = vmatprep.subr.bf16.mxu0 0
    %4007 = vmatpush1.bf16.msra.mxu0 0
    %4008 = vmatprep.subr.bf16.mxu0 0
    %4009 = vmatpush1.bf16.msra.mxu0 0
    %4010 = vmatprep.subr.bf16.mxu0 0
    %4011 = vmatpush1.bf16.msra.mxu0 0
    %4012 = vmatprep.subr.bf16.mxu0 0
    %4013 = vmatpush1.bf16.msra.mxu0 0
    %4014 = vmatprep.subr.bf16.mxu0 0
    %4015 = vmatpush1.bf16.msra.mxu0 0
    %4016 = vmatprep.mubr.bf16.mxu0 0
    %4017 = vmatmul.mubr.bf16.gmra.mrb[0].mxu0 %v3901
    %v4018 = vpop.f32.mrb[0].mxu0
    %v4019 = vadd.f32 0.0, %v4018
    %v4020 = vpop.f32.mrb[0].mxu0
    %v4021 = vadd.f32 0.0, %v4020
    %v4022 = vpop.f32.mrb[0].mxu0
    %v4023 = vpop.f32.mrb[0].mxu0
    %4024 = vdwg.mxu0
    %4025 = vmatprep.subr.bf16.mxu0 %v3612
    %4026 = vmatpush1.bf16.msra.mxu0 %v3611
    %4027 = vmatprep.subr.bf16.mxu0 %v3620
    %4028 = vmatpush1.bf16.msra.mxu0 %v3619
    %4029 = vmatprep.subr.bf16.mxu0 %v3628
    %4030 = vmatpush1.bf16.msra.mxu0 %v3627
    %4031 = vmatprep.subr.bf16.mxu0 %v3636
    %4032 = vmatpush1.bf16.msra.mxu0 %v3635
    %4033 = vmatprep.subr.bf16.mxu0 %v3644
    %4034 = vmatpush1.bf16.msra.mxu0 %v3643
    %4035 = vmatprep.subr.bf16.mxu0 %v3652
    %4036 = vmatpush1.bf16.msra.mxu0 %v3651
    %4037 = vmatprep.subr.bf16.mxu0 %v3660
    %4038 = vmatpush1.bf16.msra.mxu0 %v3659
    %4039 = vmatprep.subr.bf16.mxu0 %v3668
    %4040 = vmatpush1.bf16.msra.mxu0 %v3667
    %4041 = vmatprep.subr.bf16.mxu0 0
    %4042 = vmatpush1.bf16.msra.mxu0 0
    %4043 = vmatprep.subr.bf16.mxu0 0
    %4044 = vmatpush1.bf16.msra.mxu0 0
    %4045 = vmatprep.subr.bf16.mxu0 0
    %4046 = vmatpush1.bf16.msra.mxu0 0
    %4047 = vmatprep.subr.bf16.mxu0 0
    %4048 = vmatpush1.bf16.msra.mxu0 0
    %4049 = vmatprep.subr.bf16.mxu0 0
    %4050 = vmatpush1.bf16.msra.mxu0 0
    %4051 = vmatprep.subr.bf16.mxu0 0
    %4052 = vmatpush1.bf16.msra.mxu0 0
    %4053 = vmatprep.subr.bf16.mxu0 0
    %4054 = vmatpush1.bf16.msra.mxu0 0
    %4055 = vmatprep.subr.bf16.mxu0 0
    %4056 = vmatpush1.bf16.msra.mxu0 0
    %4057 = vmatprep.mubr.bf16.mxu0 0
    %4058 = vmatmul.mubr.bf16.gmra.mrb[0].mxu0 %v3901
    %v4059 = vpop.f32.mrb[0].mxu0
    %v4060 = vadd.f32 0.0, %v4059
    %v4061 = vpop.f32.mrb[0].mxu0
    %v4062 = vadd.f32 0.0, %v4061
    %v4063 = vpop.f32.mrb[0].mxu0
    %v4064 = vpop.f32.mrb[0].mxu0
    %4065 = vdwg.mxu0
    %v4070 = vrot.slane %v3937, 6
    %v4071 = vrot.slane %v3939, 6
    %v4072 = vrot.slane %v3978, 6
    %v4073 = vrot.slane %v3980, 6
    %v4078 = vadd.f32 %v3468, %v4070
    %v4079 = vadd.f32 %v3470, %v4071
    %v4080 = vadd.f32 %v3511, %v4072
    %v4081 = vadd.f32 %v3513, %v4073
    %v4086 = vrot.slane %v4019, 6
    %v4087 = vrot.slane %v4021, 6
    %v4088 = vrot.slane %v4060, 6
    %v4089 = vrot.slane %v4062, 6
    %v4094 = vadd.f32 %v3558, %v4086
    %v4095 = vadd.f32 %v3560, %v4087
    %v4096 = vadd.f32 %v3601, %v4088
    %v4097 = vadd.f32 %v3603, %v4089
    %v4102 = vrot.slane %v4078, 2
    %v4103 = vrot.slane %v4079, 2
    %v4104 = vrot.slane %v4080, 2
    %v4105 = vrot.slane %v4081, 2
    %v4114 = vrot.slane %v4094, 2
    %v4115 = vrot.slane %v4095, 2
    %v4116 = vrot.slane %v4096, 2
    %v4117 = vrot.slane %v4097, 2
    %v4122 = vsel %vm1509, %v4102, %v4114
    %v4123 = vsel %vm1509, %v4103, %v4115
    %v4124 = vsel %vm1509, %v4104, %v4116
    %v4125 = vsel %vm1509, %v4105, %v4117
    %v4126 = vxor.u32 %v4122, 2147483648
    %v4127 = vxor.u32 %v4123, 2147483648
    %v4128 = vxor.u32 %v4124, 2147483648
    %v4129 = vmul.f32 %v4126, 1.442695
    %v4130 = vpow.pop %v4129
    %v4131 = vmul.f32 %v4127, 1.442695
    %v4132 = vpow.pop %v4131
    %v4133 = vmul.f32 %v4128, 1.442695
    %v4134 = vpow.pop %v4133
    %v4135 = vadd.f32 %v4130, 1.0
    %v4136 = vadd.f32 %v4132, 1.0
    %v4137 = vadd.f32 %v4134, 1.0
    %v4138 = vrcp.pop %v4135
    %v4139 = vmul.f32 1.0, %v4138
    %v4140 = vrcp.pop %v4136
    %v4141 = vmul.f32 1.0, %v4140
    %v4142 = vrcp.pop %v4137
    %v4143 = vmul.f32 1.0, %v4142
    %v4144 = vtanh.pop %v4125
    %v4145 = vmul.f32 %v4141, %v3893
    %v4146 = vmul.f32 %v4139, %v4144
    %v4147 = vadd.f32 %v4145, %v4146
    %v4148 = vtanh.pop %v4147
    %v4149 = vmul.f32 %v4143, %v4148
    %v4151 = vrot.slane %v4149, 6
    %4153 = vst [vmem:[#allocation3] sm:$0xc] %v4151
    %4154 = vst [vmem:[#allocation3 + $0x18] sm:$0x30] %v4151
    %v4155 = vpack.c.bf16 %v4149, %v4149
    %4156 = vmatprep.subr.bf16.mxu0 %v3606
    %4157 = vmatpush1.bf16.msra.mxu0 %v3605
    %4158 = vmatprep.subr.bf16.mxu0 %v3614
    %4159 = vmatpush1.bf16.msra.mxu0 %v3613
    %4160 = vmatprep.subr.bf16.mxu0 %v3622
    %4161 = vmatpush1.bf16.msra.mxu0 %v3621
    %4162 = vmatprep.subr.bf16.mxu0 %v3630
    %4163 = vmatpush1.bf16.msra.mxu0 %v3629
    %4164 = vmatprep.subr.bf16.mxu0 %v3638
    %4165 = vmatpush1.bf16.msra.mxu0 %v3637
    %4166 = vmatprep.subr.bf16.mxu0 %v3646
    %4167 = vmatpush1.bf16.msra.mxu0 %v3645
    %4168 = vmatprep.subr.bf16.mxu0 %v3654
    %4169 = vmatpush1.bf16.msra.mxu0 %v3653
    %4170 = vmatprep.subr.bf16.mxu0 %v3662
    %4171 = vmatpush1.bf16.msra.mxu0 %v3661
    %4172 = vmatprep.subr.bf16.mxu0 0
    %4173 = vmatpush1.bf16.msra.mxu0 0
    %4174 = vmatprep.subr.bf16.mxu0 0
    %4175 = vmatpush1.bf16.msra.mxu0 0
    %4176 = vmatprep.subr.bf16.mxu0 0
    %4177 = vmatpush1.bf16.msra.mxu0 0
    %4178 = vmatprep.subr.bf16.mxu0 0
    %4179 = vmatpush1.bf16.msra.mxu0 0
    %4180 = vmatprep.subr.bf16.mxu0 0
    %4181 = vmatpush1.bf16.msra.mxu0 0
    %4182 = vmatprep.subr.bf16.mxu0 0
    %4183 = vmatpush1.bf16.msra.mxu0 0
    %4184 = vmatprep.subr.bf16.mxu0 0
    %4185 = vmatpush1.bf16.msra.mxu0 0
    %4186 = vmatprep.subr.bf16.mxu0 0
    %4187 = vmatpush1.bf16.msra.mxu0 0
    %4188 = vmatprep.mubr.bf16.mxu0 0
    %4189 = vmatmul.mubr.bf16.gmra.mrb[0].mxu0 %v4155
    %v4190 = vpop.f32.mrb[0].mxu0
    %v4191 = vadd.f32 0.0, %v4190
    %v4192 = vpop.f32.mrb[0].mxu0
    %v4193 = vadd.f32 0.0, %v4192
    %v4194 = vpop.f32.mrb[0].mxu0
    %v4195 = vpop.f32.mrb[0].mxu0
    %4196 = vdwg.mxu0
    %4197 = vmatprep.subr.bf16.mxu0 %v3608
    %4198 = vmatpush1.bf16.msra.mxu0 %v3607
    %4199 = vmatprep.subr.bf16.mxu0 %v3616
    %4200 = vmatpush1.bf16.msra.mxu0 %v3615
    %4201 = vmatprep.subr.bf16.mxu0 %v3624
    %4202 = vmatpush1.bf16.msra.mxu0 %v3623
    %4203 = vmatprep.subr.bf16.mxu0 %v3632
    %4204 = vmatpush1.bf16.msra.mxu0 %v3631
    %4205 = vmatprep.subr.bf16.mxu0 %v3640
    %4206 = vmatpush1.bf16.msra.mxu0 %v3639
    %4207 = vmatprep.subr.bf16.mxu0 %v3648
    %4208 = vmatpush1.bf16.msra.mxu0 %v3647
    %4209 = vmatprep.subr.bf16.mxu0 %v3656
    %4210 = vmatpush1.bf16.msra.mxu0 %v3655
    %4211 = vmatprep.subr.bf16.mxu0 %v3664
    %4212 = vmatpush1.bf16.msra.mxu0 %v3663
    %4213 = vmatprep.subr.bf16.mxu0 0
    %4214 = vmatpush1.bf16.msra.mxu0 0
    %4215 = vmatprep.subr.bf16.mxu0 0
    %4216 = vmatpush1.bf16.msra.mxu0 0
    %4217 = vmatprep.subr.bf16.mxu0 0
    %4218 = vmatpush1.bf16.msra.mxu0 0
    %4219 = vmatprep.subr.bf16.mxu0 0
    %4220 = vmatpush1.bf16.msra.mxu0 0
    %4221 = vmatprep.subr.bf16.mxu0 0
    %4222 = vmatpush1.bf16.msra.mxu0 0
    %4223 = vmatprep.subr.bf16.mxu0 0
    %4224 = vmatpush1.bf16.msra.mxu0 0
    %4225 = vmatprep.subr.bf16.mxu0 0
    %4226 = vmatpush1.bf16.msra.mxu0 0
    %4227 = vmatprep.subr.bf16.mxu0 0
    %4228 = vmatpush1.bf16.msra.mxu0 0
    %4229 = vmatprep.mubr.bf16.mxu0 0
    %4230 = vmatmul.mubr.bf16.gmra.mrb[0].mxu0 %v4155
    %v4231 = vpop.f32.mrb[0].mxu0
    %v4232 = vadd.f32 0.0, %v4231
    %v4233 = vpop.f32.mrb[0].mxu0
    %v4234 = vadd.f32 0.0, %v4233
    %v4235 = vpop.f32.mrb[0].mxu0
    %v4236 = vpop.f32.mrb[0].mxu0
    %4237 = vdwg.mxu0
    %4238 = vmatprep.subr.bf16.mxu0 %v3610
    %4239 = vmatpush1.bf16.msra.mxu0 %v3609
    %4240 = vmatprep.subr.bf16.mxu0 %v3618
    %4241 = vmatpush1.bf16.msra.mxu0 %v3617
    %4242 = vmatprep.subr.bf16.mxu0 %v3626
    %4243 = vmatpush1.bf16.msra.mxu0 %v3625
    %4244 = vmatprep.subr.bf16.mxu0 %v3634
    %4245 = vmatpush1.bf16.msra.mxu0 %v3633
    %4246 = vmatprep.subr.bf16.mxu0 %v3642
    %4247 = vmatpush1.bf16.msra.mxu0 %v3641
    %4248 = vmatprep.subr.bf16.mxu0 %v3650
    %4249 = vmatpush1.bf16.msra.mxu0 %v3649
    %4250 = vmatprep.subr.bf16.mxu0 %v3658
    %4251 = vmatpush1.bf16.msra.mxu0 %v3657
    %4252 = vmatprep.subr.bf16.mxu0 %v3666
    %4253 = vmatpush1.bf16.msra.mxu0 %v3665
    %4254 = vmatprep.subr.bf16.mxu0 0
    %4255 = vmatpush1.bf16.msra.mxu0 0
    %4256 = vmatprep.subr.bf16.mxu0 0
    %4257 = vmatpush1.bf16.msra.mxu0 0
    %4258 = vmatprep.subr.bf16.mxu0 0
    %4259 = vmatpush1.bf16.msra.mxu0 0
    %4260 = vmatprep.subr.bf16.mxu0 0
    %4261 = vmatpush1.bf16.msra.mxu0 0
    %4262 = vmatprep.subr.bf16.mxu0 0
    %4263 = vmatpush1.bf16.msra.mxu0 0
    %4264 = vmatprep.subr.bf16.mxu0 0
    %4265 = vmatpush1.bf16.msra.mxu0 0
    %4266 = vmatprep.subr.bf16.mxu0 0
    %4267 = vmatpush1.bf16.msra.mxu0 0
    %4268 = vmatprep.subr.bf16.mxu0 0
    %4269 = vmatpush1.bf16.msra.mxu0 0
    %4270 = vmatprep.mubr.bf16.mxu0 0
    %4271 = vmatmul.mubr.bf16.gmra.mrb[0].mxu0 %v4155
    %v4272 = vpop.f32.mrb[0].mxu0
    %v4273 = vadd.f32 0.0, %v4272
    %v4274 = vpop.f32.mrb[0].mxu0
    %v4275 = vadd.f32 0.0, %v4274
    %v4276 = vpop.f32.mrb[0].mxu0
    %v4277 = vpop.f32.mrb[0].mxu0
    %4278 = vdwg.mxu0
    %4279 = vmatprep.subr.bf16.mxu0 %v3612
    %4280 = vmatpush1.bf16.msra.mxu0 %v3611
    %4281 = vmatprep.subr.bf16.mxu0 %v3620
    %4282 = vmatpush1.bf16.msra.mxu0 %v3619
    %4283 = vmatprep.subr.bf16.mxu0 %v3628
    %4284 = vmatpush1.bf16.msra.mxu0 %v3627
    %4285 = vmatprep.subr.bf16.mxu0 %v3636
    %4286 = vmatpush1.bf16.msra.mxu0 %v3635
    %4287 = vmatprep.subr.bf16.mxu0 %v3644
    %4288 = vmatpush1.bf16.msra.mxu0 %v3643
    %4289 = vmatprep.subr.bf16.mxu0 %v3652
    %4290 = vmatpush1.bf16.msra.mxu0 %v3651
    %4291 = vmatprep.subr.bf16.mxu0 %v3660
    %4292 = vmatpush1.bf16.msra.mxu0 %v3659
    %4293 = vmatprep.subr.bf16.mxu0 %v3668
    %4294 = vmatpush1.bf16.msra.mxu0 %v3667
    %4295 = vmatprep.subr.bf16.mxu0 0
    %4296 = vmatpush1.bf16.msra.mxu0 0
    %4297 = vmatprep.subr.bf16.mxu0 0
    %4298 = vmatpush1.bf16.msra.mxu0 0
    %4299 = vmatprep.subr.bf16.mxu0 0
    %4300 = vmatpush1.bf16.msra.mxu0 0
    %4301 = vmatprep.subr.bf16.mxu0 0
    %4302 = vmatpush1.bf16.msra.mxu0 0
    %4303 = vmatprep.subr.bf16.mxu0 0
    %4304 = vmatpush1.bf16.msra.mxu0 0
    %4305 = vmatprep.subr.bf16.mxu0 0
    %4306 = vmatpush1.bf16.msra.mxu0 0
    %4307 = vmatprep.subr.bf16.mxu0 0
    %4308 = vmatpush1.bf16.msra.mxu0 0
    %4309 = vmatprep.subr.bf16.mxu0 0
    %4310 = vmatpush1.bf16.msra.mxu0 0
    %4311 = vmatprep.mubr.bf16.mxu0 0
    %4312 = vmatmul.mubr.bf16.gmra.mrb[0].mxu0 %v4155
    %v4313 = vpop.f32.mrb[0].mxu0
    %v4314 = vadd.f32 0.0, %v4313
    %v4315 = vpop.f32.mrb[0].mxu0
    %v4316 = vadd.f32 0.0, %v4315
    %v4317 = vpop.f32.mrb[0].mxu0
    %v4318 = vpop.f32.mrb[0].mxu0
    %4319 = vdwg.mxu0
    %v4324 = vrot.slane %v4191, 4
    %v4325 = vrot.slane %v4193, 4
    %v4326 = vrot.slane %v4232, 4
    %v4327 = vrot.slane %v4234, 4
    %v4332 = vadd.f32 %v3468, %v4324
    %v4333 = vadd.f32 %v3470, %v4325
    %v4334 = vadd.f32 %v3511, %v4326
    %v4335 = vadd.f32 %v3513, %v4327
    %v4336 = vadd.f32 %v3558, %v4273
    %v4337 = vadd.f32 %v3560, %v4275
    %v4338 = vadd.f32 %v3601, %v4314
    %v4339 = vadd.f32 %v3603, %v4316
    %v4344 = vrot.slane %v4332, 4
    %v4345 = vrot.slane %v4333, 4
    %v4346 = vrot.slane %v4334, 4
    %v4347 = vrot.slane %v4335, 4
    %v4352 = vsel %vm1509, %v4344, %v4336
    %v4353 = vsel %vm1509, %v4345, %v4337
    %v4354 = vsel %vm1509, %v4346, %v4338
    %v4355 = vsel %vm1509, %v4347, %v4339
    %v4356 = vxor.u32 %v4352, 2147483648
    %v4357 = vxor.u32 %v4353, 2147483648
    %v4358 = vxor.u32 %v4354, 2147483648
    %v4359 = vmul.f32 %v4356, 1.442695
    %v4360 = vpow.pop %v4359
    %v4361 = vmul.f32 %v4357, 1.442695
    %v4362 = vpow.pop %v4361
    %v4363 = vmul.f32 %v4358, 1.442695
    %v4364 = vpow.pop %v4363
    %v4365 = vadd.f32 %v4360, 1.0
    %v4366 = vadd.f32 %v4362, 1.0
    %v4367 = vadd.f32 %v4364, 1.0
    %v4368 = vrcp.pop %v4365
    %v4369 = vmul.f32 1.0, %v4368
    %v4370 = vrcp.pop %v4366
    %v4371 = vmul.f32 1.0, %v4370
    %v4372 = vrcp.pop %v4367
    %v4373 = vmul.f32 1.0, %v4372
    %v4374 = vtanh.pop %v4355
    %v4375 = vmul.f32 %v4371, %v4147
    %v4376 = vmul.f32 %v4369, %v4374
    %v4377 = vadd.f32 %v4375, %v4376
    %v4378 = vtanh.pop %v4377
    %v4379 = vmul.f32 %v4373, %v4378
    %v4381 = vrot.slane %v4379, 4
    %4383 = vst [vmem:[#allocation3] sm:$0x30] %v4381
    %4384 = vst [vmem:[#allocation3 + $0x18] sm:$0xc] %v4379
    %v4385 = vpack.c.bf16 %v4379, %v4379
    %4386 = vmatprep.subr.bf16.mxu0 %v3606
    %4387 = vmatpush1.bf16.msra.mxu0 %v3605
    %4388 = vmatprep.subr.bf16.mxu0 %v3614
    %4389 = vmatpush1.bf16.msra.mxu0 %v3613
    %4390 = vmatprep.subr.bf16.mxu0 %v3622
    %4391 = vmatpush1.bf16.msra.mxu0 %v3621
    %4392 = vmatprep.subr.bf16.mxu0 %v3630
    %4393 = vmatpush1.bf16.msra.mxu0 %v3629
    %4394 = vmatprep.subr.bf16.mxu0 %v3638
    %4395 = vmatpush1.bf16.msra.mxu0 %v3637
    %4396 = vmatprep.subr.bf16.mxu0 %v3646
    %4397 = vmatpush1.bf16.msra.mxu0 %v3645
    %4398 = vmatprep.subr.bf16.mxu0 %v3654
    %4399 = vmatpush1.bf16.msra.mxu0 %v3653
    %4400 = vmatprep.subr.bf16.mxu0 %v3662
    %4401 = vmatpush1.bf16.msra.mxu0 %v3661
    %4402 = vmatprep.subr.bf16.mxu0 0
    %4403 = vmatpush1.bf16.msra.mxu0 0
    %4404 = vmatprep.subr.bf16.mxu0 0
    %4405 = vmatpush1.bf16.msra.mxu0 0
    %4406 = vmatprep.subr.bf16.mxu0 0
    %4407 = vmatpush1.bf16.msra.mxu0 0
    %4408 = vmatprep.subr.bf16.mxu0 0
    %4409 = vmatpush1.bf16.msra.mxu0 0
    %4410 = vmatprep.subr.bf16.mxu0 0
    %4411 = vmatpush1.bf16.msra.mxu0 0
    %4412 = vmatprep.subr.bf16.mxu0 0
    %4413 = vmatpush1.bf16.msra.mxu0 0
    %4414 = vmatprep.subr.bf16.mxu0 0
    %4415 = vmatpush1.bf16.msra.mxu0 0
    %4416 = vmatprep.subr.bf16.mxu0 0
    %4417 = vmatpush1.bf16.msra.mxu0 0
    %4418 = vmatprep.mubr.bf16.mxu0 0
    %4419 = vmatmul.mubr.bf16.gmra.mrb[0].mxu0 %v4385
    %v4420 = vpop.f32.mrb[0].mxu0
    %v4421 = vadd.f32 0.0, %v4420
    %v4422 = vpop.f32.mrb[0].mxu0
    %v4423 = vadd.f32 0.0, %v4422
    %v4424 = vpop.f32.mrb[0].mxu0
    %v4425 = vpop.f32.mrb[0].mxu0
    %4426 = vdwg.mxu0
    %4427 = vmatprep.subr.bf16.mxu0 %v3608
    %4428 = vmatpush1.bf16.msra.mxu0 %v3607
    %4429 = vmatprep.subr.bf16.mxu0 %v3616
    %4430 = vmatpush1.bf16.msra.mxu0 %v3615
    %4431 = vmatprep.subr.bf16.mxu0 %v3624
    %4432 = vmatpush1.bf16.msra.mxu0 %v3623
    %4433 = vmatprep.subr.bf16.mxu0 %v3632
    %4434 = vmatpush1.bf16.msra.mxu0 %v3631
    %4435 = vmatprep.subr.bf16.mxu0 %v3640
    %4436 = vmatpush1.bf16.msra.mxu0 %v3639
    %4437 = vmatprep.subr.bf16.mxu0 %v3648
    %4438 = vmatpush1.bf16.msra.mxu0 %v3647
    %4439 = vmatprep.subr.bf16.mxu0 %v3656
    %4440 = vmatpush1.bf16.msra.mxu0 %v3655
    %4441 = vmatprep.subr.bf16.mxu0 %v3664
    %4442 = vmatpush1.bf16.msra.mxu0 %v3663
    %4443 = vmatprep.subr.bf16.mxu0 0
    %4444 = vmatpush1.bf16.msra.mxu0 0
    %4445 = vmatprep.subr.bf16.mxu0 0
    %4446 = vmatpush1.bf16.msra.mxu0 0
    %4447 = vmatprep.subr.bf16.mxu0 0
    %4448 = vmatpush1.bf16.msra.mxu0 0
    %4449 = vmatprep.subr.bf16.mxu0 0
    %4450 = vmatpush1.bf16.msra.mxu0 0
    %4451 = vmatprep.subr.bf16.mxu0 0
    %4452 = vmatpush1.bf16.msra.mxu0 0
    %4453 = vmatprep.subr.bf16.mxu0 0
    %4454 = vmatpush1.bf16.msra.mxu0 0
    %4455 = vmatprep.subr.bf16.mxu0 0
    %4456 = vmatpush1.bf16.msra.mxu0 0
    %4457 = vmatprep.subr.bf16.mxu0 0
    %4458 = vmatpush1.bf16.msra.mxu0 0
    %4459 = vmatprep.mubr.bf16.mxu0 0
    %4460 = vmatmul.mubr.bf16.gmra.mrb[0].mxu0 %v4385
    %v4461 = vpop.f32.mrb[0].mxu0
    %v4462 = vadd.f32 0.0, %v4461
    %v4463 = vpop.f32.mrb[0].mxu0
    %v4464 = vadd.f32 0.0, %v4463
    %v4465 = vpop.f32.mrb[0].mxu0
    %v4466 = vpop.f32.mrb[0].mxu0
    %4467 = vdwg.mxu0
    %4468 = vmatprep.subr.bf16.mxu0 %v3610
    %4469 = vmatpush1.bf16.msra.mxu0 %v3609
    %4470 = vmatprep.subr.bf16.mxu0 %v3618
    %4471 = vmatpush1.bf16.msra.mxu0 %v3617
    %4472 = vmatprep.subr.bf16.mxu0 %v3626
    %4473 = vmatpush1.bf16.msra.mxu0 %v3625
    %4474 = vmatprep.subr.bf16.mxu0 %v3634
    %4475 = vmatpush1.bf16.msra.mxu0 %v3633
    %4476 = vmatprep.subr.bf16.mxu0 %v3642
    %4477 = vmatpush1.bf16.msra.mxu0 %v3641
    %4478 = vmatprep.subr.bf16.mxu0 %v3650
    %4479 = vmatpush1.bf16.msra.mxu0 %v3649
    %4480 = vmatprep.subr.bf16.mxu0 %v3658
    %4481 = vmatpush1.bf16.msra.mxu0 %v3657
    %4482 = vmatprep.subr.bf16.mxu0 %v3666
    %4483 = vmatpush1.bf16.msra.mxu0 %v3665
    %4484 = vmatprep.subr.bf16.mxu0 0
    %4485 = vmatpush1.bf16.msra.mxu0 0
    %4486 = vmatprep.subr.bf16.mxu0 0
    %4487 = vmatpush1.bf16.msra.mxu0 0
    %4488 = vmatprep.subr.bf16.mxu0 0
    %4489 = vmatpush1.bf16.msra.mxu0 0
    %4490 = vmatprep.subr.bf16.mxu0 0
    %4491 = vmatpush1.bf16.msra.mxu0 0
    %4492 = vmatprep.subr.bf16.mxu0 0
    %4493 = vmatpush1.bf16.msra.mxu0 0
    %4494 = vmatprep.subr.bf16.mxu0 0
    %4495 = vmatpush1.bf16.msra.mxu0 0
    %4496 = vmatprep.subr.bf16.mxu0 0
    %4497 = vmatpush1.bf16.msra.mxu0 0
    %4498 = vmatprep.subr.bf16.mxu0 0
    %4499 = vmatpush1.bf16.msra.mxu0 0
    %4500 = vmatprep.mubr.bf16.mxu0 0
    %4501 = vmatmul.mubr.bf16.gmra.mrb[0].mxu0 %v4385
    %v4502 = vpop.f32.mrb[0].mxu0
    %v4503 = vadd.f32 0.0, %v4502
    %v4504 = vpop.f32.mrb[0].mxu0
    %v4505 = vadd.f32 0.0, %v4504
    %v4506 = vpop.f32.mrb[0].mxu0
    %v4507 = vpop.f32.mrb[0].mxu0
    %4508 = vdwg.mxu0
    %4509 = vmatprep.subr.bf16.mxu0 %v3612
    %4510 = vmatpush1.bf16.msra.mxu0 %v3611
    %4511 = vmatprep.subr.bf16.mxu0 %v3620
    %4512 = vmatpush1.bf16.msra.mxu0 %v3619
    %4513 = vmatprep.subr.bf16.mxu0 %v3628
    %4514 = vmatpush1.bf16.msra.mxu0 %v3627
    %4515 = vmatprep.subr.bf16.mxu0 %v3636
    %4516 = vmatpush1.bf16.msra.mxu0 %v3635
    %4517 = vmatprep.subr.bf16.mxu0 %v3644
    %4518 = vmatpush1.bf16.msra.mxu0 %v3643
    %4519 = vmatprep.subr.bf16.mxu0 %v3652
    %4520 = vmatpush1.bf16.msra.mxu0 %v3651
    %4521 = vmatprep.subr.bf16.mxu0 %v3660
    %4522 = vmatpush1.bf16.msra.mxu0 %v3659
    %4523 = vmatprep.subr.bf16.mxu0 %v3668
    %4524 = vmatpush1.bf16.msra.mxu0 %v3667
    %4525 = vmatprep.subr.bf16.mxu0 0
    %4526 = vmatpush1.bf16.msra.mxu0 0
    %4527 = vmatprep.subr.bf16.mxu0 0
    %4528 = vmatpush1.bf16.msra.mxu0 0
    %4529 = vmatprep.subr.bf16.mxu0 0
    %4530 = vmatpush1.bf16.msra.mxu0 0
    %4531 = vmatprep.subr.bf16.mxu0 0
    %4532 = vmatpush1.bf16.msra.mxu0 0
    %4533 = vmatprep.subr.bf16.mxu0 0
    %4534 = vmatpush1.bf16.msra.mxu0 0
    %4535 = vmatprep.subr.bf16.mxu0 0
    %4536 = vmatpush1.bf16.msra.mxu0 0
    %4537 = vmatprep.subr.bf16.mxu0 0
    %4538 = vmatpush1.bf16.msra.mxu0 0
    %4539 = vmatprep.subr.bf16.mxu0 0
    %4540 = vmatpush1.bf16.msra.mxu0 0
    %4541 = vmatprep.mubr.bf16.mxu0 0
    %4542 = vmatmul.mubr.bf16.gmra.mrb[0].mxu0 %v4385
    %v4543 = vpop.f32.mrb[0].mxu0
    %v4544 = vadd.f32 0.0, %v4543
    %v4545 = vpop.f32.mrb[0].mxu0
    %v4546 = vadd.f32 0.0, %v4545
    %v4547 = vpop.f32.mrb[0].mxu0
    %v4548 = vpop.f32.mrb[0].mxu0
    %4549 = vdwg.mxu0
    %v4554 = vrot.slane %v4421, 2
    %v4555 = vrot.slane %v4423, 2
    %v4556 = vrot.slane %v4462, 2
    %v4557 = vrot.slane %v4464, 2
    %v4562 = vadd.f32 %v3468, %v4554
    %v4563 = vadd.f32 %v3470, %v4555
    %v4564 = vadd.f32 %v3511, %v4556
    %v4565 = vadd.f32 %v3513, %v4557
    %v4570 = vrot.slane %v4503, 2
    %v4571 = vrot.slane %v4505, 2
    %v4572 = vrot.slane %v4544, 2
    %v4573 = vrot.slane %v4546, 2
    %v4578 = vadd.f32 %v3558, %v4570
    %v4579 = vadd.f32 %v3560, %v4571
    %v4580 = vadd.f32 %v3601, %v4572
    %v4581 = vadd.f32 %v3603, %v4573
    %v4586 = vrot.slane %v4562, 6
    %v4587 = vrot.slane %v4563, 6
    %v4588 = vrot.slane %v4564, 6
    %v4589 = vrot.slane %v4565, 6
    %v4598 = vrot.slane %v4578, 6
    %v4599 = vrot.slane %v4579, 6
    %v4600 = vrot.slane %v4580, 6
    %v4601 = vrot.slane %v4581, 6
    %v4606 = vsel %vm1509, %v4586, %v4598
    %v4607 = vsel %vm1509, %v4587, %v4599
    %v4608 = vsel %vm1509, %v4588, %v4600
    %v4609 = vsel %vm1509, %v4589, %v4601
    %v4610 = vxor.u32 %v4606, 2147483648
    %v4611 = vxor.u32 %v4607, 2147483648
    %v4612 = vxor.u32 %v4608, 2147483648
    %v4613 = vmul.f32 %v4610, 1.442695
    %v4614 = vpow.pop %v4613
    %v4615 = vmul.f32 %v4611, 1.442695
    %v4616 = vpow.pop %v4615
    %v4617 = vmul.f32 %v4612, 1.442695
    %v4618 = vpow.pop %v4617
    %v4619 = vadd.f32 %v4614, 1.0
    %v4620 = vadd.f32 %v4616, 1.0
    %v4621 = vadd.f32 %v4618, 1.0
    %v4622 = vrcp.pop %v4619
    %v4623 = vmul.f32 1.0, %v4622
    %v4624 = vrcp.pop %v4620
    %v4625 = vmul.f32 1.0, %v4624
    %v4626 = vrcp.pop %v4621
    %v4627 = vmul.f32 1.0, %v4626
    %v4628 = vtanh.pop %v4609
    %v4629 = vmul.f32 %v4625, %v4377
    %v4630 = vmul.f32 %v4623, %v4628
    %v4631 = vadd.f32 %v4629, %v4630
    %v4632 = vtanh.pop %v4631
    %v4633 = vmul.f32 %v4627, %v4632
    %v4635 = vrot.slane %v4633, 2
    %4637 = vst [vmem:[#allocation3] sm:$0xc0] %v4635
    %4638 = vst [vmem:[#allocation3 + $0x18] sm:$0x3] %v4635
    %v4639 = vpack.c.bf16 %v4633, %v4633
    %4640 = vmatprep.subr.bf16.mxu0 %v3606
    %4641 = vmatpush1.bf16.msra.mxu0 %v3605
    %4642 = vmatprep.subr.bf16.mxu0 %v3614
    %4643 = vmatpush1.bf16.msra.mxu0 %v3613
    %4644 = vmatprep.subr.bf16.mxu0 %v3622
    %4645 = vmatpush1.bf16.msra.mxu0 %v3621
    %4646 = vmatprep.subr.bf16.mxu0 %v3630
    %4647 = vmatpush1.bf16.msra.mxu0 %v3629
    %4648 = vmatprep.subr.bf16.mxu0 %v3638
    %4649 = vmatpush1.bf16.msra.mxu0 %v3637
    %4650 = vmatprep.subr.bf16.mxu0 %v3646
    %4651 = vmatpush1.bf16.msra.mxu0 %v3645
    %4652 = vmatprep.subr.bf16.mxu0 %v3654
    %4653 = vmatpush1.bf16.msra.mxu0 %v3653
    %4654 = vmatprep.subr.bf16.mxu0 %v3662
    %4655 = vmatpush1.bf16.msra.mxu0 %v3661
    %4656 = vmatprep.subr.bf16.mxu0 0
    %4657 = vmatpush1.bf16.msra.mxu0 0
    %4658 = vmatprep.subr.bf16.mxu0 0
    %4659 = vmatpush1.bf16.msra.mxu0 0
    %4660 = vmatprep.subr.bf16.mxu0 0
    %4661 = vmatpush1.bf16.msra.mxu0 0
    %4662 = vmatprep.subr.bf16.mxu0 0
    %4663 = vmatpush1.bf16.msra.mxu0 0
    %4664 = vmatprep.subr.bf16.mxu0 0
    %4665 = vmatpush1.bf16.msra.mxu0 0
    %4666 = vmatprep.subr.bf16.mxu0 0
    %4667 = vmatpush1.bf16.msra.mxu0 0
    %4668 = vmatprep.subr.bf16.mxu0 0
    %4669 = vmatpush1.bf16.msra.mxu0 0
    %4670 = vmatprep.subr.bf16.mxu0 0
    %4671 = vmatpush1.bf16.msra.mxu0 0
    %4672 = vmatprep.mubr.bf16.mxu0 0
    %4673 = vmatmul.mubr.bf16.gmra.mrb[0].mxu0 %v4639
    %v4674 = vpop.f32.mrb[0].mxu0
    %v4675 = vadd.f32 0.0, %v4674
    %v4676 = vpop.f32.mrb[0].mxu0
    %v4677 = vadd.f32 0.0, %v4676
    %v4678 = vpop.f32.mrb[0].mxu0
    %v4679 = vpop.f32.mrb[0].mxu0
    %4680 = vdwg.mxu0
    %4681 = vmatprep.subr.bf16.mxu0 %v3608
    %4682 = vmatpush1.bf16.msra.mxu0 %v3607
    %4683 = vmatprep.subr.bf16.mxu0 %v3616
    %4684 = vmatpush1.bf16.msra.mxu0 %v3615
    %4685 = vmatprep.subr.bf16.mxu0 %v3624
    %4686 = vmatpush1.bf16.msra.mxu0 %v3623
    %4687 = vmatprep.subr.bf16.mxu0 %v3632
    %4688 = vmatpush1.bf16.msra.mxu0 %v3631
    %4689 = vmatprep.subr.bf16.mxu0 %v3640
    %4690 = vmatpush1.bf16.msra.mxu0 %v3639
    %4691 = vmatprep.subr.bf16.mxu0 %v3648
    %4692 = vmatpush1.bf16.msra.mxu0 %v3647
    %4693 = vmatprep.subr.bf16.mxu0 %v3656
    %4694 = vmatpush1.bf16.msra.mxu0 %v3655
    %4695 = vmatprep.subr.bf16.mxu0 %v3664
    %4696 = vmatpush1.bf16.msra.mxu0 %v3663
    %4697 = vmatprep.subr.bf16.mxu0 0
    %4698 = vmatpush1.bf16.msra.mxu0 0
    %4699 = vmatprep.subr.bf16.mxu0 0
    %4700 = vmatpush1.bf16.msra.mxu0 0
    %4701 = vmatprep.subr.bf16.mxu0 0
    %4702 = vmatpush1.bf16.msra.mxu0 0
    %4703 = vmatprep.subr.bf16.mxu0 0
    %4704 = vmatpush1.bf16.msra.mxu0 0
    %4705 = vmatprep.subr.bf16.mxu0 0
    %4706 = vmatpush1.bf16.msra.mxu0 0
    %4707 = vmatprep.subr.bf16.mxu0 0
    %4708 = vmatpush1.bf16.msra.mxu0 0
    %4709 = vmatprep.subr.bf16.mxu0 0
    %4710 = vmatpush1.bf16.msra.mxu0 0
    %4711 = vmatprep.subr.bf16.mxu0 0
    %4712 = vmatpush1.bf16.msra.mxu0 0
    %4713 = vmatprep.mubr.bf16.mxu0 0
    %4714 = vmatmul.mubr.bf16.gmra.mrb[0].mxu0 %v4639
    %v4715 = vpop.f32.mrb[0].mxu0
    %v4716 = vadd.f32 0.0, %v4715
    %v4717 = vpop.f32.mrb[0].mxu0
    %v4718 = vadd.f32 0.0, %v4717
    %v4719 = vpop.f32.mrb[0].mxu0
    %v4720 = vpop.f32.mrb[0].mxu0
    %4721 = vdwg.mxu0
    %4722 = vmatprep.subr.bf16.mxu0 %v3610
    %4723 = vmatpush1.bf16.msra.mxu0 %v3609
    %4724 = vmatprep.subr.bf16.mxu0 %v3618
    %4725 = vmatpush1.bf16.msra.mxu0 %v3617
    %4726 = vmatprep.subr.bf16.mxu0 %v3626
    %4727 = vmatpush1.bf16.msra.mxu0 %v3625
    %4728 = vmatprep.subr.bf16.mxu0 %v3634
    %4729 = vmatpush1.bf16.msra.mxu0 %v3633
    %4730 = vmatprep.subr.bf16.mxu0 %v3642
    %4731 = vmatpush1.bf16.msra.mxu0 %v3641
    %4732 = vmatprep.subr.bf16.mxu0 %v3650
    %4733 = vmatpush1.bf16.msra.mxu0 %v3649
    %4734 = vmatprep.subr.bf16.mxu0 %v3658
    %4735 = vmatpush1.bf16.msra.mxu0 %v3657
    %4736 = vmatprep.subr.bf16.mxu0 %v3666
    %4737 = vmatpush1.bf16.msra.mxu0 %v3665
    %4738 = vmatprep.subr.bf16.mxu0 0
    %4739 = vmatpush1.bf16.msra.mxu0 0
    %4740 = vmatprep.subr.bf16.mxu0 0
    %4741 = vmatpush1.bf16.msra.mxu0 0
    %4742 = vmatprep.subr.bf16.mxu0 0
    %4743 = vmatpush1.bf16.msra.mxu0 0
    %4744 = vmatprep.subr.bf16.mxu0 0
    %4745 = vmatpush1.bf16.msra.mxu0 0
    %4746 = vmatprep.subr.bf16.mxu0 0
    %4747 = vmatpush1.bf16.msra.mxu0 0
    %4748 = vmatprep.subr.bf16.mxu0 0
    %4749 = vmatpush1.bf16.msra.mxu0 0
    %4750 = vmatprep.subr.bf16.mxu0 0
    %4751 = vmatpush1.bf16.msra.mxu0 0
    %4752 = vmatprep.subr.bf16.mxu0 0
    %4753 = vmatpush1.bf16.msra.mxu0 0
    %4754 = vmatprep.mubr.bf16.mxu0 0
    %4755 = vmatmul.mubr.bf16.gmra.mrb[0].mxu0 %v4639
    %v4756 = vpop.f32.mrb[0].mxu0
    %v4757 = vadd.f32 0.0, %v4756
    %v4758 = vpop.f32.mrb[0].mxu0
    %v4759 = vadd.f32 0.0, %v4758
    %v4760 = vpop.f32.mrb[0].mxu0
    %v4761 = vpop.f32.mrb[0].mxu0
    %4762 = vdwg.mxu0
    %4763 = vmatprep.subr.bf16.mxu0 %v3612
    %4764 = vmatpush1.bf16.msra.mxu0 %v3611
    %4765 = vmatprep.subr.bf16.mxu0 %v3620
    %4766 = vmatpush1.bf16.msra.mxu0 %v3619
    %4767 = vmatprep.subr.bf16.mxu0 %v3628
    %4768 = vmatpush1.bf16.msra.mxu0 %v3627
    %4769 = vmatprep.subr.bf16.mxu0 %v3636
    %4770 = vmatpush1.bf16.msra.mxu0 %v3635
    %4771 = vmatprep.subr.bf16.mxu0 %v3644
    %4772 = vmatpush1.bf16.msra.mxu0 %v3643
    %4773 = vmatprep.subr.bf16.mxu0 %v3652
    %4774 = vmatpush1.bf16.msra.mxu0 %v3651
    %4775 = vmatprep.subr.bf16.mxu0 %v3660
    %4776 = vmatpush1.bf16.msra.mxu0 %v3659
    %4777 = vmatprep.subr.bf16.mxu0 %v3668
    %4778 = vmatpush1.bf16.msra.mxu0 %v3667
    %4779 = vmatprep.subr.bf16.mxu0 0
    %4780 = vmatpush1.bf16.msra.mxu0 0
    %4781 = vmatprep.subr.bf16.mxu0 0
    %4782 = vmatpush1.bf16.msra.mxu0 0
    %4783 = vmatprep.subr.bf16.mxu0 0
    %4784 = vmatpush1.bf16.msra.mxu0 0
    %4785 = vmatprep.subr.bf16.mxu0 0
    %4786 = vmatpush1.bf16.msra.mxu0 0
    %4787 = vmatprep.subr.bf16.mxu0 0
    %4788 = vmatpush1.bf16.msra.mxu0 0
    %4789 = vmatprep.subr.bf16.mxu0 0
    %4790 = vmatpush1.bf16.msra.mxu0 0
    %4791 = vmatprep.subr.bf16.mxu0 0
    %4792 = vmatpush1.bf16.msra.mxu0 0
    %4793 = vmatprep.subr.bf16.mxu0 0
    %4794 = vmatpush1.bf16.msra.mxu0 0
    %4795 = vmatprep.mubr.bf16.mxu0 0
    %4796 = vmatmul.mubr.bf16.gmra.mrb[0].mxu0 %v4639
    %v4797 = vpop.f32.mrb[0].mxu0
    %v4798 = vadd.f32 0.0, %v4797
    %v4799 = vpop.f32.mrb[0].mxu0
    %v4800 = vadd.f32 0.0, %v4799
    %v4801 = vpop.f32.mrb[0].mxu0
    %v4802 = vpop.f32.mrb[0].mxu0
    %4803 = vdwg.mxu0
    %v4804 = vadd.f32 %v3472, %v4675
    %v4805 = vadd.f32 %v3474, %v4677
    %v4806 = vadd.f32 %v3515, %v4716
    %v4807 = vadd.f32 %v3517, %v4718
    %v4812 = vrot.slane %v4757, 4
    %v4813 = vrot.slane %v4759, 4
    %v4814 = vrot.slane %v4798, 4
    %v4815 = vrot.slane %v4800, 4
    %v4820 = vadd.f32 %v3554, %v4812
    %v4821 = vadd.f32 %v3556, %v4813
    %v4822 = vadd.f32 %v3597, %v4814
    %v4823 = vadd.f32 %v3599, %v4815
    %v4828 = vrot.slane %v4820, 4
    %v4829 = vrot.slane %v4821, 4
    %v4830 = vrot.slane %v4822, 4
    %v4831 = vrot.slane %v4823, 4
    %v4836 = vsel %vm1509, %v4804, %v4828
    %v4837 = vsel %vm1509, %v4805, %v4829
    %v4838 = vsel %vm1509, %v4806, %v4830
    %v4839 = vsel %vm1509, %v4807, %v4831
    %v4840 = vxor.u32 %v4836, 2147483648
    %v4841 = vxor.u32 %v4837, 2147483648
    %v4842 = vxor.u32 %v4838, 2147483648
    %v4843 = vmul.f32 %v4840, 1.442695
    %v4844 = vpow.pop %v4843
    %v4845 = vmul.f32 %v4841, 1.442695
    %v4846 = vpow.pop %v4845
    %v4847 = vmul.f32 %v4842, 1.442695
    %v4848 = vpow.pop %v4847
    %v4849 = vadd.f32 %v4844, 1.0
    %v4850 = vadd.f32 %v4846, 1.0
    %v4851 = vadd.f32 %v4848, 1.0
    %v4852 = vrcp.pop %v4849
    %v4853 = vmul.f32 1.0, %v4852
    %v4854 = vrcp.pop %v4850
    %v4855 = vmul.f32 1.0, %v4854
    %v4856 = vrcp.pop %v4851
    %v4857 = vmul.f32 1.0, %v4856
    %v4858 = vtanh.pop %v4839
    %v4859 = vmul.f32 %v4855, %v4631
    %v4860 = vmul.f32 %v4853, %v4858
    %v4861 = vadd.f32 %v4859, %v4860
    %v4862 = vtanh.pop %v4861
    %v4863 = vmul.f32 %v4857, %v4862
    %4864 = vst [vmem:[#allocation3 + $0x10] sm:$0x3] %v4863
    %v4866 = vrot.slane %v4863, 4
    %4868 = vst [vmem:[#allocation3 + $0x8] sm:$0xc0] %v4866
    %v4869 = vpack.c.bf16 %v4863, %v4863
    %4870 = vmatprep.subr.bf16.mxu0 %v3606
    %4871 = vmatpush1.bf16.msra.mxu0 %v3605
    %4872 = vmatprep.subr.bf16.mxu0 %v3614
    %4873 = vmatpush1.bf16.msra.mxu0 %v3613
    %4874 = vmatprep.subr.bf16.mxu0 %v3622
    %4875 = vmatpush1.bf16.msra.mxu0 %v3621
    %4876 = vmatprep.subr.bf16.mxu0 %v3630
    %4877 = vmatpush1.bf16.msra.mxu0 %v3629
    %4878 = vmatprep.subr.bf16.mxu0 %v3638
    %4879 = vmatpush1.bf16.msra.mxu0 %v3637
    %4880 = vmatprep.subr.bf16.mxu0 %v3646
    %4881 = vmatpush1.bf16.msra.mxu0 %v3645
    %4882 = vmatprep.subr.bf16.mxu0 %v3654
    %4883 = vmatpush1.bf16.msra.mxu0 %v3653
    %4884 = vmatprep.subr.bf16.mxu0 %v3662
    %4885 = vmatpush1.bf16.msra.mxu0 %v3661
    %4886 = vmatprep.subr.bf16.mxu0 0
    %4887 = vmatpush1.bf16.msra.mxu0 0
    %4888 = vmatprep.subr.bf16.mxu0 0
    %4889 = vmatpush1.bf16.msra.mxu0 0
    %4890 = vmatprep.subr.bf16.mxu0 0
    %4891 = vmatpush1.bf16.msra.mxu0 0
    %4892 = vmatprep.subr.bf16.mxu0 0
    %4893 = vmatpush1.bf16.msra.mxu0 0
    %4894 = vmatprep.subr.bf16.mxu0 0
    %4895 = vmatpush1.bf16.msra.mxu0 0
    %4896 = vmatprep.subr.bf16.mxu0 0
    %4897 = vmatpush1.bf16.msra.mxu0 0
    %4898 = vmatprep.subr.bf16.mxu0 0
    %4899 = vmatpush1.bf16.msra.mxu0 0
    %4900 = vmatprep.subr.bf16.mxu0 0
    %4901 = vmatpush1.bf16.msra.mxu0 0
    %4902 = vmatprep.mubr.bf16.mxu0 0
    %4903 = vmatmul.mubr.bf16.gmra.mrb[0].mxu0 %v4869
    %v4904 = vpop.f32.mrb[0].mxu0
    %v4905 = vadd.f32 0.0, %v4904
    %v4906 = vpop.f32.mrb[0].mxu0
    %v4907 = vadd.f32 0.0, %v4906
    %v4908 = vpop.f32.mrb[0].mxu0
    %v4909 = vpop.f32.mrb[0].mxu0
    %4910 = vdwg.mxu0
    %4911 = vmatprep.subr.bf16.mxu0 %v3608
    %4912 = vmatpush1.bf16.msra.mxu0 %v3607
    %4913 = vmatprep.subr.bf16.mxu0 %v3616
    %4914 = vmatpush1.bf16.msra.mxu0 %v3615
    %4915 = vmatprep.subr.bf16.mxu0 %v3624
    %4916 = vmatpush1.bf16.msra.mxu0 %v3623
    %4917 = vmatprep.subr.bf16.mxu0 %v3632
    %4918 = vmatpush1.bf16.msra.mxu0 %v3631
    %4919 = vmatprep.subr.bf16.mxu0 %v3640
    %4920 = vmatpush1.bf16.msra.mxu0 %v3639
    %4921 = vmatprep.subr.bf16.mxu0 %v3648
    %4922 = vmatpush1.bf16.msra.mxu0 %v3647
    %4923 = vmatprep.subr.bf16.mxu0 %v3656
    %4924 = vmatpush1.bf16.msra.mxu0 %v3655
    %4925 = vmatprep.subr.bf16.mxu0 %v3664
    %4926 = vmatpush1.bf16.msra.mxu0 %v3663
    %4927 = vmatprep.subr.bf16.mxu0 0
    %4928 = vmatpush1.bf16.msra.mxu0 0
    %4929 = vmatprep.subr.bf16.mxu0 0
    %4930 = vmatpush1.bf16.msra.mxu0 0
    %4931 = vmatprep.subr.bf16.mxu0 0
    %4932 = vmatpush1.bf16.msra.mxu0 0
    %4933 = vmatprep.subr.bf16.mxu0 0
    %4934 = vmatpush1.bf16.msra.mxu0 0
    %4935 = vmatprep.subr.bf16.mxu0 0
    %4936 = vmatpush1.bf16.msra.mxu0 0
    %4937 = vmatprep.subr.bf16.mxu0 0
    %4938 = vmatpush1.bf16.msra.mxu0 0
    %4939 = vmatprep.subr.bf16.mxu0 0
    %4940 = vmatpush1.bf16.msra.mxu0 0
    %4941 = vmatprep.subr.bf16.mxu0 0
    %4942 = vmatpush1.bf16.msra.mxu0 0
    %4943 = vmatprep.mubr.bf16.mxu0 0
    %4944 = vmatmul.mubr.bf16.gmra.mrb[0].mxu0 %v4869
    %v4945 = vpop.f32.mrb[0].mxu0
    %v4946 = vadd.f32 0.0, %v4945
    %v4947 = vpop.f32.mrb[0].mxu0
    %v4948 = vadd.f32 0.0, %v4947
    %v4949 = vpop.f32.mrb[0].mxu0
    %v4950 = vpop.f32.mrb[0].mxu0
    %4951 = vdwg.mxu0
    %4952 = vmatprep.subr.bf16.mxu0 %v3610
    %4953 = vmatpush1.bf16.msra.mxu0 %v3609
    %4954 = vmatprep.subr.bf16.mxu0 %v3618
    %4955 = vmatpush1.bf16.msra.mxu0 %v3617
    %4956 = vmatprep.subr.bf16.mxu0 %v3626
    %4957 = vmatpush1.bf16.msra.mxu0 %v3625
    %4958 = vmatprep.subr.bf16.mxu0 %v3634
    %4959 = vmatpush1.bf16.msra.mxu0 %v3633
    %4960 = vmatprep.subr.bf16.mxu0 %v3642
    %4961 = vmatpush1.bf16.msra.mxu0 %v3641
    %4962 = vmatprep.subr.bf16.mxu0 %v3650
    %4963 = vmatpush1.bf16.msra.mxu0 %v3649
    %4964 = vmatprep.subr.bf16.mxu0 %v3658
    %4965 = vmatpush1.bf16.msra.mxu0 %v3657
    %4966 = vmatprep.subr.bf16.mxu0 %v3666
    %4967 = vmatpush1.bf16.msra.mxu0 %v3665
    %4968 = vmatprep.subr.bf16.mxu0 0
    %4969 = vmatpush1.bf16.msra.mxu0 0
    %4970 = vmatprep.subr.bf16.mxu0 0
    %4971 = vmatpush1.bf16.msra.mxu0 0
    %4972 = vmatprep.subr.bf16.mxu0 0
    %4973 = vmatpush1.bf16.msra.mxu0 0
    %4974 = vmatprep.subr.bf16.mxu0 0
    %4975 = vmatpush1.bf16.msra.mxu0 0
    %4976 = vmatprep.subr.bf16.mxu0 0
    %4977 = vmatpush1.bf16.msra.mxu0 0
    %4978 = vmatprep.subr.bf16.mxu0 0
    %4979 = vmatpush1.bf16.msra.mxu0 0
    %4980 = vmatprep.subr.bf16.mxu0 0
    %4981 = vmatpush1.bf16.msra.mxu0 0
    %4982 = vmatprep.subr.bf16.mxu0 0
    %4983 = vmatpush1.bf16.msra.mxu0 0
    %4984 = vmatprep.mubr.bf16.mxu0 0
    %4985 = vmatmul.mubr.bf16.gmra.mrb[0].mxu0 %v4869
    %v4986 = vpop.f32.mrb[0].mxu0
    %v4987 = vadd.f32 0.0, %v4986
    %v4988 = vpop.f32.mrb[0].mxu0
    %v4989 = vadd.f32 0.0, %v4988
    %v4990 = vpop.f32.mrb[0].mxu0
    %v4991 = vpop.f32.mrb[0].mxu0
    %4992 = vdwg.mxu0
    %4993 = vmatprep.subr.bf16.mxu0 %v3612
    %4994 = vmatpush1.bf16.msra.mxu0 %v3611
    %4995 = vmatprep.subr.bf16.mxu0 %v3620
    %4996 = vmatpush1.bf16.msra.mxu0 %v3619
    %4997 = vmatprep.subr.bf16.mxu0 %v3628
    %4998 = vmatpush1.bf16.msra.mxu0 %v3627
    %4999 = vmatprep.subr.bf16.mxu0 %v3636
    %5000 = vmatpush1.bf16.msra.mxu0 %v3635
    %5001 = vmatprep.subr.bf16.mxu0 %v3644
    %5002 = vmatpush1.bf16.msra.mxu0 %v3643
    %5003 = vmatprep.subr.bf16.mxu0 %v3652
    %5004 = vmatpush1.bf16.msra.mxu0 %v3651
    %5005 = vmatprep.subr.bf16.mxu0 %v3660
    %5006 = vmatpush1.bf16.msra.mxu0 %v3659
    %5007 = vmatprep.subr.bf16.mxu0 %v3668
    %5008 = vmatpush1.bf16.msra.mxu0 %v3667
    %5009 = vmatprep.subr.bf16.mxu0 0
    %5010 = vmatpush1.bf16.msra.mxu0 0
    %5011 = vmatprep.subr.bf16.mxu0 0
    %5012 = vmatpush1.bf16.msra.mxu0 0
    %5013 = vmatprep.subr.bf16.mxu0 0
    %5014 = vmatpush1.bf16.msra.mxu0 0
    %5015 = vmatprep.subr.bf16.mxu0 0
    %5016 = vmatpush1.bf16.msra.mxu0 0
    %5017 = vmatprep.subr.bf16.mxu0 0
    %5018 = vmatpush1.bf16.msra.mxu0 0
    %5019 = vmatprep.subr.bf16.mxu0 0
    %5020 = vmatpush1.bf16.msra.mxu0 0
    %5021 = vmatprep.subr.bf16.mxu0 0
    %5022 = vmatpush1.bf16.msra.mxu0 0
    %5023 = vmatprep.subr.bf16.mxu0 0
    %5024 = vmatpush1.bf16.msra.mxu0 0
    %5025 = vmatprep.mubr.bf16.mxu0 0
    %5026 = vmatmul.mubr.bf16.gmra.mrb[0].mxu0 %v4869
    %v5027 = vpop.f32.mrb[0].mxu0
    %v5028 = vadd.f32 0.0, %v5027
    %v5029 = vpop.f32.mrb[0].mxu0
    %v5030 = vadd.f32 0.0, %v5029
    %v5031 = vpop.f32.mrb[0].mxu0
    %v5032 = vpop.f32.mrb[0].mxu0
    %5033 = vdwg.mxu0
    %v5038 = vrot.slane %v4905, 6
    %v5039 = vrot.slane %v4907, 6
    %v5040 = vrot.slane %v4946, 6
    %v5041 = vrot.slane %v4948, 6
    %v5046 = vadd.f32 %v3472, %v5038
    %v5047 = vadd.f32 %v3474, %v5039
    %v5048 = vadd.f32 %v3515, %v5040
    %v5049 = vadd.f32 %v3517, %v5041
    %v5054 = vrot.slane %v4987, 6
    %v5055 = vrot.slane %v4989, 6
    %v5056 = vrot.slane %v5028, 6
    %v5057 = vrot.slane %v5030, 6
    %v5062 = vadd.f32 %v3554, %v5054
    %v5063 = vadd.f32 %v3556, %v5055
    %v5064 = vadd.f32 %v3597, %v5056
    %v5065 = vadd.f32 %v3599, %v5057
    %v5070 = vrot.slane %v5046, 2
    %v5071 = vrot.slane %v5047, 2
    %v5072 = vrot.slane %v5048, 2
    %v5073 = vrot.slane %v5049, 2
    %v5082 = vrot.slane %v5062, 2
    %v5083 = vrot.slane %v5063, 2
    %v5084 = vrot.slane %v5064, 2
    %v5085 = vrot.slane %v5065, 2
    %v5090 = vsel %vm1509, %v5070, %v5082
    %v5091 = vsel %vm1509, %v5071, %v5083
    %v5092 = vsel %vm1509, %v5072, %v5084
    %v5093 = vsel %vm1509, %v5073, %v5085
    %v5094 = vxor.u32 %v5090, 2147483648
    %v5095 = vxor.u32 %v5091, 2147483648
    %v5096 = vxor.u32 %v5092, 2147483648
    %v5097 = vmul.f32 %v5094, 1.442695
    %v5098 = vpow.pop %v5097
    %v5099 = vmul.f32 %v5095, 1.442695
    %v5100 = vpow.pop %v5099
    %v5101 = vmul.f32 %v5096, 1.442695
    %v5102 = vpow.pop %v5101
    %v5103 = vadd.f32 %v5098, 1.0
    %v5104 = vadd.f32 %v5100, 1.0
    %v5105 = vadd.f32 %v5102, 1.0
    %v5106 = vrcp.pop %v5103
    %v5107 = vmul.f32 1.0, %v5106
    %v5108 = vrcp.pop %v5104
    %v5109 = vmul.f32 1.0, %v5108
    %v5110 = vrcp.pop %v5105
    %v5111 = vmul.f32 1.0, %v5110
    %v5112 = vtanh.pop %v5093
    %v5113 = vmul.f32 %v5109, %v4861
    %v5114 = vmul.f32 %v5107, %v5112
    %v5115 = vadd.f32 %v5113, %v5114
    %v5116 = vtanh.pop %v5115
    %v5117 = vmul.f32 %v5111, %v5116
    %v5119 = vrot.slane %v5117, 6
    %5121 = vst [vmem:[#allocation3 + $0x10] sm:$0xc] %v5119
    %5122 = vst [vmem:[#allocation3 + $0x8] sm:$0x30] %v5119
    %v5123 = vpack.c.bf16 %v5117, %v5117
    %5124 = vmatprep.subr.bf16.mxu0 %v3606
    %5125 = vmatpush1.bf16.msra.mxu0 %v3605
    %5126 = vmatprep.subr.bf16.mxu0 %v3614
    %5127 = vmatpush1.bf16.msra.mxu0 %v3613
    %5128 = vmatprep.subr.bf16.mxu0 %v3622
    %5129 = vmatpush1.bf16.msra.mxu0 %v3621
    %5130 = vmatprep.subr.bf16.mxu0 %v3630
    %5131 = vmatpush1.bf16.msra.mxu0 %v3629
    %5132 = vmatprep.subr.bf16.mxu0 %v3638
    %5133 = vmatpush1.bf16.msra.mxu0 %v3637
    %5134 = vmatprep.subr.bf16.mxu0 %v3646
    %5135 = vmatpush1.bf16.msra.mxu0 %v3645
    %5136 = vmatprep.subr.bf16.mxu0 %v3654
    %5137 = vmatpush1.bf16.msra.mxu0 %v3653
    %5138 = vmatprep.subr.bf16.mxu0 %v3662
    %5139 = vmatpush1.bf16.msra.mxu0 %v3661
    %5140 = vmatprep.subr.bf16.mxu0 0
    %5141 = vmatpush1.bf16.msra.mxu0 0
    %5142 = vmatprep.subr.bf16.mxu0 0
    %5143 = vmatpush1.bf16.msra.mxu0 0
    %5144 = vmatprep.subr.bf16.mxu0 0
    %5145 = vmatpush1.bf16.msra.mxu0 0
    %5146 = vmatprep.subr.bf16.mxu0 0
    %5147 = vmatpush1.bf16.msra.mxu0 0
    %5148 = vmatprep.subr.bf16.mxu0 0
    %5149 = vmatpush1.bf16.msra.mxu0 0
    %5150 = vmatprep.subr.bf16.mxu0 0
    %5151 = vmatpush1.bf16.msra.mxu0 0
    %5152 = vmatprep.subr.bf16.mxu0 0
    %5153 = vmatpush1.bf16.msra.mxu0 0
    %5154 = vmatprep.subr.bf16.mxu0 0
    %5155 = vmatpush1.bf16.msra.mxu0 0
    %5156 = vmatprep.mubr.bf16.mxu0 0
    %5157 = vmatmul.mubr.bf16.gmra.mrb[0].mxu0 %v5123
    %v5158 = vpop.f32.mrb[0].mxu0
    %v5159 = vadd.f32 0.0, %v5158
    %v5160 = vpop.f32.mrb[0].mxu0
    %v5161 = vadd.f32 0.0, %v5160
    %v5162 = vpop.f32.mrb[0].mxu0
    %v5163 = vpop.f32.mrb[0].mxu0
    %5164 = vdwg.mxu0
    %5165 = vmatprep.subr.bf16.mxu0 %v3608
    %5166 = vmatpush1.bf16.msra.mxu0 %v3607
    %5167 = vmatprep.subr.bf16.mxu0 %v3616
    %5168 = vmatpush1.bf16.msra.mxu0 %v3615
    %5169 = vmatprep.subr.bf16.mxu0 %v3624
    %5170 = vmatpush1.bf16.msra.mxu0 %v3623
    %5171 = vmatprep.subr.bf16.mxu0 %v3632
    %5172 = vmatpush1.bf16.msra.mxu0 %v3631
    %5173 = vmatprep.subr.bf16.mxu0 %v3640
    %5174 = vmatpush1.bf16.msra.mxu0 %v3639
    %5175 = vmatprep.subr.bf16.mxu0 %v3648
    %5176 = vmatpush1.bf16.msra.mxu0 %v3647
    %5177 = vmatprep.subr.bf16.mxu0 %v3656
    %5178 = vmatpush1.bf16.msra.mxu0 %v3655
    %5179 = vmatprep.subr.bf16.mxu0 %v3664
    %5180 = vmatpush1.bf16.msra.mxu0 %v3663
    %5181 = vmatprep.subr.bf16.mxu0 0
    %5182 = vmatpush1.bf16.msra.mxu0 0
    %5183 = vmatprep.subr.bf16.mxu0 0
    %5184 = vmatpush1.bf16.msra.mxu0 0
    %5185 = vmatprep.subr.bf16.mxu0 0
    %5186 = vmatpush1.bf16.msra.mxu0 0
    %5187 = vmatprep.subr.bf16.mxu0 0
    %5188 = vmatpush1.bf16.msra.mxu0 0
    %5189 = vmatprep.subr.bf16.mxu0 0
    %5190 = vmatpush1.bf16.msra.mxu0 0
    %5191 = vmatprep.subr.bf16.mxu0 0
    %5192 = vmatpush1.bf16.msra.mxu0 0
    %5193 = vmatprep.subr.bf16.mxu0 0
    %5194 = vmatpush1.bf16.msra.mxu0 0
    %5195 = vmatprep.subr.bf16.mxu0 0
    %5196 = vmatpush1.bf16.msra.mxu0 0
    %5197 = vmatprep.mubr.bf16.mxu0 0
    %5198 = vmatmul.mubr.bf16.gmra.mrb[0].mxu0 %v5123
    %v5199 = vpop.f32.mrb[0].mxu0
    %v5200 = vadd.f32 0.0, %v5199
    %v5201 = vpop.f32.mrb[0].mxu0
    %v5202 = vadd.f32 0.0, %v5201
    %v5203 = vpop.f32.mrb[0].mxu0
    %v5204 = vpop.f32.mrb[0].mxu0
    %5205 = vdwg.mxu0
    %5206 = vmatprep.subr.bf16.mxu0 %v3610
    %5207 = vmatpush1.bf16.msra.mxu0 %v3609
    %5208 = vmatprep.subr.bf16.mxu0 %v3618
    %5209 = vmatpush1.bf16.msra.mxu0 %v3617
    %5210 = vmatprep.subr.bf16.mxu0 %v3626
    %5211 = vmatpush1.bf16.msra.mxu0 %v3625
    %5212 = vmatprep.subr.bf16.mxu0 %v3634
    %5213 = vmatpush1.bf16.msra.mxu0 %v3633
    %5214 = vmatprep.subr.bf16.mxu0 %v3642
    %5215 = vmatpush1.bf16.msra.mxu0 %v3641
    %5216 = vmatprep.subr.bf16.mxu0 %v3650
    %5217 = vmatpush1.bf16.msra.mxu0 %v3649
    %5218 = vmatprep.subr.bf16.mxu0 %v3658
    %5219 = vmatpush1.bf16.msra.mxu0 %v3657
    %5220 = vmatprep.subr.bf16.mxu0 %v3666
    %5221 = vmatpush1.bf16.msra.mxu0 %v3665
    %5222 = vmatprep.subr.bf16.mxu0 0
    %5223 = vmatpush1.bf16.msra.mxu0 0
    %5224 = vmatprep.subr.bf16.mxu0 0
    %5225 = vmatpush1.bf16.msra.mxu0 0
    %5226 = vmatprep.subr.bf16.mxu0 0
    %5227 = vmatpush1.bf16.msra.mxu0 0
    %5228 = vmatprep.subr.bf16.mxu0 0
    %5229 = vmatpush1.bf16.msra.mxu0 0
    %5230 = vmatprep.subr.bf16.mxu0 0
    %5231 = vmatpush1.bf16.msra.mxu0 0
    %5232 = vmatprep.subr.bf16.mxu0 0
    %5233 = vmatpush1.bf16.msra.mxu0 0
    %5234 = vmatprep.subr.bf16.mxu0 0
    %5235 = vmatpush1.bf16.msra.mxu0 0
    %5236 = vmatprep.subr.bf16.mxu0 0
    %5237 = vmatpush1.bf16.msra.mxu0 0
    %5238 = vmatprep.mubr.bf16.mxu0 0
    %5239 = vmatmul.mubr.bf16.gmra.mrb[0].mxu0 %v5123
    %v5240 = vpop.f32.mrb[0].mxu0
    %v5241 = vadd.f32 0.0, %v5240
    %v5242 = vpop.f32.mrb[0].mxu0
    %v5243 = vadd.f32 0.0, %v5242
    %v5244 = vpop.f32.mrb[0].mxu0
    %v5245 = vpop.f32.mrb[0].mxu0
    %5246 = vdwg.mxu0
    %5247 = vmatprep.subr.bf16.mxu0 %v3612
    %5248 = vmatpush1.bf16.msra.mxu0 %v3611
    %5249 = vmatprep.subr.bf16.mxu0 %v3620
    %5250 = vmatpush1.bf16.msra.mxu0 %v3619
    %5251 = vmatprep.subr.bf16.mxu0 %v3628
    %5252 = vmatpush1.bf16.msra.mxu0 %v3627
    %5253 = vmatprep.subr.bf16.mxu0 %v3636
    %5254 = vmatpush1.bf16.msra.mxu0 %v3635
    %5255 = vmatprep.subr.bf16.mxu0 %v3644
    %5256 = vmatpush1.bf16.msra.mxu0 %v3643
    %5257 = vmatprep.subr.bf16.mxu0 %v3652
    %5258 = vmatpush1.bf16.msra.mxu0 %v3651
    %5259 = vmatprep.subr.bf16.mxu0 %v3660
    %5260 = vmatpush1.bf16.msra.mxu0 %v3659
    %5261 = vmatprep.subr.bf16.mxu0 %v3668
    %5262 = vmatpush1.bf16.msra.mxu0 %v3667
    %5263 = vmatprep.subr.bf16.mxu0 0
    %5264 = vmatpush1.bf16.msra.mxu0 0
    %5265 = vmatprep.subr.bf16.mxu0 0
    %5266 = vmatpush1.bf16.msra.mxu0 0
    %5267 = vmatprep.subr.bf16.mxu0 0
    %5268 = vmatpush1.bf16.msra.mxu0 0
    %5269 = vmatprep.subr.bf16.mxu0 0
    %5270 = vmatpush1.bf16.msra.mxu0 0
    %5271 = vmatprep.subr.bf16.mxu0 0
    %5272 = vmatpush1.bf16.msra.mxu0 0
    %5273 = vmatprep.subr.bf16.mxu0 0
    %5274 = vmatpush1.bf16.msra.mxu0 0
    %5275 = vmatprep.subr.bf16.mxu0 0
    %5276 = vmatpush1.bf16.msra.mxu0 0
    %5277 = vmatprep.subr.bf16.mxu0 0
    %5278 = vmatpush1.bf16.msra.mxu0 0
    %5279 = vmatprep.mubr.bf16.mxu0 0
    %5280 = vmatmul.mubr.bf16.gmra.mrb[0].mxu0 %v5123
    %v5281 = vpop.f32.mrb[0].mxu0
    %v5282 = vadd.f32 0.0, %v5281
    %v5283 = vpop.f32.mrb[0].mxu0
    %v5284 = vadd.f32 0.0, %v5283
    %v5285 = vpop.f32.mrb[0].mxu0
    %v5286 = vpop.f32.mrb[0].mxu0
    %5287 = vdwg.mxu0
    %v5292 = vrot.slane %v5159, 4
    %v5293 = vrot.slane %v5161, 4
    %v5294 = vrot.slane %v5200, 4
    %v5295 = vrot.slane %v5202, 4
    %v5300 = vadd.f32 %v3472, %v5292
    %v5301 = vadd.f32 %v3474, %v5293
    %v5302 = vadd.f32 %v3515, %v5294
    %v5303 = vadd.f32 %v3517, %v5295
    %v5304 = vadd.f32 %v3554, %v5241
    %v5305 = vadd.f32 %v3556, %v5243
    %v5306 = vadd.f32 %v3597, %v5282
    %v5307 = vadd.f32 %v3599, %v5284
    %v5312 = vrot.slane %v5300, 4
    %v5313 = vrot.slane %v5301, 4
    %v5314 = vrot.slane %v5302, 4
    %v5315 = vrot.slane %v5303, 4
    %v5320 = vsel %vm1509, %v5312, %v5304
    %v5321 = vsel %vm1509, %v5313, %v5305
    %v5322 = vsel %vm1509, %v5314, %v5306
    %v5323 = vsel %vm1509, %v5315, %v5307
    %v5324 = vxor.u32 %v5320, 2147483648
    %v5325 = vxor.u32 %v5321, 2147483648
    %v5326 = vxor.u32 %v5322, 2147483648
    %v5327 = vmul.f32 %v5324, 1.442695
    %v5328 = vpow.pop %v5327
    %v5329 = vmul.f32 %v5325, 1.442695
    %v5330 = vpow.pop %v5329
    %v5331 = vmul.f32 %v5326, 1.442695
    %v5332 = vpow.pop %v5331
    %v5333 = vadd.f32 %v5328, 1.0
    %v5334 = vadd.f32 %v5330, 1.0
    %v5335 = vadd.f32 %v5332, 1.0
    %v5336 = vrcp.pop %v5333
    %v5337 = vmul.f32 1.0, %v5336
    %v5338 = vrcp.pop %v5334
    %v5339 = vmul.f32 1.0, %v5338
    %v5340 = vrcp.pop %v5335
    %v5341 = vmul.f32 1.0, %v5340
    %v5342 = vtanh.pop %v5323
    %v5343 = vmul.f32 %v5339, %v5115
    %v5344 = vmul.f32 %v5337, %v5342
    %v5345 = vadd.f32 %v5343, %v5344
    %v5346 = vtanh.pop %v5345
    %v5347 = vmul.f32 %v5341, %v5346
    %v5349 = vrot.slane %v5347, 4
    %5351 = vst [vmem:[#allocation3 + $0x10] sm:$0x30] %v5349
    %5352 = vst [vmem:[#allocation3 + $0x8] sm:$0xc] %v5347
    %v5353 = vpack.c.bf16 %v5347, %v5347
    %5354 = vmatprep.subr.bf16.mxu0 %v3606
    %5355 = vmatpush1.bf16.msra.mxu0 %v3605
    %5356 = vmatprep.subr.bf16.mxu0 %v3614
    %5357 = vmatpush1.bf16.msra.mxu0 %v3613
    %5358 = vmatprep.subr.bf16.mxu0 %v3622
    %5359 = vmatpush1.bf16.msra.mxu0 %v3621
    %5360 = vmatprep.subr.bf16.mxu0 %v3630
    %5361 = vmatpush1.bf16.msra.mxu0 %v3629
    %5362 = vmatprep.subr.bf16.mxu0 %v3638
    %5363 = vmatpush1.bf16.msra.mxu0 %v3637
    %5364 = vmatprep.subr.bf16.mxu0 %v3646
    %5365 = vmatpush1.bf16.msra.mxu0 %v3645
    %5366 = vmatprep.subr.bf16.mxu0 %v3654
    %5367 = vmatpush1.bf16.msra.mxu0 %v3653
    %5368 = vmatprep.subr.bf16.mxu0 %v3662
    %5369 = vmatpush1.bf16.msra.mxu0 %v3661
    %5370 = vmatprep.subr.bf16.mxu0 0
    %5371 = vmatpush1.bf16.msra.mxu0 0
    %5372 = vmatprep.subr.bf16.mxu0 0
    %5373 = vmatpush1.bf16.msra.mxu0 0
    %5374 = vmatprep.subr.bf16.mxu0 0
    %5375 = vmatpush1.bf16.msra.mxu0 0
    %5376 = vmatprep.subr.bf16.mxu0 0
    %5377 = vmatpush1.bf16.msra.mxu0 0
    %5378 = vmatprep.subr.bf16.mxu0 0
    %5379 = vmatpush1.bf16.msra.mxu0 0
    %5380 = vmatprep.subr.bf16.mxu0 0
    %5381 = vmatpush1.bf16.msra.mxu0 0
    %5382 = vmatprep.subr.bf16.mxu0 0
    %5383 = vmatpush1.bf16.msra.mxu0 0
    %5384 = vmatprep.subr.bf16.mxu0 0
    %5385 = vmatpush1.bf16.msra.mxu0 0
    %5386 = vmatprep.mubr.bf16.mxu0 0
    %5387 = vmatmul.mubr.bf16.gmra.mrb[0].mxu0 %v5353
    %v5388 = vpop.f32.mrb[0].mxu0
    %v5389 = vadd.f32 0.0, %v5388
    %v5390 = vpop.f32.mrb[0].mxu0
    %v5391 = vadd.f32 0.0, %v5390
    %v5392 = vpop.f32.mrb[0].mxu0
    %v5393 = vpop.f32.mrb[0].mxu0
    %5394 = vdwg.mxu0
    %5395 = vmatprep.subr.bf16.mxu0 %v3608
    %5396 = vmatpush1.bf16.msra.mxu0 %v3607
    %5397 = vmatprep.subr.bf16.mxu0 %v3616
    %5398 = vmatpush1.bf16.msra.mxu0 %v3615
    %5399 = vmatprep.subr.bf16.mxu0 %v3624
    %5400 = vmatpush1.bf16.msra.mxu0 %v3623
    %5401 = vmatprep.subr.bf16.mxu0 %v3632
    %5402 = vmatpush1.bf16.msra.mxu0 %v3631
    %5403 = vmatprep.subr.bf16.mxu0 %v3640
    %5404 = vmatpush1.bf16.msra.mxu0 %v3639
    %5405 = vmatprep.subr.bf16.mxu0 %v3648
    %5406 = vmatpush1.bf16.msra.mxu0 %v3647
    %5407 = vmatprep.subr.bf16.mxu0 %v3656
    %5408 = vmatpush1.bf16.msra.mxu0 %v3655
    %5409 = vmatprep.subr.bf16.mxu0 %v3664
    %5410 = vmatpush1.bf16.msra.mxu0 %v3663
    %5411 = vmatprep.subr.bf16.mxu0 0
    %5412 = vmatpush1.bf16.msra.mxu0 0
    %5413 = vmatprep.subr.bf16.mxu0 0
    %5414 = vmatpush1.bf16.msra.mxu0 0
    %5415 = vmatprep.subr.bf16.mxu0 0
    %5416 = vmatpush1.bf16.msra.mxu0 0
    %5417 = vmatprep.subr.bf16.mxu0 0
    %5418 = vmatpush1.bf16.msra.mxu0 0
    %5419 = vmatprep.subr.bf16.mxu0 0
    %5420 = vmatpush1.bf16.msra.mxu0 0
    %5421 = vmatprep.subr.bf16.mxu0 0
    %5422 = vmatpush1.bf16.msra.mxu0 0
    %5423 = vmatprep.subr.bf16.mxu0 0
    %5424 = vmatpush1.bf16.msra.mxu0 0
    %5425 = vmatprep.subr.bf16.mxu0 0
    %5426 = vmatpush1.bf16.msra.mxu0 0
    %5427 = vmatprep.mubr.bf16.mxu0 0
    %5428 = vmatmul.mubr.bf16.gmra.mrb[0].mxu0 %v5353
    %v5429 = vpop.f32.mrb[0].mxu0
    %v5430 = vadd.f32 0.0, %v5429
    %v5431 = vpop.f32.mrb[0].mxu0
    %v5432 = vadd.f32 0.0, %v5431
    %v5433 = vpop.f32.mrb[0].mxu0
    %v5434 = vpop.f32.mrb[0].mxu0
    %5435 = vdwg.mxu0
    %5436 = vmatprep.subr.bf16.mxu0 %v3610
    %5437 = vmatpush1.bf16.msra.mxu0 %v3609
    %5438 = vmatprep.subr.bf16.mxu0 %v3618
    %5439 = vmatpush1.bf16.msra.mxu0 %v3617
    %5440 = vmatprep.subr.bf16.mxu0 %v3626
    %5441 = vmatpush1.bf16.msra.mxu0 %v3625
    %5442 = vmatprep.subr.bf16.mxu0 %v3634
    %5443 = vmatpush1.bf16.msra.mxu0 %v3633
    %5444 = vmatprep.subr.bf16.mxu0 %v3642
    %5445 = vmatpush1.bf16.msra.mxu0 %v3641
    %5446 = vmatprep.subr.bf16.mxu0 %v3650
    %5447 = vmatpush1.bf16.msra.mxu0 %v3649
    %5448 = vmatprep.subr.bf16.mxu0 %v3658
    %5449 = vmatpush1.bf16.msra.mxu0 %v3657
    %5450 = vmatprep.subr.bf16.mxu0 %v3666
    %5451 = vmatpush1.bf16.msra.mxu0 %v3665
    %5452 = vmatprep.subr.bf16.mxu0 0
    %5453 = vmatpush1.bf16.msra.mxu0 0
    %5454 = vmatprep.subr.bf16.mxu0 0
    %5455 = vmatpush1.bf16.msra.mxu0 0
    %5456 = vmatprep.subr.bf16.mxu0 0
    %5457 = vmatpush1.bf16.msra.mxu0 0
    %5458 = vmatprep.subr.bf16.mxu0 0
    %5459 = vmatpush1.bf16.msra.mxu0 0
    %5460 = vmatprep.subr.bf16.mxu0 0
    %5461 = vmatpush1.bf16.msra.mxu0 0
    %5462 = vmatprep.subr.bf16.mxu0 0
    %5463 = vmatpush1.bf16.msra.mxu0 0
    %5464 = vmatprep.subr.bf16.mxu0 0
    %5465 = vmatpush1.bf16.msra.mxu0 0
    %5466 = vmatprep.subr.bf16.mxu0 0
    %5467 = vmatpush1.bf16.msra.mxu0 0
    %5468 = vmatprep.mubr.bf16.mxu0 0
    %5469 = vmatmul.mubr.bf16.gmra.mrb[0].mxu0 %v5353
    %v5470 = vpop.f32.mrb[0].mxu0
    %v5471 = vadd.f32 0.0, %v5470
    %v5472 = vpop.f32.mrb[0].mxu0
    %v5473 = vadd.f32 0.0, %v5472
    %v5474 = vpop.f32.mrb[0].mxu0
    %v5475 = vpop.f32.mrb[0].mxu0
    %5476 = vdwg.mxu0
    %5477 = vmatprep.subr.bf16.mxu0 %v3612
    %5478 = vmatpush1.bf16.msra.mxu0 %v3611
    %5479 = vmatprep.subr.bf16.mxu0 %v3620
    %5480 = vmatpush1.bf16.msra.mxu0 %v3619
    %5481 = vmatprep.subr.bf16.mxu0 %v3628
    %5482 = vmatpush1.bf16.msra.mxu0 %v3627
    %5483 = vmatprep.subr.bf16.mxu0 %v3636
    %5484 = vmatpush1.bf16.msra.mxu0 %v3635
    %5485 = vmatprep.subr.bf16.mxu0 %v3644
    %5486 = vmatpush1.bf16.msra.mxu0 %v3643
    %5487 = vmatprep.subr.bf16.mxu0 %v3652
    %5488 = vmatpush1.bf16.msra.mxu0 %v3651
    %5489 = vmatprep.subr.bf16.mxu0 %v3660
    %5490 = vmatpush1.bf16.msra.mxu0 %v3659
    %5491 = vmatprep.subr.bf16.mxu0 %v3668
    %5492 = vmatpush1.bf16.msra.mxu0 %v3667
    %5493 = vmatprep.subr.bf16.mxu0 0
    %5494 = vmatpush1.bf16.msra.mxu0 0
    %5495 = vmatprep.subr.bf16.mxu0 0
    %5496 = vmatpush1.bf16.msra.mxu0 0
    %5497 = vmatprep.subr.bf16.mxu0 0
    %5498 = vmatpush1.bf16.msra.mxu0 0
    %5499 = vmatprep.subr.bf16.mxu0 0
    %5500 = vmatpush1.bf16.msra.mxu0 0
    %5501 = vmatprep.subr.bf16.mxu0 0
    %5502 = vmatpush1.bf16.msra.mxu0 0
    %5503 = vmatprep.subr.bf16.mxu0 0
    %5504 = vmatpush1.bf16.msra.mxu0 0
    %5505 = vmatprep.subr.bf16.mxu0 0
    %5506 = vmatpush1.bf16.msra.mxu0 0
    %5507 = vmatprep.subr.bf16.mxu0 0
    %5508 = vmatpush1.bf16.msra.mxu0 0
    %5509 = vmatprep.mubr.bf16.mxu0 0
    %5510 = vmatmul.mubr.bf16.gmra.mrb[0].mxu0 %v5353
    %v5511 = vpop.f32.mrb[0].mxu0
    %v5512 = vadd.f32 0.0, %v5511
    %v5513 = vpop.f32.mrb[0].mxu0
    %v5514 = vadd.f32 0.0, %v5513
    %v5515 = vpop.f32.mrb[0].mxu0
    %v5516 = vpop.f32.mrb[0].mxu0
    %5517 = vdwg.mxu0
    %v5522 = vrot.slane %v5389, 2
    %v5523 = vrot.slane %v5391, 2
    %v5524 = vrot.slane %v5430, 2
    %v5525 = vrot.slane %v5432, 2
    %v5530 = vadd.f32 %v3472, %v5522
    %v5531 = vadd.f32 %v3474, %v5523
    %v5532 = vadd.f32 %v3515, %v5524
    %v5533 = vadd.f32 %v3517, %v5525
    %v5538 = vrot.slane %v5471, 2
    %v5539 = vrot.slane %v5473, 2
    %v5540 = vrot.slane %v5512, 2
    %v5541 = vrot.slane %v5514, 2
    %v5546 = vadd.f32 %v3554, %v5538
    %v5547 = vadd.f32 %v3556, %v5539
    %v5548 = vadd.f32 %v3597, %v5540
    %v5549 = vadd.f32 %v3599, %v5541
    %v5554 = vrot.slane %v5530, 6
    %v5555 = vrot.slane %v5531, 6
    %v5556 = vrot.slane %v5532, 6
    %v5557 = vrot.slane %v5533, 6
    %v5566 = vrot.slane %v5546, 6
    %v5567 = vrot.slane %v5547, 6
    %v5568 = vrot.slane %v5548, 6
    %v5569 = vrot.slane %v5549, 6
    %v5574 = vsel %vm1509, %v5554, %v5566
    %v5575 = vsel %vm1509, %v5555, %v5567
    %v5576 = vsel %vm1509, %v5556, %v5568
    %v5577 = vsel %vm1509, %v5557, %v5569
    %v5578 = vxor.u32 %v5574, 2147483648
    %v5579 = vxor.u32 %v5575, 2147483648
    %v5580 = vxor.u32 %v5576, 2147483648
    %v5581 = vmul.f32 %v5578, 1.442695
    %v5582 = vpow.pop %v5581
    %v5583 = vmul.f32 %v5579, 1.442695
    %v5584 = vpow.pop %v5583
    %v5585 = vmul.f32 %v5580, 1.442695
    %v5586 = vpow.pop %v5585
    %v5587 = vadd.f32 %v5582, 1.0
    %v5588 = vadd.f32 %v5584, 1.0
    %v5589 = vadd.f32 %v5586, 1.0
    %v5590 = vrcp.pop %v5587
    %v5591 = vmul.f32 1.0, %v5590
    %v5592 = vrcp.pop %v5588
    %v5593 = vmul.f32 1.0, %v5592
    %v5594 = vrcp.pop %v5589
    %v5595 = vmul.f32 1.0, %v5594
    %v5596 = vtanh.pop %v5577
    %v5597 = vmul.f32 %v5593, %v5345
    %v5598 = vmul.f32 %v5591, %v5596
    %v5599 = vadd.f32 %v5597, %v5598
    %v5600 = vtanh.pop %v5599
    %v5601 = vmul.f32 %v5595, %v5600
    %v5603 = vrot.slane %v5601, 2
    %5605 = vst [vmem:[#allocation3 + $0x10] sm:$0xc0] %v5603
    %5606 = vst [vmem:[#allocation3 + $0x8] sm:$0x3] %v5603
    %s5607 = smul.u32 %s3249, 2
    %s5608 = sshll.u32 %s5607, 4
    %5609 = dma.done %s177, %s5608
    %v5610 = vld [vmem:[#allocation3] sm:$0x3]
    %v5611 = vld [vmem:[#allocation3 + $0x8] sm:$0x3]
    %v5612 = vld [vmem:[#allocation3] sm:$0xc]
    %v5613 = vld [vmem:[#allocation3 + $0x8] sm:$0xc]
    %v5614 = vld [vmem:[#allocation3] sm:$0x30]
    %v5615 = vld [vmem:[#allocation3 + $0x8] sm:$0x30]
    %v5616 = vld [vmem:[#allocation3] sm:$0xc0]
    %v5617 = vld [vmem:[#allocation3 + $0x8] sm:$0xc0]
    %v5618 = vld [vmem:[#allocation3 + $0x10] sm:$0x3]
    %v5619 = vld [vmem:[#allocation3 + $0x18] sm:$0x3]
    %v5620 = vld [vmem:[#allocation3 + $0x10] sm:$0xc]
    %v5621 = vld [vmem:[#allocation3 + $0x18] sm:$0xc]
    %v5622 = vld [vmem:[#allocation3 + $0x10] sm:$0x30]
    %v5623 = vld [vmem:[#allocation3 + $0x18] sm:$0x30]
    %v5624 = vld [vmem:[#allocation3 + $0x10] sm:$0xc0]
    %v5625 = vld [vmem:[#allocation3 + $0x18] sm:$0xc0]
    %v5628 = vcombine.low %v5610, %v5611
    %v5630 = vunpack.c.l.s4 1966171168
    %v5631 = vunpack.c.0.s8 %v5630
    %v5632 = vlaneseq
    %v5633 = vshrl.u32 %v5632, 7
    %v5634 = vsub.s32 %v5631, %v5633
    %v5635 = vrot.slane %v5628, %v5634
    %v5636 = vcombine.high %v5635, %v5635
    %v5638 = vunpack.c.l.s4 1966171168
    %v5639 = vunpack.c.0.s8 %v5638
    %v5640 = vlaneseq
    %v5641 = vshrl.u32 %v5640, 7
    %v5642 = vsub.s32 %v5639, %v5641
    %v5643 = vrot.slane %v5635, %v5642
    %v5645 = vunpack.c.l.s4 1966171168
    %v5646 = vunpack.c.0.s8 %v5645
    %v5647 = vlaneseq
    %v5648 = vshrl.u32 %v5647, 7
    %v5649 = vsub.s32 %v5646, %v5648
    %v5650 = vrot.slane %v5636, %v5649
    %v5653 = vcombine.low %v5612, %v5613
    %v5655 = vunpack.c.l.s4 1966171168
    %v5656 = vunpack.c.0.s8 %v5655
    %v5657 = vlaneseq
    %v5658 = vshrl.u32 %v5657, 7
    %v5659 = vsub.s32 %v5656, %v5658
    %v5660 = vrot.slane %v5653, %v5659
    %v5661 = vcombine.high %v5660, %v5660
    %v5663 = vunpack.c.l.s4 1966171168
    %v5664 = vunpack.c.0.s8 %v5663
    %v5665 = vlaneseq
    %v5666 = vshrl.u32 %v5665, 7
    %v5667 = vsub.s32 %v5664, %v5666
    %v5668 = vrot.slane %v5660, %v5667
    %v5670 = vunpack.c.l.s4 1966171168
    %v5671 = vunpack.c.0.s8 %v5670
    %v5672 = vlaneseq
    %v5673 = vshrl.u32 %v5672, 7
    %v5674 = vsub.s32 %v5671, %v5673
    %v5675 = vrot.slane %v5661, %v5674
    %v5676 = vcombine.high %v5668, %v5668
    %v5677 = vcombine.high %v5675, %v5675
    %v5680 = vcombine.high %v5614, %v5615
    %v5682 = vunpack.c.l.s4 1966171168
    %v5683 = vunpack.c.0.s8 %v5682
    %v5684 = vlaneseq
    %v5685 = vshrl.u32 %v5684, 7
    %v5686 = vsub.s32 %v5683, %v5685
    %v5687 = vrot.slane %v5680, %v5686
    %v5688 = vcombine.high %v5687, %v5687
    %v5690 = vunpack.c.l.s4 1966171168
    %v5691 = vunpack.c.0.s8 %v5690
    %v5692 = vlaneseq
    %v5693 = vshrl.u32 %v5692, 7
    %v5694 = vsub.s32 %v5691, %v5693
    %v5695 = vrot.slane %v5687, %v5694
    %v5697 = vunpack.c.l.s4 1966171168
    %v5698 = vunpack.c.0.s8 %v5697
    %v5699 = vlaneseq
    %v5700 = vshrl.u32 %v5699, 7
    %v5701 = vsub.s32 %v5698, %v5700
    %v5702 = vrot.slane %v5688, %v5701
    %v5705 = vcombine.high %v5616, %v5617
    %v5707 = vunpack.c.l.s4 1966171168
    %v5708 = vunpack.c.0.s8 %v5707
    %v5709 = vlaneseq
    %v5710 = vshrl.u32 %v5709, 7
    %v5711 = vsub.s32 %v5708, %v5710
    %v5712 = vrot.slane %v5705, %v5711
    %v5713 = vcombine.high %v5712, %v5712
    %v5715 = vunpack.c.l.s4 1966171168
    %v5716 = vunpack.c.0.s8 %v5715
    %v5717 = vlaneseq
    %v5718 = vshrl.u32 %v5717, 7
    %v5719 = vsub.s32 %v5716, %v5718
    %v5720 = vrot.slane %v5712, %v5719
    %v5722 = vunpack.c.l.s4 1966171168
    %v5723 = vunpack.c.0.s8 %v5722
    %v5724 = vlaneseq
    %v5725 = vshrl.u32 %v5724, 7
    %v5726 = vsub.s32 %v5723, %v5725
    %v5727 = vrot.slane %v5713, %v5726
    %v5728 = vcombine.high %v5720, %v5720
    %v5729 = vcombine.high %v5727, %v5727
    %v5732 = vcombine.low %v5618, %v5619
    %v5734 = vunpack.c.l.s4 1966171168
    %v5735 = vunpack.c.0.s8 %v5734
    %v5736 = vlaneseq
    %v5737 = vshrl.u32 %v5736, 7
    %v5738 = vsub.s32 %v5735, %v5737
    %v5739 = vrot.slane %v5732, %v5738
    %v5740 = vcombine.high %v5739, %v5739
    %v5742 = vunpack.c.l.s4 1966171168
    %v5743 = vunpack.c.0.s8 %v5742
    %v5744 = vlaneseq
    %v5745 = vshrl.u32 %v5744, 7
    %v5746 = vsub.s32 %v5743, %v5745
    %v5747 = vrot.slane %v5739, %v5746
    %v5749 = vunpack.c.l.s4 1966171168
    %v5750 = vunpack.c.0.s8 %v5749
    %v5751 = vlaneseq
    %v5752 = vshrl.u32 %v5751, 7
    %v5753 = vsub.s32 %v5750, %v5752
    %v5754 = vrot.slane %v5740, %v5753
    %v5757 = vcombine.low %v5620, %v5621
    %v5759 = vunpack.c.l.s4 1966171168
    %v5760 = vunpack.c.0.s8 %v5759
    %v5761 = vlaneseq
    %v5762 = vshrl.u32 %v5761, 7
    %v5763 = vsub.s32 %v5760, %v5762
    %v5764 = vrot.slane %v5757, %v5763
    %v5765 = vcombine.high %v5764, %v5764
    %v5767 = vunpack.c.l.s4 1966171168
    %v5768 = vunpack.c.0.s8 %v5767
    %v5769 = vlaneseq
    %v5770 = vshrl.u32 %v5769, 7
    %v5771 = vsub.s32 %v5768, %v5770
    %v5772 = vrot.slane %v5764, %v5771
    %v5774 = vunpack.c.l.s4 1966171168
    %v5775 = vunpack.c.0.s8 %v5774
    %v5776 = vlaneseq
    %v5777 = vshrl.u32 %v5776, 7
    %v5778 = vsub.s32 %v5775, %v5777
    %v5779 = vrot.slane %v5765, %v5778
    %v5780 = vcombine.high %v5772, %v5772
    %v5781 = vcombine.high %v5779, %v5779
    %v5784 = vcombine.high %v5622, %v5623
    %v5786 = vunpack.c.l.s4 1966171168
    %v5787 = vunpack.c.0.s8 %v5786
    %v5788 = vlaneseq
    %v5789 = vshrl.u32 %v5788, 7
    %v5790 = vsub.s32 %v5787, %v5789
    %v5791 = vrot.slane %v5784, %v5790
    %v5792 = vcombine.high %v5791, %v5791
    %v5794 = vunpack.c.l.s4 1966171168
    %v5795 = vunpack.c.0.s8 %v5794
    %v5796 = vlaneseq
    %v5797 = vshrl.u32 %v5796, 7
    %v5798 = vsub.s32 %v5795, %v5797
    %v5799 = vrot.slane %v5791, %v5798
    %v5801 = vunpack.c.l.s4 1966171168
    %v5802 = vunpack.c.0.s8 %v5801
    %v5803 = vlaneseq
    %v5804 = vshrl.u32 %v5803, 7
    %v5805 = vsub.s32 %v5802, %v5804
    %v5806 = vrot.slane %v5792, %v5805
    %v5809 = vcombine.high %v5624, %v5625
    %v5811 = vunpack.c.l.s4 1966171168
    %v5812 = vunpack.c.0.s8 %v5811
    %v5813 = vlaneseq
    %v5814 = vshrl.u32 %v5813, 7
    %v5815 = vsub.s32 %v5812, %v5814
    %v5816 = vrot.slane %v5809, %v5815
    %v5817 = vcombine.high %v5816, %v5816
    %v5819 = vunpack.c.l.s4 1966171168
    %v5820 = vunpack.c.0.s8 %v5819
    %v5821 = vlaneseq
    %v5822 = vshrl.u32 %v5821, 7
    %v5823 = vsub.s32 %v5820, %v5822
    %v5824 = vrot.slane %v5816, %v5823
    %v5826 = vunpack.c.l.s4 1966171168
    %v5827 = vunpack.c.0.s8 %v5826
    %v5828 = vlaneseq
    %v5829 = vshrl.u32 %v5828, 7
    %v5830 = vsub.s32 %v5827, %v5829
    %v5831 = vrot.slane %v5817, %v5830
    %v5832 = vcombine.high %v5824, %v5824
    %v5833 = vcombine.high %v5831, %v5831
    %v5834 = vlaneseq
    %v5835 = vshrl.u32 %v5834, 7
    %v5836 = vsub.s32 0, %v5835
    %v5837 = vrot.slane %v5643, %v5836
    %v5838 = vlaneseq
    %v5839 = vshrl.u32 %v5838, 7
    %v5840 = vsub.s32 1, %v5839
    %v5841 = vrot.slane %v5643, %v5840
    %v5842 = vlaneseq
    %v5843 = vshrl.u32 %v5842, 7
    %v5844 = vsub.s32 0, %v5843
    %v5845 = vrot.slane %v5650, %v5844
    %v5846 = vlaneseq
    %v5847 = vshrl.u32 %v5846, 7
    %v5848 = vsub.s32 1, %v5847
    %v5849 = vrot.slane %v5650, %v5848
    %v5854 = vlaneseq
    %v5855 = vshrl.u32 %v5854, 7
    %v5856 = vsub.s32 0, %v5855
    %v5857 = vrot.slane %v5676, %v5856
    %v5858 = vlaneseq
    %v5859 = vshrl.u32 %v5858, 7
    %v5860 = vsub.s32 1, %v5859
    %v5861 = vrot.slane %v5676, %v5860
    %v5862 = vlaneseq
    %v5863 = vshrl.u32 %v5862, 7
    %v5864 = vsub.s32 0, %v5863
    %v5865 = vrot.slane %v5677, %v5864
    %v5866 = vlaneseq
    %v5867 = vshrl.u32 %v5866, 7
    %v5868 = vsub.s32 1, %v5867
    %v5869 = vrot.slane %v5677, %v5868
    %v5874 = vlaneseq
    %v5875 = vshrl.u32 %v5874, 7
    %v5876 = vsub.s32 0, %v5875
    %v5877 = vrot.slane %v5695, %v5876
    %v5878 = vlaneseq
    %v5879 = vshrl.u32 %v5878, 7
    %v5880 = vsub.s32 1, %v5879
    %v5881 = vrot.slane %v5695, %v5880
    %v5882 = vlaneseq
    %v5883 = vshrl.u32 %v5882, 7
    %v5884 = vsub.s32 0, %v5883
    %v5885 = vrot.slane %v5702, %v5884
    %v5886 = vlaneseq
    %v5887 = vshrl.u32 %v5886, 7
    %v5888 = vsub.s32 1, %v5887
    %v5889 = vrot.slane %v5702, %v5888
    %v5894 = vlaneseq
    %v5895 = vshrl.u32 %v5894, 7
    %v5896 = vsub.s32 0, %v5895
    %v5897 = vrot.slane %v5728, %v5896
    %v5898 = vlaneseq
    %v5899 = vshrl.u32 %v5898, 7
    %v5900 = vsub.s32 1, %v5899
    %v5901 = vrot.slane %v5728, %v5900
    %v5902 = vlaneseq
    %v5903 = vshrl.u32 %v5902, 7
    %v5904 = vsub.s32 0, %v5903
    %v5905 = vrot.slane %v5729, %v5904
    %v5906 = vlaneseq
    %v5907 = vshrl.u32 %v5906, 7
    %v5908 = vsub.s32 1, %v5907
    %v5909 = vrot.slane %v5729, %v5908
    %v5914 = vlaneseq
    %v5915 = vshrl.u32 %v5914, 7
    %v5916 = vsub.s32 0, %v5915
    %v5917 = vrot.slane %v5747, %v5916
    %v5918 = vlaneseq
    %v5919 = vshrl.u32 %v5918, 7
    %v5920 = vsub.s32 1, %v5919
    %v5921 = vrot.slane %v5747, %v5920
    %v5922 = vlaneseq
    %v5923 = vshrl.u32 %v5922, 7
    %v5924 = vsub.s32 0, %v5923
    %v5925 = vrot.slane %v5754, %v5924
    %v5926 = vlaneseq
    %v5927 = vshrl.u32 %v5926, 7
    %v5928 = vsub.s32 1, %v5927
    %v5929 = vrot.slane %v5754, %v5928
    %v5934 = vlaneseq
    %v5935 = vshrl.u32 %v5934, 7
    %v5936 = vsub.s32 0, %v5935
    %v5937 = vrot.slane %v5780, %v5936
    %v5938 = vlaneseq
    %v5939 = vshrl.u32 %v5938, 7
    %v5940 = vsub.s32 1, %v5939
    %v5941 = vrot.slane %v5780, %v5940
    %v5942 = vlaneseq
    %v5943 = vshrl.u32 %v5942, 7
    %v5944 = vsub.s32 0, %v5943
    %v5945 = vrot.slane %v5781, %v5944
    %v5946 = vlaneseq
    %v5947 = vshrl.u32 %v5946, 7
    %v5948 = vsub.s32 1, %v5947
    %v5949 = vrot.slane %v5781, %v5948
    %v5954 = vlaneseq
    %v5955 = vshrl.u32 %v5954, 7
    %v5956 = vsub.s32 0, %v5955
    %v5957 = vrot.slane %v5799, %v5956
    %v5958 = vlaneseq
    %v5959 = vshrl.u32 %v5958, 7
    %v5960 = vsub.s32 1, %v5959
    %v5961 = vrot.slane %v5799, %v5960
    %v5962 = vlaneseq
    %v5963 = vshrl.u32 %v5962, 7
    %v5964 = vsub.s32 0, %v5963
    %v5965 = vrot.slane %v5806, %v5964
    %v5966 = vlaneseq
    %v5967 = vshrl.u32 %v5966, 7
    %v5968 = vsub.s32 1, %v5967
    %v5969 = vrot.slane %v5806, %v5968
    %v5974 = vlaneseq
    %v5975 = vshrl.u32 %v5974, 7
    %v5976 = vsub.s32 0, %v5975
    %v5977 = vrot.slane %v5832, %v5976
    %v5978 = vlaneseq
    %v5979 = vshrl.u32 %v5978, 7
    %v5980 = vsub.s32 1, %v5979
    %v5981 = vrot.slane %v5832, %v5980
    %v5982 = vlaneseq
    %v5983 = vshrl.u32 %v5982, 7
    %v5984 = vsub.s32 0, %v5983
    %v5985 = vrot.slane %v5833, %v5984
    %v5986 = vlaneseq
    %v5987 = vshrl.u32 %v5986, 7
    %v5988 = vsub.s32 1, %v5987
    %v5989 = vrot.slane %v5833, %v5988
    %vm5994 = vcmask 1040384
    %v5995 = vsel %vm5994, %v5837, %v5857
    %v5996 = vsel %vm5994, %v5841, %v5861
    %v5997 = vsel %vm5994, %v5845, %v5865
    %v5998 = vsel %vm5994, %v5849, %v5869
    %v5999 = vsel %vm1509, %v5995, %v5877
    %v6000 = vsel %vm1509, %v5996, %v5881
    %v6001 = vsel %vm1509, %v5997, %v5885
    %v6002 = vsel %vm1509, %v5998, %v5889
    %vm6003 = vcmask 1042432
    %v6004 = vsel %vm6003, %v5999, %v5897
    %v6005 = vsel %vm6003, %v6000, %v5901
    %v6006 = vsel %vm6003, %v6001, %v5905
    %v6007 = vsel %vm6003, %v6002, %v5909
    %vm6008 = vcmask 1043456
    %v6009 = vsel %vm6008, %v6004, %v5917
    %v6010 = vsel %vm6008, %v6005, %v5921
    %v6011 = vsel %vm6008, %v6006, %v5925
    %v6012 = vsel %vm6008, %v6007, %v5929
    %vm6013 = vcmask 1044480
    %v6014 = vsel %vm6013, %v6009, %v5937
    %v6015 = vsel %vm6013, %v6010, %v5941
    %v6016 = vsel %vm6013, %v6011, %v5945
    %v6017 = vsel %vm6013, %v6012, %v5949
    %vm6018 = vcmask 1045504
    %v6019 = vsel %vm6018, %v6014, %v5957
    %v6020 = vsel %vm6018, %v6015, %v5961
    %v6021 = vsel %vm6018, %v6016, %v5965
    %v6022 = vsel %vm6018, %v6017, %v5969
    %vm6023 = vcmask 1046528
    %v6024 = vsel %vm6023, %v6019, %v5977
    %v6025 = vsel %vm6023, %v6020, %v5981
    %v6026 = vsel %vm6023, %v6021, %v5985
    %v6027 = vsel %vm6023, %v6022, %v5989
    %v6028 = vld [vmem:[%s8] sm:$0x3]
    %v6029 = vpack.c.bf16 %v5601, %v5601
    %v6030 = vpack.c.bf16 %v5603, %v5603
    %v6031 = vld [vmem:[#allocation6] sm:$0xff]
    %v6032 = vld [vmem:[#allocation6 + $0x8] sm:$0xff]
    %v6033 = vld [vmem:[#allocation6 + $0x10] sm:$0xff]
    %v6034 = vld [vmem:[#allocation6 + $0x18] sm:$0xff]
    %v6035 = vld [vmem:[#allocation6 + $0x20] sm:$0xff]
    %v6036 = vld [vmem:[#allocation6 + $0x28] sm:$0xff]
    %v6037 = vld [vmem:[#allocation6 + $0x30] sm:$0xff]
    %v6038 = vld [vmem:[#allocation6 + $0x38] sm:$0xff]
    %v6039 = vld [vmem:[#allocation6 + $0x40] sm:$0xff]
    %v6040 = vld [vmem:[#allocation6 + $0x48] sm:$0xff]
    %v6041 = vld [vmem:[#allocation6 + $0x50] sm:$0xff]
    %v6042 = vld [vmem:[#allocation6 + $0x58] sm:$0xff]
    %v6043 = vld [vmem:[#allocation6 + $0x60] sm:$0xff]
    %v6044 = vld [vmem:[#allocation6 + $0x68] sm:$0xff]
    %v6045 = vld [vmem:[#allocation6 + $0x70] sm:$0xff]
    %v6046 = vld [vmem:[#allocation6 + $0x78] sm:$0xff]
    %v6047 = vld [vmem:[#allocation6 + $0x80] sm:$0xff]
    %v6048 = vld [vmem:[#allocation6 + $0x88] sm:$0xff]
    %v6049 = vld [vmem:[#allocation6 + $0x90] sm:$0xff]
    %v6050 = vld [vmem:[#allocation6 + $0x98] sm:$0xff]
    %v6051 = vld [vmem:[#allocation6 + $0xa0] sm:$0xff]
    %v6052 = vld [vmem:[#allocation6 + $0xa8] sm:$0xff]
    %v6053 = vld [vmem:[#allocation6 + $0xb0] sm:$0xff]
    %v6054 = vld [vmem:[#allocation6 + $0xb8] sm:$0xff]
    %v6055 = vld [vmem:[#allocation6 + $0xc0] sm:$0xff]
    %v6056 = vld [vmem:[#allocation6 + $0xc8] sm:$0xff]
    %v6057 = vld [vmem:[#allocation6 + $0xd0] sm:$0xff]
    %v6058 = vld [vmem:[#allocation6 + $0xd8] sm:$0xff]
    %v6059 = vld [vmem:[#allocation6 + $0xe0] sm:$0xff]
    %v6060 = vld [vmem:[#allocation6 + $0xe8] sm:$0xff]
    %v6061 = vld [vmem:[#allocation6 + $0xf0] sm:$0xff]
    %v6062 = vld [vmem:[#allocation6 + $0xf8] sm:$0xff]
    %6063 = vmatprep.subr.bf16.mxu0 %v6032
    %6064 = vmatpush1.bf16.msra.mxu0 %v6031
    %6065 = vmatprep.subr.bf16.mxu0 %v6034
    %6066 = vmatpush1.bf16.msra.mxu0 %v6033
    %6067 = vmatprep.subr.bf16.mxu0 %v6036
    %6068 = vmatpush1.bf16.msra.mxu0 %v6035
    %6069 = vmatprep.subr.bf16.mxu0 %v6038
    %6070 = vmatpush1.bf16.msra.mxu0 %v6037
    %6071 = vmatprep.subr.bf16.mxu0 %v6040
    %6072 = vmatpush1.bf16.msra.mxu0 %v6039
    %6073 = vmatprep.subr.bf16.mxu0 %v6042
    %6074 = vmatpush1.bf16.msra.mxu0 %v6041
    %6075 = vmatprep.subr.bf16.mxu0 %v6044
    %6076 = vmatpush1.bf16.msra.mxu0 %v6043
    %6077 = vmatprep.subr.bf16.mxu0 %v6046
    %6078 = vmatpush1.bf16.msra.mxu0 %v6045
    %6079 = vmatprep.subr.bf16.mxu0 %v6048
    %6080 = vmatpush1.bf16.msra.mxu0 %v6047
    %6081 = vmatprep.subr.bf16.mxu0 %v6050
    %6082 = vmatpush1.bf16.msra.mxu0 %v6049
    %6083 = vmatprep.subr.bf16.mxu0 %v6052
    %6084 = vmatpush1.bf16.msra.mxu0 %v6051
    %6085 = vmatprep.subr.bf16.mxu0 %v6054
    %6086 = vmatpush1.bf16.msra.mxu0 %v6053
    %6087 = vmatprep.subr.bf16.mxu0 %v6056
    %6088 = vmatpush1.bf16.msra.mxu0 %v6055
    %6089 = vmatprep.subr.bf16.mxu0 %v6058
    %6090 = vmatpush1.bf16.msra.mxu0 %v6057
    %6091 = vmatprep.subr.bf16.mxu0 %v6060
    %6092 = vmatpush1.bf16.msra.mxu0 %v6059
    %6093 = vmatprep.subr.bf16.mxu0 %v6062
    %6094 = vmatpush1.bf16.msra.mxu0 %v6061
    %6095 = vmatprep.mubr.bf16.mxu0 %v6030
    %6096 = vmatmul.mubr.bf16.gmra.mrb[0].mxu0 %v6029
    %v6097 = vpop.f32.mrb[0].mxu0
    %v6098 = vadd.f32 0.0, %v6097
    %v6099 = vpop.f32.mrb[0].mxu0
    %v6100 = vadd.f32 0.0, %v6099
    %v6101 = vpop.f32.mrb[0].mxu0
    %v6102 = vpop.f32.mrb[0].mxu0
    %6103 = vdwg.mxu0
    %v6106 = vcombine.low %v6098, %v6100
    %v6108 = vunpack.c.l.s4 1966171168
    %v6109 = vunpack.c.0.s8 %v6108
    %v6110 = vlaneseq
    %v6111 = vshrl.u32 %v6110, 7
    %v6112 = vsub.s32 %v6109, %v6111
    %v6113 = vrot.slane %v6106, %v6112
    %v6114 = vcombine.high %v6113, %v6113
    %v6116 = vunpack.c.l.s4 1966171168
    %v6117 = vunpack.c.0.s8 %v6116
    %v6118 = vlaneseq
    %v6119 = vshrl.u32 %v6118, 7
    %v6120 = vsub.s32 %v6117, %v6119
    %v6121 = vrot.slane %v6113, %v6120
    %v6123 = vunpack.c.l.s4 1966171168
    %v6124 = vunpack.c.0.s8 %v6123
    %v6125 = vlaneseq
    %v6126 = vshrl.u32 %v6125, 7
    %v6127 = vsub.s32 %v6124, %v6126
    %v6128 = vrot.slane %v6114, %v6127
    %v6129 = vlaneseq
    %v6130 = vshrl.u32 %v6129, 7
    %v6131 = vsub.s32 0, %v6130
    %v6132 = vrot.slane %v6121, %v6131
    %v6133 = vlaneseq
    %v6134 = vshrl.u32 %v6133, 7
    %v6135 = vsub.s32 1, %v6134
    %v6136 = vrot.slane %v6121, %v6135
    %v6137 = vlaneseq
    %v6138 = vshrl.u32 %v6137, 7
    %v6139 = vsub.s32 0, %v6138
    %v6140 = vrot.slane %v6128, %v6139
    %v6141 = vlaneseq
    %v6142 = vshrl.u32 %v6141, 7
    %v6143 = vsub.s32 1, %v6142
    %v6144 = vrot.slane %v6128, %v6143
    %v6149 = vmul.f32 %v6024, %v6132
    %v6150 = vmul.f32 %v6025, %v6136
    %v6151 = vmul.f32 %v6026, %v6140
    %v6152 = vmul.f32 %v6027, %v6144
    %v6153 = vadd.f32 %v6149, %v6150
    %6154 = vadd.xlane.f32.xlu0 %v6153
    %v6155 = vpop.xlane.xlu0 %6154
    %v6156 = vadd.f32 %v6151, %v6152
    %6157 = vadd.xlane.f32.xlu0 %v6156
    %v6158 = vpop.xlane.xlu0 %6157
    %v6160 = vlaneseq
    %v6161 = vshrl.u32 %v6160, 7
    %v6162 = vsub.s32 0, %v6161
    %v6163 = vrot.slane %v6028, %v6162
    %6165 = vbcast.lane.b32.xlu0 %v6163, 256
    %v6166 = vpop.permute.xlu0 %6165
    %v6167 = vlaneseq
    %v6168 = vshrl.u32 %v6167, 7
    %v6169 = vsub.s32 1, %v6168
    %v6170 = vrot.slane %v6028, %v6169
    %6172 = vbcast.lane.b32.xlu0 %v6170, 256
    %v6173 = vpop.permute.xlu0 %6172
    %v6176 = vmul.f32 %v6155, %v6166
    %v6177 = vmul.f32 %v6158, %v6173
    %6180 = vset.pattern.permute.xlu0 0
    %6181 = vperm.xlu0 %6180, %v6176
    %v6182 = vpop.permute.xlu0 %6181
    %6183 = vset.pattern.permute.xlu0 0
    %6184 = vperm.xlu0 %6183, %v6177
    %v6185 = vpop.permute.xlu0 %6184
    %v6186 = vlaneseq
    %v6187 = vshrl.u32 %v6186, 7
    %v6188 = vsub.s32 %v520, %v6187
    %v6189 = vrot.slane %v6182, %v6188
    %v6190 = vlaneseq
    %v6191 = vshrl.u32 %v6190, 7
    %v6192 = vsub.s32 %v520, %v6191
    %v6193 = vrot.slane %v6185, %v6192
    %vm6194 = vcmask 1041409
    %v6195 = vsel %vm6194, %v6193, %v6189
    %vm6197 = vcmask 58368
    %v6198 = vsel %vm6197, %v6195, -inf
    %6199 = vmax.xlane.f32.xlu0 %v6198
    %v6200 = vpop.xlane.xlu0 %6199
    %v6202 = vlaneseq
    %v6203 = vshrl.u32 %v6202, 7
    %v6204 = vsub.s32 0, %v6203
    %v6205 = vrot.slane %v6200, %v6204
    %v6206 = vlaneseq
    %v6207 = vshrl.u32 %v6206, 7
    %v6208 = vsub.s32 1, %v6207
    %v6209 = vrot.slane %v6200, %v6208
    %v6212 = vsub.f32 %v6176, %v6205
    %v6213 = vsub.f32 %v6177, %v6209
    %v6214 = vmul.f32 %v6212, 1.442695
    %v6215 = vpow.pop %v6214
    %v6216 = vmul.f32 %v6213, 1.442695
    %v6217 = vpow.pop %v6216
    %6220 = vset.pattern.permute.xlu0 0
    %6221 = vperm.xlu0 %6220, %v6215
    %v6222 = vpop.permute.xlu0 %6221
    %6223 = vset.pattern.permute.xlu0 0
    %6224 = vperm.xlu0 %6223, %v6217
    %v6225 = vpop.permute.xlu0 %6224
    %v6226 = vlaneseq
    %v6227 = vshrl.u32 %v6226, 7
    %v6228 = vsub.s32 %v520, %v6227
    %v6229 = vrot.slane %v6222, %v6228
    %v6230 = vlaneseq
    %v6231 = vshrl.u32 %v6230, 7
    %v6232 = vsub.s32 %v520, %v6231
    %v6233 = vrot.slane %v6225, %v6232
    %v6234 = vsel %vm6194, %v6233, %v6229
    %v6236 = vsel %vm6197, %v6234, 0.0
    %6237 = vadd.xlane.f32.xlu0 %v6236
    %v6238 = vpop.xlane.xlu0 %6237
    %v6239 = vrcp.pop %v6238
    %v6241 = vlaneseq
    %v6242 = vshrl.u32 %v6241, 7
    %v6243 = vsub.s32 0, %v6242
    %v6244 = vrot.slane %v6239, %v6243
    %v6245 = vlaneseq
    %v6246 = vshrl.u32 %v6245, 7
    %v6247 = vsub.s32 1, %v6246
    %v6248 = vrot.slane %v6239, %v6247
    %v6251 = vmul.f32 %v6215, %v6244
    %v6252 = vmul.f32 %v6217, %v6248
    %v6253 = vmul.f32 %v6251, %v6166
    %v6254 = vmul.f32 %v6252, %v6173
    %6256 = vset.pattern.permute.xlu0 0
    %6257 = vperm.xlu0 %6256, %v6253
    %v6258 = vpop.permute.xlu0 %6257
    %6261 = vset.pattern.permute.xlu0 0
    %6262 = vperm.xlu0 %6261, %v6254
    %v6263 = vpop.permute.xlu0 %6262
    %v6265 = vmul.f32 %v6024, %v6258
    %v6266 = vmul.f32 %v6025, %v6258
    %v6267 = vmul.f32 %v6026, %v6263
    %v6268 = vmul.f32 %v6027, %v6263
    %v6269 = vrot.slane %v6265, 4
    %v6270 = vadd.f32 %v6265, %v6269
    %v6271 = vrot.slane %v6270, 2
    %v6272 = vadd.f32 %v6270, %v6271
    %v6273 = vrot.slane %v6272, 1
    %v6274 = vadd.f32 %v6272, %v6273
    %v6275 = vrot.slane %v6266, 4
    %v6276 = vadd.f32 %v6266, %v6275
    %v6277 = vrot.slane %v6276, 2
    %v6278 = vadd.f32 %v6276, %v6277
    %v6279 = vrot.slane %v6278, 1
    %v6280 = vadd.f32 %v6278, %v6279
    %v6281 = vrot.slane %v6267, 4
    %v6282 = vadd.f32 %v6267, %v6281
    %v6283 = vrot.slane %v6282, 2
    %v6284 = vadd.f32 %v6282, %v6283
    %v6285 = vrot.slane %v6284, 1
    %v6286 = vadd.f32 %v6284, %v6285
    %v6287 = vrot.slane %v6268, 4
    %v6288 = vadd.f32 %v6268, %v6287
    %v6289 = vrot.slane %v6288, 2
    %v6290 = vadd.f32 %v6288, %v6289
    %v6291 = vrot.slane %v6290, 1
    %v6292 = vadd.f32 %v6290, %v6291
    %s6293 = smul.u32 4, 64
    %s6294 = smul.u32 %s6293, 4
    %s6295 = sshll.u32 %s6294, 4
    %6296 = dma.done %s482, %s6295
    %v6301 = vsel %vm6194, %v6286, %v6274
    %v6302 = vsel %vm6194, %v6292, %v6280
    %v6305 = vpack.c.bf16 %v6301, %v6301
    %v6306 = vpack.c.bf16 %v6302, %v6302
    %v6307 = vld [vmem:[#allocation7] sm:$0xff]
    %v6308 = vld [vmem:[#allocation7 + $0x8] sm:$0xff]
    %v6309 = vld [vmem:[#allocation7 + $0x10] sm:$0xff]
    %v6310 = vld [vmem:[#allocation7 + $0x18] sm:$0xff]
    %v6311 = vld [vmem:[#allocation7 + $0x20] sm:$0xff]
    %v6312 = vld [vmem:[#allocation7 + $0x28] sm:$0xff]
    %v6313 = vld [vmem:[#allocation7 + $0x30] sm:$0xff]
    %v6314 = vld [vmem:[#allocation7 + $0x38] sm:$0xff]
    %v6315 = vld [vmem:[#allocation7 + $0x40] sm:$0xff]
    %v6316 = vld [vmem:[#allocation7 + $0x48] sm:$0xff]
    %v6317 = vld [vmem:[#allocation7 + $0x50] sm:$0xff]
    %v6318 = vld [vmem:[#allocation7 + $0x58] sm:$0xff]
    %v6319 = vld [vmem:[#allocation7 + $0x60] sm:$0xff]
    %v6320 = vld [vmem:[#allocation7 + $0x68] sm:$0xff]
    %v6321 = vld [vmem:[#allocation7 + $0x70] sm:$0xff]
    %v6322 = vld [vmem:[#allocation7 + $0x78] sm:$0xff]
    %v6323 = vld [vmem:[#allocation7 + $0x80] sm:$0xff]
    %v6324 = vld [vmem:[#allocation7 + $0x88] sm:$0xff]
    %v6325 = vld [vmem:[#allocation7 + $0x90] sm:$0xff]
    %v6326 = vld [vmem:[#allocation7 + $0x98] sm:$0xff]
    %v6327 = vld [vmem:[#allocation7 + $0xa0] sm:$0xff]
    %v6328 = vld [vmem:[#allocation7 + $0xa8] sm:$0xff]
    %v6329 = vld [vmem:[#allocation7 + $0xb0] sm:$0xff]
    %v6330 = vld [vmem:[#allocation7 + $0xb8] sm:$0xff]
    %v6331 = vld [vmem:[#allocation7 + $0xc0] sm:$0xff]
    %v6332 = vld [vmem:[#allocation7 + $0xc8] sm:$0xff]
    %v6333 = vld [vmem:[#allocation7 + $0xd0] sm:$0xff]
    %v6334 = vld [vmem:[#allocation7 + $0xd8] sm:$0xff]
    %v6335 = vld [vmem:[#allocation7 + $0xe0] sm:$0xff]
    %v6336 = vld [vmem:[#allocation7 + $0xe8] sm:$0xff]
    %v6337 = vld [vmem:[#allocation7 + $0xf0] sm:$0xff]
    %v6338 = vld [vmem:[#allocation7 + $0xf8] sm:$0xff]
    %v6339 = vld [vmem:[#allocation7 + $0x100] sm:$0xff]
    %v6340 = vld [vmem:[#allocation7 + $0x108] sm:$0xff]
    %v6341 = vld [vmem:[#allocation7 + $0x110] sm:$0xff]
    %v6342 = vld [vmem:[#allocation7 + $0x118] sm:$0xff]
    %v6343 = vld [vmem:[#allocation7 + $0x120] sm:$0xff]
    %v6344 = vld [vmem:[#allocation7 + $0x128] sm:$0xff]
    %v6345 = vld [vmem:[#allocation7 + $0x130] sm:$0xff]
    %v6346 = vld [vmem:[#allocation7 + $0x138] sm:$0xff]
    %v6347 = vld [vmem:[#allocation7 + $0x140] sm:$0xff]
    %v6348 = vld [vmem:[#allocation7 + $0x148] sm:$0xff]
    %v6349 = vld [vmem:[#allocation7 + $0x150] sm:$0xff]
    %v6350 = vld [vmem:[#allocation7 + $0x158] sm:$0xff]
    %v6351 = vld [vmem:[#allocation7 + $0x160] sm:$0xff]
    %v6352 = vld [vmem:[#allocation7 + $0x168] sm:$0xff]
    %v6353 = vld [vmem:[#allocation7 + $0x170] sm:$0xff]
    %v6354 = vld [vmem:[#allocation7 + $0x178] sm:$0xff]
    %v6355 = vld [vmem:[#allocation7 + $0x180] sm:$0xff]
    %v6356 = vld [vmem:[#allocation7 + $0x188] sm:$0xff]
    %v6357 = vld [vmem:[#allocation7 + $0x190] sm:$0xff]
    %v6358 = vld [vmem:[#allocation7 + $0x198] sm:$0xff]
    %v6359 = vld [vmem:[#allocation7 + $0x1a0] sm:$0xff]
    %v6360 = vld [vmem:[#allocation7 + $0x1a8] sm:$0xff]
    %v6361 = vld [vmem:[#allocation7 + $0x1b0] sm:$0xff]
    %v6362 = vld [vmem:[#allocation7 + $0x1b8] sm:$0xff]
    %v6363 = vld [vmem:[#allocation7 + $0x1c0] sm:$0xff]
    %v6364 = vld [vmem:[#allocation7 + $0x1c8] sm:$0xff]
    %v6365 = vld [vmem:[#allocation7 + $0x1d0] sm:$0xff]
    %v6366 = vld [vmem:[#allocation7 + $0x1d8] sm:$0xff]
    %v6367 = vld [vmem:[#allocation7 + $0x1e0] sm:$0xff]
    %v6368 = vld [vmem:[#allocation7 + $0x1e8] sm:$0xff]
    %v6369 = vld [vmem:[#allocation7 + $0x1f0] sm:$0xff]
    %v6370 = vld [vmem:[#allocation7 + $0x1f8] sm:$0xff]
    %v6371 = vld [vmem:[#allocation7 + $0x200] sm:$0xff]
    %v6372 = vld [vmem:[#allocation7 + $0x208] sm:$0xff]
    %v6373 = vld [vmem:[#allocation7 + $0x210] sm:$0xff]
    %v6374 = vld [vmem:[#allocation7 + $0x218] sm:$0xff]
    %v6375 = vld [vmem:[#allocation7 + $0x220] sm:$0xff]
    %v6376 = vld [vmem:[#allocation7 + $0x228] sm:$0xff]
    %v6377 = vld [vmem:[#allocation7 + $0x230] sm:$0xff]
    %v6378 = vld [vmem:[#allocation7 + $0x238] sm:$0xff]
    %v6379 = vld [vmem:[#allocation7 + $0x240] sm:$0xff]
    %v6380 = vld [vmem:[#allocation7 + $0x248] sm:$0xff]
    %v6381 = vld [vmem:[#allocation7 + $0x250] sm:$0xff]
    %v6382 = vld [vmem:[#allocation7 + $0x258] sm:$0xff]
    %v6383 = vld [vmem:[#allocation7 + $0x260] sm:$0xff]
    %v6384 = vld [vmem:[#allocation7 + $0x268] sm:$0xff]
    %v6385 = vld [vmem:[#allocation7 + $0x270] sm:$0xff]
    %v6386 = vld [vmem:[#allocation7 + $0x278] sm:$0xff]
    %v6387 = vld [vmem:[#allocation7 + $0x280] sm:$0xff]
    %v6388 = vld [vmem:[#allocation7 + $0x288] sm:$0xff]
    %v6389 = vld [vmem:[#allocation7 + $0x290] sm:$0xff]
    %v6390 = vld [vmem:[#allocation7 + $0x298] sm:$0xff]
    %v6391 = vld [vmem:[#allocation7 + $0x2a0] sm:$0xff]
    %v6392 = vld [vmem:[#allocation7 + $0x2a8] sm:$0xff]
    %v6393 = vld [vmem:[#allocation7 + $0x2b0] sm:$0xff]
    %v6394 = vld [vmem:[#allocation7 + $0x2b8] sm:$0xff]
    %v6395 = vld [vmem:[#allocation7 + $0x2c0] sm:$0xff]
    %v6396 = vld [vmem:[#allocation7 + $0x2c8] sm:$0xff]
    %v6397 = vld [vmem:[#allocation7 + $0x2d0] sm:$0xff]
    %v6398 = vld [vmem:[#allocation7 + $0x2d8] sm:$0xff]
    %v6399 = vld [vmem:[#allocation7 + $0x2e0] sm:$0xff]
    %v6400 = vld [vmem:[#allocation7 + $0x2e8] sm:$0xff]
    %v6401 = vld [vmem:[#allocation7 + $0x2f0] sm:$0xff]
    %v6402 = vld [vmem:[#allocation7 + $0x2f8] sm:$0xff]
    %v6403 = vld [vmem:[#allocation7 + $0x300] sm:$0xff]
    %v6404 = vld [vmem:[#allocation7 + $0x308] sm:$0xff]
    %v6405 = vld [vmem:[#allocation7 + $0x310] sm:$0xff]
    %v6406 = vld [vmem:[#allocation7 + $0x318] sm:$0xff]
    %v6407 = vld [vmem:[#allocation7 + $0x320] sm:$0xff]
    %v6408 = vld [vmem:[#allocation7 + $0x328] sm:$0xff]
    %v6409 = vld [vmem:[#allocation7 + $0x330] sm:$0xff]
    %v6410 = vld [vmem:[#allocation7 + $0x338] sm:$0xff]
    %v6411 = vld [vmem:[#allocation7 + $0x340] sm:$0xff]
    %v6412 = vld [vmem:[#allocation7 + $0x348] sm:$0xff]
    %v6413 = vld [vmem:[#allocation7 + $0x350] sm:$0xff]
    %v6414 = vld [vmem:[#allocation7 + $0x358] sm:$0xff]
    %v6415 = vld [vmem:[#allocation7 + $0x360] sm:$0xff]
    %v6416 = vld [vmem:[#allocation7 + $0x368] sm:$0xff]
    %v6417 = vld [vmem:[#allocation7 + $0x370] sm:$0xff]
    %v6418 = vld [vmem:[#allocation7 + $0x378] sm:$0xff]
    %v6419 = vld [vmem:[#allocation7 + $0x380] sm:$0xff]
    %v6420 = vld [vmem:[#allocation7 + $0x388] sm:$0xff]
    %v6421 = vld [vmem:[#allocation7 + $0x390] sm:$0xff]
    %v6422 = vld [vmem:[#allocation7 + $0x398] sm:$0xff]
    %v6423 = vld [vmem:[#allocation7 + $0x3a0] sm:$0xff]
    %v6424 = vld [vmem:[#allocation7 + $0x3a8] sm:$0xff]
    %v6425 = vld [vmem:[#allocation7 + $0x3b0] sm:$0xff]
    %v6426 = vld [vmem:[#allocation7 + $0x3b8] sm:$0xff]
    %v6427 = vld [vmem:[#allocation7 + $0x3c0] sm:$0xff]
    %v6428 = vld [vmem:[#allocation7 + $0x3c8] sm:$0xff]
    %v6429 = vld [vmem:[#allocation7 + $0x3d0] sm:$0xff]
    %v6430 = vld [vmem:[#allocation7 + $0x3d8] sm:$0xff]
    %v6431 = vld [vmem:[#allocation7 + $0x3e0] sm:$0xff]
    %v6432 = vld [vmem:[#allocation7 + $0x3e8] sm:$0xff]
    %v6433 = vld [vmem:[#allocation7 + $0x3f0] sm:$0xff]
    %v6434 = vld [vmem:[#allocation7 + $0x3f8] sm:$0xff]
    %v6435 = vld [vmem:[%s9] sm:$0xf]
    %v6437 = vlaneseq
    %v6438 = vshrl.u32 %v6437, 7
    %v6439 = vsub.s32 0, %v6438
    %v6440 = vrot.slane %v6435, %v6439
    %v6441 = vlaneseq
    %v6442 = vshrl.u32 %v6441, 7
    %v6443 = vsub.s32 1, %v6442
    %v6444 = vrot.slane %v6435, %v6443
    %v6445 = vlaneseq
    %v6446 = vshrl.u32 %v6445, 7
    %v6447 = vsub.s32 2, %v6446
    %v6448 = vrot.slane %v6435, %v6447
    %v6449 = vlaneseq
    %v6450 = vshrl.u32 %v6449, 7
    %v6451 = vsub.s32 3, %v6450
    %v6452 = vrot.slane %v6435, %v6451
    %6457 = vmatprep.subr.bf16.mxu0 %v6308
    %6458 = vmatpush1.bf16.msra.mxu0 %v6307
    %6459 = vmatprep.subr.bf16.mxu0 %v6312
    %6460 = vmatpush1.bf16.msra.mxu0 %v6311
    %6461 = vmatprep.subr.bf16.mxu0 %v6316
    %6462 = vmatpush1.bf16.msra.mxu0 %v6315
    %6463 = vmatprep.subr.bf16.mxu0 %v6320
    %6464 = vmatpush1.bf16.msra.mxu0 %v6319
    %6465 = vmatprep.subr.bf16.mxu0 %v6324
    %6466 = vmatpush1.bf16.msra.mxu0 %v6323
    %6467 = vmatprep.subr.bf16.mxu0 %v6328
    %6468 = vmatpush1.bf16.msra.mxu0 %v6327
    %6469 = vmatprep.subr.bf16.mxu0 %v6332
    %6470 = vmatpush1.bf16.msra.mxu0 %v6331
    %6471 = vmatprep.subr.bf16.mxu0 %v6336
    %6472 = vmatpush1.bf16.msra.mxu0 %v6335
    %6473 = vmatprep.subr.bf16.mxu0 %v6340
    %6474 = vmatpush1.bf16.msra.mxu0 %v6339
    %6475 = vmatprep.subr.bf16.mxu0 %v6344
    %6476 = vmatpush1.bf16.msra.mxu0 %v6343
    %6477 = vmatprep.subr.bf16.mxu0 %v6348
    %6478 = vmatpush1.bf16.msra.mxu0 %v6347
    %6479 = vmatprep.subr.bf16.mxu0 %v6352
    %6480 = vmatpush1.bf16.msra.mxu0 %v6351
    %6481 = vmatprep.subr.bf16.mxu0 %v6356
    %6482 = vmatpush1.bf16.msra.mxu0 %v6355
    %6483 = vmatprep.subr.bf16.mxu0 %v6360
    %6484 = vmatpush1.bf16.msra.mxu0 %v6359
    %6485 = vmatprep.subr.bf16.mxu0 %v6364
    %6486 = vmatpush1.bf16.msra.mxu0 %v6363
    %6487 = vmatprep.subr.bf16.mxu0 %v6368
    %6488 = vmatpush1.bf16.msra.mxu0 %v6367
    %6489 = vmatprep.mubr.bf16.mxu0 %v6306
    %6490 = vmatmul.mubr.bf16.gmra.mrb[0].mxu0 %v6305
    %v6491 = vpop.f32.mrb[0].mxu0
    %v6492 = vadd.f32 %v6440, %v6491
    %v6493 = vpop.f32.mrb[0].mxu0
    %v6494 = vadd.f32 %v6444, %v6493
    %v6495 = vpop.f32.mrb[0].mxu0
    %v6496 = vpop.f32.mrb[0].mxu0
    %6497 = vdwg.mxu0
    %6498 = vmatprep.subr.bf16.mxu0 %v6372
    %6499 = vmatpush1.bf16.msra.mxu0 %v6371
    %6500 = vmatprep.subr.bf16.mxu0 %v6376
    %6501 = vmatpush1.bf16.msra.mxu0 %v6375
    %6502 = vmatprep.subr.bf16.mxu0 %v6380
    %6503 = vmatpush1.bf16.msra.mxu0 %v6379
    %6504 = vmatprep.subr.bf16.mxu0 %v6384
    %6505 = vmatpush1.bf16.msra.mxu0 %v6383
    %6506 = vmatprep.subr.bf16.mxu0 %v6388
    %6507 = vmatpush1.bf16.msra.mxu0 %v6387
    %6508 = vmatprep.subr.bf16.mxu0 %v6392
    %6509 = vmatpush1.bf16.msra.mxu0 %v6391
    %6510 = vmatprep.subr.bf16.mxu0 %v6396
    %6511 = vmatpush1.bf16.msra.mxu0 %v6395
    %6512 = vmatprep.subr.bf16.mxu0 %v6400
    %6513 = vmatpush1.bf16.msra.mxu0 %v6399
    %6514 = vmatprep.subr.bf16.mxu0 %v6404
    %6515 = vmatpush1.bf16.msra.mxu0 %v6403
    %6516 = vmatprep.subr.bf16.mxu0 %v6408
    %6517 = vmatpush1.bf16.msra.mxu0 %v6407
    %6518 = vmatprep.subr.bf16.mxu0 %v6412
    %6519 = vmatpush1.bf16.msra.mxu0 %v6411
    %6520 = vmatprep.subr.bf16.mxu0 %v6416
    %6521 = vmatpush1.bf16.msra.mxu0 %v6415
    %6522 = vmatprep.subr.bf16.mxu0 %v6420
    %6523 = vmatpush1.bf16.msra.mxu0 %v6419
    %6524 = vmatprep.subr.bf16.mxu0 %v6424
    %6525 = vmatpush1.bf16.msra.mxu0 %v6423
    %6526 = vmatprep.subr.bf16.mxu0 %v6428
    %6527 = vmatpush1.bf16.msra.mxu0 %v6427
    %6528 = vmatprep.subr.bf16.mxu0 %v6432
    %6529 = vmatpush1.bf16.msra.mxu0 %v6431
    %6530 = vmatprep.mubr.bf16.mxu0 %v6030
    %6531 = vmatmul.mubr.bf16.gmra.mrb[0].mxu0 %v6029
    %v6532 = vpop.f32.mrb[0].mxu0
    %v6533 = vadd.f32 %v6492, %v6532
    %v6534 = vpop.f32.mrb[0].mxu0
    %v6535 = vadd.f32 %v6494, %v6534
    %v6536 = vpop.f32.mrb[0].mxu0
    %v6537 = vpop.f32.mrb[0].mxu0
    %6538 = vdwg.mxu0
    %6539 = vmatprep.subr.bf16.mxu0 %v6310
    %6540 = vmatpush1.bf16.msra.mxu0 %v6309
    %6541 = vmatprep.subr.bf16.mxu0 %v6314
    %6542 = vmatpush1.bf16.msra.mxu0 %v6313
    %6543 = vmatprep.subr.bf16.mxu0 %v6318
    %6544 = vmatpush1.bf16.msra.mxu0 %v6317
    %6545 = vmatprep.subr.bf16.mxu0 %v6322
    %6546 = vmatpush1.bf16.msra.mxu0 %v6321
    %6547 = vmatprep.subr.bf16.mxu0 %v6326
    %6548 = vmatpush1.bf16.msra.mxu0 %v6325
    %6549 = vmatprep.subr.bf16.mxu0 %v6330
    %6550 = vmatpush1.bf16.msra.mxu0 %v6329
    %6551 = vmatprep.subr.bf16.mxu0 %v6334
    %6552 = vmatpush1.bf16.msra.mxu0 %v6333
    %6553 = vmatprep.subr.bf16.mxu0 %v6338
    %6554 = vmatpush1.bf16.msra.mxu0 %v6337
    %6555 = vmatprep.subr.bf16.mxu0 %v6342
    %6556 = vmatpush1.bf16.msra.mxu0 %v6341
    %6557 = vmatprep.subr.bf16.mxu0 %v6346
    %6558 = vmatpush1.bf16.msra.mxu0 %v6345
    %6559 = vmatprep.subr.bf16.mxu0 %v6350
    %6560 = vmatpush1.bf16.msra.mxu0 %v6349
    %6561 = vmatprep.subr.bf16.mxu0 %v6354
    %6562 = vmatpush1.bf16.msra.mxu0 %v6353
    %6563 = vmatprep.subr.bf16.mxu0 %v6358
    %6564 = vmatpush1.bf16.msra.mxu0 %v6357
    %6565 = vmatprep.subr.bf16.mxu0 %v6362
    %6566 = vmatpush1.bf16.msra.mxu0 %v6361
    %6567 = vmatprep.subr.bf16.mxu0 %v6366
    %6568 = vmatpush1.bf16.msra.mxu0 %v6365
    %6569 = vmatprep.subr.bf16.mxu0 %v6370
    %6570 = vmatpush1.bf16.msra.mxu0 %v6369
    %6571 = vmatprep.mubr.bf16.mxu0 %v6306
    %6572 = vmatmul.mubr.bf16.gmra.mrb[0].mxu0 %v6305
    %v6573 = vpop.f32.mrb[0].mxu0
    %v6574 = vadd.f32 %v6448, %v6573
    %v6575 = vpop.f32.mrb[0].mxu0
    %v6576 = vadd.f32 %v6452, %v6575
    %v6577 = vpop.f32.mrb[0].mxu0
    %v6578 = vpop.f32.mrb[0].mxu0
    %6579 = vdwg.mxu0
    %6580 = vmatprep.subr.bf16.mxu0 %v6374
    %6581 = vmatpush1.bf16.msra.mxu0 %v6373
    %6582 = vmatprep.subr.bf16.mxu0 %v6378
    %6583 = vmatpush1.bf16.msra.mxu0 %v6377
    %6584 = vmatprep.subr.bf16.mxu0 %v6382
    %6585 = vmatpush1.bf16.msra.mxu0 %v6381
    %6586 = vmatprep.subr.bf16.mxu0 %v6386
    %6587 = vmatpush1.bf16.msra.mxu0 %v6385
    %6588 = vmatprep.subr.bf16.mxu0 %v6390
    %6589 = vmatpush1.bf16.msra.mxu0 %v6389
    %6590 = vmatprep.subr.bf16.mxu0 %v6394
    %6591 = vmatpush1.bf16.msra.mxu0 %v6393
    %6592 = vmatprep.subr.bf16.mxu0 %v6398
    %6593 = vmatpush1.bf16.msra.mxu0 %v6397
    %6594 = vmatprep.subr.bf16.mxu0 %v6402
    %6595 = vmatpush1.bf16.msra.mxu0 %v6401
    %6596 = vmatprep.subr.bf16.mxu0 %v6406
    %6597 = vmatpush1.bf16.msra.mxu0 %v6405
    %6598 = vmatprep.subr.bf16.mxu0 %v6410
    %6599 = vmatpush1.bf16.msra.mxu0 %v6409
    %6600 = vmatprep.subr.bf16.mxu0 %v6414
    %6601 = vmatpush1.bf16.msra.mxu0 %v6413
    %6602 = vmatprep.subr.bf16.mxu0 %v6418
    %6603 = vmatpush1.bf16.msra.mxu0 %v6417
    %6604 = vmatprep.subr.bf16.mxu0 %v6422
    %6605 = vmatpush1.bf16.msra.mxu0 %v6421
    %6606 = vmatprep.subr.bf16.mxu0 %v6426
    %6607 = vmatpush1.bf16.msra.mxu0 %v6425
    %6608 = vmatprep.subr.bf16.mxu0 %v6430
    %6609 = vmatpush1.bf16.msra.mxu0 %v6429
    %6610 = vmatprep.subr.bf16.mxu0 %v6434
    %6611 = vmatpush1.bf16.msra.mxu0 %v6433
    %6612 = vmatprep.mubr.bf16.mxu0 %v6030
    %6613 = vmatmul.mubr.bf16.gmra.mrb[0].mxu0 %v6029
    %v6614 = vpop.f32.mrb[0].mxu0
    %v6615 = vadd.f32 %v6574, %v6614
    %v6616 = vpop.f32.mrb[0].mxu0
    %v6617 = vadd.f32 %v6576, %v6616
    %v6618 = vpop.f32.mrb[0].mxu0
    %v6619 = vpop.f32.mrb[0].mxu0
    %6620 = vdwg.mxu0
    %vm6621 = vcmp.ge.f32.partialorder %v6533, 0.0
    %vm6622 = vcmp.ge.f32.partialorder %v6535, 0.0
    %vm6623 = vcmp.ge.f32.partialorder %v6615, 0.0
    %vm6624 = vcmp.ge.f32.partialorder %v6617, 0.0
    %v6625 = vmul.f32 %v6533, 0.2
    %v6626 = vmul.f32 %v6535, 0.2
    %v6627 = vmul.f32 %v6615, 0.2
    %v6628 = vmul.f32 %v6617, 0.2
    %v6629 = vsel %vm6621, %v6533, %v6625
    %v6630 = vsel %vm6622, %v6535, %v6626
    %v6631 = vsel %vm6623, %v6615, %v6627
    %v6632 = vsel %vm6624, %v6617, %v6628
    %v6633 = vpack.c.bf16 %v6629, %v6629
    %v6634 = vpack.c.bf16 %v6630, %v6630
    %v6635 = vpack.c.bf16 %v6631, %v6631
    %v6636 = vpack.c.bf16 %v6632, %v6632
    %v6637 = vld [vmem:[%s10] sm:$0xf]
    %v6638 = vld [vmem:[%s10 + $0x4] sm:$0xf]
    %v6639 = vld [vmem:[%s10 + $0x8] sm:$0xf]
    %v6640 = vld [vmem:[%s10 + $0xc] sm:$0xf]
    %v6641 = vld [vmem:[%s10 + $0x10] sm:$0xf]
    %v6642 = vld [vmem:[%s10 + $0x14] sm:$0xf]
    %v6643 = vld [vmem:[%s10 + $0x18] sm:$0xf]
    %v6644 = vld [vmem:[%s10 + $0x1c] sm:$0xf]
    %v6645 = vld [vmem:[%s10 + $0x20] sm:$0xf]
    %v6646 = vld [vmem:[%s10 + $0x24] sm:$0xf]
    %v6647 = vld [vmem:[%s10 + $0x28] sm:$0xf]
    %v6648 = vld [vmem:[%s10 + $0x2c] sm:$0xf]
    %v6649 = vld [vmem:[%s10 + $0x30] sm:$0xf]
    %v6650 = vld [vmem:[%s10 + $0x34] sm:$0xf]
    %v6651 = vld [vmem:[%s10 + $0x38] sm:$0xf]
    %v6652 = vld [vmem:[%s10 + $0x3c] sm:$0xf]
    %v6653 = vld [vmem:[%s10 + $0x40] sm:$0xf]
    %v6654 = vld [vmem:[%s10 + $0x44] sm:$0xf]
    %v6655 = vld [vmem:[%s10 + $0x48] sm:$0xf]
    %v6656 = vld [vmem:[%s10 + $0x4c] sm:$0xf]
    %v6657 = vld [vmem:[%s10 + $0x50] sm:$0xf]
    %v6658 = vld [vmem:[%s10 + $0x54] sm:$0xf]
    %v6659 = vld [vmem:[%s10 + $0x58] sm:$0xf]
    %v6660 = vld [vmem:[%s10 + $0x5c] sm:$0xf]
    %v6661 = vld [vmem:[%s10 + $0x60] sm:$0xf]
    %v6662 = vld [vmem:[%s10 + $0x64] sm:$0xf]
    %v6663 = vld [vmem:[%s10 + $0x68] sm:$0xf]
    %v6664 = vld [vmem:[%s10 + $0x6c] sm:$0xf]
    %v6665 = vld [vmem:[%s10 + $0x70] sm:$0xf]
    %v6666 = vld [vmem:[%s10 + $0x74] sm:$0xf]
    %v6667 = vld [vmem:[%s10 + $0x78] sm:$0xf]
    %v6668 = vld [vmem:[%s10 + $0x7c] sm:$0xf]
    %v6669 = vld [vmem:[%s10 + $0x80] sm:$0xf]
    %v6670 = vld [vmem:[%s10 + $0x84] sm:$0xf]
    %v6671 = vld [vmem:[%s10 + $0x88] sm:$0xf]
    %v6672 = vld [vmem:[%s10 + $0x8c] sm:$0xf]
    %v6673 = vld [vmem:[%s10 + $0x90] sm:$0xf]
    %v6674 = vld [vmem:[%s10 + $0x94] sm:$0xf]
    %v6675 = vld [vmem:[%s10 + $0x98] sm:$0xf]
    %v6676 = vld [vmem:[%s10 + $0x9c] sm:$0xf]
    %v6677 = vld [vmem:[%s10 + $0xa0] sm:$0xf]
    %v6678 = vld [vmem:[%s10 + $0xa4] sm:$0xf]
    %v6679 = vld [vmem:[%s10 + $0xa8] sm:$0xf]
    %v6680 = vld [vmem:[%s10 + $0xac] sm:$0xf]
    %v6681 = vld [vmem:[%s10 + $0xb0] sm:$0xf]
    %v6682 = vld [vmem:[%s10 + $0xb4] sm:$0xf]
    %v6683 = vld [vmem:[%s10 + $0xb8] sm:$0xf]
    %v6684 = vld [vmem:[%s10 + $0xbc] sm:$0xf]
    %v6685 = vld [vmem:[%s10 + $0xc0] sm:$0xf]
    %v6686 = vld [vmem:[%s10 + $0xc4] sm:$0xf]
    %v6687 = vld [vmem:[%s10 + $0xc8] sm:$0xf]
    %v6688 = vld [vmem:[%s10 + $0xcc] sm:$0xf]
    %v6689 = vld [vmem:[%s10 + $0xd0] sm:$0xf]
    %v6690 = vld [vmem:[%s10 + $0xd4] sm:$0xf]
    %v6691 = vld [vmem:[%s10 + $0xd8] sm:$0xf]
    %v6692 = vld [vmem:[%s10 + $0xdc] sm:$0xf]
    %v6693 = vld [vmem:[%s10 + $0xe0] sm:$0xf]
    %v6694 = vld [vmem:[%s10 + $0xe4] sm:$0xf]
    %v6695 = vld [vmem:[%s10 + $0xe8] sm:$0xf]
    %v6696 = vld [vmem:[%s10 + $0xec] sm:$0xf]
    %v6697 = vld [vmem:[%s10 + $0xf0] sm:$0xf]
    %v6698 = vld [vmem:[%s10 + $0xf4] sm:$0xf]
    %v6699 = vld [vmem:[%s10 + $0xf8] sm:$0xf]
    %v6700 = vld [vmem:[%s10 + $0xfc] sm:$0xf]
    %v6701 = vld [vmem:[%s11] sm:$0x1]
    %v6703 = vlaneseq
    %v6704 = vshrl.u32 %v6703, 7
    %v6705 = vsub.s32 0, %v6704
    %v6706 = vrot.slane %v6701, %v6705
    %v6772 = vunpack.c.l.b16 %v6637
    %v6773 = vunpack.c.l.b16 %v6638
    %v6774 = vunpack.c.l.b16 %v6639
    %v6775 = vunpack.c.l.b16 %v6640
    %v6776 = vunpack.c.l.b16 %v6641
    %v6777 = vunpack.c.l.b16 %v6642
    %v6778 = vunpack.c.l.b16 %v6643
    %v6779 = vunpack.c.l.b16 %v6644
    %v6780 = vunpack.c.l.b16 %v6645
    %v6781 = vunpack.c.l.b16 %v6646
    %v6782 = vunpack.c.l.b16 %v6647
    %v6783 = vunpack.c.l.b16 %v6648
    %v6784 = vunpack.c.l.b16 %v6649
    %v6785 = vunpack.c.l.b16 %v6650
    %v6786 = vunpack.c.l.b16 %v6651
    %v6787 = vunpack.c.l.b16 %v6652
    %v6788 = vunpack.c.l.b16 %v6653
    %v6789 = vunpack.c.l.b16 %v6654
    %v6790 = vunpack.c.l.b16 %v6655
    %v6791 = vunpack.c.l.b16 %v6656
    %v6792 = vunpack.c.l.b16 %v6657
    %v6793 = vunpack.c.l.b16 %v6658
    %v6794 = vunpack.c.l.b16 %v6659
    %v6795 = vunpack.c.l.b16 %v6660
    %v6796 = vunpack.c.l.b16 %v6661
    %v6797 = vunpack.c.l.b16 %v6662
    %v6798 = vunpack.c.l.b16 %v6663
    %v6799 = vunpack.c.l.b16 %v6664
    %v6800 = vunpack.c.l.b16 %v6665
    %v6801 = vunpack.c.l.b16 %v6666
    %v6802 = vunpack.c.l.b16 %v6667
    %v6803 = vunpack.c.l.b16 %v6668
    %v6804 = vunpack.c.l.b16 %v6669
    %v6805 = vunpack.c.l.b16 %v6670
    %v6806 = vunpack.c.l.b16 %v6671
    %v6807 = vunpack.c.l.b16 %v6672
    %v6808 = vunpack.c.l.b16 %v6673
    %v6809 = vunpack.c.l.b16 %v6674
    %v6810 = vunpack.c.l.b16 %v6675
    %v6811 = vunpack.c.l.b16 %v6676
    %v6812 = vunpack.c.l.b16 %v6677
    %v6813 = vunpack.c.l.b16 %v6678
    %v6814 = vunpack.c.l.b16 %v6679
    %v6815 = vunpack.c.l.b16 %v6680
    %v6816 = vunpack.c.l.b16 %v6681
    %v6817 = vunpack.c.l.b16 %v6682
    %v6818 = vunpack.c.l.b16 %v6683
    %v6819 = vunpack.c.l.b16 %v6684
    %v6820 = vunpack.c.l.b16 %v6685
    %v6821 = vunpack.c.l.b16 %v6686
    %v6822 = vunpack.c.l.b16 %v6687
    %v6823 = vunpack.c.l.b16 %v6688
    %v6824 = vunpack.c.l.b16 %v6689
    %v6825 = vunpack.c.l.b16 %v6690
    %v6826 = vunpack.c.l.b16 %v6691
    %v6827 = vunpack.c.l.b16 %v6692
    %v6828 = vunpack.c.l.b16 %v6693
    %v6829 = vunpack.c.l.b16 %v6694
    %v6830 = vunpack.c.l.b16 %v6695
    %v6831 = vunpack.c.l.b16 %v6696
    %v6832 = vunpack.c.l.b16 %v6697
    %v6833 = vunpack.c.l.b16 %v6698
    %v6834 = vunpack.c.l.b16 %v6699
    %v6835 = vunpack.c.l.b16 %v6700
    %v6836 = vpack.c.b16 %v6773, %v6772
    %v6837 = vpack.c.b16 %v6775, %v6774
    %v6838 = vpack.c.b16 %v6777, %v6776
    %v6839 = vpack.c.b16 %v6779, %v6778
    %v6840 = vpack.c.b16 %v6781, %v6780
    %v6841 = vpack.c.b16 %v6783, %v6782
    %v6842 = vpack.c.b16 %v6785, %v6784
    %v6843 = vpack.c.b16 %v6787, %v6786
    %v6844 = vpack.c.b16 %v6789, %v6788
    %v6845 = vpack.c.b16 %v6791, %v6790
    %v6846 = vpack.c.b16 %v6793, %v6792
    %v6847 = vpack.c.b16 %v6795, %v6794
    %v6848 = vpack.c.b16 %v6797, %v6796
    %v6849 = vpack.c.b16 %v6799, %v6798
    %v6850 = vpack.c.b16 %v6801, %v6800
    %v6851 = vpack.c.b16 %v6803, %v6802
    %v6852 = vpack.c.b16 %v6805, %v6804
    %v6853 = vpack.c.b16 %v6807, %v6806
    %v6854 = vpack.c.b16 %v6809, %v6808
    %v6855 = vpack.c.b16 %v6811, %v6810
    %v6856 = vpack.c.b16 %v6813, %v6812
    %v6857 = vpack.c.b16 %v6815, %v6814
    %v6858 = vpack.c.b16 %v6817, %v6816
    %v6859 = vpack.c.b16 %v6819, %v6818
    %v6860 = vpack.c.b16 %v6821, %v6820
    %v6861 = vpack.c.b16 %v6823, %v6822
    %v6862 = vpack.c.b16 %v6825, %v6824
    %v6863 = vpack.c.b16 %v6827, %v6826
    %v6864 = vpack.c.b16 %v6829, %v6828
    %v6865 = vpack.c.b16 %v6831, %v6830
    %v6866 = vpack.c.b16 %v6833, %v6832
    %v6867 = vpack.c.b16 %v6835, %v6834
    %6900 = vmatprep.subr.bf16.mxu0 0
    %6901 = vmatpush1.bf16.msra.mxu0 %v6836
    %6902 = vmatprep.subr.bf16.mxu0 0
    %6903 = vmatpush1.bf16.msra.mxu0 %v6837
    %6904 = vmatprep.subr.bf16.mxu0 0
    %6905 = vmatpush1.bf16.msra.mxu0 %v6838
    %6906 = vmatprep.subr.bf16.mxu0 0
    %6907 = vmatpush1.bf16.msra.mxu0 %v6839
    %6908 = vmatprep.subr.bf16.mxu0 0
    %6909 = vmatpush1.bf16.msra.mxu0 %v6840
    %6910 = vmatprep.subr.bf16.mxu0 0
    %6911 = vmatpush1.bf16.msra.mxu0 %v6841
    %6912 = vmatprep.subr.bf16.mxu0 0
    %6913 = vmatpush1.bf16.msra.mxu0 %v6842
    %6914 = vmatprep.subr.bf16.mxu0 0
    %6915 = vmatpush1.bf16.msra.mxu0 %v6843
    %6916 = vmatprep.subr.bf16.mxu0 0
    %6917 = vmatpush1.bf16.msra.mxu0 %v6844
    %6918 = vmatprep.subr.bf16.mxu0 0
    %6919 = vmatpush1.bf16.msra.mxu0 %v6845
    %6920 = vmatprep.subr.bf16.mxu0 0
    %6921 = vmatpush1.bf16.msra.mxu0 %v6846
    %6922 = vmatprep.subr.bf16.mxu0 0
    %6923 = vmatpush1.bf16.msra.mxu0 %v6847
    %6924 = vmatprep.subr.bf16.mxu0 0
    %6925 = vmatpush1.bf16.msra.mxu0 %v6848
    %6926 = vmatprep.subr.bf16.mxu0 0
    %6927 = vmatpush1.bf16.msra.mxu0 %v6849
    %6928 = vmatprep.subr.bf16.mxu0 0
    %6929 = vmatpush1.bf16.msra.mxu0 %v6850
    %6930 = vmatprep.subr.bf16.mxu0 0
    %6931 = vmatpush1.bf16.msra.mxu0 %v6851
    %6932 = vmatprep.mubr.bf16.mxu0 %v6634
    %6933 = vmatmul.mubr.bf16.gmra.mrb[0].mxu0 %v6633
    %v6934 = vpop.f32.mrb[0].mxu0
    %v6935 = vadd.f32 %v6706, %v6934
    %v6936 = vpop.f32.mrb[0].mxu0
    %v6937 = vpop.f32.mrb[0].mxu0
    %v6938 = vpop.f32.mrb[0].mxu0
    %6939 = vdwg.mxu0
    %6940 = vmatprep.subr.bf16.mxu0 0
    %6941 = vmatpush1.bf16.msra.mxu0 %v6852
    %6942 = vmatprep.subr.bf16.mxu0 0
    %6943 = vmatpush1.bf16.msra.mxu0 %v6853
    %6944 = vmatprep.subr.bf16.mxu0 0
    %6945 = vmatpush1.bf16.msra.mxu0 %v6854
    %6946 = vmatprep.subr.bf16.mxu0 0
    %6947 = vmatpush1.bf16.msra.mxu0 %v6855
    %6948 = vmatprep.subr.bf16.mxu0 0
    %6949 = vmatpush1.bf16.msra.mxu0 %v6856
    %6950 = vmatprep.subr.bf16.mxu0 0
    %6951 = vmatpush1.bf16.msra.mxu0 %v6857
    %6952 = vmatprep.subr.bf16.mxu0 0
    %6953 = vmatpush1.bf16.msra.mxu0 %v6858
    %6954 = vmatprep.subr.bf16.mxu0 0
    %6955 = vmatpush1.bf16.msra.mxu0 %v6859
    %6956 = vmatprep.subr.bf16.mxu0 0
    %6957 = vmatpush1.bf16.msra.mxu0 %v6860
    %6958 = vmatprep.subr.bf16.mxu0 0
    %6959 = vmatpush1.bf16.msra.mxu0 %v6861
    %6960 = vmatprep.subr.bf16.mxu0 0
    %6961 = vmatpush1.bf16.msra.mxu0 %v6862
    %6962 = vmatprep.subr.bf16.mxu0 0
    %6963 = vmatpush1.bf16.msra.mxu0 %v6863
    %6964 = vmatprep.subr.bf16.mxu0 0
    %6965 = vmatpush1.bf16.msra.mxu0 %v6864
    %6966 = vmatprep.subr.bf16.mxu0 0
    %6967 = vmatpush1.bf16.msra.mxu0 %v6865
    %6968 = vmatprep.subr.bf16.mxu0 0
    %6969 = vmatpush1.bf16.msra.mxu0 %v6866
    %6970 = vmatprep.subr.bf16.mxu0 0
    %6971 = vmatpush1.bf16.msra.mxu0 %v6867
    %6972 = vmatprep.mubr.bf16.mxu0 %v6636
    %6973 = vmatmul.mubr.bf16.gmra.mrb[0].mxu0 %v6635
    %v6974 = vpop.f32.mrb[0].mxu0
    %v6975 = vadd.f32 %v6935, %v6974
    %v6976 = vpop.f32.mrb[0].mxu0
    %v6977 = vpop.f32.mrb[0].mxu0
    %v6978 = vpop.f32.mrb[0].mxu0
    %6979 = vdwg.mxu0
    %v6980 = vxor.u32 %v6975, 2147483648
    %v6981 = vmul.f32 %v6980, 1.442695
    %v6982 = vpow.pop %v6981
    %v6983 = vadd.f32 %v6982, 1.0
    %v6984 = vrcp.pop %v6983
    %v6985 = vmul.f32 1.0, %v6984
    %6986 = vst.msk [vmem:[#allocation18] sm:$0x3] %vm6197, %v6985
    // Predicated region
    $region107: #{multi_intent_forward.1} parent=1 // pred_check
      _
    $region108: #{multi_intent_forward.1} parent=1 // pred_check_branch
      %6988 = sbr.rel (0) target = $region110
    $region109: #{multi_intent_forward.1} parent=1 // pred_region
      %s6990 = ssub.s32 32, 32
      %6991 = vsyncadd [#allocation11], %s6990
      %s6993 = sshll.u32 [#allocation18], 4
      %s6994 = int_to_ptr.vmem [resolvable:$true] %s6993
      %6996 = dma.vmem_to_hbm [thread:$0]  %s6994, 32, %s16, [#allocation11]
    $region110: #{multi_intent_forward.1} parent=1 // pred_fallthru
      _
    // Predicated region
    $region111: #{multi_intent_forward.1} parent=1 // pred_check
      _
    $region112: #{multi_intent_forward.1} parent=1 // pred_check_branch
      %6998 = sbr.rel (0) target = $region114
    $region113: #{multi_intent_forward.1} parent=1 // pred_region
      %6999 = dma.done [#allocation11], 32
    $region114: #{multi_intent_forward.1} parent=1 // pred_fallthru
      _
    %7000 = vsyncpa [#allocation10], 1
    %7001 = vsyncpa [#allocation13], 1
    %7002 = vsyncpa [#allocation16], 1
    %7003 = vsyncpa [#allocation11], 1
  %7004 = vsyncmov [#allocation8]
  %s7005 = vpop.sfrf %7004
  %p7006 = scmp.eq.s32.totalorder %s7005, 0
  %p7007 = pneg %p7006
  %7009 = shalt.err (%p7007)
  %s7010 = scalar_lea.sflag [#allocation8], 1
  %7011 = vsyncmov %s7010
  %s7012 = vpop.sfrf %7011
  %p7013 = scmp.eq.s32.totalorder %s7012, 0
  %p7014 = pneg %p7013
  %7016 = shalt.err (%p7014)
  %s7017 = scalar_lea.sflag [#allocation8], 2
  %7018 = vsyncmov %s7017
  %s7019 = vpop.sfrf %7018
  %p7020 = scmp.eq.s32.totalorder %s7019, 0
  %p7021 = pneg %p7020
  %7023 = shalt.err (%p7021)
  %s7024 = scalar_lea.sflag [#allocation8], 3
  %7025 = vsyncmov %s7024
  %s7026 = vpop.sfrf %7025
  %p7027 = scmp.eq.s32.totalorder %s7026, 0
  %p7028 = pneg %p7027
  %7030 = shalt.err (%p7028)

</llo_original>
